<compile_context>
chip_gen: v7x
topology: tpu7x:2x2x1
jax: 0.10.0
libtpu: 0.0.40
codegen_flags: <defaults>
</compile_context>

<pallas_src>
import functools

import jax
import jax.numpy as jnp
from jax import lax
from jax.experimental import pallas as pl
from jax.experimental.pallas import tpu as pltpu

BN_EPS = 1e-5
VMEM_LIMIT = 32 * 1024 * 1024   # explicit scoped-VMEM cap, safe on v5e/v6e/v7x


def _prologue_dtype():
    """bf16 fused scale/shift/relu on chips with a bf16 VALU (v6e/v7x), f32 on v5e."""
    try:
        kind = jax.devices()[0].device_kind.lower()
    except Exception:
        return jnp.bfloat16
    if "v5 lite" in kind or "v5lite" in kind or "v5e" in kind:
        return jnp.float32
    return jnp.bfloat16


PROLOGUE_DTYPE = _prologue_dtype()


# ---------------------------------------------------------------------------
# Tiling helpers (never fall back to a single giant tile)
# ---------------------------------------------------------------------------
def _divisor_tile(n, cap, quantum):
    """Largest multiple-of-quantum divisor of n that is <= cap, or None."""
    best, t = None, quantum
    while t <= min(cap, n):
        if n % t == 0:
            best = t
        t += quantum
    return best


def _row_tiling(r, cap=2048):
    """Row tile for flattened (R, C) matmuls; R is always a multiple of 8 here."""
    t = _divisor_tile(r, cap, 8)
    return t if t is not None else min(r, 8)


def _point_tiling(n, cap=1024):
    """Returns (tile, padded_n).  tile is a multiple of 128 or equal to padded_n,
    so lane-dense transposed (C, tile) output blocks are always legal."""
    t = _divisor_tile(n, cap, 128)
    if t is not None:
        return t, n
    if n <= cap:
        n_pad = ((n + 7) // 8) * 8          # single point tile == full padded dim
        return n_pad, n_pad
    tile = (cap // 128) * 128
    n_pad = ((n + tile - 1) // tile) * tile
    return tile, n_pad


# ---------------------------------------------------------------------------
# Kernels
# ---------------------------------------------------------------------------
def _mm_stats_kernel(*refs, apply_act, masked, n_valid, period):
    """[fused prev-layer BN+relu] -> matmul -> pre-BN output + per-tile stats."""
    if apply_act:
        x_ref, scale_ref, shift_ref, w_ref, y_ref, st_ref = refs
        h = x_ref[...] * scale_ref[...] + shift_ref[...]      # bf16 or f32 prologue
        h = jnp.maximum(h, 0.0).astype(jnp.bfloat16)
    else:
        x_ref, w_ref, y_ref, st_ref = refs
        h = x_ref[...].astype(jnp.bfloat16)
    acc = jnp.dot(h, w_ref[...], preferred_element_type=jnp.float32)   # (TR, Cout) f32
    y_ref[...] = acc.astype(y_ref.dtype)
    sacc = acc
    if masked:   # padded rows (flattened B*N layout, period = padded N) excluded from stats
        tr = acc.shape[0]
        rows = pl.program_id(0) * tr + lax.broadcasted_iota(jnp.int32, (tr, 1), 0)
        sacc = jnp.where((rows % period) < n_valid, acc, 0.0)
    st_ref[0] = jnp.concatenate(
        [jnp.sum(sacc, axis=0, keepdims=True),
         jnp.sum(sacc * sacc, axis=0, keepdims=True)], axis=0)         # (2, Cout)


def _bmm_conv_stats_kernel(x_ref, t_ref, w_ref, xt_ref, y_ref, st_ref, *,
                           masked, n_valid):
    """Per-batch (points @ input_T) fused with conv_1; the transformed points are
    written transposed (D, tile_n) so tnet_out lands lane-dense in (B, D, N)."""
    xt = jnp.dot(x_ref[0].astype(jnp.bfloat16), t_ref[0],
                 preferred_element_type=jnp.float32)                   # (TN, D)
    xt_ref[0] = xt.T.astype(xt_ref.dtype)                              # (D, TN) lane-dense
    acc = jnp.dot(xt.astype(jnp.bfloat16), w_ref[...],
                  preferred_element_type=jnp.float32)                  # (TN, Cout)
    y_ref[0] = acc.astype(y_ref.dtype)
    sacc = acc
    if masked:
        tn = acc.shape[0]
        rows = pl.program_id(1) * tn + lax.broadcasted_iota(jnp.int32, (tn, 1), 0)
        sacc = jnp.where(rows < n_valid, acc, 0.0)
    st_ref[0] = jnp.concatenate(
        [jnp.sum(sacc, axis=0, keepdims=True),
         jnp.sum(sacc * sacc, axis=0, keepdims=True)], axis=0)


def _bdot_stats_kernel(x_ref, w_ref, y_ref, st_ref, *, masked, n_valid):
    """Single per-batch dot (feature transform pre-folded into the conv weights)."""
    acc = jnp.dot(x_ref[0], w_ref[0], preferred_element_type=jnp.float32)
    y_ref[0] = acc.astype(y_ref.dtype)
    sacc = acc
    if masked:
        tn = acc.shape[0]
        rows = pl.program_id(1) * tn + lax.broadcasted_iota(jnp.int32, (tn, 1), 0)
        sacc = jnp.where(rows < n_valid, acc, 0.0)
    st_ref[0] = jnp.concatenate(
        [jnp.sum(sacc, axis=0, keepdims=True),
         jnp.sum(sacc * sacc, axis=0, keepdims=True)], axis=0)


def _norm_relu_kernel(x_ref, scale_ref, shift_ref, o_ref):
    h = x_ref[...] * scale_ref[...] + shift_ref[...]
    o_ref[...] = jnp.maximum(h, 0.0).astype(o_ref.dtype)


def _norm_relu_maxpool_kernel(y_ref, scale_ref, shift_ref, o_ref, *, masked, n_valid):
    """relu(bn(y)) then running max over the point-tile axis (resident accumulator).
    Grid = (batch, channel-chunk, point-tile); only the last axis is a reduction."""
    h = y_ref[0].astype(jnp.float32) * scale_ref[...] + shift_ref[...]
    h = jnp.maximum(h, 0.0)
    if masked:   # padded points contribute 0, which is neutral for max of relu(.) >= 0
        tn = h.shape[0]
        rows = pl.program_id(2) * tn + lax.broadcasted_iota(jnp.int32, (tn, 1), 0)
        h = jnp.where(rows < n_valid, h, 0.0)

    @pl.when(pl.program_id(2) == 0)
    def _():
        # relu output is >= 0, so zero-init is equivalent to a -inf init here.
        o_ref[...] = jnp.zeros_like(o_ref)

    o_ref[0] = jnp.maximum(o_ref[0], jnp.max(h, axis=0, keepdims=True))


def _norm_relu_transpose_kernel(y_ref, scale_ref, shift_ref, o_ref):
    """relu(bn(y)) and write the (C, N) torch-NCW tile directly (lane-dense)."""
    h = y_ref[0].astype(jnp.float32) * scale_ref[...] + shift_ref[...]
    h = jnp.maximum(h, 0.0)                                            # (TN, C)
    # TODO(synk): if the XLU slot binds here, split the transpose into 128-column chunks.
    o_ref[0] = h.T                                                     # (C, TN)


def _fc_head_kernel(p_ref, w1_ref, g4_ref, b4_ref, w2_ref, g5_ref, b5_ref,
                    w3_ref, b3_ref, o_ref):
    """fc1+bn4+relu -> fc2+bn5+relu -> fc3(+bias), fused in one block.
    bf16 weights / MXU inputs, f32 accumulation and BN math."""
    def bn_relu(y, g, b):
        mean = jnp.mean(y, axis=0, keepdims=True)
        var = jnp.mean((y - mean) ** 2, axis=0, keepdims=True)
        scale = g * lax.rsqrt(var + BN_EPS)
        return jnp.maximum(y * scale + (b - mean * scale), 0.0)

    y = jnp.dot(p_ref[...].astype(jnp.bfloat16), w1_ref[...],
                preferred_element_type=jnp.float32)
    y = bn_relu(y, g4_ref[...], b4_ref[...])
    y = jnp.dot(y.astype(jnp.bfloat16), w2_ref[...],
                preferred_element_type=jnp.float32)
    y = bn_relu(y, g5_ref[...], b5_ref[...])
    o_ref[...] = jnp.dot(y.astype(jnp.bfloat16), w3_ref[...],
                         preferred_element_type=jnp.float32) + b3_ref[...]


# ---------------------------------------------------------------------------
# pallas_call wrappers
# ---------------------------------------------------------------------------
def matmul_stats(x, w_bf16, scale=None, shift=None, *, n_valid, period, tile_rows=2048):
    """Row-tiled matmul with optional fused prev-layer BN+relu on the input.
    Returns (pre-BN activation bf16 (R, Cout), global stats f32 (2, Cout))."""
    R, cin = x.shape
    cout = w_bf16.shape[1]
    tr = _row_tiling(R, tile_rows)
    grid = (R // tr,)
    apply_act = scale is not None
    masked = period != n_valid

    in_specs = [pl.BlockSpec((tr, cin), lambda i: (i, 0))]
    args = [x]
    if apply_act:
        in_specs += [pl.BlockSpec((1, cin), lambda i: (0, 0)),
                     pl.BlockSpec((1, cin), lambda i: (0, 0))]
        args += [scale.astype(PROLOGUE_DTYPE), shift.astype(PROLOGUE_DTYPE)]
    in_specs += [pl.BlockSpec((cin, cout), lambda i: (0, 0))]          # resident weights
    args += [w_bf16]

    y, st = pl.pallas_call(
        functools.partial(_mm_stats_kernel, apply_act=apply_act,
                          masked=masked, n_valid=n_valid, period=period),
        grid=grid,
        in_specs=in_specs,
        out_specs=[pl.BlockSpec((tr, cout), lambda i: (i, 0)),
                   pl.BlockSpec((1, 2, cout), lambda i: (i, 0, 0))],
        out_shape=[jax.ShapeDtypeStruct((R, cout), jnp.bfloat16),
                   jax.ShapeDtypeStruct((grid[0], 2, cout), jnp.float32)],
        compiler_params=pltpu.CompilerParams(
            dimension_semantics=("parallel",),
            vmem_limit_bytes=VMEM_LIMIT),
    )(*args)
    return y, jnp.sum(st, axis=0)


def bmm_conv1_stats(x, t_bf16, w_bf16, *, n_valid, tile_n):
    """torch.bmm(x, input_T) fused with conv_1; also emits the transformed points
    already transposed into the torch (B, D, N) layout (tnet_out)."""
    B, Np, D = x.shape
    cout = w_bf16.shape[1]
    tn = tile_n
    ntiles = Np // tn
    masked = n_valid != Np

    xt_t, y, st = pl.pallas_call(
        functools.partial(_bmm_conv_stats_kernel, masked=masked, n_valid=n_valid),
        grid=(B, ntiles),
        in_specs=[pl.BlockSpec((1, tn, D), lambda b, n: (b, n, 0)),
                  pl.BlockSpec((1, D, D), lambda b, n: (b, 0, 0)),
                  pl.BlockSpec((D, cout), lambda b, n: (0, 0))],
        out_specs=[pl.BlockSpec((1, D, tn), lambda b, n: (b, 0, n)),
                   pl.BlockSpec((1, tn, cout), lambda b, n: (b, n, 0)),
                   pl.BlockSpec((1, 2, cout), lambda b, n: (b * ntiles + n, 0, 0))],
        out_shape=[jax.ShapeDtypeStruct((B, D, Np), jnp.float32),
                   jax.ShapeDtypeStruct((B, Np, cout), jnp.bfloat16),
                   jax.ShapeDtypeStruct((B * ntiles, 2, cout), jnp.float32)],
        compiler_params=pltpu.CompilerParams(
            dimension_semantics=("parallel", "parallel"),
            vmem_limit_bytes=VMEM_LIMIT),
    )(x, t_bf16, w_bf16)
    return xt_t, y, jnp.sum(st, axis=0)


def bdot_stats(x, w_batched_bf16, *, n_valid, tile_n):
    """Per-batch matmul with pre-folded (feature_T @ conv_3) weights."""
    B, Np, cin = x.shape
    cout = w_batched_bf16.shape[2]
    tn = tile_n
    ntiles = Np // tn
    masked = n_valid != Np

    y, st = pl.pallas_call(
        functools.partial(_bdot_stats_kernel, masked=masked, n_valid=n_valid),
        grid=(B, ntiles),
        in_specs=[pl.BlockSpec((1, tn, cin), lambda b, n: (b, n, 0)),
                  pl.BlockSpec((1, cin, cout), lambda b, n: (b, 0, 0))],
        out_specs=[pl.BlockSpec((1, tn, cout), lambda b, n: (b, n, 0)),
                   pl.BlockSpec((1, 2, cout), lambda b, n: (b * ntiles + n, 0, 0))],
        out_shape=[jax.ShapeDtypeStruct((B, Np, cout), jnp.bfloat16),
                   jax.ShapeDtypeStruct((B * ntiles, 2, cout), jnp.float32)],
        compiler_params=pltpu.CompilerParams(
            dimension_semantics=("parallel", "parallel"),
            vmem_limit_bytes=VMEM_LIMIT),
    )(x, w_batched_bf16)
    return y, jnp.sum(st, axis=0)


def norm_relu(y, scale, shift, *, tile_rows=2048):
    R, C = y.shape
    tr = _row_tiling(R, tile_rows)
    return pl.pallas_call(
        _norm_relu_kernel, grid=(R // tr,),
        in_specs=[pl.BlockSpec((tr, C), lambda i: (i, 0)),
                  pl.BlockSpec((1, C), lambda i: (0, 0)),
                  pl.BlockSpec((1, C), lambda i: (0, 0))],
        out_specs=pl.BlockSpec((tr, C), lambda i: (i, 0)),
        out_shape=jax.ShapeDtypeStruct((R, C), jnp.bfloat16),
        compiler_params=pltpu.CompilerParams(
            dimension_semantics=("parallel",),
            vmem_limit_bytes=VMEM_LIMIT),
    )(y, scale.astype(PROLOGUE_DTYPE), shift.astype(PROLOGUE_DTYPE))


def norm_relu_maxpool(y3d, scale, shift, *, n_valid, tile_n):
    """relu(bn(y)) followed by MaxPool1d over points, tiled over (batch, channel
    chunk) in parallel and reducing over point tiles with a resident accumulator."""
    B, Np, C = y3d.shape
    tn = tile_n
    tc = 128 if C % 128 == 0 else C
    nc = C // tc
    nt = Np // tn
    masked = n_valid != Np

    pooled = pl.pallas_call(
        functools.partial(_norm_relu_maxpool_kernel, masked=masked, n_valid=n_valid),
        grid=(B, nc, nt),
        in_specs=[pl.BlockSpec((1, tn, tc), lambda b, c, i: (b, i, c)),
                  pl.BlockSpec((1, tc), lambda b, c, i: (0, c)),
                  pl.BlockSpec((1, tc), lambda b, c, i: (0, c))],
        out_specs=pl.BlockSpec((1, 1, tc), lambda b, c, i: (b, 0, c)),   # resident acc
        out_shape=jax.ShapeDtypeStruct((B, 1, C), jnp.float32),
        compiler_params=pltpu.CompilerParams(
            dimension_semantics=("parallel", "parallel", "arbitrary"),
            vmem_limit_bytes=VMEM_LIMIT),
    )(y3d, scale, shift)
    return pooled.reshape(B, C)


def norm_relu_transpose(y3d, scale, shift, *, tile_n):
    B, Np, C = y3d.shape
    tn = tile_n
    return pl.pallas_call(
        _norm_relu_transpose_kernel, grid=(B, Np // tn),
        in_specs=[pl.BlockSpec((1, tn, C), lambda b, i: (b, i, 0)),
                  pl.BlockSpec((1, C), lambda b, i: (0, 0)),
                  pl.BlockSpec((1, C), lambda b, i: (0, 0))],
        out_specs=pl.BlockSpec((1, C, tn), lambda b, i: (b, 0, i)),
        out_shape=jax.ShapeDtypeStruct((B, C, Np), jnp.float32),
        compiler_params=pltpu.CompilerParams(
            dimension_semantics=("parallel", "parallel"),
            vmem_limit_bytes=VMEM_LIMIT),
    )(y3d, scale, shift)


def fc_head(pooled, p):
    B = pooled.shape[0]
    K = p['fc3_w'].shape[1]
    return pl.pallas_call(
        _fc_head_kernel,
        out_shape=jax.ShapeDtypeStruct((B, K), jnp.float32),
        compiler_params=pltpu.CompilerParams(vmem_limit_bytes=VMEM_LIMIT),
    )(pooled,
      p['fc1_w'], p['bn4_g'].reshape(1, -1), p['bn4_b'].reshape(1, -1),
      p['fc2_w'], p['bn5_g'].reshape(1, -1), p['bn5_b'].reshape(1, -1),
      p['fc3_w'], p['fc3_b'].reshape(1, -1))


def bn_scale_shift(stats, n_rows, gamma, beta):
    """Training-mode BatchNorm: global batch stats -> fused (scale, shift), f32."""
    mean = stats[0] / n_rows
    var = jnp.maximum(stats[1] / n_rows - mean * mean, 0.0)
    scale = gamma * lax.rsqrt(var + BN_EPS)
    shift = beta - mean * scale
    return scale.reshape(1, -1), shift.reshape(1, -1)


# ---------------------------------------------------------------------------
# Parameter initialization (deterministic, in-script)
# ---------------------------------------------------------------------------
def _w(key, cin, cout, dtype=jnp.bfloat16):
    return (jax.random.normal(key, (cin, cout), jnp.float32) * 0.05).astype(dtype)


def init_tnet_params(key, din, dout):
    k = jax.random.split(key, 7)
    # Conv/FC biases followed by training-mode BN are omitted: they are exactly
    # cancelled by the batch-mean subtraction and never affect the output.
    return {
        'c1_w': _w(k[0], din, 64),
        'c2_w': _w(k[1], 64, 128),
        'c3_w': _w(k[2], 128, 256),
        'fc1_w': _w(k[3], 256, 256),
        'fc2_w': _w(k[4], 256, 128),
        'fc3_w': _w(k[5], 128, dout * dout),
        'fc3_b': jax.random.normal(k[6], (dout * dout,), jnp.float32) * 0.01,
        'bn1_g': jnp.ones((64,), jnp.float32),  'bn1_b': jnp.zeros((64,), jnp.float32),
        'bn2_g': jnp.ones((128,), jnp.float32), 'bn2_b': jnp.zeros((128,), jnp.float32),
        'bn3_g': jnp.ones((256,), jnp.float32), 'bn3_b': jnp.zeros((256,), jnp.float32),
        'bn4_g': jnp.ones((256,), jnp.float32), 'bn4_b': jnp.zeros((256,), jnp.float32),
        'bn5_g': jnp.ones((128,), jnp.float32), 'bn5_b': jnp.zeros((128,), jnp.float32),
    }


def init_base_params(key, point_dim):
    k = jax.random.split(key, 7)
    return {
        'tnet_in': init_tnet_params(k[0], point_dim, point_dim),
        'tnet_feat': init_tnet_params(k[1], 64, 64),
        'c1_w': _w(k[2], point_dim, 64),
        'c2_w': _w(k[3], 64, 64),
        'c3_w': _w(k[4], 64, 64),
        'c4_w': _w(k[5], 64, 128),
        'c5_w': _w(k[6], 128, 256),
        'bn1_g': jnp.ones((64,), jnp.float32),  'bn1_b': jnp.zeros((64,), jnp.float32),
        'bn2_g': jnp.ones((64,), jnp.float32),  'bn2_b': jnp.zeros((64,), jnp.float32),
        'bn3_g': jnp.ones((64,), jnp.float32),  'bn3_b': jnp.zeros((64,), jnp.float32),
        'bn4_g': jnp.ones((128,), jnp.float32), 'bn4_b': jnp.zeros((128,), jnp.float32),
        'bn5_g': jnp.ones((256,), jnp.float32), 'bn5_b': jnp.zeros((256,), jnp.float32),
    }


# ---------------------------------------------------------------------------
# Forward passes (glue composing the Pallas kernels)
# ---------------------------------------------------------------------------
def transformation_net(x3d, p, out_dim, *, n_valid, tile_n):
    # x3d: (B, Np, din) channels-last (the torch module does the transpose itself);
    # points >= n_valid in each batch are padding and are masked out of all stats.
    B, Np, din = x3d.shape
    rows_valid = B * n_valid
    x2d = x3d.reshape(B * Np, din)

    y1, s1 = matmul_stats(x2d, p['c1_w'], n_valid=n_valid, period=Np)          # conv_1
    sc1, sh1 = bn_scale_shift(s1, rows_valid, p['bn1_g'], p['bn1_b'])
    y2, s2 = matmul_stats(y1, p['c2_w'], sc1, sh1, n_valid=n_valid, period=Np)  # bn1+relu -> conv_2
    sc2, sh2 = bn_scale_shift(s2, rows_valid, p['bn2_g'], p['bn2_b'])
    y3, s3 = matmul_stats(y2, p['c3_w'], sc2, sh2, n_valid=n_valid, period=Np)  # bn2+relu -> conv_3
    sc3, sh3 = bn_scale_shift(s3, rows_valid, p['bn3_g'], p['bn3_b'])

    pooled = norm_relu_maxpool(y3.reshape(B, Np, 256), sc3, sh3,
                               n_valid=n_valid, tile_n=tile_n)                  # bn3+relu -> MaxPool1d
    t = fc_head(pooled, p)                                                      # fc1..fc3 fused
    return t.reshape(B, out_dim, out_dim) + jnp.eye(out_dim, dtype=jnp.float32)


def base_point_net(x, params):
    # x: (B, N, D) -- same input as the torch module
    B, N, D = x.shape
    tile_n, Np = _point_tiling(N)
    if Np != N:
        x = jnp.pad(x, ((0, 0), (0, Np - N), (0, 0)))
    R_valid = B * N
    Rp = B * Np

    input_T = transformation_net(x, params['tnet_in'], D, n_valid=N, tile_n=tile_n)

    # bmm(x, input_T) fused with conv_1; tnet_out is emitted directly as (B, D, N).
    # TODO(synk): torch returns tnet_out as a detached cpu numpy array; here it stays a jnp array.
    tnet_out, y1, s1 = bmm_conv1_stats(x, input_T.astype(jnp.bfloat16),
                                       params['c1_w'], n_valid=N, tile_n=tile_n)

    sc1, sh1 = bn_scale_shift(s1, R_valid, params['bn1_g'], params['bn1_b'])
    y2, s2 = matmul_stats(y1.reshape(Rp, 64), params['c2_w'], sc1, sh1,
                          n_valid=N, period=Np)
    sc2, sh2 = bn_scale_shift(s2, R_valid, params['bn2_g'], params['bn2_b'])
    feat = norm_relu(y2, sc2, sh2).reshape(B, Np, 64)            # relu(bn2(conv2))

    feature_T = transformation_net(feat, params['tnet_feat'], 64,
                                   n_valid=N, tile_n=tile_n)     # (B, 64, 64)

    # Fold the feature transform into the conv_3 weights (tiny XLA einsum), then
    # a single per-batch dot per tile (conv_3's bias is cancelled by train-mode BN).
    w3_b = jnp.einsum('bij,jk->bik', feature_T,
                      params['c3_w'].astype(jnp.float32)).astype(jnp.bfloat16)
    y3, s3 = bdot_stats(feat, w3_b, n_valid=N, tile_n=tile_n)
    sc3, sh3 = bn_scale_shift(s3, R_valid, params['bn3_g'], params['bn3_b'])
    y4, s4 = matmul_stats(y3.reshape(Rp, 64), params['c4_w'], sc3, sh3,
                          n_valid=N, period=Np)
    sc4, sh4 = bn_scale_shift(s4, R_valid, params['bn4_g'], params['bn4_b'])
    y5, s5 = matmul_stats(y4, params['c5_w'], sc4, sh4, n_valid=N, period=Np)
    sc5, sh5 = bn_scale_shift(s5, R_valid, params['bn5_g'], params['bn5_b'])

    # relu(bn5(conv5)) written straight into the torch NCW (B, 256, N) layout.
    out = norm_relu_transpose(y5.reshape(B, Np, 256), sc5, sh5, tile_n=tile_n)
    if Np != N:
        out = out[:, :, :N]
        tnet_out = tnet_out[:, :, :N]
    return out, feature_T, tnet_out


# ---------------------------------------------------------------------------
if __name__ == "__main__":
    key = jax.random.PRNGKey(0)
    kx, kp = jax.random.split(key)

    B, N, D = 2, 128, 3          # batch=2, num_points=128, point_dimension=3
    x = jax.random.normal(kx, (B, N, D), jnp.float32)
    params = init_base_params(kp, D)

    fwd = jax.jit(base_point_net)
    out, feature_T, tnet_out = fwd(x, params)
    jax.block_until_ready((out, feature_T, tnet_out))

    assert out.shape == (B, 256, N)
    assert feature_T.shape == (B, 64, 64)
    assert tnet_out.shape == (B, D, N)
    assert bool(jnp.all(jnp.isfinite(out)))
    assert bool(jnp.all(jnp.isfinite(feature_T)))
    assert bool(jnp.all(jnp.isfinite(tnet_out)))

    print("KERNEL_OK")
</pallas_src>

<mosaic_0001>
module attributes {stable_mosaic.version = 11 : i64} {
  func.func @_mm_stats_kernel(%arg0: i32, %arg1: memref<256x3xf32, #tpu.memory_space<vmem>>, %arg2: memref<3x64xbf16, #tpu.memory_space<vmem>>, %arg3: memref<256x64xbf16, #tpu.memory_space<vmem>>, %arg4: memref<1x2x64xf32, #tpu.memory_space<vmem>>) attributes {dimension_semantics = [#tpu.dimension_semantics<parallel>], iteration_bounds = array<i64: 1>, scalar_prefetch = 0 : i64, scratch_operands = 0 : i64, tpu.core_type = #tpu.core_type<tc>, window_params = [{transform_indices = @transform_0, window_bounds = array<i64: 256, 3>}, {pipeline_mode = #tpu.pipeline_mode<synchronous>, transform_indices = @transform_1, window_bounds = array<i64: 3, 64>}, {transform_indices = @transform_2, window_bounds = array<i64: 256, 64>}, {transform_indices = @transform_3, window_bounds = array<i64: 1, 2, 64>}]} {
    %c0 = arith.constant 0 : index
    %c0_0 = arith.constant 0 : index
    %0 = vector.load %arg1[%c0, %c0_0] : memref<256x3xf32, #tpu.memory_space<vmem>>, vector<256x3xf32>
    %1 = arith.truncf %0 : vector<256x3xf32> to vector<256x3xbf16>
    %c0_1 = arith.constant 0 : index
    %c0_2 = arith.constant 0 : index
    %2 = vector.load %arg2[%c0_1, %c0_2] : memref<3x64xbf16, #tpu.memory_space<vmem>>, vector<3x64xbf16>
    %cst = arith.constant dense<0.000000e+00> : vector<256x64xf32>
    %3 = tpu.matmul %1, %2, %cst {dimension_numbers = #tpu.dot_dimension_numbers<[1], [0], [0], [1], [0, 0, 1, 1], [], []>} : vector<256x3xbf16>, vector<3x64xbf16>, vector<256x64xf32> -> vector<256x64xf32>
    %4 = arith.truncf %3 : vector<256x64xf32> to vector<256x64xbf16>
    %c0_3 = arith.constant 0 : index
    %c0_4 = arith.constant 0 : index
    %5 = vector.load %arg3[%c0_3, %c0_4] : memref<256x64xbf16, #tpu.memory_space<vmem>>, vector<256x64xbf16>
    tpu.vector_store %arg3[%c0_3, %c0_4], %4 {strides = array<i32>} : memref<256x64xbf16, #tpu.memory_space<vmem>>, vector<256x64xbf16>,
    %cst_5 = arith.constant dense<0.000000e+00> : vector<64xf32>
    %6 = vector.multi_reduction <add>, %3, %cst_5 [0] : vector<256x64xf32> to vector<64xf32>
    %7 = vector.shape_cast %6 : vector<64xf32> to vector<1x64xf32>
    %8 = arith.mulf %3, %3 : vector<256x64xf32>
    %cst_6 = arith.constant dense<0.000000e+00> : vector<64xf32>
    %9 = vector.multi_reduction <add>, %8, %cst_6 [0] : vector<256x64xf32> to vector<64xf32>
    %10 = vector.shape_cast %9 : vector<64xf32> to vector<1x64xf32>
    %11 = tpu.concatenate %7, %10 in 0 : vector<1x64xf32>, vector<1x64xf32> -> vector<2x64xf32>
    %c0_7 = arith.constant 0 : index
    %c0_8 = arith.constant 0 : index
    %c0_9 = arith.constant 0 : index
    %12 = vector.load %arg4[%c0_7, %c0_8, %c0_9] : memref<1x2x64xf32, #tpu.memory_space<vmem>>, vector<1x2x64xf32>
    %13 = vector.shape_cast %12 : vector<1x2x64xf32> to vector<2x64xf32>
    %14 = vector.shape_cast %11 : vector<2x64xf32> to vector<1x2x64xf32>
    tpu.vector_store %arg4[%c0_7, %c0_8, %c0_9], %14 {strides = array<i32>} : memref<1x2x64xf32, #tpu.memory_space<vmem>>, vector<1x2x64xf32>,
    return
  }
  func.func @transform_0(%arg0: i32) -> (i32, i32) {
    %c0_i32 = arith.constant 0 : i32
    %c0_i32_0 = arith.constant 0 : i32
    return %arg0, %c0_i32 : i32, i32
  }
  func.func @transform_1(%arg0: i32) -> (i32, i32) {
    %c0_i32 = arith.constant 0 : i32
    %c0_i32_0 = arith.constant 0 : i32
    %c0_i32_1 = arith.constant 0 : i32
    return %c0_i32, %c0_i32_0 : i32, i32
  }
  func.func @transform_2(%arg0: i32) -> (i32, i32) {
    %c0_i32 = arith.constant 0 : i32
    %c0_i32_0 = arith.constant 0 : i32
    return %arg0, %c0_i32 : i32, i32
  }
  func.func @transform_3(%arg0: i32) -> (i32, i32, i32) {
    %c0_i32 = arith.constant 0 : i32
    %c0_i32_0 = arith.constant 0 : i32
    %c0_i32_1 = arith.constant 0 : i32
    return %arg0, %c0_i32, %c0_i32_0 : i32, i32, i32
  }
}

module attributes {stable_mosaic.version = 11 : i64} {
  func.func @_mm_stats_kernel(%arg0: i32, %arg1: memref<256x64xbf16, #tpu.memory_space<vmem>>, %arg2: memref<1x64xbf16, #tpu.memory_space<vmem>>, %arg3: memref<1x64xbf16, #tpu.memory_space<vmem>>, %arg4: memref<64x128xbf16, #tpu.memory_space<vmem>>, %arg5: memref<256x128xbf16, #tpu.memory_space<vmem>>, %arg6: memref<1x2x128xf32, #tpu.memory_space<vmem>>) attributes {dimension_semantics = [#tpu.dimension_semantics<parallel>], iteration_bounds = array<i64: 1>, scalar_prefetch = 0 : i64, scratch_operands = 0 : i64, tpu.core_type = #tpu.core_type<tc>, window_params = [{transform_indices = @transform_0, window_bounds = array<i64: 256, 64>}, {pipeline_mode = #tpu.pipeline_mode<synchronous>, transform_indices = @transform_1, window_bounds = array<i64: 1, 64>}, {pipeline_mode = #tpu.pipeline_mode<synchronous>, transform_indices = @transform_2, window_bounds = array<i64: 1, 64>}, {pipeline_mode = #tpu.pipeline_mode<synchronous>, transform_indices = @transform_3, window_bounds = array<i64: 64, 128>}, {transform_indices = @transform_4, window_bounds = array<i64: 256, 128>}, {transform_indices = @transform_5, window_bounds = array<i64: 1, 2, 128>}]} {
    %c0 = arith.constant 0 : index
    %c0_0 = arith.constant 0 : index
    %0 = vector.load %arg1[%c0, %c0_0] : memref<256x64xbf16, #tpu.memory_space<vmem>>, vector<256x64xbf16>
    %c0_1 = arith.constant 0 : index
    %c0_2 = arith.constant 0 : index
    %1 = vector.load %arg2[%c0_1, %c0_2] : memref<1x64xbf16, #tpu.memory_space<vmem>>, vector<1x64xbf16>
    %2 = vector.broadcast %1 : vector<1x64xbf16> to vector<256x64xbf16>
    %3 = arith.mulf %0, %2 : vector<256x64xbf16>
    %c0_3 = arith.constant 0 : index
    %c0_4 = arith.constant 0 : index
    %4 = vector.load %arg3[%c0_3, %c0_4] : memref<1x64xbf16, #tpu.memory_space<vmem>>, vector<1x64xbf16>
    %5 = vector.broadcast %4 : vector<1x64xbf16> to vector<256x64xbf16>
    %6 = arith.addf %3, %5 : vector<256x64xbf16>
    %cst = arith.constant 0.000000e+00 : bf16
    %7 = vector.broadcast %cst : bf16 to vector<256x64xbf16>
    %8 = arith.maximumf %6, %7 : vector<256x64xbf16>
    %c0_5 = arith.constant 0 : index
    %c0_6 = arith.constant 0 : index
    %9 = vector.load %arg4[%c0_5, %c0_6] : memref<64x128xbf16, #tpu.memory_space<vmem>>, vector<64x128xbf16>
    %cst_7 = arith.constant dense<0.000000e+00> : vector<256x128xf32>
    %10 = tpu.matmul %8, %9, %cst_7 {dimension_numbers = #tpu.dot_dimension_numbers<[1], [0], [0], [1], [0, 0, 1, 1], [], []>} : vector<256x64xbf16>, vector<64x128xbf16>, vector<256x128xf32> -> vector<256x128xf32>
    %11 = arith.truncf %10 : vector<256x128xf32> to vector<256x128xbf16>
    %c0_8 = arith.constant 0 : index
    %c0_9 = arith.constant 0 : index
    %12 = vector.load %arg5[%c0_8, %c0_9] : memref<256x128xbf16, #tpu.memory_space<vmem>>, vector<256x128xbf16>
    tpu.vector_store %arg5[%c0_8, %c0_9], %11 {strides = array<i32>} : memref<256x128xbf16, #tpu.memory_space<vmem>>, vector<256x128xbf16>,
    %cst_10 = arith.constant dense<0.000000e+00> : vector<128xf32>
    %13 = vector.multi_reduction <add>, %10, %cst_10 [0] : vector<256x128xf32> to vector<128xf32>
    %14 = vector.shape_cast %13 : vector<128xf32> to vector<1x128xf32>
    %15 = arith.mulf %10, %10 : vector<256x128xf32>
    %cst_11 = arith.constant dense<0.000000e+00> : vector<128xf32>
    %16 = vector.multi_reduction <add>, %15, %cst_11 [0] : vector<256x128xf32> to vector<128xf32>
    %17 = vector.shape_cast %16 : vector<128xf32> to vector<1x128xf32>
    %18 = tpu.concatenate %14, %17 in 0 : vector<1x128xf32>, vector<1x128xf32> -> vector<2x128xf32>
    %c0_12 = arith.constant 0 : index
    %c0_13 = arith.constant 0 : index
    %c0_14 = arith.constant 0 : index
    %19 = vector.load %arg6[%c0_12, %c0_13, %c0_14] : memref<1x2x128xf32, #tpu.memory_space<vmem>>, vector<1x2x128xf32>
    %20 = vector.shape_cast %19 : vector<1x2x128xf32> to vector<2x128xf32>
    %21 = vector.shape_cast %18 : vector<2x128xf32> to vector<1x2x128xf32>
    tpu.vector_store %arg6[%c0_12, %c0_13, %c0_14], %21 {strides = array<i32>} : memref<1x2x128xf32, #tpu.memory_space<vmem>>, vector<1x2x128xf32>,
    return
  }
  func.func @transform_0(%arg0: i32) -> (i32, i32) {
    %c0_i32 = arith.constant 0 : i32
    %c0_i32_0 = arith.constant 0 : i32
    return %arg0, %c0_i32 : i32, i32
  }
  func.func @transform_1(%arg0: i32) -> (i32, i32) {
    %c0_i32 = arith.constant 0 : i32
    %c0_i32_0 = arith.constant 0 : i32
    %c0_i32_1 = arith.constant 0 : i32
    return %c0_i32, %c0_i32_0 : i32, i32
  }
  func.func @transform_2(%arg0: i32) -> (i32, i32) {
    %c0_i32 = arith.constant 0 : i32
    %c0_i32_0 = arith.constant 0 : i32
    %c0_i32_1 = arith.constant 0 : i32
    return %c0_i32, %c0_i32_0 : i32, i32
  }
  func.func @transform_3(%arg0: i32) -> (i32, i32) {
    %c0_i32 = arith.constant 0 : i32
    %c0_i32_0 = arith.constant 0 : i32
    %c0_i32_1 = arith.constant 0 : i32
    return %c0_i32, %c0_i32_0 : i32, i32
  }
  func.func @transform_4(%arg0: i32) -> (i32, i32) {
    %c0_i32 = arith.constant 0 : i32
    %c0_i32_0 = arith.constant 0 : i32
    return %arg0, %c0_i32 : i32, i32
  }
  func.func @transform_5(%arg0: i32) -> (i32, i32, i32) {
    %c0_i32 = arith.constant 0 : i32
    %c0_i32_0 = arith.constant 0 : i32
    %c0_i32_1 = arith.constant 0 : i32
    return %arg0, %c0_i32, %c0_i32_0 : i32, i32, i32
  }
}

module attributes {stable_mosaic.version = 11 : i64} {
  func.func @_mm_stats_kernel(%arg0: i32, %arg1: memref<256x128xbf16, #tpu.memory_space<vmem>>, %arg2: memref<1x128xbf16, #tpu.memory_space<vmem>>, %arg3: memref<1x128xbf16, #tpu.memory_space<vmem>>, %arg4: memref<128x256xbf16, #tpu.memory_space<vmem>>, %arg5: memref<256x256xbf16, #tpu.memory_space<vmem>>, %arg6: memref<1x2x256xf32, #tpu.memory_space<vmem>>) attributes {dimension_semantics = [#tpu.dimension_semantics<parallel>], iteration_bounds = array<i64: 1>, scalar_prefetch = 0 : i64, scratch_operands = 0 : i64, tpu.core_type = #tpu.core_type<tc>, window_params = [{transform_indices = @transform_0, window_bounds = array<i64: 256, 128>}, {pipeline_mode = #tpu.pipeline_mode<synchronous>, transform_indices = @transform_1, window_bounds = array<i64: 1, 128>}, {pipeline_mode = #tpu.pipeline_mode<synchronous>, transform_indices = @transform_2, window_bounds = array<i64: 1, 128>}, {pipeline_mode = #tpu.pipeline_mode<synchronous>, transform_indices = @transform_3, window_bounds = array<i64: 128, 256>}, {transform_indices = @transform_4, window_bounds = array<i64: 256, 256>}, {transform_indices = @transform_5, window_bounds = array<i64: 1, 2, 256>}]} {
    %c0 = arith.constant 0 : index
    %c0_0 = arith.constant 0 : index
    %0 = vector.load %arg1[%c0, %c0_0] : memref<256x128xbf16, #tpu.memory_space<vmem>>, vector<256x128xbf16>
    %c0_1 = arith.constant 0 : index
    %c0_2 = arith.constant 0 : index
    %1 = vector.load %arg2[%c0_1, %c0_2] : memref<1x128xbf16, #tpu.memory_space<vmem>>, vector<1x128xbf16>
    %2 = vector.broadcast %1 : vector<1x128xbf16> to vector<256x128xbf16>
    %3 = arith.mulf %0, %2 : vector<256x128xbf16>
    %c0_3 = arith.constant 0 : index
    %c0_4 = arith.constant 0 : index
    %4 = vector.load %arg3[%c0_3, %c0_4] : memref<1x128xbf16, #tpu.memory_space<vmem>>, vector<1x128xbf16>
    %5 = vector.broadcast %4 : vector<1x128xbf16> to vector<256x128xbf16>
    %6 = arith.addf %3, %5 : vector<256x128xbf16>
    %cst = arith.constant 0.000000e+00 : bf16
    %7 = vector.broadcast %cst : bf16 to vector<256x128xbf16>
    %8 = arith.maximumf %6, %7 : vector<256x128xbf16>
    %c0_5 = arith.constant 0 : index
    %c0_6 = arith.constant 0 : index
    %9 = vector.load %arg4[%c0_5, %c0_6] : memref<128x256xbf16, #tpu.memory_space<vmem>>, vector<128x256xbf16>
    %cst_7 = arith.constant dense<0.000000e+00> : vector<256x256xf32>
    %10 = tpu.matmul %8, %9, %cst_7 {dimension_numbers = #tpu.dot_dimension_numbers<[1], [0], [0], [1], [0, 0, 1, 1], [], []>} : vector<256x128xbf16>, vector<128x256xbf16>, vector<256x256xf32> -> vector<256x256xf32>
    %11 = arith.truncf %10 : vector<256x256xf32> to vector<256x256xbf16>
    %c0_8 = arith.constant 0 : index
    %c0_9 = arith.constant 0 : index
    %12 = vector.load %arg5[%c0_8, %c0_9] : memref<256x256xbf16, #tpu.memory_space<vmem>>, vector<256x256xbf16>
    tpu.vector_store %arg5[%c0_8, %c0_9], %11 {strides = array<i32>} : memref<256x256xbf16, #tpu.memory_space<vmem>>, vector<256x256xbf16>,
    %cst_10 = arith.constant dense<0.000000e+00> : vector<256xf32>
    %13 = vector.multi_reduction <add>, %10, %cst_10 [0] : vector<256x256xf32> to vector<256xf32>
    %14 = vector.shape_cast %13 : vector<256xf32> to vector<1x256xf32>
    %15 = arith.mulf %10, %10 : vector<256x256xf32>
    %cst_11 = arith.constant dense<0.000000e+00> : vector<256xf32>
    %16 = vector.multi_reduction <add>, %15, %cst_11 [0] : vector<256x256xf32> to vector<256xf32>
    %17 = vector.shape_cast %16 : vector<256xf32> to vector<1x256xf32>
    %18 = tpu.concatenate %14, %17 in 0 : vector<1x256xf32>, vector<1x256xf32> -> vector<2x256xf32>
    %c0_12 = arith.constant 0 : index
    %c0_13 = arith.constant 0 : index
    %c0_14 = arith.constant 0 : index
    %19 = vector.load %arg6[%c0_12, %c0_13, %c0_14] : memref<1x2x256xf32, #tpu.memory_space<vmem>>, vector<1x2x256xf32>
    %20 = vector.shape_cast %19 : vector<1x2x256xf32> to vector<2x256xf32>
    %21 = vector.shape_cast %18 : vector<2x256xf32> to vector<1x2x256xf32>
    tpu.vector_store %arg6[%c0_12, %c0_13, %c0_14], %21 {strides = array<i32>} : memref<1x2x256xf32, #tpu.memory_space<vmem>>, vector<1x2x256xf32>,
    return
  }
  func.func @transform_0(%arg0: i32) -> (i32, i32) {
    %c0_i32 = arith.constant 0 : i32
    %c0_i32_0 = arith.constant 0 : i32
    return %arg0, %c0_i32 : i32, i32
  }
  func.func @transform_1(%arg0: i32) -> (i32, i32) {
    %c0_i32 = arith.constant 0 : i32
    %c0_i32_0 = arith.constant 0 : i32
    %c0_i32_1 = arith.constant 0 : i32
    return %c0_i32, %c0_i32_0 : i32, i32
  }
  func.func @transform_2(%arg0: i32) -> (i32, i32) {
    %c0_i32 = arith.constant 0 : i32
    %c0_i32_0 = arith.constant 0 : i32
    %c0_i32_1 = arith.constant 0 : i32
    return %c0_i32, %c0_i32_0 : i32, i32
  }
  func.func @transform_3(%arg0: i32) -> (i32, i32) {
    %c0_i32 = arith.constant 0 : i32
    %c0_i32_0 = arith.constant 0 : i32
    %c0_i32_1 = arith.constant 0 : i32
    return %c0_i32, %c0_i32_0 : i32, i32
  }
  func.func @transform_4(%arg0: i32) -> (i32, i32) {
    %c0_i32 = arith.constant 0 : i32
    %c0_i32_0 = arith.constant 0 : i32
    return %arg0, %c0_i32 : i32, i32
  }
  func.func @transform_5(%arg0: i32) -> (i32, i32, i32) {
    %c0_i32 = arith.constant 0 : i32
    %c0_i32_0 = arith.constant 0 : i32
    %c0_i32_1 = arith.constant 0 : i32
    return %arg0, %c0_i32, %c0_i32_0 : i32, i32, i32
  }
}

module attributes {stable_mosaic.version = 11 : i64} {
  func.func @_norm_relu_maxpool_kernel(%arg0: i32, %arg1: i32, %arg2: i32, %arg3: memref<1x128x128xbf16, #tpu.memory_space<vmem>>, %arg4: memref<1x128xf32, #tpu.memory_space<vmem>>, %arg5: memref<1x128xf32, #tpu.memory_space<vmem>>, %arg6: memref<1x1x128xf32, #tpu.memory_space<vmem>>) attributes {dimension_semantics = [#tpu.dimension_semantics<parallel>, #tpu.dimension_semantics<parallel>, #tpu.dimension_semantics<arbitrary>], iteration_bounds = array<i64: 2, 2, 1>, scalar_prefetch = 0 : i64, scratch_operands = 0 : i64, tpu.core_type = #tpu.core_type<tc>, window_params = [{transform_indices = @transform_0, window_bounds = array<i64: 1, 128, 128>}, {transform_indices = @transform_1, window_bounds = array<i64: 1, 128>}, {transform_indices = @transform_2, window_bounds = array<i64: 1, 128>}, {transform_indices = @transform_3, window_bounds = array<i64: 1, 1, 128>}]} {
    %c0 = arith.constant 0 : index
    %c0_0 = arith.constant 0 : index
    %c0_1 = arith.constant 0 : index
    %0 = vector.load %arg3[%c0, %c0_0, %c0_1] : memref<1x128x128xbf16, #tpu.memory_space<vmem>>, vector<1x128x128xbf16>
    %1 = vector.shape_cast %0 : vector<1x128x128xbf16> to vector<128x128xbf16>
    %2 = arith.extf %1 : vector<128x128xbf16> to vector<128x128xf32>
    %c0_2 = arith.constant 0 : index
    %c0_3 = arith.constant 0 : index
    %3 = vector.load %arg4[%c0_2, %c0_3] : memref<1x128xf32, #tpu.memory_space<vmem>>, vector<1x128xf32>
    %4 = vector.broadcast %3 : vector<1x128xf32> to vector<128x128xf32>
    %5 = arith.mulf %2, %4 : vector<128x128xf32>
    %c0_4 = arith.constant 0 : index
    %c0_5 = arith.constant 0 : index
    %6 = vector.load %arg5[%c0_4, %c0_5] : memref<1x128xf32, #tpu.memory_space<vmem>>, vector<1x128xf32>
    %7 = vector.broadcast %6 : vector<1x128xf32> to vector<128x128xf32>
    %8 = arith.addf %5, %7 : vector<128x128xf32>
    %cst = arith.constant 0.000000e+00 : f32
    %9 = vector.broadcast %cst : f32 to vector<128x128xf32>
    %10 = arith.maximumf %8, %9 : vector<128x128xf32>
    %c0_i32 = arith.constant 0 : i32
    %11 = arith.cmpi eq, %arg2, %c0_i32 : i32
    %12 = arith.extui %11 : i1 to i32
    %c0_i32_6 = arith.constant 0 : i32
    %13 = arith.cmpi ne, %12, %c0_i32_6 : i32
    scf.if %13 {
      %cst_14 = arith.constant 0.000000e+00 : f32
      %22 = vector.broadcast %cst_14 : f32 to vector<1x1x128xf32>
      %c0_15 = arith.constant 0 : index
      %c0_16 = arith.constant 0 : index
      %c0_17 = arith.constant 0 : index
      %23 = vector.load %arg6[%c0_15, %c0_16, %c0_17] : memref<1x1x128xf32, #tpu.memory_space<vmem>>, vector<1x1x128xf32>
      tpu.vector_store %arg6[%c0_15, %c0_16, %c0_17], %22 {strides = array<i32>} : memref<1x1x128xf32, #tpu.memory_space<vmem>>, vector<1x1x128xf32>,
    } else {
    }
    %c0_7 = arith.constant 0 : index
    %c0_8 = arith.constant 0 : index
    %c0_9 = arith.constant 0 : index
    %14 = vector.load %arg6[%c0_7, %c0_8, %c0_9] : memref<1x1x128xf32, #tpu.memory_space<vmem>>, vector<1x1x128xf32>
    %15 = vector.shape_cast %14 : vector<1x1x128xf32> to vector<1x128xf32>
    %cst_10 = arith.constant dense<0xFF800000> : vector<128xf32>
    %16 = vector.multi_reduction <maximumf>, %10, %cst_10 [0] : vector<128x128xf32> to vector<128xf32>
    %17 = vector.shape_cast %16 : vector<128xf32> to vector<1x128xf32>
    %18 = arith.maximumf %15, %17 : vector<1x128xf32>
    %c0_11 = arith.constant 0 : index
    %c0_12 = arith.constant 0 : index
    %c0_13 = arith.constant 0 : index
    %19 = vector.load %arg6[%c0_11, %c0_12, %c0_13] : memref<1x1x128xf32, #tpu.memory_space<vmem>>, vector<1x1x128xf32>
    %20 = vector.shape_cast %19 : vector<1x1x128xf32> to vector<1x128xf32>
    %21 = vector.shape_cast %18 : vector<1x128xf32> to vector<1x1x128xf32>
    tpu.vector_store %arg6[%c0_11, %c0_12, %c0_13], %21 {strides = array<i32>} : memref<1x1x128xf32, #tpu.memory_space<vmem>>, vector<1x1x128xf32>,
    return
  }
  func.func @transform_0(%arg0: i32, %arg1: i32, %arg2: i32) -> (i32, i32, i32) {
    %c0_i32 = arith.constant 0 : i32
    return %arg0, %arg2, %arg1 : i32, i32, i32
  }
  func.func @transform_1(%arg0: i32, %arg1: i32, %arg2: i32) -> (i32, i32) {
    %c0_i32 = arith.constant 0 : i32
    %c0_i32_0 = arith.constant 0 : i32
    return %c0_i32, %arg1 : i32, i32
  }
  func.func @transform_2(%arg0: i32, %arg1: i32, %arg2: i32) -> (i32, i32) {
    %c0_i32 = arith.constant 0 : i32
    %c0_i32_0 = arith.constant 0 : i32
    return %c0_i32, %arg1 : i32, i32
  }
  func.func @transform_3(%arg0: i32, %arg1: i32, %arg2: i32) -> (i32, i32, i32) {
    %c0_i32 = arith.constant 0 : i32
    %c0_i32_0 = arith.constant 0 : i32
    return %arg0, %c0_i32, %arg1 : i32, i32, i32
  }
}

module attributes {stable_mosaic.version = 11 : i64} {
  func.func @_bmm_conv_stats_kernel(%arg0: i32, %arg1: i32, %arg2: memref<1x128x3xf32, #tpu.memory_space<vmem>>, %arg3: memref<1x3x3xbf16, #tpu.memory_space<vmem>>, %arg4: memref<3x64xbf16, #tpu.memory_space<vmem>>, %arg5: memref<1x3x128xf32, #tpu.memory_space<vmem>>, %arg6: memref<1x128x64xbf16, #tpu.memory_space<vmem>>, %arg7: memref<1x2x64xf32, #tpu.memory_space<vmem>>) attributes {dimension_semantics = [#tpu.dimension_semantics<parallel>, #tpu.dimension_semantics<parallel>], iteration_bounds = array<i64: 2, 1>, scalar_prefetch = 0 : i64, scratch_operands = 0 : i64, tpu.core_type = #tpu.core_type<tc>, window_params = [{transform_indices = @transform_0, window_bounds = array<i64: 1, 128, 3>}, {transform_indices = @transform_1, window_bounds = array<i64: 1, 3, 3>}, {pipeline_mode = #tpu.pipeline_mode<synchronous>, transform_indices = @transform_2, window_bounds = array<i64: 3, 64>}, {transform_indices = @transform_3, window_bounds = array<i64: 1, 3, 128>}, {transform_indices = @transform_4, window_bounds = array<i64: 1, 128, 64>}, {transform_indices = @transform_5, window_bounds = array<i64: 1, 2, 64>}]} {
    %c0 = arith.constant 0 : index
    %c0_0 = arith.constant 0 : index
    %c0_1 = arith.constant 0 : index
    %0 = vector.load %arg2[%c0, %c0_0, %c0_1] : memref<1x128x3xf32, #tpu.memory_space<vmem>>, vector<1x128x3xf32>
    %1 = vector.shape_cast %0 : vector<1x128x3xf32> to vector<128x3xf32>
    %2 = arith.truncf %1 : vector<128x3xf32> to vector<128x3xbf16>
    %c0_2 = arith.constant 0 : index
    %c0_3 = arith.constant 0 : index
    %c0_4 = arith.constant 0 : index
    %3 = vector.load %arg3[%c0_2, %c0_3, %c0_4] : memref<1x3x3xbf16, #tpu.memory_space<vmem>>, vector<1x3x3xbf16>
    %4 = vector.shape_cast %3 : vector<1x3x3xbf16> to vector<3x3xbf16>
    %cst = arith.constant dense<0.000000e+00> : vector<128x3xf32>
    %5 = tpu.matmul %2, %4, %cst {dimension_numbers = #tpu.dot_dimension_numbers<[1], [0], [0], [1], [0, 0, 1, 1], [], []>} : vector<128x3xbf16>, vector<3x3xbf16>, vector<128x3xf32> -> vector<128x3xf32>
    %6 = tpu.transpose %5, [1, 0] : vector<128x3xf32> -> vector<3x128xf32>
    %c0_5 = arith.constant 0 : index
    %c0_6 = arith.constant 0 : index
    %c0_7 = arith.constant 0 : index
    %7 = vector.load %arg5[%c0_5, %c0_6, %c0_7] : memref<1x3x128xf32, #tpu.memory_space<vmem>>, vector<1x3x128xf32>
    %8 = vector.shape_cast %7 : vector<1x3x128xf32> to vector<3x128xf32>
    %9 = vector.shape_cast %6 : vector<3x128xf32> to vector<1x3x128xf32>
    tpu.vector_store %arg5[%c0_5, %c0_6, %c0_7], %9 {strides = array<i32>} : memref<1x3x128xf32, #tpu.memory_space<vmem>>, vector<1x3x128xf32>,
    %10 = arith.truncf %5 : vector<128x3xf32> to vector<128x3xbf16>
    %c0_8 = arith.constant 0 : index
    %c0_9 = arith.constant 0 : index
    %11 = vector.load %arg4[%c0_8, %c0_9] : memref<3x64xbf16, #tpu.memory_space<vmem>>, vector<3x64xbf16>
    %cst_10 = arith.constant dense<0.000000e+00> : vector<128x64xf32>
    %12 = tpu.matmul %10, %11, %cst_10 {dimension_numbers = #tpu.dot_dimension_numbers<[1], [0], [0], [1], [0, 0, 1, 1], [], []>} : vector<128x3xbf16>, vector<3x64xbf16>, vector<128x64xf32> -> vector<128x64xf32>
    %13 = arith.truncf %12 : vector<128x64xf32> to vector<128x64xbf16>
    %c0_11 = arith.constant 0 : index
    %c0_12 = arith.constant 0 : index
    %c0_13 = arith.constant 0 : index
    %14 = vector.load %arg6[%c0_11, %c0_12, %c0_13] : memref<1x128x64xbf16, #tpu.memory_space<vmem>>, vector<1x128x64xbf16>
    %15 = vector.shape_cast %14 : vector<1x128x64xbf16> to vector<128x64xbf16>
    %16 = vector.shape_cast %13 : vector<128x64xbf16> to vector<1x128x64xbf16>
    tpu.vector_store %arg6[%c0_11, %c0_12, %c0_13], %16 {strides = array<i32>} : memref<1x128x64xbf16, #tpu.memory_space<vmem>>, vector<1x128x64xbf16>,
    %cst_14 = arith.constant dense<0.000000e+00> : vector<64xf32>
    %17 = vector.multi_reduction <add>, %12, %cst_14 [0] : vector<128x64xf32> to vector<64xf32>
    %18 = vector.shape_cast %17 : vector<64xf32> to vector<1x64xf32>
    %19 = arith.mulf %12, %12 : vector<128x64xf32>
    %cst_15 = arith.constant dense<0.000000e+00> : vector<64xf32>
    %20 = vector.multi_reduction <add>, %19, %cst_15 [0] : vector<128x64xf32> to vector<64xf32>
    %21 = vector.shape_cast %20 : vector<64xf32> to vector<1x64xf32>
    %22 = tpu.concatenate %18, %21 in 0 : vector<1x64xf32>, vector<1x64xf32> -> vector<2x64xf32>
    %c0_16 = arith.constant 0 : index
    %c0_17 = arith.constant 0 : index
    %c0_18 = arith.constant 0 : index
    %23 = vector.load %arg7[%c0_16, %c0_17, %c0_18] : memref<1x2x64xf32, #tpu.memory_space<vmem>>, vector<1x2x64xf32>
    %24 = vector.shape_cast %23 : vector<1x2x64xf32> to vector<2x64xf32>
    %25 = vector.shape_cast %22 : vector<2x64xf32> to vector<1x2x64xf32>
    tpu.vector_store %arg7[%c0_16, %c0_17, %c0_18], %25 {strides = array<i32>} : memref<1x2x64xf32, #tpu.memory_space<vmem>>, vector<1x2x64xf32>,
    return
  }
  func.func @transform_0(%arg0: i32, %arg1: i32) -> (i32, i32, i32) {
    %c0_i32 = arith.constant 0 : i32
    %c0_i32_0 = arith.constant 0 : i32
    return %arg0, %arg1, %c0_i32 : i32, i32, i32
  }
  func.func @transform_1(%arg0: i32, %arg1: i32) -> (i32, i32, i32) {
    %c0_i32 = arith.constant 0 : i32
    %c0_i32_0 = arith.constant 0 : i32
    %c0_i32_1 = arith.constant 0 : i32
    return %arg0, %c0_i32, %c0_i32_0 : i32, i32, i32
  }
  func.func @transform_2(%arg0: i32, %arg1: i32) -> (i32, i32) {
    %c0_i32 = arith.constant 0 : i32
    %c0_i32_0 = arith.constant 0 : i32
    %c0_i32_1 = arith.constant 0 : i32
    return %c0_i32, %c0_i32_0 : i32, i32
  }
  func.func @transform_3(%arg0: i32, %arg1: i32) -> (i32, i32, i32) {
    %c0_i32 = arith.constant 0 : i32
    %c0_i32_0 = arith.constant 0 : i32
    return %arg0, %c0_i32, %arg1 : i32, i32, i32
  }
  func.func @transform_4(%arg0: i32, %arg1: i32) -> (i32, i32, i32) {
    %c0_i32 = arith.constant 0 : i32
    %c0_i32_0 = arith.constant 0 : i32
    return %arg0, %arg1, %c0_i32 : i32, i32, i32
  }
  func.func @transform_5(%arg0: i32, %arg1: i32) -> (i32, i32, i32) {
    %c1_i32 = arith.constant 1 : i32
    %0 = arith.muli %arg0, %c1_i32 : i32
    %1 = arith.addi %0, %arg1 : i32
    %c0_i32 = arith.constant 0 : i32
    %c0_i32_0 = arith.constant 0 : i32
    %c0_i32_1 = arith.constant 0 : i32
    return %1, %c0_i32, %c0_i32_0 : i32, i32, i32
  }
}

module attributes {stable_mosaic.version = 11 : i64} {
  func.func @_fc_head_kernel(%arg0: memref<2x256xf32, #tpu.memory_space<vmem>>, %arg1: memref<256x256xbf16, #tpu.memory_space<vmem>>, %arg2: memref<1x256xf32, #tpu.memory_space<vmem>>, %arg3: memref<1x256xf32, #tpu.memory_space<vmem>>, %arg4: memref<256x128xbf16, #tpu.memory_space<vmem>>, %arg5: memref<1x128xf32, #tpu.memory_space<vmem>>, %arg6: memref<1x128xf32, #tpu.memory_space<vmem>>, %arg7: memref<128x9xbf16, #tpu.memory_space<vmem>>, %arg8: memref<1x9xf32, #tpu.memory_space<vmem>>, %arg9: memref<2x9xf32, #tpu.memory_space<vmem>>) attributes {dimension_semantics = [], scalar_prefetch = 0 : i64, scratch_operands = 0 : i64, tpu.core_type = #tpu.core_type<tc>} {
    %c0 = arith.constant 0 : index
    %c0_0 = arith.constant 0 : index
    %0 = vector.load %arg0[%c0, %c0_0] : memref<2x256xf32, #tpu.memory_space<vmem>>, vector<2x256xf32>
    %1 = arith.truncf %0 : vector<2x256xf32> to vector<2x256xbf16>
    %c0_1 = arith.constant 0 : index
    %c0_2 = arith.constant 0 : index
    %2 = vector.load %arg1[%c0_1, %c0_2] : memref<256x256xbf16, #tpu.memory_space<vmem>>, vector<256x256xbf16>
    %cst = arith.constant dense<0.000000e+00> : vector<2x256xf32>
    %3 = tpu.matmul %1, %2, %cst {dimension_numbers = #tpu.dot_dimension_numbers<[1], [0], [0], [1], [0, 0, 1, 1], [], []>} : vector<2x256xbf16>, vector<256x256xbf16>, vector<2x256xf32> -> vector<2x256xf32>
    %c0_3 = arith.constant 0 : index
    %c0_4 = arith.constant 0 : index
    %4 = vector.load %arg2[%c0_3, %c0_4] : memref<1x256xf32, #tpu.memory_space<vmem>>, vector<1x256xf32>
    %c0_5 = arith.constant 0 : index
    %c0_6 = arith.constant 0 : index
    %5 = vector.load %arg3[%c0_5, %c0_6] : memref<1x256xf32, #tpu.memory_space<vmem>>, vector<1x256xf32>
    %cst_7 = arith.constant dense<0.000000e+00> : vector<256xf32>
    %6 = vector.multi_reduction <add>, %3, %cst_7 [0] : vector<2x256xf32> to vector<256xf32>
    %7 = vector.shape_cast %6 : vector<256xf32> to vector<1x256xf32>
    %cst_8 = arith.constant 2.000000e+00 : f32
    %8 = vector.broadcast %cst_8 : f32 to vector<1x256xf32>
    %9 = arith.divf %7, %8 : vector<1x256xf32>
    %10 = vector.broadcast %9 : vector<1x256xf32> to vector<2x256xf32>
    %11 = arith.subf %3, %10 : vector<2x256xf32>
    %12 = arith.mulf %11, %11 : vector<2x256xf32>
    %cst_9 = arith.constant dense<0.000000e+00> : vector<256xf32>
    %13 = vector.multi_reduction <add>, %12, %cst_9 [0] : vector<2x256xf32> to vector<256xf32>
    %14 = vector.shape_cast %13 : vector<256xf32> to vector<1x256xf32>
    %cst_10 = arith.constant 2.000000e+00 : f32
    %15 = vector.broadcast %cst_10 : f32 to vector<1x256xf32>
    %16 = arith.divf %14, %15 : vector<1x256xf32>
    %cst_11 = arith.constant 9.99999974E-6 : f32
    %17 = vector.broadcast %cst_11 : f32 to vector<1x256xf32>
    %18 = arith.addf %16, %17 : vector<1x256xf32>
    %19 = math.rsqrt %18 : vector<1x256xf32>
    %20 = arith.mulf %4, %19 : vector<1x256xf32>
    %21 = vector.broadcast %20 : vector<1x256xf32> to vector<2x256xf32>
    %22 = arith.mulf %3, %21 : vector<2x256xf32>
    %23 = arith.mulf %9, %20 : vector<1x256xf32>
    %24 = arith.subf %5, %23 : vector<1x256xf32>
    %25 = vector.broadcast %24 : vector<1x256xf32> to vector<2x256xf32>
    %26 = arith.addf %22, %25 : vector<2x256xf32>
    %cst_12 = arith.constant 0.000000e+00 : f32
    %27 = vector.broadcast %cst_12 : f32 to vector<2x256xf32>
    %28 = arith.maximumf %26, %27 : vector<2x256xf32>
    %29 = arith.truncf %28 : vector<2x256xf32> to vector<2x256xbf16>
    %c0_13 = arith.constant 0 : index
    %c0_14 = arith.constant 0 : index
    %30 = vector.load %arg4[%c0_13, %c0_14] : memref<256x128xbf16, #tpu.memory_space<vmem>>, vector<256x128xbf16>
    %cst_15 = arith.constant dense<0.000000e+00> : vector<2x128xf32>
    %31 = tpu.matmul %29, %30, %cst_15 {dimension_numbers = #tpu.dot_dimension_numbers<[1], [0], [0], [1], [0, 0, 1, 1], [], []>} : vector<2x256xbf16>, vector<256x128xbf16>, vector<2x128xf32> -> vector<2x128xf32>
    %c0_16 = arith.constant 0 : index
    %c0_17 = arith.constant 0 : index
    %32 = vector.load %arg5[%c0_16, %c0_17] : memref<1x128xf32, #tpu.memory_space<vmem>>, vector<1x128xf32>
    %c0_18 = arith.constant 0 : index
    %c0_19 = arith.constant 0 : index
    %33 = vector.load %arg6[%c0_18, %c0_19] : memref<1x128xf32, #tpu.memory_space<vmem>>, vector<1x128xf32>
    %cst_20 = arith.constant dense<0.000000e+00> : vector<128xf32>
    %34 = vector.multi_reduction <add>, %31, %cst_20 [0] : vector<2x128xf32> to vector<128xf32>
    %35 = vector.shape_cast %34 : vector<128xf32> to vector<1x128xf32>
    %cst_21 = arith.constant 2.000000e+00 : f32
    %36 = vector.broadcast %cst_21 : f32 to vector<1x128xf32>
    %37 = arith.divf %35, %36 : vector<1x128xf32>
    %38 = vector.broadcast %37 : vector<1x128xf32> to vector<2x128xf32>
    %39 = arith.subf %31, %38 : vector<2x128xf32>
    %40 = arith.mulf %39, %39 : vector<2x128xf32>
    %cst_22 = arith.constant dense<0.000000e+00> : vector<128xf32>
    %41 = vector.multi_reduction <add>, %40, %cst_22 [0] : vector<2x128xf32> to vector<128xf32>
    %42 = vector.shape_cast %41 : vector<128xf32> to vector<1x128xf32>
    %cst_23 = arith.constant 2.000000e+00 : f32
    %43 = vector.broadcast %cst_23 : f32 to vector<1x128xf32>
    %44 = arith.divf %42, %43 : vector<1x128xf32>
    %cst_24 = arith.constant 9.99999974E-6 : f32
    %45 = vector.broadcast %cst_24 : f32 to vector<1x128xf32>
    %46 = arith.addf %44, %45 : vector<1x128xf32>
    %47 = math.rsqrt %46 : vector<1x128xf32>
    %48 = arith.mulf %32, %47 : vector<1x128xf32>
    %49 = vector.broadcast %48 : vector<1x128xf32> to vector<2x128xf32>
    %50 = arith.mulf %31, %49 : vector<2x128xf32>
    %51 = arith.mulf %37, %48 : vector<1x128xf32>
    %52 = arith.subf %33, %51 : vector<1x128xf32>
    %53 = vector.broadcast %52 : vector<1x128xf32> to vector<2x128xf32>
    %54 = arith.addf %50, %53 : vector<2x128xf32>
    %cst_25 = arith.constant 0.000000e+00 : f32
    %55 = vector.broadcast %cst_25 : f32 to vector<2x128xf32>
    %56 = arith.maximumf %54, %55 : vector<2x128xf32>
    %57 = arith.truncf %56 : vector<2x128xf32> to vector<2x128xbf16>
    %c0_26 = arith.constant 0 : index
    %c0_27 = arith.constant 0 : index
    %58 = vector.load %arg7[%c0_26, %c0_27] : memref<128x9xbf16, #tpu.memory_space<vmem>>, vector<128x9xbf16>
    %cst_28 = arith.constant dense<0.000000e+00> : vector<2x9xf32>
    %59 = tpu.matmul %57, %58, %cst_28 {dimension_numbers = #tpu.dot_dimension_numbers<[1], [0], [0], [1], [0, 0, 1, 1], [], []>} : vector<2x128xbf16>, vector<128x9xbf16>, vector<2x9xf32> -> vector<2x9xf32>
    %c0_29 = arith.constant 0 : index
    %c0_30 = arith.constant 0 : index
    %60 = vector.load %arg8[%c0_29, %c0_30] : memref<1x9xf32, #tpu.memory_space<vmem>>, vector<1x9xf32>
    %61 = vector.broadcast %60 : vector<1x9xf32> to vector<2x9xf32>
    %62 = arith.addf %59, %61 : vector<2x9xf32>
    %c0_31 = arith.constant 0 : index
    %c0_32 = arith.constant 0 : index
    %63 = vector.load %arg9[%c0_31, %c0_32] : memref<2x9xf32, #tpu.memory_space<vmem>>, vector<2x9xf32>
    tpu.vector_store %arg9[%c0_31, %c0_32], %62 {strides = array<i32>} : memref<2x9xf32, #tpu.memory_space<vmem>>, vector<2x9xf32>,
    return
  }
}

module attributes {stable_mosaic.version = 11 : i64} {
  func.func @_mm_stats_kernel(%arg0: i32, %arg1: memref<256x64xbf16, #tpu.memory_space<vmem>>, %arg2: memref<1x64xbf16, #tpu.memory_space<vmem>>, %arg3: memref<1x64xbf16, #tpu.memory_space<vmem>>, %arg4: memref<64x64xbf16, #tpu.memory_space<vmem>>, %arg5: memref<256x64xbf16, #tpu.memory_space<vmem>>, %arg6: memref<1x2x64xf32, #tpu.memory_space<vmem>>) attributes {dimension_semantics = [#tpu.dimension_semantics<parallel>], iteration_bounds = array<i64: 1>, scalar_prefetch = 0 : i64, scratch_operands = 0 : i64, tpu.core_type = #tpu.core_type<tc>, window_params = [{transform_indices = @transform_0, window_bounds = array<i64: 256, 64>}, {pipeline_mode = #tpu.pipeline_mode<synchronous>, transform_indices = @transform_1, window_bounds = array<i64: 1, 64>}, {pipeline_mode = #tpu.pipeline_mode<synchronous>, transform_indices = @transform_2, window_bounds = array<i64: 1, 64>}, {pipeline_mode = #tpu.pipeline_mode<synchronous>, transform_indices = @transform_3, window_bounds = array<i64: 64, 64>}, {transform_indices = @transform_4, window_bounds = array<i64: 256, 64>}, {transform_indices = @transform_5, window_bounds = array<i64: 1, 2, 64>}]} {
    %c0 = arith.constant 0 : index
    %c0_0 = arith.constant 0 : index
    %0 = vector.load %arg1[%c0, %c0_0] : memref<256x64xbf16, #tpu.memory_space<vmem>>, vector<256x64xbf16>
    %c0_1 = arith.constant 0 : index
    %c0_2 = arith.constant 0 : index
    %1 = vector.load %arg2[%c0_1, %c0_2] : memref<1x64xbf16, #tpu.memory_space<vmem>>, vector<1x64xbf16>
    %2 = vector.broadcast %1 : vector<1x64xbf16> to vector<256x64xbf16>
    %3 = arith.mulf %0, %2 : vector<256x64xbf16>
    %c0_3 = arith.constant 0 : index
    %c0_4 = arith.constant 0 : index
    %4 = vector.load %arg3[%c0_3, %c0_4] : memref<1x64xbf16, #tpu.memory_space<vmem>>, vector<1x64xbf16>
    %5 = vector.broadcast %4 : vector<1x64xbf16> to vector<256x64xbf16>
    %6 = arith.addf %3, %5 : vector<256x64xbf16>
    %cst = arith.constant 0.000000e+00 : bf16
    %7 = vector.broadcast %cst : bf16 to vector<256x64xbf16>
    %8 = arith.maximumf %6, %7 : vector<256x64xbf16>
    %c0_5 = arith.constant 0 : index
    %c0_6 = arith.constant 0 : index
    %9 = vector.load %arg4[%c0_5, %c0_6] : memref<64x64xbf16, #tpu.memory_space<vmem>>, vector<64x64xbf16>
    %cst_7 = arith.constant dense<0.000000e+00> : vector<256x64xf32>
    %10 = tpu.matmul %8, %9, %cst_7 {dimension_numbers = #tpu.dot_dimension_numbers<[1], [0], [0], [1], [0, 0, 1, 1], [], []>} : vector<256x64xbf16>, vector<64x64xbf16>, vector<256x64xf32> -> vector<256x64xf32>
    %11 = arith.truncf %10 : vector<256x64xf32> to vector<256x64xbf16>
    %c0_8 = arith.constant 0 : index
    %c0_9 = arith.constant 0 : index
    %12 = vector.load %arg5[%c0_8, %c0_9] : memref<256x64xbf16, #tpu.memory_space<vmem>>, vector<256x64xbf16>
    tpu.vector_store %arg5[%c0_8, %c0_9], %11 {strides = array<i32>} : memref<256x64xbf16, #tpu.memory_space<vmem>>, vector<256x64xbf16>,
    %cst_10 = arith.constant dense<0.000000e+00> : vector<64xf32>
    %13 = vector.multi_reduction <add>, %10, %cst_10 [0] : vector<256x64xf32> to vector<64xf32>
    %14 = vector.shape_cast %13 : vector<64xf32> to vector<1x64xf32>
    %15 = arith.mulf %10, %10 : vector<256x64xf32>
    %cst_11 = arith.constant dense<0.000000e+00> : vector<64xf32>
    %16 = vector.multi_reduction <add>, %15, %cst_11 [0] : vector<256x64xf32> to vector<64xf32>
    %17 = vector.shape_cast %16 : vector<64xf32> to vector<1x64xf32>
    %18 = tpu.concatenate %14, %17 in 0 : vector<1x64xf32>, vector<1x64xf32> -> vector<2x64xf32>
    %c0_12 = arith.constant 0 : index
    %c0_13 = arith.constant 0 : index
    %c0_14 = arith.constant 0 : index
    %19 = vector.load %arg6[%c0_12, %c0_13, %c0_14] : memref<1x2x64xf32, #tpu.memory_space<vmem>>, vector<1x2x64xf32>
    %20 = vector.shape_cast %19 : vector<1x2x64xf32> to vector<2x64xf32>
    %21 = vector.shape_cast %18 : vector<2x64xf32> to vector<1x2x64xf32>
    tpu.vector_store %arg6[%c0_12, %c0_13, %c0_14], %21 {strides = array<i32>} : memref<1x2x64xf32, #tpu.memory_space<vmem>>, vector<1x2x64xf32>,
    return
  }
  func.func @transform_0(%arg0: i32) -> (i32, i32) {
    %c0_i32 = arith.constant 0 : i32
    %c0_i32_0 = arith.constant 0 : i32
    return %arg0, %c0_i32 : i32, i32
  }
  func.func @transform_1(%arg0: i32) -> (i32, i32) {
    %c0_i32 = arith.constant 0 : i32
    %c0_i32_0 = arith.constant 0 : i32
    %c0_i32_1 = arith.constant 0 : i32
    return %c0_i32, %c0_i32_0 : i32, i32
  }
  func.func @transform_2(%arg0: i32) -> (i32, i32) {
    %c0_i32 = arith.constant 0 : i32
    %c0_i32_0 = arith.constant 0 : i32
    %c0_i32_1 = arith.constant 0 : i32
    return %c0_i32, %c0_i32_0 : i32, i32
  }
  func.func @transform_3(%arg0: i32) -> (i32, i32) {
    %c0_i32 = arith.constant 0 : i32
    %c0_i32_0 = arith.constant 0 : i32
    %c0_i32_1 = arith.constant 0 : i32
    return %c0_i32, %c0_i32_0 : i32, i32
  }
  func.func @transform_4(%arg0: i32) -> (i32, i32) {
    %c0_i32 = arith.constant 0 : i32
    %c0_i32_0 = arith.constant 0 : i32
    return %arg0, %c0_i32 : i32, i32
  }
  func.func @transform_5(%arg0: i32) -> (i32, i32, i32) {
    %c0_i32 = arith.constant 0 : i32
    %c0_i32_0 = arith.constant 0 : i32
    %c0_i32_1 = arith.constant 0 : i32
    return %arg0, %c0_i32, %c0_i32_0 : i32, i32, i32
  }
}

module attributes {stable_mosaic.version = 11 : i64} {
  func.func @_norm_relu_kernel(%arg0: i32, %arg1: memref<256x64xbf16, #tpu.memory_space<vmem>>, %arg2: memref<1x64xbf16, #tpu.memory_space<vmem>>, %arg3: memref<1x64xbf16, #tpu.memory_space<vmem>>, %arg4: memref<256x64xbf16, #tpu.memory_space<vmem>>) attributes {dimension_semantics = [#tpu.dimension_semantics<parallel>], iteration_bounds = array<i64: 1>, scalar_prefetch = 0 : i64, scratch_operands = 0 : i64, tpu.core_type = #tpu.core_type<tc>, window_params = [{transform_indices = @transform_0, window_bounds = array<i64: 256, 64>}, {pipeline_mode = #tpu.pipeline_mode<synchronous>, transform_indices = @transform_1, window_bounds = array<i64: 1, 64>}, {pipeline_mode = #tpu.pipeline_mode<synchronous>, transform_indices = @transform_2, window_bounds = array<i64: 1, 64>}, {transform_indices = @transform_3, window_bounds = array<i64: 256, 64>}]} {
    %c0 = arith.constant 0 : index
    %c0_0 = arith.constant 0 : index
    %0 = vector.load %arg1[%c0, %c0_0] : memref<256x64xbf16, #tpu.memory_space<vmem>>, vector<256x64xbf16>
    %c0_1 = arith.constant 0 : index
    %c0_2 = arith.constant 0 : index
    %1 = vector.load %arg2[%c0_1, %c0_2] : memref<1x64xbf16, #tpu.memory_space<vmem>>, vector<1x64xbf16>
    %2 = vector.broadcast %1 : vector<1x64xbf16> to vector<256x64xbf16>
    %3 = arith.mulf %0, %2 : vector<256x64xbf16>
    %c0_3 = arith.constant 0 : index
    %c0_4 = arith.constant 0 : index
    %4 = vector.load %arg3[%c0_3, %c0_4] : memref<1x64xbf16, #tpu.memory_space<vmem>>, vector<1x64xbf16>
    %5 = vector.broadcast %4 : vector<1x64xbf16> to vector<256x64xbf16>
    %6 = arith.addf %3, %5 : vector<256x64xbf16>
    %cst = arith.constant 0.000000e+00 : bf16
    %7 = vector.broadcast %cst : bf16 to vector<256x64xbf16>
    %8 = arith.maximumf %6, %7 : vector<256x64xbf16>
    %c0_5 = arith.constant 0 : index
    %c0_6 = arith.constant 0 : index
    %9 = vector.load %arg4[%c0_5, %c0_6] : memref<256x64xbf16, #tpu.memory_space<vmem>>, vector<256x64xbf16>
    tpu.vector_store %arg4[%c0_5, %c0_6], %8 {strides = array<i32>} : memref<256x64xbf16, #tpu.memory_space<vmem>>, vector<256x64xbf16>,
    return
  }
  func.func @transform_0(%arg0: i32) -> (i32, i32) {
    %c0_i32 = arith.constant 0 : i32
    %c0_i32_0 = arith.constant 0 : i32
    return %arg0, %c0_i32 : i32, i32
  }
  func.func @transform_1(%arg0: i32) -> (i32, i32) {
    %c0_i32 = arith.constant 0 : i32
    %c0_i32_0 = arith.constant 0 : i32
    %c0_i32_1 = arith.constant 0 : i32
    return %c0_i32, %c0_i32_0 : i32, i32
  }
  func.func @transform_2(%arg0: i32) -> (i32, i32) {
    %c0_i32 = arith.constant 0 : i32
    %c0_i32_0 = arith.constant 0 : i32
    %c0_i32_1 = arith.constant 0 : i32
    return %c0_i32, %c0_i32_0 : i32, i32
  }
  func.func @transform_3(%arg0: i32) -> (i32, i32) {
    %c0_i32 = arith.constant 0 : i32
    %c0_i32_0 = arith.constant 0 : i32
    return %arg0, %c0_i32 : i32, i32
  }
}

module attributes {stable_mosaic.version = 11 : i64} {
  func.func @_mm_stats_kernel(%arg0: i32, %arg1: memref<256x64xbf16, #tpu.memory_space<vmem>>, %arg2: memref<64x64xbf16, #tpu.memory_space<vmem>>, %arg3: memref<256x64xbf16, #tpu.memory_space<vmem>>, %arg4: memref<1x2x64xf32, #tpu.memory_space<vmem>>) attributes {dimension_semantics = [#tpu.dimension_semantics<parallel>], iteration_bounds = array<i64: 1>, scalar_prefetch = 0 : i64, scratch_operands = 0 : i64, tpu.core_type = #tpu.core_type<tc>, window_params = [{transform_indices = @transform_0, window_bounds = array<i64: 256, 64>}, {pipeline_mode = #tpu.pipeline_mode<synchronous>, transform_indices = @transform_1, window_bounds = array<i64: 64, 64>}, {transform_indices = @transform_2, window_bounds = array<i64: 256, 64>}, {transform_indices = @transform_3, window_bounds = array<i64: 1, 2, 64>}]} {
    %c0 = arith.constant 0 : index
    %c0_0 = arith.constant 0 : index
    %0 = vector.load %arg1[%c0, %c0_0] : memref<256x64xbf16, #tpu.memory_space<vmem>>, vector<256x64xbf16>
    %c0_1 = arith.constant 0 : index
    %c0_2 = arith.constant 0 : index
    %1 = vector.load %arg2[%c0_1, %c0_2] : memref<64x64xbf16, #tpu.memory_space<vmem>>, vector<64x64xbf16>
    %cst = arith.constant dense<0.000000e+00> : vector<256x64xf32>
    %2 = tpu.matmul %0, %1, %cst {dimension_numbers = #tpu.dot_dimension_numbers<[1], [0], [0], [1], [0, 0, 1, 1], [], []>} : vector<256x64xbf16>, vector<64x64xbf16>, vector<256x64xf32> -> vector<256x64xf32>
    %3 = arith.truncf %2 : vector<256x64xf32> to vector<256x64xbf16>
    %c0_3 = arith.constant 0 : index
    %c0_4 = arith.constant 0 : index
    %4 = vector.load %arg3[%c0_3, %c0_4] : memref<256x64xbf16, #tpu.memory_space<vmem>>, vector<256x64xbf16>
    tpu.vector_store %arg3[%c0_3, %c0_4], %3 {strides = array<i32>} : memref<256x64xbf16, #tpu.memory_space<vmem>>, vector<256x64xbf16>,
    %cst_5 = arith.constant dense<0.000000e+00> : vector<64xf32>
    %5 = vector.multi_reduction <add>, %2, %cst_5 [0] : vector<256x64xf32> to vector<64xf32>
    %6 = vector.shape_cast %5 : vector<64xf32> to vector<1x64xf32>
    %7 = arith.mulf %2, %2 : vector<256x64xf32>
    %cst_6 = arith.constant dense<0.000000e+00> : vector<64xf32>
    %8 = vector.multi_reduction <add>, %7, %cst_6 [0] : vector<256x64xf32> to vector<64xf32>
    %9 = vector.shape_cast %8 : vector<64xf32> to vector<1x64xf32>
    %10 = tpu.concatenate %6, %9 in 0 : vector<1x64xf32>, vector<1x64xf32> -> vector<2x64xf32>
    %c0_7 = arith.constant 0 : index
    %c0_8 = arith.constant 0 : index
    %c0_9 = arith.constant 0 : index
    %11 = vector.load %arg4[%c0_7, %c0_8, %c0_9] : memref<1x2x64xf32, #tpu.memory_space<vmem>>, vector<1x2x64xf32>
    %12 = vector.shape_cast %11 : vector<1x2x64xf32> to vector<2x64xf32>
    %13 = vector.shape_cast %10 : vector<2x64xf32> to vector<1x2x64xf32>
    tpu.vector_store %arg4[%c0_7, %c0_8, %c0_9], %13 {strides = array<i32>} : memref<1x2x64xf32, #tpu.memory_space<vmem>>, vector<1x2x64xf32>,
    return
  }
  func.func @transform_0(%arg0: i32) -> (i32, i32) {
    %c0_i32 = arith.constant 0 : i32
    %c0_i32_0 = arith.constant 0 : i32
    return %arg0, %c0_i32 : i32, i32
  }
  func.func @transform_1(%arg0: i32) -> (i32, i32) {
    %c0_i32 = arith.constant 0 : i32
    %c0_i32_0 = arith.constant 0 : i32
    %c0_i32_1 = arith.constant 0 : i32
    return %c0_i32, %c0_i32_0 : i32, i32
  }
  func.func @transform_2(%arg0: i32) -> (i32, i32) {
    %c0_i32 = arith.constant 0 : i32
    %c0_i32_0 = arith.constant 0 : i32
    return %arg0, %c0_i32 : i32, i32
  }
  func.func @transform_3(%arg0: i32) -> (i32, i32, i32) {
    %c0_i32 = arith.constant 0 : i32
    %c0_i32_0 = arith.constant 0 : i32
    %c0_i32_1 = arith.constant 0 : i32
    return %arg0, %c0_i32, %c0_i32_0 : i32, i32, i32
  }
}

module attributes {stable_mosaic.version = 11 : i64} {
  func.func @_fc_head_kernel(%arg0: memref<2x256xf32, #tpu.memory_space<vmem>>, %arg1: memref<256x256xbf16, #tpu.memory_space<vmem>>, %arg2: memref<1x256xf32, #tpu.memory_space<vmem>>, %arg3: memref<1x256xf32, #tpu.memory_space<vmem>>, %arg4: memref<256x128xbf16, #tpu.memory_space<vmem>>, %arg5: memref<1x128xf32, #tpu.memory_space<vmem>>, %arg6: memref<1x128xf32, #tpu.memory_space<vmem>>, %arg7: memref<128x4096xbf16, #tpu.memory_space<vmem>>, %arg8: memref<1x4096xf32, #tpu.memory_space<vmem>>, %arg9: memref<2x4096xf32, #tpu.memory_space<vmem>>) attributes {dimension_semantics = [], scalar_prefetch = 0 : i64, scratch_operands = 0 : i64, tpu.core_type = #tpu.core_type<tc>} {
    %c0 = arith.constant 0 : index
    %c0_0 = arith.constant 0 : index
    %0 = vector.load %arg0[%c0, %c0_0] : memref<2x256xf32, #tpu.memory_space<vmem>>, vector<2x256xf32>
    %1 = arith.truncf %0 : vector<2x256xf32> to vector<2x256xbf16>
    %c0_1 = arith.constant 0 : index
    %c0_2 = arith.constant 0 : index
    %2 = vector.load %arg1[%c0_1, %c0_2] : memref<256x256xbf16, #tpu.memory_space<vmem>>, vector<256x256xbf16>
    %cst = arith.constant dense<0.000000e+00> : vector<2x256xf32>
    %3 = tpu.matmul %1, %2, %cst {dimension_numbers = #tpu.dot_dimension_numbers<[1], [0], [0], [1], [0, 0, 1, 1], [], []>} : vector<2x256xbf16>, vector<256x256xbf16>, vector<2x256xf32> -> vector<2x256xf32>
    %c0_3 = arith.constant 0 : index
    %c0_4 = arith.constant 0 : index
    %4 = vector.load %arg2[%c0_3, %c0_4] : memref<1x256xf32, #tpu.memory_space<vmem>>, vector<1x256xf32>
    %c0_5 = arith.constant 0 : index
    %c0_6 = arith.constant 0 : index
    %5 = vector.load %arg3[%c0_5, %c0_6] : memref<1x256xf32, #tpu.memory_space<vmem>>, vector<1x256xf32>
    %cst_7 = arith.constant dense<0.000000e+00> : vector<256xf32>
    %6 = vector.multi_reduction <add>, %3, %cst_7 [0] : vector<2x256xf32> to vector<256xf32>
    %7 = vector.shape_cast %6 : vector<256xf32> to vector<1x256xf32>
    %cst_8 = arith.constant 2.000000e+00 : f32
    %8 = vector.broadcast %cst_8 : f32 to vector<1x256xf32>
    %9 = arith.divf %7, %8 : vector<1x256xf32>
    %10 = vector.broadcast %9 : vector<1x256xf32> to vector<2x256xf32>
    %11 = arith.subf %3, %10 : vector<2x256xf32>
    %12 = arith.mulf %11, %11 : vector<2x256xf32>
    %cst_9 = arith.constant dense<0.000000e+00> : vector<256xf32>
    %13 = vector.multi_reduction <add>, %12, %cst_9 [0] : vector<2x256xf32> to vector<256xf32>
    %14 = vector.shape_cast %13 : vector<256xf32> to vector<1x256xf32>
    %cst_10 = arith.constant 2.000000e+00 : f32
    %15 = vector.broadcast %cst_10 : f32 to vector<1x256xf32>
    %16 = arith.divf %14, %15 : vector<1x256xf32>
    %cst_11 = arith.constant 9.99999974E-6 : f32
    %17 = vector.broadcast %cst_11 : f32 to vector<1x256xf32>
    %18 = arith.addf %16, %17 : vector<1x256xf32>
    %19 = math.rsqrt %18 : vector<1x256xf32>
    %20 = arith.mulf %4, %19 : vector<1x256xf32>
    %21 = vector.broadcast %20 : vector<1x256xf32> to vector<2x256xf32>
    %22 = arith.mulf %3, %21 : vector<2x256xf32>
    %23 = arith.mulf %9, %20 : vector<1x256xf32>
    %24 = arith.subf %5, %23 : vector<1x256xf32>
    %25 = vector.broadcast %24 : vector<1x256xf32> to vector<2x256xf32>
    %26 = arith.addf %22, %25 : vector<2x256xf32>
    %cst_12 = arith.constant 0.000000e+00 : f32
    %27 = vector.broadcast %cst_12 : f32 to vector<2x256xf32>
    %28 = arith.maximumf %26, %27 : vector<2x256xf32>
    %29 = arith.truncf %28 : vector<2x256xf32> to vector<2x256xbf16>
    %c0_13 = arith.constant 0 : index
    %c0_14 = arith.constant 0 : index
    %30 = vector.load %arg4[%c0_13, %c0_14] : memref<256x128xbf16, #tpu.memory_space<vmem>>, vector<256x128xbf16>
    %cst_15 = arith.constant dense<0.000000e+00> : vector<2x128xf32>
    %31 = tpu.matmul %29, %30, %cst_15 {dimension_numbers = #tpu.dot_dimension_numbers<[1], [0], [0], [1], [0, 0, 1, 1], [], []>} : vector<2x256xbf16>, vector<256x128xbf16>, vector<2x128xf32> -> vector<2x128xf32>
    %c0_16 = arith.constant 0 : index
    %c0_17 = arith.constant 0 : index
    %32 = vector.load %arg5[%c0_16, %c0_17] : memref<1x128xf32, #tpu.memory_space<vmem>>, vector<1x128xf32>
    %c0_18 = arith.constant 0 : index
    %c0_19 = arith.constant 0 : index
    %33 = vector.load %arg6[%c0_18, %c0_19] : memref<1x128xf32, #tpu.memory_space<vmem>>, vector<1x128xf32>
    %cst_20 = arith.constant dense<0.000000e+00> : vector<128xf32>
    %34 = vector.multi_reduction <add>, %31, %cst_20 [0] : vector<2x128xf32> to vector<128xf32>
    %35 = vector.shape_cast %34 : vector<128xf32> to vector<1x128xf32>
    %cst_21 = arith.constant 2.000000e+00 : f32
    %36 = vector.broadcast %cst_21 : f32 to vector<1x128xf32>
    %37 = arith.divf %35, %36 : vector<1x128xf32>
    %38 = vector.broadcast %37 : vector<1x128xf32> to vector<2x128xf32>
    %39 = arith.subf %31, %38 : vector<2x128xf32>
    %40 = arith.mulf %39, %39 : vector<2x128xf32>
    %cst_22 = arith.constant dense<0.000000e+00> : vector<128xf32>
    %41 = vector.multi_reduction <add>, %40, %cst_22 [0] : vector<2x128xf32> to vector<128xf32>
    %42 = vector.shape_cast %41 : vector<128xf32> to vector<1x128xf32>
    %cst_23 = arith.constant 2.000000e+00 : f32
    %43 = vector.broadcast %cst_23 : f32 to vector<1x128xf32>
    %44 = arith.divf %42, %43 : vector<1x128xf32>
    %cst_24 = arith.constant 9.99999974E-6 : f32
    %45 = vector.broadcast %cst_24 : f32 to vector<1x128xf32>
    %46 = arith.addf %44, %45 : vector<1x128xf32>
    %47 = math.rsqrt %46 : vector<1x128xf32>
    %48 = arith.mulf %32, %47 : vector<1x128xf32>
    %49 = vector.broadcast %48 : vector<1x128xf32> to vector<2x128xf32>
    %50 = arith.mulf %31, %49 : vector<2x128xf32>
    %51 = arith.mulf %37, %48 : vector<1x128xf32>
    %52 = arith.subf %33, %51 : vector<1x128xf32>
    %53 = vector.broadcast %52 : vector<1x128xf32> to vector<2x128xf32>
    %54 = arith.addf %50, %53 : vector<2x128xf32>
    %cst_25 = arith.constant 0.000000e+00 : f32
    %55 = vector.broadcast %cst_25 : f32 to vector<2x128xf32>
    %56 = arith.maximumf %54, %55 : vector<2x128xf32>
    %57 = arith.truncf %56 : vector<2x128xf32> to vector<2x128xbf16>
    %c0_26 = arith.constant 0 : index
    %c0_27 = arith.constant 0 : index
    %58 = vector.load %arg7[%c0_26, %c0_27] : memref<128x4096xbf16, #tpu.memory_space<vmem>>, vector<128x4096xbf16>
    %cst_28 = arith.constant dense<0.000000e+00> : vector<2x4096xf32>
    %59 = tpu.matmul %57, %58, %cst_28 {dimension_numbers = #tpu.dot_dimension_numbers<[1], [0], [0], [1], [0, 0, 1, 1], [], []>} : vector<2x128xbf16>, vector<128x4096xbf16>, vector<2x4096xf32> -> vector<2x4096xf32>
    %c0_29 = arith.constant 0 : index
    %c0_30 = arith.constant 0 : index
    %60 = vector.load %arg8[%c0_29, %c0_30] : memref<1x4096xf32, #tpu.memory_space<vmem>>, vector<1x4096xf32>
    %61 = vector.broadcast %60 : vector<1x4096xf32> to vector<2x4096xf32>
    %62 = arith.addf %59, %61 : vector<2x4096xf32>
    %c0_31 = arith.constant 0 : index
    %c0_32 = arith.constant 0 : index
    %63 = vector.load %arg9[%c0_31, %c0_32] : memref<2x4096xf32, #tpu.memory_space<vmem>>, vector<2x4096xf32>
    tpu.vector_store %arg9[%c0_31, %c0_32], %62 {strides = array<i32>} : memref<2x4096xf32, #tpu.memory_space<vmem>>, vector<2x4096xf32>,
    return
  }
}

module attributes {stable_mosaic.version = 11 : i64} {
  func.func @_bdot_stats_kernel(%arg0: i32, %arg1: i32, %arg2: memref<1x128x64xbf16, #tpu.memory_space<vmem>>, %arg3: memref<1x64x64xbf16, #tpu.memory_space<vmem>>, %arg4: memref<1x128x64xbf16, #tpu.memory_space<vmem>>, %arg5: memref<1x2x64xf32, #tpu.memory_space<vmem>>) attributes {dimension_semantics = [#tpu.dimension_semantics<parallel>, #tpu.dimension_semantics<parallel>], iteration_bounds = array<i64: 2, 1>, scalar_prefetch = 0 : i64, scratch_operands = 0 : i64, tpu.core_type = #tpu.core_type<tc>, window_params = [{transform_indices = @transform_0, window_bounds = array<i64: 1, 128, 64>}, {transform_indices = @transform_1, window_bounds = array<i64: 1, 64, 64>}, {transform_indices = @transform_2, window_bounds = array<i64: 1, 128, 64>}, {transform_indices = @transform_3, window_bounds = array<i64: 1, 2, 64>}]} {
    %c0 = arith.constant 0 : index
    %c0_0 = arith.constant 0 : index
    %c0_1 = arith.constant 0 : index
    %0 = vector.load %arg2[%c0, %c0_0, %c0_1] : memref<1x128x64xbf16, #tpu.memory_space<vmem>>, vector<1x128x64xbf16>
    %1 = vector.shape_cast %0 : vector<1x128x64xbf16> to vector<128x64xbf16>
    %c0_2 = arith.constant 0 : index
    %c0_3 = arith.constant 0 : index
    %c0_4 = arith.constant 0 : index
    %2 = vector.load %arg3[%c0_2, %c0_3, %c0_4] : memref<1x64x64xbf16, #tpu.memory_space<vmem>>, vector<1x64x64xbf16>
    %3 = vector.shape_cast %2 : vector<1x64x64xbf16> to vector<64x64xbf16>
    %cst = arith.constant dense<0.000000e+00> : vector<128x64xf32>
    %4 = tpu.matmul %1, %3, %cst {dimension_numbers = #tpu.dot_dimension_numbers<[1], [0], [0], [1], [0, 0, 1, 1], [], []>} : vector<128x64xbf16>, vector<64x64xbf16>, vector<128x64xf32> -> vector<128x64xf32>
    %5 = arith.truncf %4 : vector<128x64xf32> to vector<128x64xbf16>
    %c0_5 = arith.constant 0 : index
    %c0_6 = arith.constant 0 : index
    %c0_7 = arith.constant 0 : index
    %6 = vector.load %arg4[%c0_5, %c0_6, %c0_7] : memref<1x128x64xbf16, #tpu.memory_space<vmem>>, vector<1x128x64xbf16>
    %7 = vector.shape_cast %6 : vector<1x128x64xbf16> to vector<128x64xbf16>
    %8 = vector.shape_cast %5 : vector<128x64xbf16> to vector<1x128x64xbf16>
    tpu.vector_store %arg4[%c0_5, %c0_6, %c0_7], %8 {strides = array<i32>} : memref<1x128x64xbf16, #tpu.memory_space<vmem>>, vector<1x128x64xbf16>,
    %cst_8 = arith.constant dense<0.000000e+00> : vector<64xf32>
    %9 = vector.multi_reduction <add>, %4, %cst_8 [0] : vector<128x64xf32> to vector<64xf32>
    %10 = vector.shape_cast %9 : vector<64xf32> to vector<1x64xf32>
    %11 = arith.mulf %4, %4 : vector<128x64xf32>
    %cst_9 = arith.constant dense<0.000000e+00> : vector<64xf32>
    %12 = vector.multi_reduction <add>, %11, %cst_9 [0] : vector<128x64xf32> to vector<64xf32>
    %13 = vector.shape_cast %12 : vector<64xf32> to vector<1x64xf32>
    %14 = tpu.concatenate %10, %13 in 0 : vector<1x64xf32>, vector<1x64xf32> -> vector<2x64xf32>
    %c0_10 = arith.constant 0 : index
    %c0_11 = arith.constant 0 : index
    %c0_12 = arith.constant 0 : index
    %15 = vector.load %arg5[%c0_10, %c0_11, %c0_12] : memref<1x2x64xf32, #tpu.memory_space<vmem>>, vector<1x2x64xf32>
    %16 = vector.shape_cast %15 : vector<1x2x64xf32> to vector<2x64xf32>
    %17 = vector.shape_cast %14 : vector<2x64xf32> to vector<1x2x64xf32>
    tpu.vector_store %arg5[%c0_10, %c0_11, %c0_12], %17 {strides = array<i32>} : memref<1x2x64xf32, #tpu.memory_space<vmem>>, vector<1x2x64xf32>,
    return
  }
  func.func @transform_0(%arg0: i32, %arg1: i32) -> (i32, i32, i32) {
    %c0_i32 = arith.constant 0 : i32
    %c0_i32_0 = arith.constant 0 : i32
    return %arg0, %arg1, %c0_i32 : i32, i32, i32
  }
  func.func @transform_1(%arg0: i32, %arg1: i32) -> (i32, i32, i32) {
    %c0_i32 = arith.constant 0 : i32
    %c0_i32_0 = arith.constant 0 : i32
    %c0_i32_1 = arith.constant 0 : i32
    return %arg0, %c0_i32, %c0_i32_0 : i32, i32, i32
  }
  func.func @transform_2(%arg0: i32, %arg1: i32) -> (i32, i32, i32) {
    %c0_i32 = arith.constant 0 : i32
    %c0_i32_0 = arith.constant 0 : i32
    return %arg0, %arg1, %c0_i32 : i32, i32, i32
  }
  func.func @transform_3(%arg0: i32, %arg1: i32) -> (i32, i32, i32) {
    %c1_i32 = arith.constant 1 : i32
    %0 = arith.muli %arg0, %c1_i32 : i32
    %1 = arith.addi %0, %arg1 : i32
    %c0_i32 = arith.constant 0 : i32
    %c0_i32_0 = arith.constant 0 : i32
    %c0_i32_1 = arith.constant 0 : i32
    return %1, %c0_i32, %c0_i32_0 : i32, i32, i32
  }
}

module attributes {stable_mosaic.version = 11 : i64} {
  func.func @_norm_relu_transpose_kernel(%arg0: i32, %arg1: i32, %arg2: memref<1x128x256xbf16, #tpu.memory_space<vmem>>, %arg3: memref<1x256xf32, #tpu.memory_space<vmem>>, %arg4: memref<1x256xf32, #tpu.memory_space<vmem>>, %arg5: memref<1x256x128xf32, #tpu.memory_space<vmem>>) attributes {dimension_semantics = [#tpu.dimension_semantics<parallel>, #tpu.dimension_semantics<parallel>], iteration_bounds = array<i64: 2, 1>, scalar_prefetch = 0 : i64, scratch_operands = 0 : i64, tpu.core_type = #tpu.core_type<tc>, window_params = [{transform_indices = @transform_0, window_bounds = array<i64: 1, 128, 256>}, {pipeline_mode = #tpu.pipeline_mode<synchronous>, transform_indices = @transform_1, window_bounds = array<i64: 1, 256>}, {pipeline_mode = #tpu.pipeline_mode<synchronous>, transform_indices = @transform_2, window_bounds = array<i64: 1, 256>}, {transform_indices = @transform_3, window_bounds = array<i64: 1, 256, 128>}]} {
    %c0 = arith.constant 0 : index
    %c0_0 = arith.constant 0 : index
    %c0_1 = arith.constant 0 : index
    %0 = vector.load %arg2[%c0, %c0_0, %c0_1] : memref<1x128x256xbf16, #tpu.memory_space<vmem>>, vector<1x128x256xbf16>
    %1 = vector.shape_cast %0 : vector<1x128x256xbf16> to vector<128x256xbf16>
    %2 = arith.extf %1 : vector<128x256xbf16> to vector<128x256xf32>
    %c0_2 = arith.constant 0 : index
    %c0_3 = arith.constant 0 : index
    %3 = vector.load %arg3[%c0_2, %c0_3] : memref<1x256xf32, #tpu.memory_space<vmem>>, vector<1x256xf32>
    %4 = vector.broadcast %3 : vector<1x256xf32> to vector<128x256xf32>
    %5 = arith.mulf %2, %4 : vector<128x256xf32>
    %c0_4 = arith.constant 0 : index
    %c0_5 = arith.constant 0 : index
    %6 = vector.load %arg4[%c0_4, %c0_5] : memref<1x256xf32, #tpu.memory_space<vmem>>, vector<1x256xf32>
    %7 = vector.broadcast %6 : vector<1x256xf32> to vector<128x256xf32>
    %8 = arith.addf %5, %7 : vector<128x256xf32>
    %cst = arith.constant 0.000000e+00 : f32
    %9 = vector.broadcast %cst : f32 to vector<128x256xf32>
    %10 = arith.maximumf %8, %9 : vector<128x256xf32>
    %11 = tpu.transpose %10, [1, 0] : vector<128x256xf32> -> vector<256x128xf32>
    %c0_6 = arith.constant 0 : index
    %c0_7 = arith.constant 0 : index
    %c0_8 = arith.constant 0 : index
    %12 = vector.load %arg5[%c0_6, %c0_7, %c0_8] : memref<1x256x128xf32, #tpu.memory_space<vmem>>, vector<1x256x128xf32>
    %13 = vector.shape_cast %12 : vector<1x256x128xf32> to vector<256x128xf32>
    %14 = vector.shape_cast %11 : vector<256x128xf32> to vector<1x256x128xf32>
    tpu.vector_store %arg5[%c0_6, %c0_7, %c0_8], %14 {strides = array<i32>} : memref<1x256x128xf32, #tpu.memory_space<vmem>>, vector<1x256x128xf32>,
    return
  }
  func.func @transform_0(%arg0: i32, %arg1: i32) -> (i32, i32, i32) {
    %c0_i32 = arith.constant 0 : i32
    %c0_i32_0 = arith.constant 0 : i32
    return %arg0, %arg1, %c0_i32 : i32, i32, i32
  }
  func.func @transform_1(%arg0: i32, %arg1: i32) -> (i32, i32) {
    %c0_i32 = arith.constant 0 : i32
    %c0_i32_0 = arith.constant 0 : i32
    %c0_i32_1 = arith.constant 0 : i32
    return %c0_i32, %c0_i32_0 : i32, i32
  }
  func.func @transform_2(%arg0: i32, %arg1: i32) -> (i32, i32) {
    %c0_i32 = arith.constant 0 : i32
    %c0_i32_0 = arith.constant 0 : i32
    %c0_i32_1 = arith.constant 0 : i32
    return %c0_i32, %c0_i32_0 : i32, i32
  }
  func.func @transform_3(%arg0: i32, %arg1: i32) -> (i32, i32, i32) {
    %c0_i32 = arith.constant 0 : i32
    %c0_i32_0 = arith.constant 0 : i32
    return %arg0, %c0_i32, %arg1 : i32, i32, i32
  }
}

</mosaic_0001>

<llo_original>
// kernel: base_point_net.20
$region0: #{base_point_net.20}
  #allocation0 [shape = 'u32[]', space=smem, size = 0x4, offset = 0x4, fixed_abs, tag = 'smem constant byte address 0x4 - core index']
  #allocation1 [shape = 'u32[144,128]{1,0:T(1,128)}', space=vmem, size = 0x12000, scoped, tag = 'internal scratch']
  %s0 = inlined_call_operand.vmem [shape: bf16[2,128,256], index: 0, kind: input, shape index: {}]
  %s1 = inlined_call_operand.vmem [shape: f32[1,256], index: 1, kind: input, shape index: {}]
  %s2 = inlined_call_operand.vmem [shape: f32[1,256], index: 2, kind: input, shape index: {}]
  %s3 = inlined_call_operand.vmem [shape: f32[2,1,256], index: 3, kind: output, shape index: {}]
  %s4 = sld [smem:[#allocation0]]
  $region90: #{base_point_net.20} parent=0
    _
  %s6 = ssub.s32 1, %s4
  %s7 = scalar_select 0, %s6, %s4
  $region1: #{base_point_net.20} parent=0
    #allocation2 [shape = 'u8[65536]{0}', space=vmem, size = 0x10000, scoped, tag = 'input window, operand 0']
    loop: start=0, step=1, limit=6
    $region2: #{base_point_net.20} parent=1 // loop_pre_header
      _
    $region3: #{base_point_net.20} parent=1 // loop_header
      %s9 = sphi 0, %s13
      %p10 = scmp.ge.s32.totalorder %s9, 6
      %s16 = sphi 0, %s35
      %s17 = sphi 0, %s31
      %s18 = sphi 0, %s27
      %s19 = sphi 0, %s16
      %s20 = sphi 0, %s17
      %s21 = sphi 0, %s18
      %s22 = sphi 0, %s19
      %s23 = sphi 0, %s20
      %s24 = sphi 0, %s21
      %s42 = sphi 0, %s44
      %s45 = sphi 0, %s42
      %s46 = sphi 0, %s45
      %s62 = sphi 0, %s46
      %s68 = sphi 0, %s70
      %s71 = sphi 0, %s68
      %s72 = sphi 0, %s71
      %s88 = sphi 0, %s72
      %s94 = sphi 0, %s96
      %s97 = sphi 0, %s94
      %s98 = sphi 0, %s97
      %s114 = sphi 0, %s98
      %s122 = sphi 0, %s124
      %s125 = sphi 0, %s122
      %s126 = sphi 0, %s125
      %s142 = sphi 0, %s126
    $region4: #{base_point_net.20} parent=1 // loop_header_branch
      %12 = sbr.rel (%p10) target = $region8
    $region5: #{base_point_net.20} parent=1 // loop_body
      %s14 = ssub.s32 %s9, 1
      %s15 = ssub.s32 %s9, 2
      %s25 = sadd.s32 1, %s18
      %p26 = scmp.ge.s32.totalorder %s25, 1
      %s27 = scalar_select %p26, 0, %s25
      %s28 = sadd.s32 1, %s17
      %s29 = scalar_select %p26, %s28, %s17
      %p30 = scmp.ge.s32.totalorder %s29, 2
      %s31 = scalar_select %p30, 0, %s29
      %s32 = sadd.s32 1, %s16
      %s33 = scalar_select %p30, %s32, %s16
      %p34 = scmp.ge.s32.totalorder %s33, 2
      %s35 = scalar_select %p34, 0, %s33
      %s36 = ssub.s32 %s16, %s35
      %s37 = ssub.s32 %s18, %s27
      %s38 = sor.u32 %s36, %s37
      %s39 = ssub.s32 %s17, %s31
      %s40 = sor.u32 %s38, %s39
      %p41 = scmp.eq.s32.totalorder %s40, 0
      %s43 = sadd.s32 %s42, 1
      %s44 = scalar_select %p41, %s42, %s43
      %p47 = pneg %p41
      %p48 = scmp.eq.s32.totalorder %s9, 3
      %p49 = por %p47, %p48
      %p50 = scmp.ne.s32.totalorder %s42, %s45
      %p51 = scmp.eq.s32.totalorder %s9, 0
      %p52 = por %p50, %p51
      %p53 = scmp.ne.s32.totalorder %s42, %s45
      %p54 = scmp.eq.s32.totalorder %s14, 3
      %p55 = por %p53, %p54
      %p56 = scmp.ne.s32.totalorder %s45, %s46
      %p57 = scmp.eq.s32.totalorder %s14, 0
      %p58 = por %p56, %p57
      %p59 = scmp.ne.s32.totalorder %s45, %s46
      %p60 = scmp.eq.s32.totalorder %s15, 3
      %p61 = por %p59, %p60
      %p63 = scmp.ne.s32.totalorder %s46, %s62
      %p64 = scmp.eq.s32.totalorder %s15, 0
      %p65 = por %p63, %p64
      %s66 = ssub.s32 %s17, %s31
      %p67 = scmp.eq.s32.totalorder %s66, 0
      %s69 = sadd.s32 %s68, 1
      %s70 = scalar_select %p67, %s68, %s69
      %p73 = pneg %p67
      %p74 = scmp.eq.s32.totalorder %s9, 3
      %p75 = por %p73, %p74
      %p76 = scmp.ne.s32.totalorder %s68, %s71
      %p77 = scmp.eq.s32.totalorder %s9, 0
      %p78 = por %p76, %p77
      %p79 = scmp.ne.s32.totalorder %s68, %s71
      %p80 = scmp.eq.s32.totalorder %s14, 3
      %p81 = por %p79, %p80
      %p82 = scmp.ne.s32.totalorder %s71, %s72
      %p83 = scmp.eq.s32.totalorder %s14, 0
      %p84 = por %p82, %p83
      %p85 = scmp.ne.s32.totalorder %s71, %s72
      %p86 = scmp.eq.s32.totalorder %s15, 3
      %p87 = por %p85, %p86
      %p89 = scmp.ne.s32.totalorder %s72, %s88
      %p90 = scmp.eq.s32.totalorder %s15, 0
      %p91 = por %p89, %p90
      %s92 = ssub.s32 %s17, %s31
      %p93 = scmp.eq.s32.totalorder %s92, 0
      %s95 = sadd.s32 %s94, 1
      %s96 = scalar_select %p93, %s94, %s95
      %p99 = pneg %p93
      %p100 = scmp.eq.s32.totalorder %s9, 3
      %p101 = por %p99, %p100
      %p102 = scmp.ne.s32.totalorder %s94, %s97
      %p103 = scmp.eq.s32.totalorder %s9, 0
      %p104 = por %p102, %p103
      %p105 = scmp.ne.s32.totalorder %s94, %s97
      %p106 = scmp.eq.s32.totalorder %s14, 3
      %p107 = por %p105, %p106
      %p108 = scmp.ne.s32.totalorder %s97, %s98
      %p109 = scmp.eq.s32.totalorder %s14, 0
      %p110 = por %p108, %p109
      %p111 = scmp.ne.s32.totalorder %s97, %s98
      %p112 = scmp.eq.s32.totalorder %s15, 3
      %p113 = por %p111, %p112
      %p115 = scmp.ne.s32.totalorder %s98, %s114
      %p116 = scmp.eq.s32.totalorder %s15, 0
      %p117 = por %p115, %p116
      %s118 = ssub.s32 %s16, %s35
      %s119 = ssub.s32 %s17, %s31
      %s120 = sor.u32 %s118, %s119
      %p121 = scmp.eq.s32.totalorder %s120, 0
      %s123 = sadd.s32 %s122, 1
      %s124 = scalar_select %p121, %s122, %s123
      %p127 = pneg %p121
      %p128 = scmp.eq.s32.totalorder %s9, 3
      %p129 = por %p127, %p128
      %p130 = scmp.ne.s32.totalorder %s122, %s125
      %p131 = scmp.eq.s32.totalorder %s9, 0
      %p132 = por %p130, %p131
      %p133 = scmp.ne.s32.totalorder %s122, %s125
      %p134 = scmp.eq.s32.totalorder %s14, 3
      %p135 = por %p133, %p134
      %p136 = scmp.ne.s32.totalorder %s125, %s126
      %p137 = scmp.eq.s32.totalorder %s14, 0
      %p138 = por %p136, %p137
      %p139 = scmp.ne.s32.totalorder %s125, %s126
      %p140 = scmp.eq.s32.totalorder %s15, 3
      %p141 = por %p139, %p140
      %p143 = scmp.ne.s32.totalorder %s126, %s142
      %p144 = scmp.eq.s32.totalorder %s15, 0
      %p145 = por %p143, %p144
      %p146 = scmp.le.s32.totalorder 1, %s9
      %p147 = scmp.lt.s32.totalorder %s9, 5
      %p148 = pnand %p146, %p147
      %p149 = pneg %p148
      // Predicated region
      $region9: #{base_point_net.20} parent=5 // pred_check
        _
      $region10: #{base_point_net.20} parent=5 // pred_check_branch
        %151 = sbr.rel (%p148) target = $region12
      $region11: #{base_point_net.20} parent=5 // pred_region
        %s152 = ssub.s32 %s9, 1
      $region12: #{base_point_net.20} parent=5 // pred_fallthru
        _
      %p153 = scmp.lt.s32.totalorder %s9, 4
      // Predicated region
      $region13: #{base_point_net.20} parent=5 // pred_check
        %p154 = pneg %p153
      $region14: #{base_point_net.20} parent=5 // pred_check_branch
        %156 = sbr.rel (%p154) target = $region16
      $region15: #{base_point_net.20} parent=5 // pred_region
        // Predicated region
        $region17: #{base_point_net.20} parent=15 // pred_check
          %p157 = pneg %p52
        $region18: #{base_point_net.20} parent=15 // pred_check_branch
          %159 = sbr.rel (%p157) target = $region20
        $region19: #{base_point_net.20} parent=15 // pred_region
          %s160 = sand.u32 %s42, 1
          %s161 = sand.u32 %s42, 1
          %s162 = smul.addr %s161, 64
          %s163 = scalar_lea.vmem [#allocation2], %s162
          %s164 = smul.u32 16, %s18
          %s165 = smul.addr %s164, 2
          %s166 = sadd.s32 %s17, %s165
          %s167 = smul.addr %s16, 32
          %s168 = sadd.s32 %s166, %s167
          %s169 = smul.addr %s168, 4
          %s170 = scalar_lea.vmem %s0, %s169
          // Predicated region
          $region21: #{base_point_net.20} parent=19 // pred_check
            _
          $region22: #{base_point_net.20} parent=19 // pred_check_branch
            %172 = sbr.rel (0) target = $region24
          $region23: #{base_point_net.20} parent=19 // pred_region
            // Predicated region
            $region25: #{base_point_net.20} parent=23 // pred_check
              _
            $region26: #{base_point_net.20} parent=23 // pred_check_branch
              %174 = sbr.rel target = $region28
            $region27: #{base_point_net.20} parent=23 // pred_region
              // Predicated region
              $region40: #{base_point_net.20} parent=27 // pred_check
                _
              $region41: #{base_point_net.20} parent=27 // pred_check_branch
                %219 = sbr.rel (0) target = $region43
              $region42: #{base_point_net.20} parent=27 // pred_region
                loop: start=0, step=1, limit=1
                $region44: #{base_point_net.20} parent=42 // loop_pre_header
                  _
                $region45: #{base_point_net.20} parent=42 // loop_header
                  %s221 = sphi 0, %s225
                  %p222 = scmp.ge.s32.totalorder %s221, 1
                  %s226 = sphi %s170, %s170
                  %s227 = sphi %s163, %s163
                $region46: #{base_point_net.20} parent=42 // loop_header_branch
                  %224 = sbr.rel (%p222) target = $region50
                $region47: #{base_point_net.20} parent=42 // loop_body
                  _
                $region48: #{base_point_net.20} parent=42 // loop_footer
                  %s225 = sadd.s32 1, %s221
                $region49: #{base_point_net.20} parent=42 // loop_footer_branch
                  %220 = sbr.rel target = $region45
                $region50: #{base_point_net.20} parent=42 // loop_exit
                  _
                loop: start=0, step=1, limit=1
                $region51: #{base_point_net.20} parent=42 // loop_pre_header
                  _
                $region52: #{base_point_net.20} parent=42 // loop_header
                  %s230 = sphi 0, %s234
                  %p231 = scmp.ge.s32.totalorder %s230, 1
                  %s235 = sphi %s170, %s170
                  %s236 = sphi %s163, %s163
                $region53: #{base_point_net.20} parent=42 // loop_header_branch
                  %233 = sbr.rel (%p231) target = $region57
                $region54: #{base_point_net.20} parent=42 // loop_body
                  %v237 = vld [vmem:[%s235] sm:$0xf]
                  %238 = vst [vmem:[%s236] sm:$0xf] %v237
                  %v239 = vld [vmem:[%s235 + $0x8] sm:$0xf]
                  %240 = vst [vmem:[%s236 + $0x4] sm:$0xf] %v239
                  %v241 = vld [vmem:[%s235 + $0x10] sm:$0xf]
                  %242 = vst [vmem:[%s236 + $0x8] sm:$0xf] %v241
                  %v243 = vld [vmem:[%s235 + $0x18] sm:$0xf]
                  %244 = vst [vmem:[%s236 + $0xc] sm:$0xf] %v243
                  %v245 = vld [vmem:[%s235 + $0x20] sm:$0xf]
                  %246 = vst [vmem:[%s236 + $0x10] sm:$0xf] %v245
                  %v247 = vld [vmem:[%s235 + $0x28] sm:$0xf]
                  %248 = vst [vmem:[%s236 + $0x14] sm:$0xf] %v247
                  %v249 = vld [vmem:[%s235 + $0x30] sm:$0xf]
                  %250 = vst [vmem:[%s236 + $0x18] sm:$0xf] %v249
                  %v251 = vld [vmem:[%s235 + $0x38] sm:$0xf]
                  %252 = vst [vmem:[%s236 + $0x1c] sm:$0xf] %v251
                  %v253 = vld [vmem:[%s235 + $0x40] sm:$0xf]
                  %254 = vst [vmem:[%s236 + $0x20] sm:$0xf] %v253
                  %v255 = vld [vmem:[%s235 + $0x48] sm:$0xf]
                  %256 = vst [vmem:[%s236 + $0x24] sm:$0xf] %v255
                  %v257 = vld [vmem:[%s235 + $0x50] sm:$0xf]
                  %258 = vst [vmem:[%s236 + $0x28] sm:$0xf] %v257
                  %v259 = vld [vmem:[%s235 + $0x58] sm:$0xf]
                  %260 = vst [vmem:[%s236 + $0x2c] sm:$0xf] %v259
                  %v261 = vld [vmem:[%s235 + $0x60] sm:$0xf]
                  %262 = vst [vmem:[%s236 + $0x30] sm:$0xf] %v261
                  %v263 = vld [vmem:[%s235 + $0x68] sm:$0xf]
                  %264 = vst [vmem:[%s236 + $0x34] sm:$0xf] %v263
                  %v265 = vld [vmem:[%s235 + $0x70] sm:$0xf]
                  %266 = vst [vmem:[%s236 + $0x38] sm:$0xf] %v265
                  %v267 = vld [vmem:[%s235 + $0x78] sm:$0xf]
                  %268 = vst [vmem:[%s236 + $0x3c] sm:$0xf] %v267
                $region55: #{base_point_net.20} parent=42 // loop_footer
                  %s234 = sadd.s32 1, %s230
                $region56: #{base_point_net.20} parent=42 // loop_footer_branch
                  %229 = sbr.rel target = $region52
                $region57: #{base_point_net.20} parent=42 // loop_exit
                  _
              $region43: #{base_point_net.20} parent=27 // pred_fallthru
                _
            $region28: #{base_point_net.20} parent=23 // pred_fallthru
              _
            // Predicated region
            $region29: #{base_point_net.20} parent=23 // pred_check
              _
            $region30: #{base_point_net.20} parent=23 // pred_check_branch
              %176 = sbr.rel (0) target = $region32
            $region31: #{base_point_net.20} parent=23 // pred_region
              loop: start=0, step=1, limit=1
              $region33: #{base_point_net.20} parent=31 // loop_pre_header
                _
              $region34: #{base_point_net.20} parent=31 // loop_header
                %s179 = sphi 0, %s183
                %p180 = scmp.ge.s32.totalorder %s179, 1
                %s184 = sphi %s170, %s170
                %s185 = sphi %s163, %s163
              $region35: #{base_point_net.20} parent=31 // loop_header_branch
                %182 = sbr.rel (%p180) target = $region39
              $region36: #{base_point_net.20} parent=31 // loop_body
                %v186 = vld [vmem:[%s184] sm:$0xf]
                %187 = vst [vmem:[%s185] sm:$0xf] %v186
                %v188 = vld [vmem:[%s184 + $0x8] sm:$0xf]
                %189 = vst [vmem:[%s185 + $0x4] sm:$0xf] %v188
                %v190 = vld [vmem:[%s184 + $0x10] sm:$0xf]
                %191 = vst [vmem:[%s185 + $0x8] sm:$0xf] %v190
                %v192 = vld [vmem:[%s184 + $0x18] sm:$0xf]
                %193 = vst [vmem:[%s185 + $0xc] sm:$0xf] %v192
                %v194 = vld [vmem:[%s184 + $0x20] sm:$0xf]
                %195 = vst [vmem:[%s185 + $0x10] sm:$0xf] %v194
                %v196 = vld [vmem:[%s184 + $0x28] sm:$0xf]
                %197 = vst [vmem:[%s185 + $0x14] sm:$0xf] %v196
                %v198 = vld [vmem:[%s184 + $0x30] sm:$0xf]
                %199 = vst [vmem:[%s185 + $0x18] sm:$0xf] %v198
                %v200 = vld [vmem:[%s184 + $0x38] sm:$0xf]
                %201 = vst [vmem:[%s185 + $0x1c] sm:$0xf] %v200
                %v202 = vld [vmem:[%s184 + $0x40] sm:$0xf]
                %203 = vst [vmem:[%s185 + $0x20] sm:$0xf] %v202
                %v204 = vld [vmem:[%s184 + $0x48] sm:$0xf]
                %205 = vst [vmem:[%s185 + $0x24] sm:$0xf] %v204
                %v206 = vld [vmem:[%s184 + $0x50] sm:$0xf]
                %207 = vst [vmem:[%s185 + $0x28] sm:$0xf] %v206
                %v208 = vld [vmem:[%s184 + $0x58] sm:$0xf]
                %209 = vst [vmem:[%s185 + $0x2c] sm:$0xf] %v208
                %v210 = vld [vmem:[%s184 + $0x60] sm:$0xf]
                %211 = vst [vmem:[%s185 + $0x30] sm:$0xf] %v210
                %v212 = vld [vmem:[%s184 + $0x68] sm:$0xf]
                %213 = vst [vmem:[%s185 + $0x34] sm:$0xf] %v212
                %v214 = vld [vmem:[%s184 + $0x70] sm:$0xf]
                %215 = vst [vmem:[%s185 + $0x38] sm:$0xf] %v214
                %v216 = vld [vmem:[%s184 + $0x78] sm:$0xf]
                %217 = vst [vmem:[%s185 + $0x3c] sm:$0xf] %v216
              $region37: #{base_point_net.20} parent=31 // loop_footer
                %s183 = sadd.s32 1, %s179
              $region38: #{base_point_net.20} parent=31 // loop_footer_branch
                %178 = sbr.rel target = $region34
              $region39: #{base_point_net.20} parent=31 // loop_exit
                _
            $region32: #{base_point_net.20} parent=23 // pred_fallthru
              _
          $region24: #{base_point_net.20} parent=19 // pred_fallthru
            _
          %269 = vnop
        $region20: #{base_point_net.20} parent=15 // pred_fallthru
          _
        // Predicated region
        $region58: #{base_point_net.20} parent=15 // pred_check
          %p270 = pneg %p78
        $region59: #{base_point_net.20} parent=15 // pred_check_branch
          %272 = sbr.rel (%p270) target = $region61
        $region60: #{base_point_net.20} parent=15 // pred_region
          %p273 = scmp.lt.s32.totalorder %s17, 1
          %s274 = scalar_select %p273, %s17, 1
          %s275 = scalar_lea.vmem %s1, %s274
        $region61: #{base_point_net.20} parent=15 // pred_fallthru
          _
        // Predicated region
        $region62: #{base_point_net.20} parent=15 // pred_check
          %p276 = pneg %p104
        $region63: #{base_point_net.20} parent=15 // pred_check_branch
          %278 = sbr.rel (%p276) target = $region65
        $region64: #{base_point_net.20} parent=15 // pred_region
          %p279 = scmp.lt.s32.totalorder %s17, 1
          %s280 = scalar_select %p279, %s17, 1
          %s281 = scalar_lea.vmem %s2, %s280
        $region65: #{base_point_net.20} parent=15 // pred_fallthru
          _
      $region16: #{base_point_net.20} parent=5 // pred_fallthru
        _
      %p282 = scmp.le.s32.totalorder 1, %s9
      %p283 = scmp.lt.s32.totalorder %s9, 5
      %p284 = pnand %p282, %p283
      %p285 = pneg %p284
      // Predicated region
      $region66: #{base_point_net.20} parent=5 // pred_check
        _
      $region67: #{base_point_net.20} parent=5 // pred_check_branch
        %287 = sbr.rel (%p284) target = $region69
      $region68: #{base_point_net.20} parent=5 // pred_region
        %s288 = ssub.s32 %s9, 1
        %s289 = sand.u32 %s45, 1
        %s290 = sand.u32 %s45, 1
        %s291 = smul.addr %s290, 64
        %s292 = scalar_lea.vmem [#allocation2], %s291
        // Predicated region
        $region70: #{base_point_net.20} parent=68 // pred_check
          %p293 = pneg %p58
        $region71: #{base_point_net.20} parent=68 // pred_check_branch
          %295 = sbr.rel (%p293) target = $region73
        $region72: #{base_point_net.20} parent=68 // pred_region
          _
        $region73: #{base_point_net.20} parent=68 // pred_fallthru
          _
        %s296 = sand.u32 %s45, 1
        %s297 = sand.u32 %s45, 1
        %s298 = smul.addr %s297, 64
        %s299 = scalar_lea.vmem [#allocation2], %s298
        %p300 = pneg %p58
        %p301 = pneg %p55
        %p302 = scmp.lt.s32.totalorder %s20, 1
        %s303 = scalar_select %p302, %s20, 1
        %s304 = scalar_lea.vmem %s1, %s303
        %p305 = pneg %p84
        %p306 = pneg %p81
        %p307 = scmp.lt.s32.totalorder %s20, 1
        %s308 = scalar_select %p307, %s20, 1
        %s309 = scalar_lea.vmem %s2, %s308
        %p310 = pneg %p110
        %p311 = pneg %p107
        %p312 = pneg %p138
        %p313 = pneg %p135
        %p314 = scmp.lt.s32.totalorder %s19, 1
        %s315 = scalar_select %p314, %s19, 1
        %p316 = scmp.lt.s32.totalorder %s20, 1
        %s317 = scalar_select %p316, %s20, 1
        %s318 = smul.addr %s315, 2
        %s319 = sadd.s32 %s317, %s318
        %s320 = scalar_lea.vmem %s3, %s319
        %s321 = smul.u32 16, %s21
        %p322 = scmp.lt.s32.totalorder %s20, 1
        %s323 = scalar_select %p322, %s20, 1
        %s324 = scalar_lea.vmem %s1, %s323
        %p325 = scmp.lt.s32.totalorder %s20, 1
        %s326 = scalar_select %p325, %s20, 1
        %s327 = scalar_lea.vmem %s2, %s326
        %p328 = scmp.lt.s32.totalorder %s19, 1
        %s329 = scalar_select %p328, %s19, 1
        %p330 = scmp.lt.s32.totalorder %s20, 1
        %s331 = scalar_select %p330, %s20, 1
        %s332 = smul.addr %s329, 2
        %s333 = sadd.s32 %s331, %s332
        %s334 = scalar_lea.vmem %s3, %s333
        %v335 = vld [vmem:[%s292] sm:$0xf]
        %v336 = vld [vmem:[%s292 + $0x4] sm:$0xf]
        %v337 = vld [vmem:[%s292 + $0x8] sm:$0xf]
        %v338 = vld [vmem:[%s292 + $0xc] sm:$0xf]
        %v339 = vld [vmem:[%s292 + $0x10] sm:$0xf]
        %v340 = vld [vmem:[%s292 + $0x14] sm:$0xf]
        %v341 = vld [vmem:[%s292 + $0x18] sm:$0xf]
        %v342 = vld [vmem:[%s292 + $0x1c] sm:$0xf]
        %v343 = vld [vmem:[%s292 + $0x20] sm:$0xf]
        %v344 = vld [vmem:[%s292 + $0x24] sm:$0xf]
        %v345 = vld [vmem:[%s292 + $0x28] sm:$0xf]
        %v346 = vld [vmem:[%s292 + $0x2c] sm:$0xf]
        %v347 = vld [vmem:[%s292 + $0x30] sm:$0xf]
        %v348 = vld [vmem:[%s292 + $0x34] sm:$0xf]
        %v349 = vld [vmem:[%s292 + $0x38] sm:$0xf]
        %v350 = vld [vmem:[%s292 + $0x3c] sm:$0xf]
        %v351 = vunpack.c.l.bf16 %v335
        %v352 = vunpack.c.l.bf16 %v336
        %v353 = vunpack.c.l.bf16 %v337
        %v354 = vunpack.c.l.bf16 %v338
        %v355 = vunpack.c.l.bf16 %v339
        %v356 = vunpack.c.l.bf16 %v340
        %v357 = vunpack.c.l.bf16 %v341
        %v358 = vunpack.c.l.bf16 %v342
        %v359 = vunpack.c.l.bf16 %v343
        %v360 = vunpack.c.l.bf16 %v344
        %v361 = vunpack.c.l.bf16 %v345
        %v362 = vunpack.c.l.bf16 %v346
        %v363 = vunpack.c.l.bf16 %v347
        %v364 = vunpack.c.l.bf16 %v348
        %v365 = vunpack.c.l.bf16 %v349
        %v366 = vunpack.c.l.bf16 %v350
        %v367 = vld [vmem:[%s324] sm:$0x1]
        %v369 = vlaneseq
        %v370 = vshrl.u32 %v369, 7
        %v371 = vsub.s32 0, %v370
        %v372 = vrot.slane %v367, %v371
        %v374 = vmul.f32 %v351, %v372
        %v375 = vmul.f32 %v352, %v372
        %v376 = vmul.f32 %v353, %v372
        %v377 = vmul.f32 %v354, %v372
        %v378 = vmul.f32 %v355, %v372
        %v379 = vmul.f32 %v356, %v372
        %v380 = vmul.f32 %v357, %v372
        %v381 = vmul.f32 %v358, %v372
        %v382 = vmul.f32 %v359, %v372
        %v383 = vmul.f32 %v360, %v372
        %v384 = vmul.f32 %v361, %v372
        %v385 = vmul.f32 %v362, %v372
        %v386 = vmul.f32 %v363, %v372
        %v387 = vmul.f32 %v364, %v372
        %v388 = vmul.f32 %v365, %v372
        %v389 = vmul.f32 %v366, %v372
        %v390 = vld [vmem:[%s327] sm:$0x1]
        %v392 = vlaneseq
        %v393 = vshrl.u32 %v392, 7
        %v394 = vsub.s32 0, %v393
        %v395 = vrot.slane %v390, %v394
        %v397 = vadd.f32 %v374, %v395
        %v398 = vadd.f32 %v375, %v395
        %v399 = vadd.f32 %v376, %v395
        %v400 = vadd.f32 %v377, %v395
        %v401 = vadd.f32 %v378, %v395
        %v402 = vadd.f32 %v379, %v395
        %v403 = vadd.f32 %v380, %v395
        %v404 = vadd.f32 %v381, %v395
        %v405 = vadd.f32 %v382, %v395
        %v406 = vadd.f32 %v383, %v395
        %v407 = vadd.f32 %v384, %v395
        %v408 = vadd.f32 %v385, %v395
        %v409 = vadd.f32 %v386, %v395
        %v410 = vadd.f32 %v387, %v395
        %v411 = vadd.f32 %v388, %v395
        %v412 = vadd.f32 %v389, %v395
        %v413 = vmax.f32 %v397, 0.0
        %v414 = vmax.f32 %v398, 0.0
        %v415 = vmax.f32 %v399, 0.0
        %v416 = vmax.f32 %v400, 0.0
        %v417 = vmax.f32 %v401, 0.0
        %v418 = vmax.f32 %v402, 0.0
        %v419 = vmax.f32 %v403, 0.0
        %v420 = vmax.f32 %v404, 0.0
        %v421 = vmax.f32 %v405, 0.0
        %v422 = vmax.f32 %v406, 0.0
        %v423 = vmax.f32 %v407, 0.0
        %v424 = vmax.f32 %v408, 0.0
        %v425 = vmax.f32 %v409, 0.0
        %v426 = vmax.f32 %v410, 0.0
        %v427 = vmax.f32 %v411, 0.0
        %v428 = vmax.f32 %v412, 0.0
        %p429 = scmp.eq.s32.totalorder %s21, 0
        // Predicated region
        $region74: #{base_point_net.20} parent=68 // pred_check
          %p430 = pneg %p429
        $region75: #{base_point_net.20} parent=68 // pred_check_branch
          %432 = sbr.rel (%p430) target = $region77
        $region76: #{base_point_net.20} parent=68 // pred_region
          %433 = vst [vmem:[%s334] sm:$0x1] 0.0
        $region77: #{base_point_net.20} parent=68 // pred_fallthru
          _
        %v434 = vld [vmem:[%s334] sm:$0x1]
        %v435 = vmax.f32 %v413, %v417
        %v436 = vmax.f32 %v414, %v418
        %v437 = vmax.f32 %v415, %v419
        %v438 = vmax.f32 %v416, %v420
        %v439 = vmax.f32 %v435, %v421
        %v440 = vmax.f32 %v436, %v422
        %v441 = vmax.f32 %v437, %v423
        %v442 = vmax.f32 %v438, %v424
        %v443 = vmax.f32 %v439, %v425
        %v444 = vmax.f32 %v440, %v426
        %v445 = vmax.f32 %v441, %v427
        %v446 = vmax.f32 %v442, %v428
        %v447 = vmax.f32 %v443, %v444
        %v448 = vmax.f32 %v445, %v446
        %v449 = vmax.f32 %v447, %v448
        %v450 = vrot.slane %v449, 4
        %v451 = vmax.f32 %v449, %v450
        %v452 = vrot.slane %v451, 2
        %v453 = vmax.f32 %v451, %v452
        %v454 = vrot.slane %v453, 1
        %v455 = vmax.f32 %v453, %v454
        %v456 = vmax.f32 %v434, %v455
        %457 = vst [vmem:[%s334] sm:$0x1] %v456
        %p458 = scmp.lt.s32.totalorder %s19, 1
        %s459 = scalar_select %p458, %s19, 1
        %p460 = scmp.lt.s32.totalorder %s20, 1
        %s461 = scalar_select %p460, %s20, 1
        %s462 = smul.addr %s459, 2
        %s463 = sadd.s32 %s461, %s462
        %s464 = scalar_lea.vmem %s3, %s463
        // Predicated region
        $region78: #{base_point_net.20} parent=68 // pred_check
          %p465 = pneg %p135
        $region79: #{base_point_net.20} parent=68 // pred_check_branch
          %467 = sbr.rel (%p465) target = $region81
        $region80: #{base_point_net.20} parent=68 // pred_region
          _
        $region81: #{base_point_net.20} parent=68 // pred_fallthru
          _
      $region69: #{base_point_net.20} parent=5 // pred_fallthru
        _
      %p468 = scmp.le.s32.totalorder 2, %s9
      // Predicated region
      $region82: #{base_point_net.20} parent=5 // pred_check
        %p469 = pneg %p468
      $region83: #{base_point_net.20} parent=5 // pred_check_branch
        %471 = sbr.rel (%p469) target = $region85
      $region84: #{base_point_net.20} parent=5 // pred_region
        %s472 = ssub.s32 %s9, 2
        // Predicated region
        $region86: #{base_point_net.20} parent=84 // pred_check
          %p473 = pneg %p141
        $region87: #{base_point_net.20} parent=84 // pred_check_branch
          %475 = sbr.rel (%p473) target = $region89
        $region88: #{base_point_net.20} parent=84 // pred_region
          %p476 = scmp.lt.s32.totalorder %s22, 1
          %s477 = scalar_select %p476, %s22, 1
          %p478 = scmp.lt.s32.totalorder %s23, 1
          %s479 = scalar_select %p478, %s23, 1
          %s480 = smul.addr %s477, 2
          %s481 = sadd.s32 %s479, %s480
          %s482 = scalar_lea.vmem %s3, %s481
        $region89: #{base_point_net.20} parent=84 // pred_fallthru
          _
      $region85: #{base_point_net.20} parent=5 // pred_fallthru
        _
    $region6: #{base_point_net.20} parent=1 // loop_footer
      %s13 = sadd.s32 1, %s9
    $region7: #{base_point_net.20} parent=1 // loop_footer_branch
      %8 = sbr.rel target = $region3
    $region8: #{base_point_net.20} parent=1 // loop_exit
      _

// kernel: base_point_net.17
$region0: #{base_point_net.17}
  #allocation0 [shape = 'u32[]', space=smem, size = 0x4, offset = 0x4, fixed_abs, tag = 'smem constant byte address 0x4 - core index']
  #allocation1 [shape = 'u32[144,128]{1,0:T(1,128)}', space=vmem, size = 0x12000, scoped, tag = 'internal scratch']
  %s0 = inlined_call_operand.vmem [shape: f32[256,3], index: 0, kind: input, shape index: {}]
  %s1 = inlined_call_operand.vmem [shape: bf16[3,64], index: 1, kind: input, shape index: {}]
  %s2 = inlined_call_operand.vmem [shape: bf16[256,64], index: 2, kind: output, shape index: {0}]
  %s3 = inlined_call_operand.vmem [shape: f32[1,2,64], index: 3, kind: output, shape index: {1}]
  %4 = xla_tuple %s2, %s3
  %s5 = sld [smem:[#allocation0]]
  $region26: #{base_point_net.17} parent=0
    _
  %s7 = ssub.s32 1, %s5
  %s8 = scalar_select 0, %s7, %s5
  // Predicated region
  $region2: #{base_point_net.17} parent=0 // pred_check
    _
  $region3: #{base_point_net.17} parent=0 // pred_check_branch
    %10 = sbr.rel (0) target = $region5
  $region4: #{base_point_net.17} parent=0 // pred_region
    _
  $region5: #{base_point_net.17} parent=0 // pred_fallthru
    _
  // Predicated region
  $region6: #{base_point_net.17} parent=0 // pred_check
    _
  $region7: #{base_point_net.17} parent=0 // pred_check_branch
    %12 = sbr.rel (0) target = $region9
  $region8: #{base_point_net.17} parent=0 // pred_region
    _
  $region9: #{base_point_net.17} parent=0 // pred_fallthru
    _
  %v14 = vld [vmem:[%s0] sm:$0xff]
  %v15 = vld [vmem:[%s0 + $0x8] sm:$0xff]
  %v16 = vld [vmem:[%s0 + $0x10] sm:$0xff]
  %v17 = vld [vmem:[%s0 + $0x18] sm:$0xff]
  %v18 = vld [vmem:[%s0 + $0x20] sm:$0xff]
  %v19 = vld [vmem:[%s0 + $0x28] sm:$0xff]
  %v20 = vld [vmem:[%s0 + $0x30] sm:$0xff]
  %v21 = vld [vmem:[%s0 + $0x38] sm:$0xff]
  %v22 = vld [vmem:[%s0 + $0x40] sm:$0xff]
  %v23 = vld [vmem:[%s0 + $0x48] sm:$0xff]
  %v24 = vld [vmem:[%s0 + $0x50] sm:$0xff]
  %v25 = vld [vmem:[%s0 + $0x58] sm:$0xff]
  %v26 = vld [vmem:[%s0 + $0x60] sm:$0xff]
  %v27 = vld [vmem:[%s0 + $0x68] sm:$0xff]
  %v28 = vld [vmem:[%s0 + $0x70] sm:$0xff]
  %v29 = vld [vmem:[%s0 + $0x78] sm:$0xff]
  %v30 = vld [vmem:[%s0 + $0x80] sm:$0xff]
  %v31 = vld [vmem:[%s0 + $0x88] sm:$0xff]
  %v32 = vld [vmem:[%s0 + $0x90] sm:$0xff]
  %v33 = vld [vmem:[%s0 + $0x98] sm:$0xff]
  %v34 = vld [vmem:[%s0 + $0xa0] sm:$0xff]
  %v35 = vld [vmem:[%s0 + $0xa8] sm:$0xff]
  %v36 = vld [vmem:[%s0 + $0xb0] sm:$0xff]
  %v37 = vld [vmem:[%s0 + $0xb8] sm:$0xff]
  %v38 = vld [vmem:[%s0 + $0xc0] sm:$0xff]
  %v39 = vld [vmem:[%s0 + $0xc8] sm:$0xff]
  %v40 = vld [vmem:[%s0 + $0xd0] sm:$0xff]
  %v41 = vld [vmem:[%s0 + $0xd8] sm:$0xff]
  %v42 = vld [vmem:[%s0 + $0xe0] sm:$0xff]
  %v43 = vld [vmem:[%s0 + $0xe8] sm:$0xff]
  %v44 = vld [vmem:[%s0 + $0xf0] sm:$0xff]
  %v45 = vld [vmem:[%s0 + $0xf8] sm:$0xff]
  %v46 = vpack.c.bf16 %v15, %v14
  %v47 = vpack.c.bf16 %v17, %v16
  %v48 = vpack.c.bf16 %v19, %v18
  %v49 = vpack.c.bf16 %v21, %v20
  %v50 = vpack.c.bf16 %v23, %v22
  %v51 = vpack.c.bf16 %v25, %v24
  %v52 = vpack.c.bf16 %v27, %v26
  %v53 = vpack.c.bf16 %v29, %v28
  %v54 = vpack.c.bf16 %v31, %v30
  %v55 = vpack.c.bf16 %v33, %v32
  %v56 = vpack.c.bf16 %v35, %v34
  %v57 = vpack.c.bf16 %v37, %v36
  %v58 = vpack.c.bf16 %v39, %v38
  %v59 = vpack.c.bf16 %v41, %v40
  %v60 = vpack.c.bf16 %v43, %v42
  %v61 = vpack.c.bf16 %v45, %v44
  %v62 = vld [vmem:[%s1] sm:$0x3]
  %vm63 = vcmask 23552
  %v65 = vsel %vm63, %v46, 0
  %v68 = vsel %vm63, %v47, 0
  %v71 = vsel %vm63, %v48, 0
  %v74 = vsel %vm63, %v49, 0
  %v77 = vsel %vm63, %v50, 0
  %v80 = vsel %vm63, %v51, 0
  %v83 = vsel %vm63, %v52, 0
  %v86 = vsel %vm63, %v53, 0
  %v89 = vsel %vm63, %v54, 0
  %v92 = vsel %vm63, %v55, 0
  %v95 = vsel %vm63, %v56, 0
  %v98 = vsel %vm63, %v57, 0
  %v101 = vsel %vm63, %v58, 0
  %v104 = vsel %vm63, %v59, 0
  %v107 = vsel %vm63, %v60, 0
  %v110 = vsel %vm63, %v61, 0
  %vm112 = vcmask 1040384
  %vm113 = vcmask 1041408
  %v114 = vsel %vm112, 4294967295, 65535
  %v115 = vsel %vm113, %v114, 0
  %v117 = vand.u32 %v62, %v115
  %119 = vmatprep.subr.bf16.mxu0 0
  %120 = vmatpush1.bf16.msra.mxu0 %v117
  %121 = vmatprep.subr.bf16.mxu0 0
  %122 = vmatpush1.bf16.msra.mxu0 0
  %123 = vmatprep.subr.bf16.mxu0 0
  %124 = vmatpush1.bf16.msra.mxu0 0
  %125 = vmatprep.subr.bf16.mxu0 0
  %126 = vmatpush1.bf16.msra.mxu0 0
  %127 = vmatprep.subr.bf16.mxu0 0
  %128 = vmatpush1.bf16.msra.mxu0 0
  %129 = vmatprep.subr.bf16.mxu0 0
  %130 = vmatpush1.bf16.msra.mxu0 0
  %131 = vmatprep.subr.bf16.mxu0 0
  %132 = vmatpush1.bf16.msra.mxu0 0
  %133 = vmatprep.subr.bf16.mxu0 0
  %134 = vmatpush1.bf16.msra.mxu0 0
  %135 = vmatprep.subr.bf16.mxu0 0
  %136 = vmatpush1.bf16.msra.mxu0 0
  %137 = vmatprep.subr.bf16.mxu0 0
  %138 = vmatpush1.bf16.msra.mxu0 0
  %139 = vmatprep.subr.bf16.mxu0 0
  %140 = vmatpush1.bf16.msra.mxu0 0
  %141 = vmatprep.subr.bf16.mxu0 0
  %142 = vmatpush1.bf16.msra.mxu0 0
  %143 = vmatprep.subr.bf16.mxu0 0
  %144 = vmatpush1.bf16.msra.mxu0 0
  %145 = vmatprep.subr.bf16.mxu0 0
  %146 = vmatpush1.bf16.msra.mxu0 0
  %147 = vmatprep.subr.bf16.mxu0 0
  %148 = vmatpush1.bf16.msra.mxu0 0
  %149 = vmatprep.subr.bf16.mxu0 0
  %150 = vmatpush1.bf16.msra.mxu0 0
  %151 = vmatprep.mubr.bf16.mxu0 0
  %152 = vmatmul.mubr.bf16.gmra.mrb[0].mxu0 %v65
  %v153 = vpop.f32.mrb[0].mxu0
  %v154 = vadd.f32 0.0, %v153
  %v155 = vpop.f32.mrb[0].mxu0
  %v156 = vpop.f32.mrb[0].mxu0
  %v157 = vadd.f32 0.0, %v156
  %v158 = vpop.f32.mrb[0].mxu0
  %159 = vmatprep.mubr.bf16.mxu0 0
  %160 = vmatmul.mubr.bf16.gmra.mrb[0].mxu0 %v68
  %v161 = vpop.f32.mrb[0].mxu0
  %v162 = vadd.f32 0.0, %v161
  %v163 = vpop.f32.mrb[0].mxu0
  %v164 = vpop.f32.mrb[0].mxu0
  %v165 = vadd.f32 0.0, %v164
  %v166 = vpop.f32.mrb[0].mxu0
  %167 = vmatprep.mubr.bf16.mxu0 0
  %168 = vmatmul.mubr.bf16.gmra.mrb[0].mxu0 %v71
  %v169 = vpop.f32.mrb[0].mxu0
  %v170 = vadd.f32 0.0, %v169
  %v171 = vpop.f32.mrb[0].mxu0
  %v172 = vpop.f32.mrb[0].mxu0
  %v173 = vadd.f32 0.0, %v172
  %v174 = vpop.f32.mrb[0].mxu0
  %175 = vmatprep.mubr.bf16.mxu0 0
  %176 = vmatmul.mubr.bf16.gmra.mrb[0].mxu0 %v74
  %v177 = vpop.f32.mrb[0].mxu0
  %v178 = vadd.f32 0.0, %v177
  %v179 = vpop.f32.mrb[0].mxu0
  %v180 = vpop.f32.mrb[0].mxu0
  %v181 = vadd.f32 0.0, %v180
  %v182 = vpop.f32.mrb[0].mxu0
  %183 = vmatprep.mubr.bf16.mxu0 0
  %184 = vmatmul.mubr.bf16.gmra.mrb[0].mxu0 %v77
  %v185 = vpop.f32.mrb[0].mxu0
  %v186 = vadd.f32 0.0, %v185
  %v187 = vpop.f32.mrb[0].mxu0
  %v188 = vpop.f32.mrb[0].mxu0
  %v189 = vadd.f32 0.0, %v188
  %v190 = vpop.f32.mrb[0].mxu0
  %191 = vmatprep.mubr.bf16.mxu0 0
  %192 = vmatmul.mubr.bf16.gmra.mrb[0].mxu0 %v80
  %v193 = vpop.f32.mrb[0].mxu0
  %v194 = vadd.f32 0.0, %v193
  %v195 = vpop.f32.mrb[0].mxu0
  %v196 = vpop.f32.mrb[0].mxu0
  %v197 = vadd.f32 0.0, %v196
  %v198 = vpop.f32.mrb[0].mxu0
  %199 = vmatprep.mubr.bf16.mxu0 0
  %200 = vmatmul.mubr.bf16.gmra.mrb[0].mxu0 %v83
  %v201 = vpop.f32.mrb[0].mxu0
  %v202 = vadd.f32 0.0, %v201
  %v203 = vpop.f32.mrb[0].mxu0
  %v204 = vpop.f32.mrb[0].mxu0
  %v205 = vadd.f32 0.0, %v204
  %v206 = vpop.f32.mrb[0].mxu0
  %207 = vmatprep.mubr.bf16.mxu0 0
  %208 = vmatmul.mubr.bf16.gmra.mrb[0].mxu0 %v86
  %v209 = vpop.f32.mrb[0].mxu0
  %v210 = vadd.f32 0.0, %v209
  %v211 = vpop.f32.mrb[0].mxu0
  %v212 = vpop.f32.mrb[0].mxu0
  %v213 = vadd.f32 0.0, %v212
  %v214 = vpop.f32.mrb[0].mxu0
  %215 = vmatprep.mubr.bf16.mxu0 0
  %216 = vmatmul.mubr.bf16.gmra.mrb[0].mxu0 %v89
  %v217 = vpop.f32.mrb[0].mxu0
  %v218 = vadd.f32 0.0, %v217
  %v219 = vpop.f32.mrb[0].mxu0
  %v220 = vpop.f32.mrb[0].mxu0
  %v221 = vadd.f32 0.0, %v220
  %v222 = vpop.f32.mrb[0].mxu0
  %223 = vmatprep.mubr.bf16.mxu0 0
  %224 = vmatmul.mubr.bf16.gmra.mrb[0].mxu0 %v92
  %v225 = vpop.f32.mrb[0].mxu0
  %v226 = vadd.f32 0.0, %v225
  %v227 = vpop.f32.mrb[0].mxu0
  %v228 = vpop.f32.mrb[0].mxu0
  %v229 = vadd.f32 0.0, %v228
  %v230 = vpop.f32.mrb[0].mxu0
  %231 = vmatprep.mubr.bf16.mxu0 0
  %232 = vmatmul.mubr.bf16.gmra.mrb[0].mxu0 %v95
  %v233 = vpop.f32.mrb[0].mxu0
  %v234 = vadd.f32 0.0, %v233
  %v235 = vpop.f32.mrb[0].mxu0
  %v236 = vpop.f32.mrb[0].mxu0
  %v237 = vadd.f32 0.0, %v236
  %v238 = vpop.f32.mrb[0].mxu0
  %239 = vmatprep.mubr.bf16.mxu0 0
  %240 = vmatmul.mubr.bf16.gmra.mrb[0].mxu0 %v98
  %v241 = vpop.f32.mrb[0].mxu0
  %v242 = vadd.f32 0.0, %v241
  %v243 = vpop.f32.mrb[0].mxu0
  %v244 = vpop.f32.mrb[0].mxu0
  %v245 = vadd.f32 0.0, %v244
  %v246 = vpop.f32.mrb[0].mxu0
  %247 = vmatprep.mubr.bf16.mxu0 0
  %248 = vmatmul.mubr.bf16.gmra.mrb[0].mxu0 %v101
  %v249 = vpop.f32.mrb[0].mxu0
  %v250 = vadd.f32 0.0, %v249
  %v251 = vpop.f32.mrb[0].mxu0
  %v252 = vpop.f32.mrb[0].mxu0
  %v253 = vadd.f32 0.0, %v252
  %v254 = vpop.f32.mrb[0].mxu0
  %255 = vmatprep.mubr.bf16.mxu0 0
  %256 = vmatmul.mubr.bf16.gmra.mrb[0].mxu0 %v104
  %v257 = vpop.f32.mrb[0].mxu0
  %v258 = vadd.f32 0.0, %v257
  %v259 = vpop.f32.mrb[0].mxu0
  %v260 = vpop.f32.mrb[0].mxu0
  %v261 = vadd.f32 0.0, %v260
  %v262 = vpop.f32.mrb[0].mxu0
  %263 = vmatprep.mubr.bf16.mxu0 0
  %264 = vmatmul.mubr.bf16.gmra.mrb[0].mxu0 %v107
  %v265 = vpop.f32.mrb[0].mxu0
  %v266 = vadd.f32 0.0, %v265
  %v267 = vpop.f32.mrb[0].mxu0
  %v268 = vpop.f32.mrb[0].mxu0
  %v269 = vadd.f32 0.0, %v268
  %v270 = vpop.f32.mrb[0].mxu0
  %271 = vmatprep.mubr.bf16.mxu0 0
  %272 = vmatmul.mubr.bf16.gmra.mrb[0].mxu0 %v110
  %v273 = vpop.f32.mrb[0].mxu0
  %v274 = vadd.f32 0.0, %v273
  %v275 = vpop.f32.mrb[0].mxu0
  %v276 = vpop.f32.mrb[0].mxu0
  %v277 = vadd.f32 0.0, %v276
  %v278 = vpop.f32.mrb[0].mxu0
  %279 = vdwg.mxu0
  %v280 = vpack.c.bf16 %v157, %v154
  %v281 = vpack.c.bf16 %v165, %v162
  %v282 = vpack.c.bf16 %v173, %v170
  %v283 = vpack.c.bf16 %v181, %v178
  %v284 = vpack.c.bf16 %v189, %v186
  %v285 = vpack.c.bf16 %v197, %v194
  %v286 = vpack.c.bf16 %v205, %v202
  %v287 = vpack.c.bf16 %v213, %v210
  %v288 = vpack.c.bf16 %v221, %v218
  %v289 = vpack.c.bf16 %v229, %v226
  %v290 = vpack.c.bf16 %v237, %v234
  %v291 = vpack.c.bf16 %v245, %v242
  %v292 = vpack.c.bf16 %v253, %v250
  %v293 = vpack.c.bf16 %v261, %v258
  %v294 = vpack.c.bf16 %v269, %v266
  %v295 = vpack.c.bf16 %v277, %v274
  %v312 = vunpack.c.l.b16 %v280
  %v313 = vunpack.c.h.b16 %v280
  %v314 = vunpack.c.l.b16 %v281
  %v315 = vunpack.c.h.b16 %v281
  %v316 = vunpack.c.l.b16 %v282
  %v317 = vunpack.c.h.b16 %v282
  %v318 = vunpack.c.l.b16 %v283
  %v319 = vunpack.c.h.b16 %v283
  %v320 = vunpack.c.l.b16 %v284
  %v321 = vunpack.c.h.b16 %v284
  %v322 = vunpack.c.l.b16 %v285
  %v323 = vunpack.c.h.b16 %v285
  %v324 = vunpack.c.l.b16 %v286
  %v325 = vunpack.c.h.b16 %v286
  %v326 = vunpack.c.l.b16 %v287
  %v327 = vunpack.c.h.b16 %v287
  %v328 = vunpack.c.l.b16 %v288
  %v329 = vunpack.c.h.b16 %v288
  %v330 = vunpack.c.l.b16 %v289
  %v331 = vunpack.c.h.b16 %v289
  %v332 = vunpack.c.l.b16 %v290
  %v333 = vunpack.c.h.b16 %v290
  %v334 = vunpack.c.l.b16 %v291
  %v335 = vunpack.c.h.b16 %v291
  %v336 = vunpack.c.l.b16 %v292
  %v337 = vunpack.c.h.b16 %v292
  %v338 = vunpack.c.l.b16 %v293
  %v339 = vunpack.c.h.b16 %v293
  %v340 = vunpack.c.l.b16 %v294
  %v341 = vunpack.c.h.b16 %v294
  %v342 = vunpack.c.l.b16 %v295
  %v343 = vunpack.c.h.b16 %v295
  %v344 = vpack.c.b16 %v312, %v312
  %v345 = vpack.c.b16 %v313, %v313
  %v346 = vpack.c.b16 %v314, %v314
  %v347 = vpack.c.b16 %v315, %v315
  %v348 = vpack.c.b16 %v316, %v316
  %v349 = vpack.c.b16 %v317, %v317
  %v350 = vpack.c.b16 %v318, %v318
  %v351 = vpack.c.b16 %v319, %v319
  %v352 = vpack.c.b16 %v320, %v320
  %v353 = vpack.c.b16 %v321, %v321
  %v354 = vpack.c.b16 %v322, %v322
  %v355 = vpack.c.b16 %v323, %v323
  %v356 = vpack.c.b16 %v324, %v324
  %v357 = vpack.c.b16 %v325, %v325
  %v358 = vpack.c.b16 %v326, %v326
  %v359 = vpack.c.b16 %v327, %v327
  %v360 = vpack.c.b16 %v328, %v328
  %v361 = vpack.c.b16 %v329, %v329
  %v362 = vpack.c.b16 %v330, %v330
  %v363 = vpack.c.b16 %v331, %v331
  %v364 = vpack.c.b16 %v332, %v332
  %v365 = vpack.c.b16 %v333, %v333
  %v366 = vpack.c.b16 %v334, %v334
  %v367 = vpack.c.b16 %v335, %v335
  %v368 = vpack.c.b16 %v336, %v336
  %v369 = vpack.c.b16 %v337, %v337
  %v370 = vpack.c.b16 %v338, %v338
  %v371 = vpack.c.b16 %v339, %v339
  %v372 = vpack.c.b16 %v340, %v340
  %v373 = vpack.c.b16 %v341, %v341
  %v374 = vpack.c.b16 %v342, %v342
  %v375 = vpack.c.b16 %v343, %v343
  %vm408 = vcmask 519168
  %409 = vst.msk [vmem:[%s2] sm:$0xf] %vm408, %v344
  %410 = vst.msk [vmem:[%s2 + $0x4] sm:$0xf] %vm408, %v345
  %411 = vst.msk [vmem:[%s2 + $0x8] sm:$0xf] %vm408, %v346
  %412 = vst.msk [vmem:[%s2 + $0xc] sm:$0xf] %vm408, %v347
  %413 = vst.msk [vmem:[%s2 + $0x10] sm:$0xf] %vm408, %v348
  %414 = vst.msk [vmem:[%s2 + $0x14] sm:$0xf] %vm408, %v349
  %415 = vst.msk [vmem:[%s2 + $0x18] sm:$0xf] %vm408, %v350
  %416 = vst.msk [vmem:[%s2 + $0x1c] sm:$0xf] %vm408, %v351
  %417 = vst.msk [vmem:[%s2 + $0x20] sm:$0xf] %vm408, %v352
  %418 = vst.msk [vmem:[%s2 + $0x24] sm:$0xf] %vm408, %v353
  %419 = vst.msk [vmem:[%s2 + $0x28] sm:$0xf] %vm408, %v354
  %420 = vst.msk [vmem:[%s2 + $0x2c] sm:$0xf] %vm408, %v355
  %421 = vst.msk [vmem:[%s2 + $0x30] sm:$0xf] %vm408, %v356
  %422 = vst.msk [vmem:[%s2 + $0x34] sm:$0xf] %vm408, %v357
  %423 = vst.msk [vmem:[%s2 + $0x38] sm:$0xf] %vm408, %v358
  %424 = vst.msk [vmem:[%s2 + $0x3c] sm:$0xf] %vm408, %v359
  %425 = vst.msk [vmem:[%s2 + $0x40] sm:$0xf] %vm408, %v360
  %426 = vst.msk [vmem:[%s2 + $0x44] sm:$0xf] %vm408, %v361
  %427 = vst.msk [vmem:[%s2 + $0x48] sm:$0xf] %vm408, %v362
  %428 = vst.msk [vmem:[%s2 + $0x4c] sm:$0xf] %vm408, %v363
  %429 = vst.msk [vmem:[%s2 + $0x50] sm:$0xf] %vm408, %v364
  %430 = vst.msk [vmem:[%s2 + $0x54] sm:$0xf] %vm408, %v365
  %431 = vst.msk [vmem:[%s2 + $0x58] sm:$0xf] %vm408, %v366
  %432 = vst.msk [vmem:[%s2 + $0x5c] sm:$0xf] %vm408, %v367
  %433 = vst.msk [vmem:[%s2 + $0x60] sm:$0xf] %vm408, %v368
  %434 = vst.msk [vmem:[%s2 + $0x64] sm:$0xf] %vm408, %v369
  %435 = vst.msk [vmem:[%s2 + $0x68] sm:$0xf] %vm408, %v370
  %436 = vst.msk [vmem:[%s2 + $0x6c] sm:$0xf] %vm408, %v371
  %437 = vst.msk [vmem:[%s2 + $0x70] sm:$0xf] %vm408, %v372
  %438 = vst.msk [vmem:[%s2 + $0x74] sm:$0xf] %vm408, %v373
  %439 = vst.msk [vmem:[%s2 + $0x78] sm:$0xf] %vm408, %v374
  %440 = vst.msk [vmem:[%s2 + $0x7c] sm:$0xf] %vm408, %v375
  %vm441 = vcmask 523264
  %v442 = vsel %vm441, %v154, 0.0
  %v443 = vsel %vm441, %v157, 0.0
  %v444 = vadd.f32 %v442, %v443
  %v445 = vsel %vm441, %v162, 0.0
  %v446 = vadd.f32 %v444, %v445
  %v447 = vsel %vm441, %v165, 0.0
  %v448 = vadd.f32 %v446, %v447
  %v449 = vsel %vm441, %v170, 0.0
  %v450 = vadd.f32 %v448, %v449
  %v451 = vsel %vm441, %v173, 0.0
  %v452 = vadd.f32 %v450, %v451
  %v453 = vsel %vm441, %v178, 0.0
  %v454 = vadd.f32 %v452, %v453
  %v455 = vsel %vm441, %v181, 0.0
  %v456 = vadd.f32 %v454, %v455
  %v457 = vsel %vm441, %v186, 0.0
  %v458 = vadd.f32 %v456, %v457
  %v459 = vsel %vm441, %v189, 0.0
  %v460 = vadd.f32 %v458, %v459
  %v461 = vsel %vm441, %v194, 0.0
  %v462 = vadd.f32 %v460, %v461
  %v463 = vsel %vm441, %v197, 0.0
  %v464 = vadd.f32 %v462, %v463
  %v465 = vsel %vm441, %v202, 0.0
  %v466 = vadd.f32 %v464, %v465
  %v467 = vsel %vm441, %v205, 0.0
  %v468 = vadd.f32 %v466, %v467
  %v469 = vsel %vm441, %v210, 0.0
  %v470 = vadd.f32 %v468, %v469
  %v471 = vsel %vm441, %v213, 0.0
  %v472 = vadd.f32 %v470, %v471
  %v473 = vsel %vm441, %v218, 0.0
  %v474 = vadd.f32 %v472, %v473
  %v475 = vsel %vm441, %v221, 0.0
  %v476 = vadd.f32 %v474, %v475
  %v477 = vsel %vm441, %v226, 0.0
  %v478 = vadd.f32 %v476, %v477
  %v479 = vsel %vm441, %v229, 0.0
  %v480 = vadd.f32 %v478, %v479
  %v481 = vsel %vm441, %v234, 0.0
  %v482 = vadd.f32 %v480, %v481
  %v483 = vsel %vm441, %v237, 0.0
  %v484 = vadd.f32 %v482, %v483
  %v485 = vsel %vm441, %v242, 0.0
  %v486 = vadd.f32 %v484, %v485
  %v487 = vsel %vm441, %v245, 0.0
  %v488 = vadd.f32 %v486, %v487
  %v489 = vsel %vm441, %v250, 0.0
  %v490 = vadd.f32 %v488, %v489
  %v491 = vsel %vm441, %v253, 0.0
  %v492 = vadd.f32 %v490, %v491
  %v493 = vsel %vm441, %v258, 0.0
  %v494 = vadd.f32 %v492, %v493
  %v495 = vsel %vm441, %v261, 0.0
  %v496 = vadd.f32 %v494, %v495
  %v497 = vsel %vm441, %v266, 0.0
  %v498 = vadd.f32 %v496, %v497
  %v499 = vsel %vm441, %v269, 0.0
  %v500 = vadd.f32 %v498, %v499
  %v501 = vsel %vm441, %v274, 0.0
  %v502 = vadd.f32 %v500, %v501
  %v503 = vsel %vm441, %v277, 0.0
  %v504 = vadd.f32 %v502, %v503
  %v505 = vrot.slane %v504, 4
  %v506 = vadd.f32 %v504, %v505
  %v507 = vrot.slane %v506, 2
  %v508 = vadd.f32 %v506, %v507
  %v509 = vrot.slane %v508, 1
  %v510 = vadd.f32 %v508, %v509
  %v511 = vmul.f32 %v154, %v154
  %v512 = vmul.f32 %v157, %v157
  %v513 = vmul.f32 %v162, %v162
  %v514 = vmul.f32 %v165, %v165
  %v515 = vmul.f32 %v170, %v170
  %v516 = vmul.f32 %v173, %v173
  %v517 = vmul.f32 %v178, %v178
  %v518 = vmul.f32 %v181, %v181
  %v519 = vmul.f32 %v186, %v186
  %v520 = vmul.f32 %v189, %v189
  %v521 = vmul.f32 %v194, %v194
  %v522 = vmul.f32 %v197, %v197
  %v523 = vmul.f32 %v202, %v202
  %v524 = vmul.f32 %v205, %v205
  %v525 = vmul.f32 %v210, %v210
  %v526 = vmul.f32 %v213, %v213
  %v527 = vmul.f32 %v218, %v218
  %v528 = vmul.f32 %v221, %v221
  %v529 = vmul.f32 %v226, %v226
  %v530 = vmul.f32 %v229, %v229
  %v531 = vmul.f32 %v234, %v234
  %v532 = vmul.f32 %v237, %v237
  %v533 = vmul.f32 %v242, %v242
  %v534 = vmul.f32 %v245, %v245
  %v535 = vmul.f32 %v250, %v250
  %v536 = vmul.f32 %v253, %v253
  %v537 = vmul.f32 %v258, %v258
  %v538 = vmul.f32 %v261, %v261
  %v539 = vmul.f32 %v266, %v266
  %v540 = vmul.f32 %v269, %v269
  %v541 = vmul.f32 %v274, %v274
  %v542 = vmul.f32 %v277, %v277
  %v543 = vsel %vm441, %v511, 0.0
  %v544 = vsel %vm441, %v512, 0.0
  %v545 = vadd.f32 %v543, %v544
  %v546 = vsel %vm441, %v513, 0.0
  %v547 = vadd.f32 %v545, %v546
  %v548 = vsel %vm441, %v514, 0.0
  %v549 = vadd.f32 %v547, %v548
  %v550 = vsel %vm441, %v515, 0.0
  %v551 = vadd.f32 %v549, %v550
  %v552 = vsel %vm441, %v516, 0.0
  %v553 = vadd.f32 %v551, %v552
  %v554 = vsel %vm441, %v517, 0.0
  %v555 = vadd.f32 %v553, %v554
  %v556 = vsel %vm441, %v518, 0.0
  %v557 = vadd.f32 %v555, %v556
  %v558 = vsel %vm441, %v519, 0.0
  %v559 = vadd.f32 %v557, %v558
  %v560 = vsel %vm441, %v520, 0.0
  %v561 = vadd.f32 %v559, %v560
  %v562 = vsel %vm441, %v521, 0.0
  %v563 = vadd.f32 %v561, %v562
  %v564 = vsel %vm441, %v522, 0.0
  %v565 = vadd.f32 %v563, %v564
  %v566 = vsel %vm441, %v523, 0.0
  %v567 = vadd.f32 %v565, %v566
  %v568 = vsel %vm441, %v524, 0.0
  %v569 = vadd.f32 %v567, %v568
  %v570 = vsel %vm441, %v525, 0.0
  %v571 = vadd.f32 %v569, %v570
  %v572 = vsel %vm441, %v526, 0.0
  %v573 = vadd.f32 %v571, %v572
  %v574 = vsel %vm441, %v527, 0.0
  %v575 = vadd.f32 %v573, %v574
  %v576 = vsel %vm441, %v528, 0.0
  %v577 = vadd.f32 %v575, %v576
  %v578 = vsel %vm441, %v529, 0.0
  %v579 = vadd.f32 %v577, %v578
  %v580 = vsel %vm441, %v530, 0.0
  %v581 = vadd.f32 %v579, %v580
  %v582 = vsel %vm441, %v531, 0.0
  %v583 = vadd.f32 %v581, %v582
  %v584 = vsel %vm441, %v532, 0.0
  %v585 = vadd.f32 %v583, %v584
  %v586 = vsel %vm441, %v533, 0.0
  %v587 = vadd.f32 %v585, %v586
  %v588 = vsel %vm441, %v534, 0.0
  %v589 = vadd.f32 %v587, %v588
  %v590 = vsel %vm441, %v535, 0.0
  %v591 = vadd.f32 %v589, %v590
  %v592 = vsel %vm441, %v536, 0.0
  %v593 = vadd.f32 %v591, %v592
  %v594 = vsel %vm441, %v537, 0.0
  %v595 = vadd.f32 %v593, %v594
  %v596 = vsel %vm441, %v538, 0.0
  %v597 = vadd.f32 %v595, %v596
  %v598 = vsel %vm441, %v539, 0.0
  %v599 = vadd.f32 %v597, %v598
  %v600 = vsel %vm441, %v540, 0.0
  %v601 = vadd.f32 %v599, %v600
  %v602 = vsel %vm441, %v541, 0.0
  %v603 = vadd.f32 %v601, %v602
  %v604 = vsel %vm441, %v542, 0.0
  %v605 = vadd.f32 %v603, %v604
  %v606 = vrot.slane %v605, 4
  %v607 = vadd.f32 %v605, %v606
  %v608 = vrot.slane %v607, 2
  %v609 = vadd.f32 %v607, %v608
  %v610 = vrot.slane %v609, 1
  %v611 = vadd.f32 %v609, %v610
  %v612 = vsel %vm112, %v510, %v611
  %vm613 = vcmask 517120
  %614 = vst.msk [vmem:[%s3] sm:$0x3] %vm613, %v612
  // Predicated region
  $region10: #{base_point_net.17} parent=0 // pred_check
    _
  $region11: #{base_point_net.17} parent=0 // pred_check_branch
    %616 = sbr.rel (0) target = $region13
  $region12: #{base_point_net.17} parent=0 // pred_region
    _
  $region13: #{base_point_net.17} parent=0 // pred_fallthru
    _
  // Predicated region
  $region14: #{base_point_net.17} parent=0 // pred_check
    _
  $region15: #{base_point_net.17} parent=0 // pred_check_branch
    %618 = sbr.rel (0) target = $region17
  $region16: #{base_point_net.17} parent=0 // pred_region
    _
  $region17: #{base_point_net.17} parent=0 // pred_fallthru
    _
  // Predicated region
  $region18: #{base_point_net.17} parent=0 // pred_check
    _
  $region19: #{base_point_net.17} parent=0 // pred_check_branch
    %620 = sbr.rel (0) target = $region21
  $region20: #{base_point_net.17} parent=0 // pred_region
    _
  $region21: #{base_point_net.17} parent=0 // pred_fallthru
    _
  // Predicated region
  $region22: #{base_point_net.17} parent=0 // pred_check
    _
  $region23: #{base_point_net.17} parent=0 // pred_check_branch
    %622 = sbr.rel (0) target = $region25
  $region24: #{base_point_net.17} parent=0 // pred_region
    _
  $region25: #{base_point_net.17} parent=0 // pred_fallthru
    _

// kernel: base_point_net.18
$region0: #{base_point_net.18}
  #allocation0 [shape = 'u32[]', space=smem, size = 0x4, offset = 0x4, fixed_abs, tag = 'smem constant byte address 0x4 - core index']
  #allocation1 [shape = 'u32[144,128]{1,0:T(1,128)}', space=vmem, size = 0x12000, scoped, tag = 'internal scratch']
  %s0 = inlined_call_operand.vmem [shape: bf16[256,64], index: 0, kind: input, shape index: {}]
  %s1 = inlined_call_operand.vmem [shape: bf16[1,64], index: 1, kind: input, shape index: {}]
  %s2 = inlined_call_operand.vmem [shape: bf16[1,64], index: 2, kind: input, shape index: {}]
  %s3 = inlined_call_operand.vmem [shape: bf16[64,128], index: 3, kind: input, shape index: {}]
  %s4 = inlined_call_operand.vmem [shape: bf16[256,128], index: 4, kind: output, shape index: {0}]
  %s5 = inlined_call_operand.vmem [shape: f32[1,2,128], index: 5, kind: output, shape index: {1}]
  %6 = xla_tuple %s4, %s5
  %s7 = sld [smem:[#allocation0]]
  $region34: #{base_point_net.18} parent=0
    _
  %s9 = ssub.s32 1, %s7
  %s10 = scalar_select 0, %s9, %s7
  // Predicated region
  $region2: #{base_point_net.18} parent=0 // pred_check
    _
  $region3: #{base_point_net.18} parent=0 // pred_check_branch
    %12 = sbr.rel (0) target = $region5
  $region4: #{base_point_net.18} parent=0 // pred_region
    _
  $region5: #{base_point_net.18} parent=0 // pred_fallthru
    _
  // Predicated region
  $region6: #{base_point_net.18} parent=0 // pred_check
    _
  $region7: #{base_point_net.18} parent=0 // pred_check_branch
    %14 = sbr.rel (0) target = $region9
  $region8: #{base_point_net.18} parent=0 // pred_region
    _
  $region9: #{base_point_net.18} parent=0 // pred_fallthru
    _
  // Predicated region
  $region10: #{base_point_net.18} parent=0 // pred_check
    _
  $region11: #{base_point_net.18} parent=0 // pred_check_branch
    %16 = sbr.rel (0) target = $region13
  $region12: #{base_point_net.18} parent=0 // pred_region
    _
  $region13: #{base_point_net.18} parent=0 // pred_fallthru
    _
  // Predicated region
  $region14: #{base_point_net.18} parent=0 // pred_check
    _
  $region15: #{base_point_net.18} parent=0 // pred_check_branch
    %18 = sbr.rel (0) target = $region17
  $region16: #{base_point_net.18} parent=0 // pred_region
    _
  $region17: #{base_point_net.18} parent=0 // pred_fallthru
    _
  %v20 = vld [vmem:[%s0] sm:$0xf]
  %v21 = vld [vmem:[%s0 + $0x4] sm:$0xf]
  %v22 = vld [vmem:[%s0 + $0x8] sm:$0xf]
  %v23 = vld [vmem:[%s0 + $0xc] sm:$0xf]
  %v24 = vld [vmem:[%s0 + $0x10] sm:$0xf]
  %v25 = vld [vmem:[%s0 + $0x14] sm:$0xf]
  %v26 = vld [vmem:[%s0 + $0x18] sm:$0xf]
  %v27 = vld [vmem:[%s0 + $0x1c] sm:$0xf]
  %v28 = vld [vmem:[%s0 + $0x20] sm:$0xf]
  %v29 = vld [vmem:[%s0 + $0x24] sm:$0xf]
  %v30 = vld [vmem:[%s0 + $0x28] sm:$0xf]
  %v31 = vld [vmem:[%s0 + $0x2c] sm:$0xf]
  %v32 = vld [vmem:[%s0 + $0x30] sm:$0xf]
  %v33 = vld [vmem:[%s0 + $0x34] sm:$0xf]
  %v34 = vld [vmem:[%s0 + $0x38] sm:$0xf]
  %v35 = vld [vmem:[%s0 + $0x3c] sm:$0xf]
  %v36 = vld [vmem:[%s0 + $0x40] sm:$0xf]
  %v37 = vld [vmem:[%s0 + $0x44] sm:$0xf]
  %v38 = vld [vmem:[%s0 + $0x48] sm:$0xf]
  %v39 = vld [vmem:[%s0 + $0x4c] sm:$0xf]
  %v40 = vld [vmem:[%s0 + $0x50] sm:$0xf]
  %v41 = vld [vmem:[%s0 + $0x54] sm:$0xf]
  %v42 = vld [vmem:[%s0 + $0x58] sm:$0xf]
  %v43 = vld [vmem:[%s0 + $0x5c] sm:$0xf]
  %v44 = vld [vmem:[%s0 + $0x60] sm:$0xf]
  %v45 = vld [vmem:[%s0 + $0x64] sm:$0xf]
  %v46 = vld [vmem:[%s0 + $0x68] sm:$0xf]
  %v47 = vld [vmem:[%s0 + $0x6c] sm:$0xf]
  %v48 = vld [vmem:[%s0 + $0x70] sm:$0xf]
  %v49 = vld [vmem:[%s0 + $0x74] sm:$0xf]
  %v50 = vld [vmem:[%s0 + $0x78] sm:$0xf]
  %v51 = vld [vmem:[%s0 + $0x7c] sm:$0xf]
  %v52 = vld [vmem:[%s1] sm:$0x1]
  %v54 = vpack.i.b16 %v52, %v52
  %v56 = vlaneseq
  %v57 = vshrl.u32 %v56, 7
  %v58 = vsub.s32 0, %v57
  %v59 = vrot.slane %v54, %v58
  %v61 = vunpack.c.l.b16 %v59
  %v62 = vpack.c.b16 %v61, %v61
  %v64 = vmul.bf16 %v20, %v62
  %v65 = vmul.bf16 %v21, %v62
  %v66 = vmul.bf16 %v22, %v62
  %v67 = vmul.bf16 %v23, %v62
  %v68 = vmul.bf16 %v24, %v62
  %v69 = vmul.bf16 %v25, %v62
  %v70 = vmul.bf16 %v26, %v62
  %v71 = vmul.bf16 %v27, %v62
  %v72 = vmul.bf16 %v28, %v62
  %v73 = vmul.bf16 %v29, %v62
  %v74 = vmul.bf16 %v30, %v62
  %v75 = vmul.bf16 %v31, %v62
  %v76 = vmul.bf16 %v32, %v62
  %v77 = vmul.bf16 %v33, %v62
  %v78 = vmul.bf16 %v34, %v62
  %v79 = vmul.bf16 %v35, %v62
  %v80 = vmul.bf16 %v36, %v62
  %v81 = vmul.bf16 %v37, %v62
  %v82 = vmul.bf16 %v38, %v62
  %v83 = vmul.bf16 %v39, %v62
  %v84 = vmul.bf16 %v40, %v62
  %v85 = vmul.bf16 %v41, %v62
  %v86 = vmul.bf16 %v42, %v62
  %v87 = vmul.bf16 %v43, %v62
  %v88 = vmul.bf16 %v44, %v62
  %v89 = vmul.bf16 %v45, %v62
  %v90 = vmul.bf16 %v46, %v62
  %v91 = vmul.bf16 %v47, %v62
  %v92 = vmul.bf16 %v48, %v62
  %v93 = vmul.bf16 %v49, %v62
  %v94 = vmul.bf16 %v50, %v62
  %v95 = vmul.bf16 %v51, %v62
  %v96 = vld [vmem:[%s2] sm:$0x1]
  %v98 = vpack.i.b16 %v96, %v96
  %v100 = vlaneseq
  %v101 = vshrl.u32 %v100, 7
  %v102 = vsub.s32 0, %v101
  %v103 = vrot.slane %v98, %v102
  %v105 = vunpack.c.l.b16 %v103
  %v106 = vpack.c.b16 %v105, %v105
  %v108 = vadd.bf16 %v64, %v106
  %v109 = vadd.bf16 %v65, %v106
  %v110 = vadd.bf16 %v66, %v106
  %v111 = vadd.bf16 %v67, %v106
  %v112 = vadd.bf16 %v68, %v106
  %v113 = vadd.bf16 %v69, %v106
  %v114 = vadd.bf16 %v70, %v106
  %v115 = vadd.bf16 %v71, %v106
  %v116 = vadd.bf16 %v72, %v106
  %v117 = vadd.bf16 %v73, %v106
  %v118 = vadd.bf16 %v74, %v106
  %v119 = vadd.bf16 %v75, %v106
  %v120 = vadd.bf16 %v76, %v106
  %v121 = vadd.bf16 %v77, %v106
  %v122 = vadd.bf16 %v78, %v106
  %v123 = vadd.bf16 %v79, %v106
  %v124 = vadd.bf16 %v80, %v106
  %v125 = vadd.bf16 %v81, %v106
  %v126 = vadd.bf16 %v82, %v106
  %v127 = vadd.bf16 %v83, %v106
  %v128 = vadd.bf16 %v84, %v106
  %v129 = vadd.bf16 %v85, %v106
  %v130 = vadd.bf16 %v86, %v106
  %v131 = vadd.bf16 %v87, %v106
  %v132 = vadd.bf16 %v88, %v106
  %v133 = vadd.bf16 %v89, %v106
  %v134 = vadd.bf16 %v90, %v106
  %v135 = vadd.bf16 %v91, %v106
  %v136 = vadd.bf16 %v92, %v106
  %v137 = vadd.bf16 %v93, %v106
  %v138 = vadd.bf16 %v94, %v106
  %v139 = vadd.bf16 %v95, %v106
  %v140 = vmax.bf16 %v108, 0
  %v141 = vmax.bf16 %v109, 0
  %v142 = vmax.bf16 %v110, 0
  %v143 = vmax.bf16 %v111, 0
  %v144 = vmax.bf16 %v112, 0
  %v145 = vmax.bf16 %v113, 0
  %v146 = vmax.bf16 %v114, 0
  %v147 = vmax.bf16 %v115, 0
  %v148 = vmax.bf16 %v116, 0
  %v149 = vmax.bf16 %v117, 0
  %v150 = vmax.bf16 %v118, 0
  %v151 = vmax.bf16 %v119, 0
  %v152 = vmax.bf16 %v120, 0
  %v153 = vmax.bf16 %v121, 0
  %v154 = vmax.bf16 %v122, 0
  %v155 = vmax.bf16 %v123, 0
  %v156 = vmax.bf16 %v124, 0
  %v157 = vmax.bf16 %v125, 0
  %v158 = vmax.bf16 %v126, 0
  %v159 = vmax.bf16 %v127, 0
  %v160 = vmax.bf16 %v128, 0
  %v161 = vmax.bf16 %v129, 0
  %v162 = vmax.bf16 %v130, 0
  %v163 = vmax.bf16 %v131, 0
  %v164 = vmax.bf16 %v132, 0
  %v165 = vmax.bf16 %v133, 0
  %v166 = vmax.bf16 %v134, 0
  %v167 = vmax.bf16 %v135, 0
  %v168 = vmax.bf16 %v136, 0
  %v169 = vmax.bf16 %v137, 0
  %v170 = vmax.bf16 %v138, 0
  %v171 = vmax.bf16 %v139, 0
  %v172 = vld [vmem:[%s3] sm:$0xf]
  %v173 = vld [vmem:[%s3 + $0x4] sm:$0xf]
  %v174 = vld [vmem:[%s3 + $0x8] sm:$0xf]
  %v175 = vld [vmem:[%s3 + $0xc] sm:$0xf]
  %v176 = vld [vmem:[%s3 + $0x10] sm:$0xf]
  %v177 = vld [vmem:[%s3 + $0x14] sm:$0xf]
  %v178 = vld [vmem:[%s3 + $0x18] sm:$0xf]
  %v179 = vld [vmem:[%s3 + $0x1c] sm:$0xf]
  %v212 = vunpack.c.l.b16 %v140
  %v213 = vunpack.c.l.b16 %v141
  %v214 = vunpack.c.l.b16 %v142
  %v215 = vunpack.c.l.b16 %v143
  %v216 = vunpack.c.l.b16 %v144
  %v217 = vunpack.c.l.b16 %v145
  %v218 = vunpack.c.l.b16 %v146
  %v219 = vunpack.c.l.b16 %v147
  %v220 = vunpack.c.l.b16 %v148
  %v221 = vunpack.c.l.b16 %v149
  %v222 = vunpack.c.l.b16 %v150
  %v223 = vunpack.c.l.b16 %v151
  %v224 = vunpack.c.l.b16 %v152
  %v225 = vunpack.c.l.b16 %v153
  %v226 = vunpack.c.l.b16 %v154
  %v227 = vunpack.c.l.b16 %v155
  %v228 = vunpack.c.l.b16 %v156
  %v229 = vunpack.c.l.b16 %v157
  %v230 = vunpack.c.l.b16 %v158
  %v231 = vunpack.c.l.b16 %v159
  %v232 = vunpack.c.l.b16 %v160
  %v233 = vunpack.c.l.b16 %v161
  %v234 = vunpack.c.l.b16 %v162
  %v235 = vunpack.c.l.b16 %v163
  %v236 = vunpack.c.l.b16 %v164
  %v237 = vunpack.c.l.b16 %v165
  %v238 = vunpack.c.l.b16 %v166
  %v239 = vunpack.c.l.b16 %v167
  %v240 = vunpack.c.l.b16 %v168
  %v241 = vunpack.c.l.b16 %v169
  %v242 = vunpack.c.l.b16 %v170
  %v243 = vunpack.c.l.b16 %v171
  %v244 = vpack.c.b16 %v213, %v212
  %v245 = vpack.c.b16 %v215, %v214
  %v246 = vpack.c.b16 %v217, %v216
  %v247 = vpack.c.b16 %v219, %v218
  %v248 = vpack.c.b16 %v221, %v220
  %v249 = vpack.c.b16 %v223, %v222
  %v250 = vpack.c.b16 %v225, %v224
  %v251 = vpack.c.b16 %v227, %v226
  %v252 = vpack.c.b16 %v229, %v228
  %v253 = vpack.c.b16 %v231, %v230
  %v254 = vpack.c.b16 %v233, %v232
  %v255 = vpack.c.b16 %v235, %v234
  %v256 = vpack.c.b16 %v237, %v236
  %v257 = vpack.c.b16 %v239, %v238
  %v258 = vpack.c.b16 %v241, %v240
  %v259 = vpack.c.b16 %v243, %v242
  %v268 = vunpack.c.l.b16 %v172
  %v269 = vunpack.c.l.b16 %v173
  %v270 = vunpack.c.l.b16 %v174
  %v271 = vunpack.c.l.b16 %v175
  %v272 = vunpack.c.l.b16 %v176
  %v273 = vunpack.c.l.b16 %v177
  %v274 = vunpack.c.l.b16 %v178
  %v275 = vunpack.c.l.b16 %v179
  %v276 = vpack.c.b16 %v269, %v268
  %v277 = vpack.c.b16 %v271, %v270
  %v278 = vpack.c.b16 %v273, %v272
  %v279 = vpack.c.b16 %v275, %v274
  %vm284 = vcmask 523264
  %v286 = vsel %vm284, %v244, 0
  %v289 = vsel %vm284, %v245, 0
  %v292 = vsel %vm284, %v246, 0
  %v295 = vsel %vm284, %v247, 0
  %v298 = vsel %vm284, %v248, 0
  %v301 = vsel %vm284, %v249, 0
  %v304 = vsel %vm284, %v250, 0
  %v307 = vsel %vm284, %v251, 0
  %v310 = vsel %vm284, %v252, 0
  %v313 = vsel %vm284, %v253, 0
  %v316 = vsel %vm284, %v254, 0
  %v319 = vsel %vm284, %v255, 0
  %v322 = vsel %vm284, %v256, 0
  %v325 = vsel %vm284, %v257, 0
  %v328 = vsel %vm284, %v258, 0
  %v331 = vsel %vm284, %v259, 0
  %333 = vmatprep.subr.bf16.mxu0 0
  %334 = vmatpush1.bf16.msra.mxu0 %v276
  %335 = vmatprep.subr.bf16.mxu0 0
  %336 = vmatpush1.bf16.msra.mxu0 %v277
  %337 = vmatprep.subr.bf16.mxu0 0
  %338 = vmatpush1.bf16.msra.mxu0 %v278
  %339 = vmatprep.subr.bf16.mxu0 0
  %340 = vmatpush1.bf16.msra.mxu0 %v279
  %341 = vmatprep.subr.bf16.mxu0 0
  %342 = vmatpush1.bf16.msra.mxu0 0
  %343 = vmatprep.subr.bf16.mxu0 0
  %344 = vmatpush1.bf16.msra.mxu0 0
  %345 = vmatprep.subr.bf16.mxu0 0
  %346 = vmatpush1.bf16.msra.mxu0 0
  %347 = vmatprep.subr.bf16.mxu0 0
  %348 = vmatpush1.bf16.msra.mxu0 0
  %349 = vmatprep.subr.bf16.mxu0 0
  %350 = vmatpush1.bf16.msra.mxu0 0
  %351 = vmatprep.subr.bf16.mxu0 0
  %352 = vmatpush1.bf16.msra.mxu0 0
  %353 = vmatprep.subr.bf16.mxu0 0
  %354 = vmatpush1.bf16.msra.mxu0 0
  %355 = vmatprep.subr.bf16.mxu0 0
  %356 = vmatpush1.bf16.msra.mxu0 0
  %357 = vmatprep.subr.bf16.mxu0 0
  %358 = vmatpush1.bf16.msra.mxu0 0
  %359 = vmatprep.subr.bf16.mxu0 0
  %360 = vmatpush1.bf16.msra.mxu0 0
  %361 = vmatprep.subr.bf16.mxu0 0
  %362 = vmatpush1.bf16.msra.mxu0 0
  %363 = vmatprep.subr.bf16.mxu0 0
  %364 = vmatpush1.bf16.msra.mxu0 0
  %365 = vmatprep.mubr.bf16.mxu0 0
  %366 = vmatmul.mubr.bf16.gmra.mrb[0].mxu0 %v286
  %v367 = vpop.f32.mrb[0].mxu0
  %v368 = vadd.f32 0.0, %v367
  %v369 = vpop.f32.mrb[0].mxu0
  %v370 = vpop.f32.mrb[0].mxu0
  %v371 = vadd.f32 0.0, %v370
  %v372 = vpop.f32.mrb[0].mxu0
  %373 = vmatprep.mubr.bf16.mxu0 0
  %374 = vmatmul.mubr.bf16.gmra.mrb[0].mxu0 %v289
  %v375 = vpop.f32.mrb[0].mxu0
  %v376 = vadd.f32 0.0, %v375
  %v377 = vpop.f32.mrb[0].mxu0
  %v378 = vpop.f32.mrb[0].mxu0
  %v379 = vadd.f32 0.0, %v378
  %v380 = vpop.f32.mrb[0].mxu0
  %381 = vmatprep.mubr.bf16.mxu0 0
  %382 = vmatmul.mubr.bf16.gmra.mrb[0].mxu0 %v292
  %v383 = vpop.f32.mrb[0].mxu0
  %v384 = vadd.f32 0.0, %v383
  %v385 = vpop.f32.mrb[0].mxu0
  %v386 = vpop.f32.mrb[0].mxu0
  %v387 = vadd.f32 0.0, %v386
  %v388 = vpop.f32.mrb[0].mxu0
  %389 = vmatprep.mubr.bf16.mxu0 0
  %390 = vmatmul.mubr.bf16.gmra.mrb[0].mxu0 %v295
  %v391 = vpop.f32.mrb[0].mxu0
  %v392 = vadd.f32 0.0, %v391
  %v393 = vpop.f32.mrb[0].mxu0
  %v394 = vpop.f32.mrb[0].mxu0
  %v395 = vadd.f32 0.0, %v394
  %v396 = vpop.f32.mrb[0].mxu0
  %397 = vmatprep.mubr.bf16.mxu0 0
  %398 = vmatmul.mubr.bf16.gmra.mrb[0].mxu0 %v298
  %v399 = vpop.f32.mrb[0].mxu0
  %v400 = vadd.f32 0.0, %v399
  %v401 = vpop.f32.mrb[0].mxu0
  %v402 = vpop.f32.mrb[0].mxu0
  %v403 = vadd.f32 0.0, %v402
  %v404 = vpop.f32.mrb[0].mxu0
  %405 = vmatprep.mubr.bf16.mxu0 0
  %406 = vmatmul.mubr.bf16.gmra.mrb[0].mxu0 %v301
  %v407 = vpop.f32.mrb[0].mxu0
  %v408 = vadd.f32 0.0, %v407
  %v409 = vpop.f32.mrb[0].mxu0
  %v410 = vpop.f32.mrb[0].mxu0
  %v411 = vadd.f32 0.0, %v410
  %v412 = vpop.f32.mrb[0].mxu0
  %413 = vmatprep.mubr.bf16.mxu0 0
  %414 = vmatmul.mubr.bf16.gmra.mrb[0].mxu0 %v304
  %v415 = vpop.f32.mrb[0].mxu0
  %v416 = vadd.f32 0.0, %v415
  %v417 = vpop.f32.mrb[0].mxu0
  %v418 = vpop.f32.mrb[0].mxu0
  %v419 = vadd.f32 0.0, %v418
  %v420 = vpop.f32.mrb[0].mxu0
  %421 = vmatprep.mubr.bf16.mxu0 0
  %422 = vmatmul.mubr.bf16.gmra.mrb[0].mxu0 %v307
  %v423 = vpop.f32.mrb[0].mxu0
  %v424 = vadd.f32 0.0, %v423
  %v425 = vpop.f32.mrb[0].mxu0
  %v426 = vpop.f32.mrb[0].mxu0
  %v427 = vadd.f32 0.0, %v426
  %v428 = vpop.f32.mrb[0].mxu0
  %429 = vmatprep.mubr.bf16.mxu0 0
  %430 = vmatmul.mubr.bf16.gmra.mrb[0].mxu0 %v310
  %v431 = vpop.f32.mrb[0].mxu0
  %v432 = vadd.f32 0.0, %v431
  %v433 = vpop.f32.mrb[0].mxu0
  %v434 = vpop.f32.mrb[0].mxu0
  %v435 = vadd.f32 0.0, %v434
  %v436 = vpop.f32.mrb[0].mxu0
  %437 = vmatprep.mubr.bf16.mxu0 0
  %438 = vmatmul.mubr.bf16.gmra.mrb[0].mxu0 %v313
  %v439 = vpop.f32.mrb[0].mxu0
  %v440 = vadd.f32 0.0, %v439
  %v441 = vpop.f32.mrb[0].mxu0
  %v442 = vpop.f32.mrb[0].mxu0
  %v443 = vadd.f32 0.0, %v442
  %v444 = vpop.f32.mrb[0].mxu0
  %445 = vmatprep.mubr.bf16.mxu0 0
  %446 = vmatmul.mubr.bf16.gmra.mrb[0].mxu0 %v316
  %v447 = vpop.f32.mrb[0].mxu0
  %v448 = vadd.f32 0.0, %v447
  %v449 = vpop.f32.mrb[0].mxu0
  %v450 = vpop.f32.mrb[0].mxu0
  %v451 = vadd.f32 0.0, %v450
  %v452 = vpop.f32.mrb[0].mxu0
  %453 = vmatprep.mubr.bf16.mxu0 0
  %454 = vmatmul.mubr.bf16.gmra.mrb[0].mxu0 %v319
  %v455 = vpop.f32.mrb[0].mxu0
  %v456 = vadd.f32 0.0, %v455
  %v457 = vpop.f32.mrb[0].mxu0
  %v458 = vpop.f32.mrb[0].mxu0
  %v459 = vadd.f32 0.0, %v458
  %v460 = vpop.f32.mrb[0].mxu0
  %461 = vmatprep.mubr.bf16.mxu0 0
  %462 = vmatmul.mubr.bf16.gmra.mrb[0].mxu0 %v322
  %v463 = vpop.f32.mrb[0].mxu0
  %v464 = vadd.f32 0.0, %v463
  %v465 = vpop.f32.mrb[0].mxu0
  %v466 = vpop.f32.mrb[0].mxu0
  %v467 = vadd.f32 0.0, %v466
  %v468 = vpop.f32.mrb[0].mxu0
  %469 = vmatprep.mubr.bf16.mxu0 0
  %470 = vmatmul.mubr.bf16.gmra.mrb[0].mxu0 %v325
  %v471 = vpop.f32.mrb[0].mxu0
  %v472 = vadd.f32 0.0, %v471
  %v473 = vpop.f32.mrb[0].mxu0
  %v474 = vpop.f32.mrb[0].mxu0
  %v475 = vadd.f32 0.0, %v474
  %v476 = vpop.f32.mrb[0].mxu0
  %477 = vmatprep.mubr.bf16.mxu0 0
  %478 = vmatmul.mubr.bf16.gmra.mrb[0].mxu0 %v328
  %v479 = vpop.f32.mrb[0].mxu0
  %v480 = vadd.f32 0.0, %v479
  %v481 = vpop.f32.mrb[0].mxu0
  %v482 = vpop.f32.mrb[0].mxu0
  %v483 = vadd.f32 0.0, %v482
  %v484 = vpop.f32.mrb[0].mxu0
  %485 = vmatprep.mubr.bf16.mxu0 0
  %486 = vmatmul.mubr.bf16.gmra.mrb[0].mxu0 %v331
  %v487 = vpop.f32.mrb[0].mxu0
  %v488 = vadd.f32 0.0, %v487
  %v489 = vpop.f32.mrb[0].mxu0
  %v490 = vpop.f32.mrb[0].mxu0
  %v491 = vadd.f32 0.0, %v490
  %v492 = vpop.f32.mrb[0].mxu0
  %493 = vdwg.mxu0
  %v494 = vpack.c.bf16 %v371, %v368
  %v495 = vpack.c.bf16 %v379, %v376
  %v496 = vpack.c.bf16 %v387, %v384
  %v497 = vpack.c.bf16 %v395, %v392
  %v498 = vpack.c.bf16 %v403, %v400
  %v499 = vpack.c.bf16 %v411, %v408
  %v500 = vpack.c.bf16 %v419, %v416
  %v501 = vpack.c.bf16 %v427, %v424
  %v502 = vpack.c.bf16 %v435, %v432
  %v503 = vpack.c.bf16 %v443, %v440
  %v504 = vpack.c.bf16 %v451, %v448
  %v505 = vpack.c.bf16 %v459, %v456
  %v506 = vpack.c.bf16 %v467, %v464
  %v507 = vpack.c.bf16 %v475, %v472
  %v508 = vpack.c.bf16 %v483, %v480
  %v509 = vpack.c.bf16 %v491, %v488
  %v526 = vunpack.c.l.b16 %v494
  %v527 = vunpack.c.h.b16 %v494
  %v528 = vunpack.c.l.b16 %v495
  %v529 = vunpack.c.h.b16 %v495
  %v530 = vunpack.c.l.b16 %v496
  %v531 = vunpack.c.h.b16 %v496
  %v532 = vunpack.c.l.b16 %v497
  %v533 = vunpack.c.h.b16 %v497
  %v534 = vunpack.c.l.b16 %v498
  %v535 = vunpack.c.h.b16 %v498
  %v536 = vunpack.c.l.b16 %v499
  %v537 = vunpack.c.h.b16 %v499
  %v538 = vunpack.c.l.b16 %v500
  %v539 = vunpack.c.h.b16 %v500
  %v540 = vunpack.c.l.b16 %v501
  %v541 = vunpack.c.h.b16 %v501
  %v542 = vunpack.c.l.b16 %v502
  %v543 = vunpack.c.h.b16 %v502
  %v544 = vunpack.c.l.b16 %v503
  %v545 = vunpack.c.h.b16 %v503
  %v546 = vunpack.c.l.b16 %v504
  %v547 = vunpack.c.h.b16 %v504
  %v548 = vunpack.c.l.b16 %v505
  %v549 = vunpack.c.h.b16 %v505
  %v550 = vunpack.c.l.b16 %v506
  %v551 = vunpack.c.h.b16 %v506
  %v552 = vunpack.c.l.b16 %v507
  %v553 = vunpack.c.h.b16 %v507
  %v554 = vunpack.c.l.b16 %v508
  %v555 = vunpack.c.h.b16 %v508
  %v556 = vunpack.c.l.b16 %v509
  %v557 = vunpack.c.h.b16 %v509
  %v558 = vpack.c.b16 %v526, %v526
  %v559 = vpack.c.b16 %v527, %v527
  %v560 = vpack.c.b16 %v528, %v528
  %v561 = vpack.c.b16 %v529, %v529
  %v562 = vpack.c.b16 %v530, %v530
  %v563 = vpack.c.b16 %v531, %v531
  %v564 = vpack.c.b16 %v532, %v532
  %v565 = vpack.c.b16 %v533, %v533
  %v566 = vpack.c.b16 %v534, %v534
  %v567 = vpack.c.b16 %v535, %v535
  %v568 = vpack.c.b16 %v536, %v536
  %v569 = vpack.c.b16 %v537, %v537
  %v570 = vpack.c.b16 %v538, %v538
  %v571 = vpack.c.b16 %v539, %v539
  %v572 = vpack.c.b16 %v540, %v540
  %v573 = vpack.c.b16 %v541, %v541
  %v574 = vpack.c.b16 %v542, %v542
  %v575 = vpack.c.b16 %v543, %v543
  %v576 = vpack.c.b16 %v544, %v544
  %v577 = vpack.c.b16 %v545, %v545
  %v578 = vpack.c.b16 %v546, %v546
  %v579 = vpack.c.b16 %v547, %v547
  %v580 = vpack.c.b16 %v548, %v548
  %v581 = vpack.c.b16 %v549, %v549
  %v582 = vpack.c.b16 %v550, %v550
  %v583 = vpack.c.b16 %v551, %v551
  %v584 = vpack.c.b16 %v552, %v552
  %v585 = vpack.c.b16 %v553, %v553
  %v586 = vpack.c.b16 %v554, %v554
  %v587 = vpack.c.b16 %v555, %v555
  %v588 = vpack.c.b16 %v556, %v556
  %v589 = vpack.c.b16 %v557, %v557
  %622 = vst [vmem:[%s4] sm:$0xf] %v558
  %623 = vst [vmem:[%s4 + $0x4] sm:$0xf] %v559
  %624 = vst [vmem:[%s4 + $0x8] sm:$0xf] %v560
  %625 = vst [vmem:[%s4 + $0xc] sm:$0xf] %v561
  %626 = vst [vmem:[%s4 + $0x10] sm:$0xf] %v562
  %627 = vst [vmem:[%s4 + $0x14] sm:$0xf] %v563
  %628 = vst [vmem:[%s4 + $0x18] sm:$0xf] %v564
  %629 = vst [vmem:[%s4 + $0x1c] sm:$0xf] %v565
  %630 = vst [vmem:[%s4 + $0x20] sm:$0xf] %v566
  %631 = vst [vmem:[%s4 + $0x24] sm:$0xf] %v567
  %632 = vst [vmem:[%s4 + $0x28] sm:$0xf] %v568
  %633 = vst [vmem:[%s4 + $0x2c] sm:$0xf] %v569
  %634 = vst [vmem:[%s4 + $0x30] sm:$0xf] %v570
  %635 = vst [vmem:[%s4 + $0x34] sm:$0xf] %v571
  %636 = vst [vmem:[%s4 + $0x38] sm:$0xf] %v572
  %637 = vst [vmem:[%s4 + $0x3c] sm:$0xf] %v573
  %638 = vst [vmem:[%s4 + $0x40] sm:$0xf] %v574
  %639 = vst [vmem:[%s4 + $0x44] sm:$0xf] %v575
  %640 = vst [vmem:[%s4 + $0x48] sm:$0xf] %v576
  %641 = vst [vmem:[%s4 + $0x4c] sm:$0xf] %v577
  %642 = vst [vmem:[%s4 + $0x50] sm:$0xf] %v578
  %643 = vst [vmem:[%s4 + $0x54] sm:$0xf] %v579
  %644 = vst [vmem:[%s4 + $0x58] sm:$0xf] %v580
  %645 = vst [vmem:[%s4 + $0x5c] sm:$0xf] %v581
  %646 = vst [vmem:[%s4 + $0x60] sm:$0xf] %v582
  %647 = vst [vmem:[%s4 + $0x64] sm:$0xf] %v583
  %648 = vst [vmem:[%s4 + $0x68] sm:$0xf] %v584
  %649 = vst [vmem:[%s4 + $0x6c] sm:$0xf] %v585
  %650 = vst [vmem:[%s4 + $0x70] sm:$0xf] %v586
  %651 = vst [vmem:[%s4 + $0x74] sm:$0xf] %v587
  %652 = vst [vmem:[%s4 + $0x78] sm:$0xf] %v588
  %653 = vst [vmem:[%s4 + $0x7c] sm:$0xf] %v589
  %v654 = vadd.f32 %v368, %v371
  %v655 = vadd.f32 %v654, %v376
  %v656 = vadd.f32 %v655, %v379
  %v657 = vadd.f32 %v656, %v384
  %v658 = vadd.f32 %v657, %v387
  %v659 = vadd.f32 %v658, %v392
  %v660 = vadd.f32 %v659, %v395
  %v661 = vadd.f32 %v660, %v400
  %v662 = vadd.f32 %v661, %v403
  %v663 = vadd.f32 %v662, %v408
  %v664 = vadd.f32 %v663, %v411
  %v665 = vadd.f32 %v664, %v416
  %v666 = vadd.f32 %v665, %v419
  %v667 = vadd.f32 %v666, %v424
  %v668 = vadd.f32 %v667, %v427
  %v669 = vadd.f32 %v668, %v432
  %v670 = vadd.f32 %v669, %v435
  %v671 = vadd.f32 %v670, %v440
  %v672 = vadd.f32 %v671, %v443
  %v673 = vadd.f32 %v672, %v448
  %v674 = vadd.f32 %v673, %v451
  %v675 = vadd.f32 %v674, %v456
  %v676 = vadd.f32 %v675, %v459
  %v677 = vadd.f32 %v676, %v464
  %v678 = vadd.f32 %v677, %v467
  %v679 = vadd.f32 %v678, %v472
  %v680 = vadd.f32 %v679, %v475
  %v681 = vadd.f32 %v680, %v480
  %v682 = vadd.f32 %v681, %v483
  %v683 = vadd.f32 %v682, %v488
  %v684 = vadd.f32 %v683, %v491
  %v685 = vrot.slane %v684, 4
  %v686 = vadd.f32 %v684, %v685
  %v687 = vrot.slane %v686, 2
  %v688 = vadd.f32 %v686, %v687
  %v689 = vrot.slane %v688, 1
  %v690 = vadd.f32 %v688, %v689
  %v691 = vmul.f32 %v368, %v368
  %v692 = vmul.f32 %v371, %v371
  %v693 = vmul.f32 %v376, %v376
  %v694 = vmul.f32 %v379, %v379
  %v695 = vmul.f32 %v384, %v384
  %v696 = vmul.f32 %v387, %v387
  %v697 = vmul.f32 %v392, %v392
  %v698 = vmul.f32 %v395, %v395
  %v699 = vmul.f32 %v400, %v400
  %v700 = vmul.f32 %v403, %v403
  %v701 = vmul.f32 %v408, %v408
  %v702 = vmul.f32 %v411, %v411
  %v703 = vmul.f32 %v416, %v416
  %v704 = vmul.f32 %v419, %v419
  %v705 = vmul.f32 %v424, %v424
  %v706 = vmul.f32 %v427, %v427
  %v707 = vmul.f32 %v432, %v432
  %v708 = vmul.f32 %v435, %v435
  %v709 = vmul.f32 %v440, %v440
  %v710 = vmul.f32 %v443, %v443
  %v711 = vmul.f32 %v448, %v448
  %v712 = vmul.f32 %v451, %v451
  %v713 = vmul.f32 %v456, %v456
  %v714 = vmul.f32 %v459, %v459
  %v715 = vmul.f32 %v464, %v464
  %v716 = vmul.f32 %v467, %v467
  %v717 = vmul.f32 %v472, %v472
  %v718 = vmul.f32 %v475, %v475
  %v719 = vmul.f32 %v480, %v480
  %v720 = vmul.f32 %v483, %v483
  %v721 = vmul.f32 %v488, %v488
  %v722 = vmul.f32 %v491, %v491
  %v723 = vadd.f32 %v691, %v692
  %v724 = vadd.f32 %v723, %v693
  %v725 = vadd.f32 %v724, %v694
  %v726 = vadd.f32 %v725, %v695
  %v727 = vadd.f32 %v726, %v696
  %v728 = vadd.f32 %v727, %v697
  %v729 = vadd.f32 %v728, %v698
  %v730 = vadd.f32 %v729, %v699
  %v731 = vadd.f32 %v730, %v700
  %v732 = vadd.f32 %v731, %v701
  %v733 = vadd.f32 %v732, %v702
  %v734 = vadd.f32 %v733, %v703
  %v735 = vadd.f32 %v734, %v704
  %v736 = vadd.f32 %v735, %v705
  %v737 = vadd.f32 %v736, %v706
  %v738 = vadd.f32 %v737, %v707
  %v739 = vadd.f32 %v738, %v708
  %v740 = vadd.f32 %v739, %v709
  %v741 = vadd.f32 %v740, %v710
  %v742 = vadd.f32 %v741, %v711
  %v743 = vadd.f32 %v742, %v712
  %v744 = vadd.f32 %v743, %v713
  %v745 = vadd.f32 %v744, %v714
  %v746 = vadd.f32 %v745, %v715
  %v747 = vadd.f32 %v746, %v716
  %v748 = vadd.f32 %v747, %v717
  %v749 = vadd.f32 %v748, %v718
  %v750 = vadd.f32 %v749, %v719
  %v751 = vadd.f32 %v750, %v720
  %v752 = vadd.f32 %v751, %v721
  %v753 = vadd.f32 %v752, %v722
  %v754 = vrot.slane %v753, 4
  %v755 = vadd.f32 %v753, %v754
  %v756 = vrot.slane %v755, 2
  %v757 = vadd.f32 %v755, %v756
  %v758 = vrot.slane %v757, 1
  %v759 = vadd.f32 %v757, %v758
  %vm760 = vcmask 1040384
  %v761 = vsel %vm760, %v690, %v759
  %762 = vst [vmem:[%s5] sm:$0x3] %v761
  // Predicated region
  $region18: #{base_point_net.18} parent=0 // pred_check
    _
  $region19: #{base_point_net.18} parent=0 // pred_check_branch
    %764 = sbr.rel (0) target = $region21
  $region20: #{base_point_net.18} parent=0 // pred_region
    _
  $region21: #{base_point_net.18} parent=0 // pred_fallthru
    _
  // Predicated region
  $region22: #{base_point_net.18} parent=0 // pred_check
    _
  $region23: #{base_point_net.18} parent=0 // pred_check_branch
    %766 = sbr.rel (0) target = $region25
  $region24: #{base_point_net.18} parent=0 // pred_region
    _
  $region25: #{base_point_net.18} parent=0 // pred_fallthru
    _
  // Predicated region
  $region26: #{base_point_net.18} parent=0 // pred_check
    _
  $region27: #{base_point_net.18} parent=0 // pred_check_branch
    %768 = sbr.rel (0) target = $region29
  $region28: #{base_point_net.18} parent=0 // pred_region
    _
  $region29: #{base_point_net.18} parent=0 // pred_fallthru
    _
  // Predicated region
  $region30: #{base_point_net.18} parent=0 // pred_check
    _
  $region31: #{base_point_net.18} parent=0 // pred_check_branch
    %770 = sbr.rel (0) target = $region33
  $region32: #{base_point_net.18} parent=0 // pred_region
    _
  $region33: #{base_point_net.18} parent=0 // pred_fallthru
    _

// kernel: base_point_net.19
$region0: #{base_point_net.19}
  #allocation0 [shape = 'u32[]', space=smem, size = 0x4, offset = 0x4, fixed_abs, tag = 'smem constant byte address 0x4 - core index']
  #allocation1 [shape = 'u32[144,128]{1,0:T(1,128)}', space=vmem, size = 0x12000, scoped, tag = 'internal scratch']
  %s0 = inlined_call_operand.vmem [shape: bf16[256,128], index: 0, kind: input, shape index: {}]
  %s1 = inlined_call_operand.vmem [shape: bf16[1,128], index: 1, kind: input, shape index: {}]
  %s2 = inlined_call_operand.vmem [shape: bf16[1,128], index: 2, kind: input, shape index: {}]
  %s3 = inlined_call_operand.vmem [shape: bf16[128,256], index: 3, kind: input, shape index: {}]
  %s4 = inlined_call_operand.vmem [shape: bf16[256,256], index: 4, kind: output, shape index: {0}]
  %s5 = inlined_call_operand.vmem [shape: f32[1,2,256], index: 5, kind: output, shape index: {1}]
  %6 = xla_tuple %s4, %s5
  %s7 = sld [smem:[#allocation0]]
  $region34: #{base_point_net.19} parent=0
    _
  %s9 = ssub.s32 1, %s7
  %s10 = scalar_select 0, %s9, %s7
  // Predicated region
  $region2: #{base_point_net.19} parent=0 // pred_check
    _
  $region3: #{base_point_net.19} parent=0 // pred_check_branch
    %12 = sbr.rel (0) target = $region5
  $region4: #{base_point_net.19} parent=0 // pred_region
    _
  $region5: #{base_point_net.19} parent=0 // pred_fallthru
    _
  // Predicated region
  $region6: #{base_point_net.19} parent=0 // pred_check
    _
  $region7: #{base_point_net.19} parent=0 // pred_check_branch
    %14 = sbr.rel (0) target = $region9
  $region8: #{base_point_net.19} parent=0 // pred_region
    _
  $region9: #{base_point_net.19} parent=0 // pred_fallthru
    _
  // Predicated region
  $region10: #{base_point_net.19} parent=0 // pred_check
    _
  $region11: #{base_point_net.19} parent=0 // pred_check_branch
    %16 = sbr.rel (0) target = $region13
  $region12: #{base_point_net.19} parent=0 // pred_region
    _
  $region13: #{base_point_net.19} parent=0 // pred_fallthru
    _
  // Predicated region
  $region14: #{base_point_net.19} parent=0 // pred_check
    _
  $region15: #{base_point_net.19} parent=0 // pred_check_branch
    %18 = sbr.rel (0) target = $region17
  $region16: #{base_point_net.19} parent=0 // pred_region
    _
  $region17: #{base_point_net.19} parent=0 // pred_fallthru
    _
  %v20 = vld [vmem:[%s0] sm:$0xf]
  %v21 = vld [vmem:[%s0 + $0x4] sm:$0xf]
  %v22 = vld [vmem:[%s0 + $0x8] sm:$0xf]
  %v23 = vld [vmem:[%s0 + $0xc] sm:$0xf]
  %v24 = vld [vmem:[%s0 + $0x10] sm:$0xf]
  %v25 = vld [vmem:[%s0 + $0x14] sm:$0xf]
  %v26 = vld [vmem:[%s0 + $0x18] sm:$0xf]
  %v27 = vld [vmem:[%s0 + $0x1c] sm:$0xf]
  %v28 = vld [vmem:[%s0 + $0x20] sm:$0xf]
  %v29 = vld [vmem:[%s0 + $0x24] sm:$0xf]
  %v30 = vld [vmem:[%s0 + $0x28] sm:$0xf]
  %v31 = vld [vmem:[%s0 + $0x2c] sm:$0xf]
  %v32 = vld [vmem:[%s0 + $0x30] sm:$0xf]
  %v33 = vld [vmem:[%s0 + $0x34] sm:$0xf]
  %v34 = vld [vmem:[%s0 + $0x38] sm:$0xf]
  %v35 = vld [vmem:[%s0 + $0x3c] sm:$0xf]
  %v36 = vld [vmem:[%s0 + $0x40] sm:$0xf]
  %v37 = vld [vmem:[%s0 + $0x44] sm:$0xf]
  %v38 = vld [vmem:[%s0 + $0x48] sm:$0xf]
  %v39 = vld [vmem:[%s0 + $0x4c] sm:$0xf]
  %v40 = vld [vmem:[%s0 + $0x50] sm:$0xf]
  %v41 = vld [vmem:[%s0 + $0x54] sm:$0xf]
  %v42 = vld [vmem:[%s0 + $0x58] sm:$0xf]
  %v43 = vld [vmem:[%s0 + $0x5c] sm:$0xf]
  %v44 = vld [vmem:[%s0 + $0x60] sm:$0xf]
  %v45 = vld [vmem:[%s0 + $0x64] sm:$0xf]
  %v46 = vld [vmem:[%s0 + $0x68] sm:$0xf]
  %v47 = vld [vmem:[%s0 + $0x6c] sm:$0xf]
  %v48 = vld [vmem:[%s0 + $0x70] sm:$0xf]
  %v49 = vld [vmem:[%s0 + $0x74] sm:$0xf]
  %v50 = vld [vmem:[%s0 + $0x78] sm:$0xf]
  %v51 = vld [vmem:[%s0 + $0x7c] sm:$0xf]
  %v52 = vld [vmem:[%s1] sm:$0x1]
  %v54 = vpack.i.b16 %v52, %v52
  %v56 = vlaneseq
  %v57 = vshrl.u32 %v56, 7
  %v58 = vsub.s32 0, %v57
  %v59 = vrot.slane %v54, %v58
  %v61 = vunpack.c.l.b16 %v59
  %v62 = vpack.c.b16 %v61, %v61
  %v64 = vmul.bf16 %v20, %v62
  %v65 = vmul.bf16 %v21, %v62
  %v66 = vmul.bf16 %v22, %v62
  %v67 = vmul.bf16 %v23, %v62
  %v68 = vmul.bf16 %v24, %v62
  %v69 = vmul.bf16 %v25, %v62
  %v70 = vmul.bf16 %v26, %v62
  %v71 = vmul.bf16 %v27, %v62
  %v72 = vmul.bf16 %v28, %v62
  %v73 = vmul.bf16 %v29, %v62
  %v74 = vmul.bf16 %v30, %v62
  %v75 = vmul.bf16 %v31, %v62
  %v76 = vmul.bf16 %v32, %v62
  %v77 = vmul.bf16 %v33, %v62
  %v78 = vmul.bf16 %v34, %v62
  %v79 = vmul.bf16 %v35, %v62
  %v80 = vmul.bf16 %v36, %v62
  %v81 = vmul.bf16 %v37, %v62
  %v82 = vmul.bf16 %v38, %v62
  %v83 = vmul.bf16 %v39, %v62
  %v84 = vmul.bf16 %v40, %v62
  %v85 = vmul.bf16 %v41, %v62
  %v86 = vmul.bf16 %v42, %v62
  %v87 = vmul.bf16 %v43, %v62
  %v88 = vmul.bf16 %v44, %v62
  %v89 = vmul.bf16 %v45, %v62
  %v90 = vmul.bf16 %v46, %v62
  %v91 = vmul.bf16 %v47, %v62
  %v92 = vmul.bf16 %v48, %v62
  %v93 = vmul.bf16 %v49, %v62
  %v94 = vmul.bf16 %v50, %v62
  %v95 = vmul.bf16 %v51, %v62
  %v96 = vld [vmem:[%s2] sm:$0x1]
  %v98 = vpack.i.b16 %v96, %v96
  %v100 = vlaneseq
  %v101 = vshrl.u32 %v100, 7
  %v102 = vsub.s32 0, %v101
  %v103 = vrot.slane %v98, %v102
  %v105 = vunpack.c.l.b16 %v103
  %v106 = vpack.c.b16 %v105, %v105
  %v108 = vadd.bf16 %v64, %v106
  %v109 = vadd.bf16 %v65, %v106
  %v110 = vadd.bf16 %v66, %v106
  %v111 = vadd.bf16 %v67, %v106
  %v112 = vadd.bf16 %v68, %v106
  %v113 = vadd.bf16 %v69, %v106
  %v114 = vadd.bf16 %v70, %v106
  %v115 = vadd.bf16 %v71, %v106
  %v116 = vadd.bf16 %v72, %v106
  %v117 = vadd.bf16 %v73, %v106
  %v118 = vadd.bf16 %v74, %v106
  %v119 = vadd.bf16 %v75, %v106
  %v120 = vadd.bf16 %v76, %v106
  %v121 = vadd.bf16 %v77, %v106
  %v122 = vadd.bf16 %v78, %v106
  %v123 = vadd.bf16 %v79, %v106
  %v124 = vadd.bf16 %v80, %v106
  %v125 = vadd.bf16 %v81, %v106
  %v126 = vadd.bf16 %v82, %v106
  %v127 = vadd.bf16 %v83, %v106
  %v128 = vadd.bf16 %v84, %v106
  %v129 = vadd.bf16 %v85, %v106
  %v130 = vadd.bf16 %v86, %v106
  %v131 = vadd.bf16 %v87, %v106
  %v132 = vadd.bf16 %v88, %v106
  %v133 = vadd.bf16 %v89, %v106
  %v134 = vadd.bf16 %v90, %v106
  %v135 = vadd.bf16 %v91, %v106
  %v136 = vadd.bf16 %v92, %v106
  %v137 = vadd.bf16 %v93, %v106
  %v138 = vadd.bf16 %v94, %v106
  %v139 = vadd.bf16 %v95, %v106
  %v140 = vmax.bf16 %v108, 0
  %v141 = vmax.bf16 %v109, 0
  %v142 = vmax.bf16 %v110, 0
  %v143 = vmax.bf16 %v111, 0
  %v144 = vmax.bf16 %v112, 0
  %v145 = vmax.bf16 %v113, 0
  %v146 = vmax.bf16 %v114, 0
  %v147 = vmax.bf16 %v115, 0
  %v148 = vmax.bf16 %v116, 0
  %v149 = vmax.bf16 %v117, 0
  %v150 = vmax.bf16 %v118, 0
  %v151 = vmax.bf16 %v119, 0
  %v152 = vmax.bf16 %v120, 0
  %v153 = vmax.bf16 %v121, 0
  %v154 = vmax.bf16 %v122, 0
  %v155 = vmax.bf16 %v123, 0
  %v156 = vmax.bf16 %v124, 0
  %v157 = vmax.bf16 %v125, 0
  %v158 = vmax.bf16 %v126, 0
  %v159 = vmax.bf16 %v127, 0
  %v160 = vmax.bf16 %v128, 0
  %v161 = vmax.bf16 %v129, 0
  %v162 = vmax.bf16 %v130, 0
  %v163 = vmax.bf16 %v131, 0
  %v164 = vmax.bf16 %v132, 0
  %v165 = vmax.bf16 %v133, 0
  %v166 = vmax.bf16 %v134, 0
  %v167 = vmax.bf16 %v135, 0
  %v168 = vmax.bf16 %v136, 0
  %v169 = vmax.bf16 %v137, 0
  %v170 = vmax.bf16 %v138, 0
  %v171 = vmax.bf16 %v139, 0
  %v172 = vld [vmem:[%s3] sm:$0xff]
  %v173 = vld [vmem:[%s3 + $0x8] sm:$0xff]
  %v174 = vld [vmem:[%s3 + $0x10] sm:$0xff]
  %v175 = vld [vmem:[%s3 + $0x18] sm:$0xff]
  %v176 = vld [vmem:[%s3 + $0x20] sm:$0xff]
  %v177 = vld [vmem:[%s3 + $0x28] sm:$0xff]
  %v178 = vld [vmem:[%s3 + $0x30] sm:$0xff]
  %v179 = vld [vmem:[%s3 + $0x38] sm:$0xff]
  %v180 = vld [vmem:[%s3 + $0x40] sm:$0xff]
  %v181 = vld [vmem:[%s3 + $0x48] sm:$0xff]
  %v182 = vld [vmem:[%s3 + $0x50] sm:$0xff]
  %v183 = vld [vmem:[%s3 + $0x58] sm:$0xff]
  %v184 = vld [vmem:[%s3 + $0x60] sm:$0xff]
  %v185 = vld [vmem:[%s3 + $0x68] sm:$0xff]
  %v186 = vld [vmem:[%s3 + $0x70] sm:$0xff]
  %v187 = vld [vmem:[%s3 + $0x78] sm:$0xff]
  %v220 = vunpack.c.l.b16 %v140
  %v221 = vunpack.c.l.b16 %v141
  %v222 = vunpack.c.l.b16 %v142
  %v223 = vunpack.c.l.b16 %v143
  %v224 = vunpack.c.l.b16 %v144
  %v225 = vunpack.c.l.b16 %v145
  %v226 = vunpack.c.l.b16 %v146
  %v227 = vunpack.c.l.b16 %v147
  %v228 = vunpack.c.l.b16 %v148
  %v229 = vunpack.c.l.b16 %v149
  %v230 = vunpack.c.l.b16 %v150
  %v231 = vunpack.c.l.b16 %v151
  %v232 = vunpack.c.l.b16 %v152
  %v233 = vunpack.c.l.b16 %v153
  %v234 = vunpack.c.l.b16 %v154
  %v235 = vunpack.c.l.b16 %v155
  %v236 = vunpack.c.l.b16 %v156
  %v237 = vunpack.c.l.b16 %v157
  %v238 = vunpack.c.l.b16 %v158
  %v239 = vunpack.c.l.b16 %v159
  %v240 = vunpack.c.l.b16 %v160
  %v241 = vunpack.c.l.b16 %v161
  %v242 = vunpack.c.l.b16 %v162
  %v243 = vunpack.c.l.b16 %v163
  %v244 = vunpack.c.l.b16 %v164
  %v245 = vunpack.c.l.b16 %v165
  %v246 = vunpack.c.l.b16 %v166
  %v247 = vunpack.c.l.b16 %v167
  %v248 = vunpack.c.l.b16 %v168
  %v249 = vunpack.c.l.b16 %v169
  %v250 = vunpack.c.l.b16 %v170
  %v251 = vunpack.c.l.b16 %v171
  %v252 = vpack.c.b16 %v221, %v220
  %v253 = vpack.c.b16 %v223, %v222
  %v254 = vpack.c.b16 %v225, %v224
  %v255 = vpack.c.b16 %v227, %v226
  %v256 = vpack.c.b16 %v229, %v228
  %v257 = vpack.c.b16 %v231, %v230
  %v258 = vpack.c.b16 %v233, %v232
  %v259 = vpack.c.b16 %v235, %v234
  %v260 = vpack.c.b16 %v237, %v236
  %v261 = vpack.c.b16 %v239, %v238
  %v262 = vpack.c.b16 %v241, %v240
  %v263 = vpack.c.b16 %v243, %v242
  %v264 = vpack.c.b16 %v245, %v244
  %v265 = vpack.c.b16 %v247, %v246
  %v266 = vpack.c.b16 %v249, %v248
  %v267 = vpack.c.b16 %v251, %v250
  %v300 = vunpack.c.l.b16 %v172
  %v301 = vunpack.c.h.b16 %v172
  %v302 = vunpack.c.l.b16 %v173
  %v303 = vunpack.c.h.b16 %v173
  %v304 = vunpack.c.l.b16 %v174
  %v305 = vunpack.c.h.b16 %v174
  %v306 = vunpack.c.l.b16 %v175
  %v307 = vunpack.c.h.b16 %v175
  %v308 = vunpack.c.l.b16 %v176
  %v309 = vunpack.c.h.b16 %v176
  %v310 = vunpack.c.l.b16 %v177
  %v311 = vunpack.c.h.b16 %v177
  %v312 = vunpack.c.l.b16 %v178
  %v313 = vunpack.c.h.b16 %v178
  %v314 = vunpack.c.l.b16 %v179
  %v315 = vunpack.c.h.b16 %v179
  %v316 = vunpack.c.l.b16 %v180
  %v317 = vunpack.c.h.b16 %v180
  %v318 = vunpack.c.l.b16 %v181
  %v319 = vunpack.c.h.b16 %v181
  %v320 = vunpack.c.l.b16 %v182
  %v321 = vunpack.c.h.b16 %v182
  %v322 = vunpack.c.l.b16 %v183
  %v323 = vunpack.c.h.b16 %v183
  %v324 = vunpack.c.l.b16 %v184
  %v325 = vunpack.c.h.b16 %v184
  %v326 = vunpack.c.l.b16 %v185
  %v327 = vunpack.c.h.b16 %v185
  %v328 = vunpack.c.l.b16 %v186
  %v329 = vunpack.c.h.b16 %v186
  %v330 = vunpack.c.l.b16 %v187
  %v331 = vunpack.c.h.b16 %v187
  %v332 = vpack.c.b16 %v302, %v300
  %v333 = vpack.c.b16 %v303, %v301
  %v334 = vpack.c.b16 %v306, %v304
  %v335 = vpack.c.b16 %v307, %v305
  %v336 = vpack.c.b16 %v310, %v308
  %v337 = vpack.c.b16 %v311, %v309
  %v338 = vpack.c.b16 %v314, %v312
  %v339 = vpack.c.b16 %v315, %v313
  %v340 = vpack.c.b16 %v318, %v316
  %v341 = vpack.c.b16 %v319, %v317
  %v342 = vpack.c.b16 %v322, %v320
  %v343 = vpack.c.b16 %v323, %v321
  %v344 = vpack.c.b16 %v326, %v324
  %v345 = vpack.c.b16 %v327, %v325
  %v346 = vpack.c.b16 %v330, %v328
  %v347 = vpack.c.b16 %v331, %v329
  %364 = vmatprep.subr.bf16.mxu0 %v333
  %365 = vmatpush1.bf16.msra.mxu0 %v332
  %366 = vmatprep.subr.bf16.mxu0 %v335
  %367 = vmatpush1.bf16.msra.mxu0 %v334
  %368 = vmatprep.subr.bf16.mxu0 %v337
  %369 = vmatpush1.bf16.msra.mxu0 %v336
  %370 = vmatprep.subr.bf16.mxu0 %v339
  %371 = vmatpush1.bf16.msra.mxu0 %v338
  %372 = vmatprep.subr.bf16.mxu0 %v341
  %373 = vmatpush1.bf16.msra.mxu0 %v340
  %374 = vmatprep.subr.bf16.mxu0 %v343
  %375 = vmatpush1.bf16.msra.mxu0 %v342
  %376 = vmatprep.subr.bf16.mxu0 %v345
  %377 = vmatpush1.bf16.msra.mxu0 %v344
  %378 = vmatprep.subr.bf16.mxu0 %v347
  %379 = vmatpush1.bf16.msra.mxu0 %v346
  %380 = vmatprep.subr.bf16.mxu0 0
  %381 = vmatpush1.bf16.msra.mxu0 0
  %382 = vmatprep.subr.bf16.mxu0 0
  %383 = vmatpush1.bf16.msra.mxu0 0
  %384 = vmatprep.subr.bf16.mxu0 0
  %385 = vmatpush1.bf16.msra.mxu0 0
  %386 = vmatprep.subr.bf16.mxu0 0
  %387 = vmatpush1.bf16.msra.mxu0 0
  %388 = vmatprep.subr.bf16.mxu0 0
  %389 = vmatpush1.bf16.msra.mxu0 0
  %390 = vmatprep.subr.bf16.mxu0 0
  %391 = vmatpush1.bf16.msra.mxu0 0
  %392 = vmatprep.subr.bf16.mxu0 0
  %393 = vmatpush1.bf16.msra.mxu0 0
  %394 = vmatprep.subr.bf16.mxu0 0
  %395 = vmatpush1.bf16.msra.mxu0 0
  %396 = vmatprep.mubr.bf16.mxu0 0
  %397 = vmatmul.mubr.bf16.gmra.mrb[0].mxu0 %v252
  %v398 = vpop.f32.mrb[0].mxu0
  %v399 = vadd.f32 0.0, %v398
  %v400 = vpop.f32.mrb[0].mxu0
  %v401 = vadd.f32 0.0, %v400
  %v402 = vpop.f32.mrb[0].mxu0
  %v403 = vadd.f32 0.0, %v402
  %v404 = vpop.f32.mrb[0].mxu0
  %v405 = vadd.f32 0.0, %v404
  %406 = vmatprep.mubr.bf16.mxu0 0
  %407 = vmatmul.mubr.bf16.gmra.mrb[0].mxu0 %v253
  %v408 = vpop.f32.mrb[0].mxu0
  %v409 = vadd.f32 0.0, %v408
  %v410 = vpop.f32.mrb[0].mxu0
  %v411 = vadd.f32 0.0, %v410
  %v412 = vpop.f32.mrb[0].mxu0
  %v413 = vadd.f32 0.0, %v412
  %v414 = vpop.f32.mrb[0].mxu0
  %v415 = vadd.f32 0.0, %v414
  %416 = vmatprep.mubr.bf16.mxu0 0
  %417 = vmatmul.mubr.bf16.gmra.mrb[0].mxu0 %v254
  %v418 = vpop.f32.mrb[0].mxu0
  %v419 = vadd.f32 0.0, %v418
  %v420 = vpop.f32.mrb[0].mxu0
  %v421 = vadd.f32 0.0, %v420
  %v422 = vpop.f32.mrb[0].mxu0
  %v423 = vadd.f32 0.0, %v422
  %v424 = vpop.f32.mrb[0].mxu0
  %v425 = vadd.f32 0.0, %v424
  %426 = vmatprep.mubr.bf16.mxu0 0
  %427 = vmatmul.mubr.bf16.gmra.mrb[0].mxu0 %v255
  %v428 = vpop.f32.mrb[0].mxu0
  %v429 = vadd.f32 0.0, %v428
  %v430 = vpop.f32.mrb[0].mxu0
  %v431 = vadd.f32 0.0, %v430
  %v432 = vpop.f32.mrb[0].mxu0
  %v433 = vadd.f32 0.0, %v432
  %v434 = vpop.f32.mrb[0].mxu0
  %v435 = vadd.f32 0.0, %v434
  %436 = vmatprep.mubr.bf16.mxu0 0
  %437 = vmatmul.mubr.bf16.gmra.mrb[0].mxu0 %v256
  %v438 = vpop.f32.mrb[0].mxu0
  %v439 = vadd.f32 0.0, %v438
  %v440 = vpop.f32.mrb[0].mxu0
  %v441 = vadd.f32 0.0, %v440
  %v442 = vpop.f32.mrb[0].mxu0
  %v443 = vadd.f32 0.0, %v442
  %v444 = vpop.f32.mrb[0].mxu0
  %v445 = vadd.f32 0.0, %v444
  %446 = vmatprep.mubr.bf16.mxu0 0
  %447 = vmatmul.mubr.bf16.gmra.mrb[0].mxu0 %v257
  %v448 = vpop.f32.mrb[0].mxu0
  %v449 = vadd.f32 0.0, %v448
  %v450 = vpop.f32.mrb[0].mxu0
  %v451 = vadd.f32 0.0, %v450
  %v452 = vpop.f32.mrb[0].mxu0
  %v453 = vadd.f32 0.0, %v452
  %v454 = vpop.f32.mrb[0].mxu0
  %v455 = vadd.f32 0.0, %v454
  %456 = vmatprep.mubr.bf16.mxu0 0
  %457 = vmatmul.mubr.bf16.gmra.mrb[0].mxu0 %v258
  %v458 = vpop.f32.mrb[0].mxu0
  %v459 = vadd.f32 0.0, %v458
  %v460 = vpop.f32.mrb[0].mxu0
  %v461 = vadd.f32 0.0, %v460
  %v462 = vpop.f32.mrb[0].mxu0
  %v463 = vadd.f32 0.0, %v462
  %v464 = vpop.f32.mrb[0].mxu0
  %v465 = vadd.f32 0.0, %v464
  %466 = vmatprep.mubr.bf16.mxu0 0
  %467 = vmatmul.mubr.bf16.gmra.mrb[0].mxu0 %v259
  %v468 = vpop.f32.mrb[0].mxu0
  %v469 = vadd.f32 0.0, %v468
  %v470 = vpop.f32.mrb[0].mxu0
  %v471 = vadd.f32 0.0, %v470
  %v472 = vpop.f32.mrb[0].mxu0
  %v473 = vadd.f32 0.0, %v472
  %v474 = vpop.f32.mrb[0].mxu0
  %v475 = vadd.f32 0.0, %v474
  %476 = vmatprep.mubr.bf16.mxu0 0
  %477 = vmatmul.mubr.bf16.gmra.mrb[0].mxu0 %v260
  %v478 = vpop.f32.mrb[0].mxu0
  %v479 = vadd.f32 0.0, %v478
  %v480 = vpop.f32.mrb[0].mxu0
  %v481 = vadd.f32 0.0, %v480
  %v482 = vpop.f32.mrb[0].mxu0
  %v483 = vadd.f32 0.0, %v482
  %v484 = vpop.f32.mrb[0].mxu0
  %v485 = vadd.f32 0.0, %v484
  %486 = vmatprep.mubr.bf16.mxu0 0
  %487 = vmatmul.mubr.bf16.gmra.mrb[0].mxu0 %v261
  %v488 = vpop.f32.mrb[0].mxu0
  %v489 = vadd.f32 0.0, %v488
  %v490 = vpop.f32.mrb[0].mxu0
  %v491 = vadd.f32 0.0, %v490
  %v492 = vpop.f32.mrb[0].mxu0
  %v493 = vadd.f32 0.0, %v492
  %v494 = vpop.f32.mrb[0].mxu0
  %v495 = vadd.f32 0.0, %v494
  %496 = vmatprep.mubr.bf16.mxu0 0
  %497 = vmatmul.mubr.bf16.gmra.mrb[0].mxu0 %v262
  %v498 = vpop.f32.mrb[0].mxu0
  %v499 = vadd.f32 0.0, %v498
  %v500 = vpop.f32.mrb[0].mxu0
  %v501 = vadd.f32 0.0, %v500
  %v502 = vpop.f32.mrb[0].mxu0
  %v503 = vadd.f32 0.0, %v502
  %v504 = vpop.f32.mrb[0].mxu0
  %v505 = vadd.f32 0.0, %v504
  %506 = vmatprep.mubr.bf16.mxu0 0
  %507 = vmatmul.mubr.bf16.gmra.mrb[0].mxu0 %v263
  %v508 = vpop.f32.mrb[0].mxu0
  %v509 = vadd.f32 0.0, %v508
  %v510 = vpop.f32.mrb[0].mxu0
  %v511 = vadd.f32 0.0, %v510
  %v512 = vpop.f32.mrb[0].mxu0
  %v513 = vadd.f32 0.0, %v512
  %v514 = vpop.f32.mrb[0].mxu0
  %v515 = vadd.f32 0.0, %v514
  %516 = vmatprep.mubr.bf16.mxu0 0
  %517 = vmatmul.mubr.bf16.gmra.mrb[0].mxu0 %v264
  %v518 = vpop.f32.mrb[0].mxu0
  %v519 = vadd.f32 0.0, %v518
  %v520 = vpop.f32.mrb[0].mxu0
  %v521 = vadd.f32 0.0, %v520
  %v522 = vpop.f32.mrb[0].mxu0
  %v523 = vadd.f32 0.0, %v522
  %v524 = vpop.f32.mrb[0].mxu0
  %v525 = vadd.f32 0.0, %v524
  %526 = vmatprep.mubr.bf16.mxu0 0
  %527 = vmatmul.mubr.bf16.gmra.mrb[0].mxu0 %v265
  %v528 = vpop.f32.mrb[0].mxu0
  %v529 = vadd.f32 0.0, %v528
  %v530 = vpop.f32.mrb[0].mxu0
  %v531 = vadd.f32 0.0, %v530
  %v532 = vpop.f32.mrb[0].mxu0
  %v533 = vadd.f32 0.0, %v532
  %v534 = vpop.f32.mrb[0].mxu0
  %v535 = vadd.f32 0.0, %v534
  %536 = vmatprep.mubr.bf16.mxu0 0
  %537 = vmatmul.mubr.bf16.gmra.mrb[0].mxu0 %v266
  %v538 = vpop.f32.mrb[0].mxu0
  %v539 = vadd.f32 0.0, %v538
  %v540 = vpop.f32.mrb[0].mxu0
  %v541 = vadd.f32 0.0, %v540
  %v542 = vpop.f32.mrb[0].mxu0
  %v543 = vadd.f32 0.0, %v542
  %v544 = vpop.f32.mrb[0].mxu0
  %v545 = vadd.f32 0.0, %v544
  %546 = vmatprep.mubr.bf16.mxu0 0
  %547 = vmatmul.mubr.bf16.gmra.mrb[0].mxu0 %v267
  %v548 = vpop.f32.mrb[0].mxu0
  %v549 = vadd.f32 0.0, %v548
  %v550 = vpop.f32.mrb[0].mxu0
  %v551 = vadd.f32 0.0, %v550
  %v552 = vpop.f32.mrb[0].mxu0
  %v553 = vadd.f32 0.0, %v552
  %v554 = vpop.f32.mrb[0].mxu0
  %v555 = vadd.f32 0.0, %v554
  %556 = vdwg.mxu0
  %v557 = vpack.c.bf16 %v403, %v399
  %v558 = vpack.c.bf16 %v405, %v401
  %v559 = vpack.c.bf16 %v413, %v409
  %v560 = vpack.c.bf16 %v415, %v411
  %v561 = vpack.c.bf16 %v423, %v419
  %v562 = vpack.c.bf16 %v425, %v421
  %v563 = vpack.c.bf16 %v433, %v429
  %v564 = vpack.c.bf16 %v435, %v431
  %v565 = vpack.c.bf16 %v443, %v439
  %v566 = vpack.c.bf16 %v445, %v441
  %v567 = vpack.c.bf16 %v453, %v449
  %v568 = vpack.c.bf16 %v455, %v451
  %v569 = vpack.c.bf16 %v463, %v459
  %v570 = vpack.c.bf16 %v465, %v461
  %v571 = vpack.c.bf16 %v473, %v469
  %v572 = vpack.c.bf16 %v475, %v471
  %v573 = vpack.c.bf16 %v483, %v479
  %v574 = vpack.c.bf16 %v485, %v481
  %v575 = vpack.c.bf16 %v493, %v489
  %v576 = vpack.c.bf16 %v495, %v491
  %v577 = vpack.c.bf16 %v503, %v499
  %v578 = vpack.c.bf16 %v505, %v501
  %v579 = vpack.c.bf16 %v513, %v509
  %v580 = vpack.c.bf16 %v515, %v511
  %v581 = vpack.c.bf16 %v523, %v519
  %v582 = vpack.c.bf16 %v525, %v521
  %v583 = vpack.c.bf16 %v533, %v529
  %v584 = vpack.c.bf16 %v535, %v531
  %v585 = vpack.c.bf16 %v543, %v539
  %v586 = vpack.c.bf16 %v545, %v541
  %v587 = vpack.c.bf16 %v553, %v549
  %v588 = vpack.c.bf16 %v555, %v551
  %v621 = vunpack.c.l.b16 %v557
  %v622 = vunpack.c.l.b16 %v558
  %v623 = vunpack.c.h.b16 %v557
  %v624 = vunpack.c.h.b16 %v558
  %v625 = vunpack.c.l.b16 %v559
  %v626 = vunpack.c.l.b16 %v560
  %v627 = vunpack.c.h.b16 %v559
  %v628 = vunpack.c.h.b16 %v560
  %v629 = vunpack.c.l.b16 %v561
  %v630 = vunpack.c.l.b16 %v562
  %v631 = vunpack.c.h.b16 %v561
  %v632 = vunpack.c.h.b16 %v562
  %v633 = vunpack.c.l.b16 %v563
  %v634 = vunpack.c.l.b16 %v564
  %v635 = vunpack.c.h.b16 %v563
  %v636 = vunpack.c.h.b16 %v564
  %v637 = vunpack.c.l.b16 %v565
  %v638 = vunpack.c.l.b16 %v566
  %v639 = vunpack.c.h.b16 %v565
  %v640 = vunpack.c.h.b16 %v566
  %v641 = vunpack.c.l.b16 %v567
  %v642 = vunpack.c.l.b16 %v568
  %v643 = vunpack.c.h.b16 %v567
  %v644 = vunpack.c.h.b16 %v568
  %v645 = vunpack.c.l.b16 %v569
  %v646 = vunpack.c.l.b16 %v570
  %v647 = vunpack.c.h.b16 %v569
  %v648 = vunpack.c.h.b16 %v570
  %v649 = vunpack.c.l.b16 %v571
  %v650 = vunpack.c.l.b16 %v572
  %v651 = vunpack.c.h.b16 %v571
  %v652 = vunpack.c.h.b16 %v572
  %v653 = vunpack.c.l.b16 %v573
  %v654 = vunpack.c.l.b16 %v574
  %v655 = vunpack.c.h.b16 %v573
  %v656 = vunpack.c.h.b16 %v574
  %v657 = vunpack.c.l.b16 %v575
  %v658 = vunpack.c.l.b16 %v576
  %v659 = vunpack.c.h.b16 %v575
  %v660 = vunpack.c.h.b16 %v576
  %v661 = vunpack.c.l.b16 %v577
  %v662 = vunpack.c.l.b16 %v578
  %v663 = vunpack.c.h.b16 %v577
  %v664 = vunpack.c.h.b16 %v578
  %v665 = vunpack.c.l.b16 %v579
  %v666 = vunpack.c.l.b16 %v580
  %v667 = vunpack.c.h.b16 %v579
  %v668 = vunpack.c.h.b16 %v580
  %v669 = vunpack.c.l.b16 %v581
  %v670 = vunpack.c.l.b16 %v582
  %v671 = vunpack.c.h.b16 %v581
  %v672 = vunpack.c.h.b16 %v582
  %v673 = vunpack.c.l.b16 %v583
  %v674 = vunpack.c.l.b16 %v584
  %v675 = vunpack.c.h.b16 %v583
  %v676 = vunpack.c.h.b16 %v584
  %v677 = vunpack.c.l.b16 %v585
  %v678 = vunpack.c.l.b16 %v586
  %v679 = vunpack.c.h.b16 %v585
  %v680 = vunpack.c.h.b16 %v586
  %v681 = vunpack.c.l.b16 %v587
  %v682 = vunpack.c.l.b16 %v588
  %v683 = vunpack.c.h.b16 %v587
  %v684 = vunpack.c.h.b16 %v588
  %v685 = vpack.c.b16 %v622, %v621
  %v686 = vpack.c.b16 %v624, %v623
  %v687 = vpack.c.b16 %v626, %v625
  %v688 = vpack.c.b16 %v628, %v627
  %v689 = vpack.c.b16 %v630, %v629
  %v690 = vpack.c.b16 %v632, %v631
  %v691 = vpack.c.b16 %v634, %v633
  %v692 = vpack.c.b16 %v636, %v635
  %v693 = vpack.c.b16 %v638, %v637
  %v694 = vpack.c.b16 %v640, %v639
  %v695 = vpack.c.b16 %v642, %v641
  %v696 = vpack.c.b16 %v644, %v643
  %v697 = vpack.c.b16 %v646, %v645
  %v698 = vpack.c.b16 %v648, %v647
  %v699 = vpack.c.b16 %v650, %v649
  %v700 = vpack.c.b16 %v652, %v651
  %v701 = vpack.c.b16 %v654, %v653
  %v702 = vpack.c.b16 %v656, %v655
  %v703 = vpack.c.b16 %v658, %v657
  %v704 = vpack.c.b16 %v660, %v659
  %v705 = vpack.c.b16 %v662, %v661
  %v706 = vpack.c.b16 %v664, %v663
  %v707 = vpack.c.b16 %v666, %v665
  %v708 = vpack.c.b16 %v668, %v667
  %v709 = vpack.c.b16 %v670, %v669
  %v710 = vpack.c.b16 %v672, %v671
  %v711 = vpack.c.b16 %v674, %v673
  %v712 = vpack.c.b16 %v676, %v675
  %v713 = vpack.c.b16 %v678, %v677
  %v714 = vpack.c.b16 %v680, %v679
  %v715 = vpack.c.b16 %v682, %v681
  %v716 = vpack.c.b16 %v684, %v683
  %749 = vst [vmem:[%s4] sm:$0xff] %v685
  %750 = vst [vmem:[%s4 + $0x8] sm:$0xff] %v686
  %751 = vst [vmem:[%s4 + $0x10] sm:$0xff] %v687
  %752 = vst [vmem:[%s4 + $0x18] sm:$0xff] %v688
  %753 = vst [vmem:[%s4 + $0x20] sm:$0xff] %v689
  %754 = vst [vmem:[%s4 + $0x28] sm:$0xff] %v690
  %755 = vst [vmem:[%s4 + $0x30] sm:$0xff] %v691
  %756 = vst [vmem:[%s4 + $0x38] sm:$0xff] %v692
  %757 = vst [vmem:[%s4 + $0x40] sm:$0xff] %v693
  %758 = vst [vmem:[%s4 + $0x48] sm:$0xff] %v694
  %759 = vst [vmem:[%s4 + $0x50] sm:$0xff] %v695
  %760 = vst [vmem:[%s4 + $0x58] sm:$0xff] %v696
  %761 = vst [vmem:[%s4 + $0x60] sm:$0xff] %v697
  %762 = vst [vmem:[%s4 + $0x68] sm:$0xff] %v698
  %763 = vst [vmem:[%s4 + $0x70] sm:$0xff] %v699
  %764 = vst [vmem:[%s4 + $0x78] sm:$0xff] %v700
  %765 = vst [vmem:[%s4 + $0x80] sm:$0xff] %v701
  %766 = vst [vmem:[%s4 + $0x88] sm:$0xff] %v702
  %767 = vst [vmem:[%s4 + $0x90] sm:$0xff] %v703
  %768 = vst [vmem:[%s4 + $0x98] sm:$0xff] %v704
  %769 = vst [vmem:[%s4 + $0xa0] sm:$0xff] %v705
  %770 = vst [vmem:[%s4 + $0xa8] sm:$0xff] %v706
  %771 = vst [vmem:[%s4 + $0xb0] sm:$0xff] %v707
  %772 = vst [vmem:[%s4 + $0xb8] sm:$0xff] %v708
  %773 = vst [vmem:[%s4 + $0xc0] sm:$0xff] %v709
  %774 = vst [vmem:[%s4 + $0xc8] sm:$0xff] %v710
  %775 = vst [vmem:[%s4 + $0xd0] sm:$0xff] %v711
  %776 = vst [vmem:[%s4 + $0xd8] sm:$0xff] %v712
  %777 = vst [vmem:[%s4 + $0xe0] sm:$0xff] %v713
  %778 = vst [vmem:[%s4 + $0xe8] sm:$0xff] %v714
  %779 = vst [vmem:[%s4 + $0xf0] sm:$0xff] %v715
  %780 = vst [vmem:[%s4 + $0xf8] sm:$0xff] %v716
  %v781 = vadd.f32 %v399, %v403
  %v782 = vadd.f32 %v781, %v409
  %v783 = vadd.f32 %v782, %v413
  %v784 = vadd.f32 %v783, %v419
  %v785 = vadd.f32 %v784, %v423
  %v786 = vadd.f32 %v785, %v429
  %v787 = vadd.f32 %v786, %v433
  %v788 = vadd.f32 %v787, %v439
  %v789 = vadd.f32 %v788, %v443
  %v790 = vadd.f32 %v789, %v449
  %v791 = vadd.f32 %v790, %v453
  %v792 = vadd.f32 %v791, %v459
  %v793 = vadd.f32 %v792, %v463
  %v794 = vadd.f32 %v793, %v469
  %v795 = vadd.f32 %v794, %v473
  %v796 = vadd.f32 %v795, %v479
  %v797 = vadd.f32 %v796, %v483
  %v798 = vadd.f32 %v797, %v489
  %v799 = vadd.f32 %v798, %v493
  %v800 = vadd.f32 %v799, %v499
  %v801 = vadd.f32 %v800, %v503
  %v802 = vadd.f32 %v801, %v509
  %v803 = vadd.f32 %v802, %v513
  %v804 = vadd.f32 %v803, %v519
  %v805 = vadd.f32 %v804, %v523
  %v806 = vadd.f32 %v805, %v529
  %v807 = vadd.f32 %v806, %v533
  %v808 = vadd.f32 %v807, %v539
  %v809 = vadd.f32 %v808, %v543
  %v810 = vadd.f32 %v809, %v549
  %v811 = vadd.f32 %v810, %v553
  %v812 = vrot.slane %v811, 4
  %v813 = vadd.f32 %v811, %v812
  %v814 = vrot.slane %v813, 2
  %v815 = vadd.f32 %v813, %v814
  %v816 = vrot.slane %v815, 1
  %v817 = vadd.f32 %v815, %v816
  %v818 = vadd.f32 %v401, %v405
  %v819 = vadd.f32 %v818, %v411
  %v820 = vadd.f32 %v819, %v415
  %v821 = vadd.f32 %v820, %v421
  %v822 = vadd.f32 %v821, %v425
  %v823 = vadd.f32 %v822, %v431
  %v824 = vadd.f32 %v823, %v435
  %v825 = vadd.f32 %v824, %v441
  %v826 = vadd.f32 %v825, %v445
  %v827 = vadd.f32 %v826, %v451
  %v828 = vadd.f32 %v827, %v455
  %v829 = vadd.f32 %v828, %v461
  %v830 = vadd.f32 %v829, %v465
  %v831 = vadd.f32 %v830, %v471
  %v832 = vadd.f32 %v831, %v475
  %v833 = vadd.f32 %v832, %v481
  %v834 = vadd.f32 %v833, %v485
  %v835 = vadd.f32 %v834, %v491
  %v836 = vadd.f32 %v835, %v495
  %v837 = vadd.f32 %v836, %v501
  %v838 = vadd.f32 %v837, %v505
  %v839 = vadd.f32 %v838, %v511
  %v840 = vadd.f32 %v839, %v515
  %v841 = vadd.f32 %v840, %v521
  %v842 = vadd.f32 %v841, %v525
  %v843 = vadd.f32 %v842, %v531
  %v844 = vadd.f32 %v843, %v535
  %v845 = vadd.f32 %v844, %v541
  %v846 = vadd.f32 %v845, %v545
  %v847 = vadd.f32 %v846, %v551
  %v848 = vadd.f32 %v847, %v555
  %v849 = vrot.slane %v848, 4
  %v850 = vadd.f32 %v848, %v849
  %v851 = vrot.slane %v850, 2
  %v852 = vadd.f32 %v850, %v851
  %v853 = vrot.slane %v852, 1
  %v854 = vadd.f32 %v852, %v853
  %v855 = vmul.f32 %v399, %v399
  %v856 = vmul.f32 %v401, %v401
  %v857 = vmul.f32 %v403, %v403
  %v858 = vmul.f32 %v405, %v405
  %v859 = vmul.f32 %v409, %v409
  %v860 = vmul.f32 %v411, %v411
  %v861 = vmul.f32 %v413, %v413
  %v862 = vmul.f32 %v415, %v415
  %v863 = vmul.f32 %v419, %v419
  %v864 = vmul.f32 %v421, %v421
  %v865 = vmul.f32 %v423, %v423
  %v866 = vmul.f32 %v425, %v425
  %v867 = vmul.f32 %v429, %v429
  %v868 = vmul.f32 %v431, %v431
  %v869 = vmul.f32 %v433, %v433
  %v870 = vmul.f32 %v435, %v435
  %v871 = vmul.f32 %v439, %v439
  %v872 = vmul.f32 %v441, %v441
  %v873 = vmul.f32 %v443, %v443
  %v874 = vmul.f32 %v445, %v445
  %v875 = vmul.f32 %v449, %v449
  %v876 = vmul.f32 %v451, %v451
  %v877 = vmul.f32 %v453, %v453
  %v878 = vmul.f32 %v455, %v455
  %v879 = vmul.f32 %v459, %v459
  %v880 = vmul.f32 %v461, %v461
  %v881 = vmul.f32 %v463, %v463
  %v882 = vmul.f32 %v465, %v465
  %v883 = vmul.f32 %v469, %v469
  %v884 = vmul.f32 %v471, %v471
  %v885 = vmul.f32 %v473, %v473
  %v886 = vmul.f32 %v475, %v475
  %v887 = vmul.f32 %v479, %v479
  %v888 = vmul.f32 %v481, %v481
  %v889 = vmul.f32 %v483, %v483
  %v890 = vmul.f32 %v485, %v485
  %v891 = vmul.f32 %v489, %v489
  %v892 = vmul.f32 %v491, %v491
  %v893 = vmul.f32 %v493, %v493
  %v894 = vmul.f32 %v495, %v495
  %v895 = vmul.f32 %v499, %v499
  %v896 = vmul.f32 %v501, %v501
  %v897 = vmul.f32 %v503, %v503
  %v898 = vmul.f32 %v505, %v505
  %v899 = vmul.f32 %v509, %v509
  %v900 = vmul.f32 %v511, %v511
  %v901 = vmul.f32 %v513, %v513
  %v902 = vmul.f32 %v515, %v515
  %v903 = vmul.f32 %v519, %v519
  %v904 = vmul.f32 %v521, %v521
  %v905 = vmul.f32 %v523, %v523
  %v906 = vmul.f32 %v525, %v525
  %v907 = vmul.f32 %v529, %v529
  %v908 = vmul.f32 %v531, %v531
  %v909 = vmul.f32 %v533, %v533
  %v910 = vmul.f32 %v535, %v535
  %v911 = vmul.f32 %v539, %v539
  %v912 = vmul.f32 %v541, %v541
  %v913 = vmul.f32 %v543, %v543
  %v914 = vmul.f32 %v545, %v545
  %v915 = vmul.f32 %v549, %v549
  %v916 = vmul.f32 %v551, %v551
  %v917 = vmul.f32 %v553, %v553
  %v918 = vmul.f32 %v555, %v555
  %v919 = vadd.f32 %v855, %v857
  %v920 = vadd.f32 %v919, %v859
  %v921 = vadd.f32 %v920, %v861
  %v922 = vadd.f32 %v921, %v863
  %v923 = vadd.f32 %v922, %v865
  %v924 = vadd.f32 %v923, %v867
  %v925 = vadd.f32 %v924, %v869
  %v926 = vadd.f32 %v925, %v871
  %v927 = vadd.f32 %v926, %v873
  %v928 = vadd.f32 %v927, %v875
  %v929 = vadd.f32 %v928, %v877
  %v930 = vadd.f32 %v929, %v879
  %v931 = vadd.f32 %v930, %v881
  %v932 = vadd.f32 %v931, %v883
  %v933 = vadd.f32 %v932, %v885
  %v934 = vadd.f32 %v933, %v887
  %v935 = vadd.f32 %v934, %v889
  %v936 = vadd.f32 %v935, %v891
  %v937 = vadd.f32 %v936, %v893
  %v938 = vadd.f32 %v937, %v895
  %v939 = vadd.f32 %v938, %v897
  %v940 = vadd.f32 %v939, %v899
  %v941 = vadd.f32 %v940, %v901
  %v942 = vadd.f32 %v941, %v903
  %v943 = vadd.f32 %v942, %v905
  %v944 = vadd.f32 %v943, %v907
  %v945 = vadd.f32 %v944, %v909
  %v946 = vadd.f32 %v945, %v911
  %v947 = vadd.f32 %v946, %v913
  %v948 = vadd.f32 %v947, %v915
  %v949 = vadd.f32 %v948, %v917
  %v950 = vrot.slane %v949, 4
  %v951 = vadd.f32 %v949, %v950
  %v952 = vrot.slane %v951, 2
  %v953 = vadd.f32 %v951, %v952
  %v954 = vrot.slane %v953, 1
  %v955 = vadd.f32 %v953, %v954
  %v956 = vadd.f32 %v856, %v858
  %v957 = vadd.f32 %v956, %v860
  %v958 = vadd.f32 %v957, %v862
  %v959 = vadd.f32 %v958, %v864
  %v960 = vadd.f32 %v959, %v866
  %v961 = vadd.f32 %v960, %v868
  %v962 = vadd.f32 %v961, %v870
  %v963 = vadd.f32 %v962, %v872
  %v964 = vadd.f32 %v963, %v874
  %v965 = vadd.f32 %v964, %v876
  %v966 = vadd.f32 %v965, %v878
  %v967 = vadd.f32 %v966, %v880
  %v968 = vadd.f32 %v967, %v882
  %v969 = vadd.f32 %v968, %v884
  %v970 = vadd.f32 %v969, %v886
  %v971 = vadd.f32 %v970, %v888
  %v972 = vadd.f32 %v971, %v890
  %v973 = vadd.f32 %v972, %v892
  %v974 = vadd.f32 %v973, %v894
  %v975 = vadd.f32 %v974, %v896
  %v976 = vadd.f32 %v975, %v898
  %v977 = vadd.f32 %v976, %v900
  %v978 = vadd.f32 %v977, %v902
  %v979 = vadd.f32 %v978, %v904
  %v980 = vadd.f32 %v979, %v906
  %v981 = vadd.f32 %v980, %v908
  %v982 = vadd.f32 %v981, %v910
  %v983 = vadd.f32 %v982, %v912
  %v984 = vadd.f32 %v983, %v914
  %v985 = vadd.f32 %v984, %v916
  %v986 = vadd.f32 %v985, %v918
  %v987 = vrot.slane %v986, 4
  %v988 = vadd.f32 %v986, %v987
  %v989 = vrot.slane %v988, 2
  %v990 = vadd.f32 %v988, %v989
  %v991 = vrot.slane %v990, 1
  %v992 = vadd.f32 %v990, %v991
  %vm993 = vcmask 1040384
  %v994 = vsel %vm993, %v817, %v955
  %v995 = vsel %vm993, %v854, %v992
  %v998 = vcombine.low %v994, %v995
  %v1000 = vunpack.c.l.s4 1983009808
  %v1001 = vunpack.c.0.s8 %v1000
  %v1002 = vlaneseq
  %v1003 = vshrl.u32 %v1002, 7
  %v1004 = vsub.s32 %v1001, %v1003
  %v1005 = vrot.slane %v998, %v1004
  %1007 = vst [vmem:[%s5] sm:$0xf] %v1005
  // Predicated region
  $region18: #{base_point_net.19} parent=0 // pred_check
    _
  $region19: #{base_point_net.19} parent=0 // pred_check_branch
    %1009 = sbr.rel (0) target = $region21
  $region20: #{base_point_net.19} parent=0 // pred_region
    _
  $region21: #{base_point_net.19} parent=0 // pred_fallthru
    _
  // Predicated region
  $region22: #{base_point_net.19} parent=0 // pred_check
    _
  $region23: #{base_point_net.19} parent=0 // pred_check_branch
    %1011 = sbr.rel (0) target = $region25
  $region24: #{base_point_net.19} parent=0 // pred_region
    _
  $region25: #{base_point_net.19} parent=0 // pred_fallthru
    _
  // Predicated region
  $region26: #{base_point_net.19} parent=0 // pred_check
    _
  $region27: #{base_point_net.19} parent=0 // pred_check_branch
    %1013 = sbr.rel (0) target = $region29
  $region28: #{base_point_net.19} parent=0 // pred_region
    _
  $region29: #{base_point_net.19} parent=0 // pred_fallthru
    _
  // Predicated region
  $region30: #{base_point_net.19} parent=0 // pred_check
    _
  $region31: #{base_point_net.19} parent=0 // pred_check_branch
    %1015 = sbr.rel (0) target = $region33
  $region32: #{base_point_net.19} parent=0 // pred_region
    _
  $region33: #{base_point_net.19} parent=0 // pred_fallthru
    _

// kernel: base_point_net.21
$region0: #{base_point_net.21}
  #allocation0 [shape = 'u32[]', space=smem, size = 0x4, offset = 0x4, fixed_abs, tag = 'smem constant byte address 0x4 - core index']
  #allocation1 [shape = 'u32[144,128]{1,0:T(1,128)}', space=vmem, size = 0x12000, scoped, tag = 'internal scratch']
  %s0 = inlined_call_operand.vmem [shape: f32[2,256], index: 0, kind: input, shape index: {}]
  %s1 = inlined_call_operand.vmem [shape: bf16[256,256], index: 1, kind: input, shape index: {}]
  %s2 = inlined_call_operand.vmem [shape: f32[1,256], index: 2, kind: input, shape index: {}]
  %s3 = inlined_call_operand.vmem [shape: f32[1,256], index: 3, kind: input, shape index: {}]
  %s4 = inlined_call_operand.vmem [shape: bf16[256,128], index: 4, kind: input, shape index: {}]
  %s5 = inlined_call_operand.vmem [shape: f32[1,128], index: 5, kind: input, shape index: {}]
  %s6 = inlined_call_operand.vmem [shape: f32[1,128], index: 6, kind: input, shape index: {}]
  %s7 = inlined_call_operand.vmem [shape: bf16[128,9], index: 7, kind: input, shape index: {}]
  %s8 = inlined_call_operand.vmem [shape: f32[1,9], index: 8, kind: input, shape index: {}]
  %s9 = inlined_call_operand.vmem [shape: f32[2,9], index: 9, kind: output, shape index: {}]
  %s10 = sld [smem:[#allocation0]]
  $region46: #{base_point_net.21} parent=0
    _
  %s12 = ssub.s32 1, %s10
  %s13 = scalar_select 0, %s12, %s10
  // Predicated region
  $region2: #{base_point_net.21} parent=0 // pred_check
    _
  $region3: #{base_point_net.21} parent=0 // pred_check_branch
    %15 = sbr.rel (0) target = $region5
  $region4: #{base_point_net.21} parent=0 // pred_region
    _
  $region5: #{base_point_net.21} parent=0 // pred_fallthru
    _
  // Predicated region
  $region6: #{base_point_net.21} parent=0 // pred_check
    _
  $region7: #{base_point_net.21} parent=0 // pred_check_branch
    %17 = sbr.rel (0) target = $region9
  $region8: #{base_point_net.21} parent=0 // pred_region
    _
  $region9: #{base_point_net.21} parent=0 // pred_fallthru
    _
  // Predicated region
  $region10: #{base_point_net.21} parent=0 // pred_check
    _
  $region11: #{base_point_net.21} parent=0 // pred_check_branch
    %19 = sbr.rel (0) target = $region13
  $region12: #{base_point_net.21} parent=0 // pred_region
    _
  $region13: #{base_point_net.21} parent=0 // pred_fallthru
    _
  // Predicated region
  $region14: #{base_point_net.21} parent=0 // pred_check
    _
  $region15: #{base_point_net.21} parent=0 // pred_check_branch
    %21 = sbr.rel (0) target = $region17
  $region16: #{base_point_net.21} parent=0 // pred_region
    _
  $region17: #{base_point_net.21} parent=0 // pred_fallthru
    _
  // Predicated region
  $region18: #{base_point_net.21} parent=0 // pred_check
    _
  $region19: #{base_point_net.21} parent=0 // pred_check_branch
    %23 = sbr.rel (0) target = $region21
  $region20: #{base_point_net.21} parent=0 // pred_region
    _
  $region21: #{base_point_net.21} parent=0 // pred_fallthru
    _
  // Predicated region
  $region22: #{base_point_net.21} parent=0 // pred_check
    _
  $region23: #{base_point_net.21} parent=0 // pred_check_branch
    %25 = sbr.rel (0) target = $region25
  $region24: #{base_point_net.21} parent=0 // pred_region
    _
  $region25: #{base_point_net.21} parent=0 // pred_fallthru
    _
  // Predicated region
  $region26: #{base_point_net.21} parent=0 // pred_check
    _
  $region27: #{base_point_net.21} parent=0 // pred_check_branch
    %27 = sbr.rel (0) target = $region29
  $region28: #{base_point_net.21} parent=0 // pred_region
    _
  $region29: #{base_point_net.21} parent=0 // pred_fallthru
    _
  // Predicated region
  $region30: #{base_point_net.21} parent=0 // pred_check
    _
  $region31: #{base_point_net.21} parent=0 // pred_check_branch
    %29 = sbr.rel (0) target = $region33
  $region32: #{base_point_net.21} parent=0 // pred_region
    _
  $region33: #{base_point_net.21} parent=0 // pred_fallthru
    _
  // Predicated region
  $region34: #{base_point_net.21} parent=0 // pred_check
    _
  $region35: #{base_point_net.21} parent=0 // pred_check_branch
    %31 = sbr.rel (0) target = $region37
  $region36: #{base_point_net.21} parent=0 // pred_region
    _
  $region37: #{base_point_net.21} parent=0 // pred_fallthru
    _
  %v33 = vld [vmem:[%s0] sm:$0xf]
  %v36 = vunpack.c.l.s4 1983009808
  %v37 = vunpack.c.0.s8 %v36
  %v38 = vlaneseq
  %v39 = vshrl.u32 %v38, 7
  %v40 = vsub.s32 %v37, %v39
  %v41 = vrot.slane %v33, %v40
  %v42 = vcombine.high %v41, %v41
  %v45 = vpack.c.bf16 %v41, %v41
  %v46 = vpack.c.bf16 %v42, %v42
  %v47 = vld [vmem:[%s1] sm:$0xff]
  %v48 = vld [vmem:[%s1 + $0x8] sm:$0xff]
  %v49 = vld [vmem:[%s1 + $0x10] sm:$0xff]
  %v50 = vld [vmem:[%s1 + $0x18] sm:$0xff]
  %v51 = vld [vmem:[%s1 + $0x20] sm:$0xff]
  %v52 = vld [vmem:[%s1 + $0x28] sm:$0xff]
  %v53 = vld [vmem:[%s1 + $0x30] sm:$0xff]
  %v54 = vld [vmem:[%s1 + $0x38] sm:$0xff]
  %v55 = vld [vmem:[%s1 + $0x40] sm:$0xff]
  %v56 = vld [vmem:[%s1 + $0x48] sm:$0xff]
  %v57 = vld [vmem:[%s1 + $0x50] sm:$0xff]
  %v58 = vld [vmem:[%s1 + $0x58] sm:$0xff]
  %v59 = vld [vmem:[%s1 + $0x60] sm:$0xff]
  %v60 = vld [vmem:[%s1 + $0x68] sm:$0xff]
  %v61 = vld [vmem:[%s1 + $0x70] sm:$0xff]
  %v62 = vld [vmem:[%s1 + $0x78] sm:$0xff]
  %v63 = vld [vmem:[%s1 + $0x80] sm:$0xff]
  %v64 = vld [vmem:[%s1 + $0x88] sm:$0xff]
  %v65 = vld [vmem:[%s1 + $0x90] sm:$0xff]
  %v66 = vld [vmem:[%s1 + $0x98] sm:$0xff]
  %v67 = vld [vmem:[%s1 + $0xa0] sm:$0xff]
  %v68 = vld [vmem:[%s1 + $0xa8] sm:$0xff]
  %v69 = vld [vmem:[%s1 + $0xb0] sm:$0xff]
  %v70 = vld [vmem:[%s1 + $0xb8] sm:$0xff]
  %v71 = vld [vmem:[%s1 + $0xc0] sm:$0xff]
  %v72 = vld [vmem:[%s1 + $0xc8] sm:$0xff]
  %v73 = vld [vmem:[%s1 + $0xd0] sm:$0xff]
  %v74 = vld [vmem:[%s1 + $0xd8] sm:$0xff]
  %v75 = vld [vmem:[%s1 + $0xe0] sm:$0xff]
  %v76 = vld [vmem:[%s1 + $0xe8] sm:$0xff]
  %v77 = vld [vmem:[%s1 + $0xf0] sm:$0xff]
  %v78 = vld [vmem:[%s1 + $0xf8] sm:$0xff]
  %v111 = vunpack.c.l.b16 %v47
  %v112 = vunpack.c.h.b16 %v47
  %v113 = vunpack.c.l.b16 %v48
  %v114 = vunpack.c.h.b16 %v48
  %v115 = vunpack.c.l.b16 %v49
  %v116 = vunpack.c.h.b16 %v49
  %v117 = vunpack.c.l.b16 %v50
  %v118 = vunpack.c.h.b16 %v50
  %v119 = vunpack.c.l.b16 %v51
  %v120 = vunpack.c.h.b16 %v51
  %v121 = vunpack.c.l.b16 %v52
  %v122 = vunpack.c.h.b16 %v52
  %v123 = vunpack.c.l.b16 %v53
  %v124 = vunpack.c.h.b16 %v53
  %v125 = vunpack.c.l.b16 %v54
  %v126 = vunpack.c.h.b16 %v54
  %v127 = vunpack.c.l.b16 %v55
  %v128 = vunpack.c.h.b16 %v55
  %v129 = vunpack.c.l.b16 %v56
  %v130 = vunpack.c.h.b16 %v56
  %v131 = vunpack.c.l.b16 %v57
  %v132 = vunpack.c.h.b16 %v57
  %v133 = vunpack.c.l.b16 %v58
  %v134 = vunpack.c.h.b16 %v58
  %v135 = vunpack.c.l.b16 %v59
  %v136 = vunpack.c.h.b16 %v59
  %v137 = vunpack.c.l.b16 %v60
  %v138 = vunpack.c.h.b16 %v60
  %v139 = vunpack.c.l.b16 %v61
  %v140 = vunpack.c.h.b16 %v61
  %v141 = vunpack.c.l.b16 %v62
  %v142 = vunpack.c.h.b16 %v62
  %v143 = vunpack.c.l.b16 %v63
  %v144 = vunpack.c.h.b16 %v63
  %v145 = vunpack.c.l.b16 %v64
  %v146 = vunpack.c.h.b16 %v64
  %v147 = vunpack.c.l.b16 %v65
  %v148 = vunpack.c.h.b16 %v65
  %v149 = vunpack.c.l.b16 %v66
  %v150 = vunpack.c.h.b16 %v66
  %v151 = vunpack.c.l.b16 %v67
  %v152 = vunpack.c.h.b16 %v67
  %v153 = vunpack.c.l.b16 %v68
  %v154 = vunpack.c.h.b16 %v68
  %v155 = vunpack.c.l.b16 %v69
  %v156 = vunpack.c.h.b16 %v69
  %v157 = vunpack.c.l.b16 %v70
  %v158 = vunpack.c.h.b16 %v70
  %v159 = vunpack.c.l.b16 %v71
  %v160 = vunpack.c.h.b16 %v71
  %v161 = vunpack.c.l.b16 %v72
  %v162 = vunpack.c.h.b16 %v72
  %v163 = vunpack.c.l.b16 %v73
  %v164 = vunpack.c.h.b16 %v73
  %v165 = vunpack.c.l.b16 %v74
  %v166 = vunpack.c.h.b16 %v74
  %v167 = vunpack.c.l.b16 %v75
  %v168 = vunpack.c.h.b16 %v75
  %v169 = vunpack.c.l.b16 %v76
  %v170 = vunpack.c.h.b16 %v76
  %v171 = vunpack.c.l.b16 %v77
  %v172 = vunpack.c.h.b16 %v77
  %v173 = vunpack.c.l.b16 %v78
  %v174 = vunpack.c.h.b16 %v78
  %v175 = vpack.c.b16 %v113, %v111
  %v176 = vpack.c.b16 %v114, %v112
  %v177 = vpack.c.b16 %v117, %v115
  %v178 = vpack.c.b16 %v118, %v116
  %v179 = vpack.c.b16 %v121, %v119
  %v180 = vpack.c.b16 %v122, %v120
  %v181 = vpack.c.b16 %v125, %v123
  %v182 = vpack.c.b16 %v126, %v124
  %v183 = vpack.c.b16 %v129, %v127
  %v184 = vpack.c.b16 %v130, %v128
  %v185 = vpack.c.b16 %v133, %v131
  %v186 = vpack.c.b16 %v134, %v132
  %v187 = vpack.c.b16 %v137, %v135
  %v188 = vpack.c.b16 %v138, %v136
  %v189 = vpack.c.b16 %v141, %v139
  %v190 = vpack.c.b16 %v142, %v140
  %v191 = vpack.c.b16 %v145, %v143
  %v192 = vpack.c.b16 %v146, %v144
  %v193 = vpack.c.b16 %v149, %v147
  %v194 = vpack.c.b16 %v150, %v148
  %v195 = vpack.c.b16 %v153, %v151
  %v196 = vpack.c.b16 %v154, %v152
  %v197 = vpack.c.b16 %v157, %v155
  %v198 = vpack.c.b16 %v158, %v156
  %v199 = vpack.c.b16 %v161, %v159
  %v200 = vpack.c.b16 %v162, %v160
  %v201 = vpack.c.b16 %v165, %v163
  %v202 = vpack.c.b16 %v166, %v164
  %v203 = vpack.c.b16 %v169, %v167
  %v204 = vpack.c.b16 %v170, %v168
  %v205 = vpack.c.b16 %v173, %v171
  %v206 = vpack.c.b16 %v174, %v172
  %239 = vmatprep.subr.bf16.mxu0 %v176
  %240 = vmatpush1.bf16.msra.mxu0 %v175
  %241 = vmatprep.subr.bf16.mxu0 %v178
  %242 = vmatpush1.bf16.msra.mxu0 %v177
  %243 = vmatprep.subr.bf16.mxu0 %v180
  %244 = vmatpush1.bf16.msra.mxu0 %v179
  %245 = vmatprep.subr.bf16.mxu0 %v182
  %246 = vmatpush1.bf16.msra.mxu0 %v181
  %247 = vmatprep.subr.bf16.mxu0 %v184
  %248 = vmatpush1.bf16.msra.mxu0 %v183
  %249 = vmatprep.subr.bf16.mxu0 %v186
  %250 = vmatpush1.bf16.msra.mxu0 %v185
  %251 = vmatprep.subr.bf16.mxu0 %v188
  %252 = vmatpush1.bf16.msra.mxu0 %v187
  %253 = vmatprep.subr.bf16.mxu0 %v190
  %254 = vmatpush1.bf16.msra.mxu0 %v189
  %255 = vmatprep.subr.bf16.mxu0 %v192
  %256 = vmatpush1.bf16.msra.mxu0 %v191
  %257 = vmatprep.subr.bf16.mxu0 %v194
  %258 = vmatpush1.bf16.msra.mxu0 %v193
  %259 = vmatprep.subr.bf16.mxu0 %v196
  %260 = vmatpush1.bf16.msra.mxu0 %v195
  %261 = vmatprep.subr.bf16.mxu0 %v198
  %262 = vmatpush1.bf16.msra.mxu0 %v197
  %263 = vmatprep.subr.bf16.mxu0 %v200
  %264 = vmatpush1.bf16.msra.mxu0 %v199
  %265 = vmatprep.subr.bf16.mxu0 %v202
  %266 = vmatpush1.bf16.msra.mxu0 %v201
  %267 = vmatprep.subr.bf16.mxu0 %v204
  %268 = vmatpush1.bf16.msra.mxu0 %v203
  %269 = vmatprep.subr.bf16.mxu0 %v206
  %270 = vmatpush1.bf16.msra.mxu0 %v205
  %271 = vmatprep.mubr.bf16.mxu0 %v46
  %272 = vmatmul.mubr.bf16.gmra.mrb[0].mxu0 %v45
  %v273 = vpop.f32.mrb[0].mxu0
  %v274 = vadd.f32 0.0, %v273
  %v275 = vpop.f32.mrb[0].mxu0
  %v276 = vadd.f32 0.0, %v275
  %v277 = vpop.f32.mrb[0].mxu0
  %v278 = vpop.f32.mrb[0].mxu0
  %279 = vdwg.mxu0
  %v280 = vld [vmem:[%s2] sm:$0x3]
  %v281 = vld [vmem:[%s3] sm:$0x3]
  %vm282 = vcmask 1041408
  %v283 = vsel %vm282, %v274, 0.0
  %v284 = vrot.slane %v283, 4
  %v285 = vadd.f32 %v283, %v284
  %v286 = vrot.slane %v285, 2
  %v287 = vadd.f32 %v285, %v286
  %v288 = vrot.slane %v287, 1
  %v289 = vadd.f32 %v287, %v288
  %v290 = vsel %vm282, %v276, 0.0
  %v291 = vrot.slane %v290, 4
  %v292 = vadd.f32 %v290, %v291
  %v293 = vrot.slane %v292, 2
  %v294 = vadd.f32 %v292, %v293
  %v295 = vrot.slane %v294, 1
  %v296 = vadd.f32 %v294, %v295
  %v297 = vrcp.pop 2.0
  %v298 = vmul.f32 %v289, %v297
  %v299 = vmul.f32 %v296, %v297
  %v300 = vsub.f32 %v274, %v298
  %v301 = vsub.f32 %v276, %v299
  %v302 = vmul.f32 %v300, %v300
  %v303 = vmul.f32 %v301, %v301
  %v304 = vsel %vm282, %v302, 0.0
  %v305 = vrot.slane %v304, 4
  %v306 = vadd.f32 %v304, %v305
  %v307 = vrot.slane %v306, 2
  %v308 = vadd.f32 %v306, %v307
  %v309 = vrot.slane %v308, 1
  %v310 = vadd.f32 %v308, %v309
  %v311 = vsel %vm282, %v303, 0.0
  %v312 = vrot.slane %v311, 4
  %v313 = vadd.f32 %v311, %v312
  %v314 = vrot.slane %v313, 2
  %v315 = vadd.f32 %v313, %v314
  %v316 = vrot.slane %v315, 1
  %v317 = vadd.f32 %v315, %v316
  %v318 = vmul.f32 %v310, %v297
  %v319 = vmul.f32 %v317, %v297
  %v320 = vadd.f32 %v318, 1e-05
  %v321 = vadd.f32 %v319, 1e-05
  %v322 = vrsqrt.pop %v320
  %v323 = vrsqrt.pop %v321
  %v326 = vcombine.low %v322, %v323
  %v328 = vunpack.c.l.s4 1966171168
  %v329 = vunpack.c.0.s8 %v328
  %v330 = vlaneseq
  %v331 = vshrl.u32 %v330, 7
  %v332 = vsub.s32 %v329, %v331
  %v333 = vrot.slane %v326, %v332
  %v335 = vunpack.c.l.s4 1966171168
  %v336 = vunpack.c.0.s8 %v335
  %v337 = vlaneseq
  %v338 = vshrl.u32 %v337, 7
  %v339 = vsub.s32 %v336, %v338
  %v340 = vrot.slane %v333, %v339
  %v342 = vmul.f32 %v280, %v340
  %v344 = vlaneseq
  %v345 = vshrl.u32 %v344, 7
  %v346 = vsub.s32 0, %v345
  %v347 = vrot.slane %v342, %v346
  %v348 = vlaneseq
  %v349 = vshrl.u32 %v348, 7
  %v350 = vsub.s32 1, %v349
  %v351 = vrot.slane %v342, %v350
  %v354 = vmul.f32 %v274, %v347
  %v355 = vmul.f32 %v276, %v351
  %v356 = vmul.f32 %v298, %v347
  %v357 = vmul.f32 %v299, %v351
  %v360 = vcombine.low %v356, %v357
  %v362 = vunpack.c.l.s4 1966171168
  %v363 = vunpack.c.0.s8 %v362
  %v364 = vlaneseq
  %v365 = vshrl.u32 %v364, 7
  %v366 = vsub.s32 %v363, %v365
  %v367 = vrot.slane %v360, %v366
  %v369 = vunpack.c.l.s4 1966171168
  %v370 = vunpack.c.0.s8 %v369
  %v371 = vlaneseq
  %v372 = vshrl.u32 %v371, 7
  %v373 = vsub.s32 %v370, %v372
  %v374 = vrot.slane %v367, %v373
  %v376 = vsub.f32 %v281, %v374
  %v378 = vlaneseq
  %v379 = vshrl.u32 %v378, 7
  %v380 = vsub.s32 0, %v379
  %v381 = vrot.slane %v376, %v380
  %v382 = vlaneseq
  %v383 = vshrl.u32 %v382, 7
  %v384 = vsub.s32 1, %v383
  %v385 = vrot.slane %v376, %v384
  %v388 = vadd.f32 %v354, %v381
  %v389 = vadd.f32 %v355, %v385
  %v390 = vmax.f32 %v388, 0.0
  %v391 = vmax.f32 %v389, 0.0
  %v392 = vpack.c.bf16 %v390, %v390
  %v393 = vpack.c.bf16 %v391, %v391
  %v394 = vld [vmem:[%s4] sm:$0xf]
  %v395 = vld [vmem:[%s4 + $0x4] sm:$0xf]
  %v396 = vld [vmem:[%s4 + $0x8] sm:$0xf]
  %v397 = vld [vmem:[%s4 + $0xc] sm:$0xf]
  %v398 = vld [vmem:[%s4 + $0x10] sm:$0xf]
  %v399 = vld [vmem:[%s4 + $0x14] sm:$0xf]
  %v400 = vld [vmem:[%s4 + $0x18] sm:$0xf]
  %v401 = vld [vmem:[%s4 + $0x1c] sm:$0xf]
  %v402 = vld [vmem:[%s4 + $0x20] sm:$0xf]
  %v403 = vld [vmem:[%s4 + $0x24] sm:$0xf]
  %v404 = vld [vmem:[%s4 + $0x28] sm:$0xf]
  %v405 = vld [vmem:[%s4 + $0x2c] sm:$0xf]
  %v406 = vld [vmem:[%s4 + $0x30] sm:$0xf]
  %v407 = vld [vmem:[%s4 + $0x34] sm:$0xf]
  %v408 = vld [vmem:[%s4 + $0x38] sm:$0xf]
  %v409 = vld [vmem:[%s4 + $0x3c] sm:$0xf]
  %v410 = vld [vmem:[%s4 + $0x40] sm:$0xf]
  %v411 = vld [vmem:[%s4 + $0x44] sm:$0xf]
  %v412 = vld [vmem:[%s4 + $0x48] sm:$0xf]
  %v413 = vld [vmem:[%s4 + $0x4c] sm:$0xf]
  %v414 = vld [vmem:[%s4 + $0x50] sm:$0xf]
  %v415 = vld [vmem:[%s4 + $0x54] sm:$0xf]
  %v416 = vld [vmem:[%s4 + $0x58] sm:$0xf]
  %v417 = vld [vmem:[%s4 + $0x5c] sm:$0xf]
  %v418 = vld [vmem:[%s4 + $0x60] sm:$0xf]
  %v419 = vld [vmem:[%s4 + $0x64] sm:$0xf]
  %v420 = vld [vmem:[%s4 + $0x68] sm:$0xf]
  %v421 = vld [vmem:[%s4 + $0x6c] sm:$0xf]
  %v422 = vld [vmem:[%s4 + $0x70] sm:$0xf]
  %v423 = vld [vmem:[%s4 + $0x74] sm:$0xf]
  %v424 = vld [vmem:[%s4 + $0x78] sm:$0xf]
  %v425 = vld [vmem:[%s4 + $0x7c] sm:$0xf]
  %v458 = vunpack.c.l.b16 %v394
  %v459 = vunpack.c.l.b16 %v395
  %v460 = vunpack.c.l.b16 %v396
  %v461 = vunpack.c.l.b16 %v397
  %v462 = vunpack.c.l.b16 %v398
  %v463 = vunpack.c.l.b16 %v399
  %v464 = vunpack.c.l.b16 %v400
  %v465 = vunpack.c.l.b16 %v401
  %v466 = vunpack.c.l.b16 %v402
  %v467 = vunpack.c.l.b16 %v403
  %v468 = vunpack.c.l.b16 %v404
  %v469 = vunpack.c.l.b16 %v405
  %v470 = vunpack.c.l.b16 %v406
  %v471 = vunpack.c.l.b16 %v407
  %v472 = vunpack.c.l.b16 %v408
  %v473 = vunpack.c.l.b16 %v409
  %v474 = vunpack.c.l.b16 %v410
  %v475 = vunpack.c.l.b16 %v411
  %v476 = vunpack.c.l.b16 %v412
  %v477 = vunpack.c.l.b16 %v413
  %v478 = vunpack.c.l.b16 %v414
  %v479 = vunpack.c.l.b16 %v415
  %v480 = vunpack.c.l.b16 %v416
  %v481 = vunpack.c.l.b16 %v417
  %v482 = vunpack.c.l.b16 %v418
  %v483 = vunpack.c.l.b16 %v419
  %v484 = vunpack.c.l.b16 %v420
  %v485 = vunpack.c.l.b16 %v421
  %v486 = vunpack.c.l.b16 %v422
  %v487 = vunpack.c.l.b16 %v423
  %v488 = vunpack.c.l.b16 %v424
  %v489 = vunpack.c.l.b16 %v425
  %v490 = vpack.c.b16 %v459, %v458
  %v491 = vpack.c.b16 %v461, %v460
  %v492 = vpack.c.b16 %v463, %v462
  %v493 = vpack.c.b16 %v465, %v464
  %v494 = vpack.c.b16 %v467, %v466
  %v495 = vpack.c.b16 %v469, %v468
  %v496 = vpack.c.b16 %v471, %v470
  %v497 = vpack.c.b16 %v473, %v472
  %v498 = vpack.c.b16 %v475, %v474
  %v499 = vpack.c.b16 %v477, %v476
  %v500 = vpack.c.b16 %v479, %v478
  %v501 = vpack.c.b16 %v481, %v480
  %v502 = vpack.c.b16 %v483, %v482
  %v503 = vpack.c.b16 %v485, %v484
  %v504 = vpack.c.b16 %v487, %v486
  %v505 = vpack.c.b16 %v489, %v488
  %522 = vmatprep.subr.bf16.mxu0 0
  %523 = vmatpush1.bf16.msra.mxu0 %v490
  %524 = vmatprep.subr.bf16.mxu0 0
  %525 = vmatpush1.bf16.msra.mxu0 %v491
  %526 = vmatprep.subr.bf16.mxu0 0
  %527 = vmatpush1.bf16.msra.mxu0 %v492
  %528 = vmatprep.subr.bf16.mxu0 0
  %529 = vmatpush1.bf16.msra.mxu0 %v493
  %530 = vmatprep.subr.bf16.mxu0 0
  %531 = vmatpush1.bf16.msra.mxu0 %v494
  %532 = vmatprep.subr.bf16.mxu0 0
  %533 = vmatpush1.bf16.msra.mxu0 %v495
  %534 = vmatprep.subr.bf16.mxu0 0
  %535 = vmatpush1.bf16.msra.mxu0 %v496
  %536 = vmatprep.subr.bf16.mxu0 0
  %537 = vmatpush1.bf16.msra.mxu0 %v497
  %538 = vmatprep.subr.bf16.mxu0 0
  %539 = vmatpush1.bf16.msra.mxu0 %v498
  %540 = vmatprep.subr.bf16.mxu0 0
  %541 = vmatpush1.bf16.msra.mxu0 %v499
  %542 = vmatprep.subr.bf16.mxu0 0
  %543 = vmatpush1.bf16.msra.mxu0 %v500
  %544 = vmatprep.subr.bf16.mxu0 0
  %545 = vmatpush1.bf16.msra.mxu0 %v501
  %546 = vmatprep.subr.bf16.mxu0 0
  %547 = vmatpush1.bf16.msra.mxu0 %v502
  %548 = vmatprep.subr.bf16.mxu0 0
  %549 = vmatpush1.bf16.msra.mxu0 %v503
  %550 = vmatprep.subr.bf16.mxu0 0
  %551 = vmatpush1.bf16.msra.mxu0 %v504
  %552 = vmatprep.subr.bf16.mxu0 0
  %553 = vmatpush1.bf16.msra.mxu0 %v505
  %554 = vmatprep.mubr.bf16.mxu0 %v393
  %555 = vmatmul.mubr.bf16.gmra.mrb[0].mxu0 %v392
  %v556 = vpop.f32.mrb[0].mxu0
  %v557 = vadd.f32 0.0, %v556
  %v558 = vpop.f32.mrb[0].mxu0
  %v559 = vpop.f32.mrb[0].mxu0
  %v560 = vpop.f32.mrb[0].mxu0
  %561 = vdwg.mxu0
  %v562 = vld [vmem:[%s5] sm:$0x1]
  %v563 = vld [vmem:[%s6] sm:$0x1]
  %v564 = vsel %vm282, %v557, 0.0
  %v565 = vrot.slane %v564, 4
  %v566 = vadd.f32 %v564, %v565
  %v567 = vrot.slane %v566, 2
  %v568 = vadd.f32 %v566, %v567
  %v569 = vrot.slane %v568, 1
  %v570 = vadd.f32 %v568, %v569
  %v571 = vmul.f32 %v570, %v297
  %v572 = vsub.f32 %v557, %v571
  %v573 = vmul.f32 %v572, %v572
  %v574 = vsel %vm282, %v573, 0.0
  %v575 = vrot.slane %v574, 4
  %v576 = vadd.f32 %v574, %v575
  %v577 = vrot.slane %v576, 2
  %v578 = vadd.f32 %v576, %v577
  %v579 = vrot.slane %v578, 1
  %v580 = vadd.f32 %v578, %v579
  %v581 = vmul.f32 %v580, %v297
  %v582 = vadd.f32 %v581, 1e-05
  %v583 = vrsqrt.pop %v582
  %v584 = vmul.f32 %v562, %v583
  %v586 = vlaneseq
  %v587 = vshrl.u32 %v586, 7
  %v588 = vsub.s32 0, %v587
  %v589 = vrot.slane %v584, %v588
  %v591 = vmul.f32 %v557, %v589
  %v592 = vmul.f32 %v571, %v584
  %v593 = vsub.f32 %v563, %v592
  %v595 = vlaneseq
  %v596 = vshrl.u32 %v595, 7
  %v597 = vsub.s32 0, %v596
  %v598 = vrot.slane %v593, %v597
  %v600 = vadd.f32 %v591, %v598
  %v601 = vmax.f32 %v600, 0.0
  %v602 = vpack.c.bf16 %v601, %v601
  %v603 = vld [vmem:[%s7] sm:$0xf]
  %v604 = vld [vmem:[%s7 + $0x4] sm:$0xf]
  %v605 = vld [vmem:[%s7 + $0x8] sm:$0xf]
  %v606 = vld [vmem:[%s7 + $0xc] sm:$0xf]
  %v607 = vld [vmem:[%s7 + $0x10] sm:$0xf]
  %v608 = vld [vmem:[%s7 + $0x14] sm:$0xf]
  %v609 = vld [vmem:[%s7 + $0x18] sm:$0xf]
  %v610 = vld [vmem:[%s7 + $0x1c] sm:$0xf]
  %v611 = vld [vmem:[%s7 + $0x20] sm:$0xf]
  %v612 = vld [vmem:[%s7 + $0x24] sm:$0xf]
  %v613 = vld [vmem:[%s7 + $0x28] sm:$0xf]
  %v614 = vld [vmem:[%s7 + $0x2c] sm:$0xf]
  %v615 = vld [vmem:[%s7 + $0x30] sm:$0xf]
  %v616 = vld [vmem:[%s7 + $0x34] sm:$0xf]
  %v617 = vld [vmem:[%s7 + $0x38] sm:$0xf]
  %v618 = vld [vmem:[%s7 + $0x3c] sm:$0xf]
  %v619 = vld [vmem:[%s8] sm:$0x1]
  %v621 = vlaneseq
  %v622 = vshrl.u32 %v621, 7
  %v623 = vsub.s32 0, %v622
  %v624 = vrot.slane %v619, %v623
  %v642 = vunpack.c.l.b16 %v603
  %v643 = vunpack.c.l.b16 %v604
  %v644 = vunpack.c.l.b16 %v605
  %v645 = vunpack.c.l.b16 %v606
  %v646 = vunpack.c.l.b16 %v607
  %v647 = vunpack.c.l.b16 %v608
  %v648 = vunpack.c.l.b16 %v609
  %v649 = vunpack.c.l.b16 %v610
  %v650 = vunpack.c.l.b16 %v611
  %v651 = vunpack.c.l.b16 %v612
  %v652 = vunpack.c.l.b16 %v613
  %v653 = vunpack.c.l.b16 %v614
  %v654 = vunpack.c.l.b16 %v615
  %v655 = vunpack.c.l.b16 %v616
  %v656 = vunpack.c.l.b16 %v617
  %v657 = vunpack.c.l.b16 %v618
  %v658 = vpack.c.b16 %v643, %v642
  %v659 = vpack.c.b16 %v645, %v644
  %v660 = vpack.c.b16 %v647, %v646
  %v661 = vpack.c.b16 %v649, %v648
  %v662 = vpack.c.b16 %v651, %v650
  %v663 = vpack.c.b16 %v653, %v652
  %v664 = vpack.c.b16 %v655, %v654
  %v665 = vpack.c.b16 %v657, %v656
  %674 = vmatprep.subr.bf16.mxu0 0
  %675 = vmatpush1.bf16.msra.mxu0 %v658
  %676 = vmatprep.subr.bf16.mxu0 0
  %677 = vmatpush1.bf16.msra.mxu0 %v659
  %678 = vmatprep.subr.bf16.mxu0 0
  %679 = vmatpush1.bf16.msra.mxu0 %v660
  %680 = vmatprep.subr.bf16.mxu0 0
  %681 = vmatpush1.bf16.msra.mxu0 %v661
  %682 = vmatprep.subr.bf16.mxu0 0
  %683 = vmatpush1.bf16.msra.mxu0 %v662
  %684 = vmatprep.subr.bf16.mxu0 0
  %685 = vmatpush1.bf16.msra.mxu0 %v663
  %686 = vmatprep.subr.bf16.mxu0 0
  %687 = vmatpush1.bf16.msra.mxu0 %v664
  %688 = vmatprep.subr.bf16.mxu0 0
  %689 = vmatpush1.bf16.msra.mxu0 %v665
  %690 = vmatprep.subr.bf16.mxu0 0
  %691 = vmatpush1.bf16.msra.mxu0 0
  %692 = vmatprep.subr.bf16.mxu0 0
  %693 = vmatpush1.bf16.msra.mxu0 0
  %694 = vmatprep.subr.bf16.mxu0 0
  %695 = vmatpush1.bf16.msra.mxu0 0
  %696 = vmatprep.subr.bf16.mxu0 0
  %697 = vmatpush1.bf16.msra.mxu0 0
  %698 = vmatprep.subr.bf16.mxu0 0
  %699 = vmatpush1.bf16.msra.mxu0 0
  %700 = vmatprep.subr.bf16.mxu0 0
  %701 = vmatpush1.bf16.msra.mxu0 0
  %702 = vmatprep.subr.bf16.mxu0 0
  %703 = vmatpush1.bf16.msra.mxu0 0
  %704 = vmatprep.subr.bf16.mxu0 0
  %705 = vmatpush1.bf16.msra.mxu0 0
  %706 = vmatprep.mubr.bf16.mxu0 0
  %707 = vmatmul.mubr.bf16.gmra.mrb[0].mxu0 %v602
  %v708 = vpop.f32.mrb[0].mxu0
  %v709 = vadd.f32 %v624, %v708
  %v710 = vpop.f32.mrb[0].mxu0
  %v711 = vpop.f32.mrb[0].mxu0
  %v712 = vpop.f32.mrb[0].mxu0
  %713 = vdwg.mxu0
  %vm714 = vcmask 66560
  %715 = vst.msk [vmem:[%s9] sm:$0x3] %vm714, %v709
  // Predicated region
  $region38: #{base_point_net.21} parent=0 // pred_check
    _
  $region39: #{base_point_net.21} parent=0 // pred_check_branch
    %717 = sbr.rel (0) target = $region41
  $region40: #{base_point_net.21} parent=0 // pred_region
    _
  $region41: #{base_point_net.21} parent=0 // pred_fallthru
    _
  // Predicated region
  $region42: #{base_point_net.21} parent=0 // pred_check
    _
  $region43: #{base_point_net.21} parent=0 // pred_check_branch
    %719 = sbr.rel (0) target = $region45
  $region44: #{base_point_net.21} parent=0 // pred_region
    _
  $region45: #{base_point_net.21} parent=0 // pred_fallthru
    _

// kernel: base_point_net.22
$region0: #{base_point_net.22}
  #allocation0 [shape = 'u32[]', space=smem, size = 0x4, offset = 0x4, fixed_abs, tag = 'smem constant byte address 0x4 - core index']
  #allocation1 [shape = 'u32[144,128]{1,0:T(1,128)}', space=vmem, size = 0x12000, scoped, tag = 'internal scratch']
  %s0 = inlined_call_operand.vmem [shape: f32[2,128,3], index: 0, kind: input, shape index: {}]
  %s1 = inlined_call_operand.vmem [shape: bf16[2,3,3], index: 1, kind: input, shape index: {}]
  %s2 = inlined_call_operand.hbm [shape: bf16[3,64], index: 2, kind: input, shape index: {}]
  %s3 = inlined_call_operand.vmem [shape: f32[2,3,128], index: 3, kind: output, shape index: {0}]
  %s4 = inlined_call_operand.vmem [shape: bf16[2,128,64], index: 4, kind: output, shape index: {1}]
  %s5 = inlined_call_operand.vmem [shape: f32[2,2,64], index: 5, kind: output, shape index: {2}]
  %6 = xla_tuple %s3, %s4, %s5
  %s7 = sld [smem:[#allocation0]]
  $region65: #{base_point_net.22} parent=0
    _
  %s9 = ssub.s32 1, %s7
  %s10 = scalar_select 0, %s9, %s7
  $region1: #{base_point_net.22} parent=0
    #allocation2 [shape = 'u8[1024]{0}', space=vmem, size = 0x400, scoped, tag = 'input window, operand 2, single buffered']
    #allocation3 [shape = 's32[2]{0}', space=sflag, size = 0x8, scoped, tag = 'scoped memory for base_point_net.22']
    %11 = vsyncpa [#allocation3], 0
    loop: start=0, step=1, limit=4
    $region2: #{base_point_net.22} parent=1 // loop_pre_header
      _
    $region3: #{base_point_net.22} parent=1 // loop_header
      %s13 = sphi 0, %s17
      %p14 = scmp.ge.s32.totalorder %s13, 4
      %s20 = sphi 0, %s32
      %s21 = sphi 0, %s28
      %s22 = sphi 0, %s20
      %s23 = sphi 0, %s21
      %s24 = sphi 0, %s22
      %s25 = sphi 0, %s23
      %s37 = sphi 0, %s39
      %s40 = sphi 0, %s37
      %s41 = sphi 0, %s40
      %s57 = sphi 0, %s41
      %s63 = sphi 0, %s65
      %s66 = sphi 0, %s63
      %s67 = sphi 0, %s66
      %s83 = sphi 0, %s67
      %s87 = sphi 0, %s87
      %s89 = sphi 0, %s87
      %s90 = sphi 0, %s89
      %s104 = sphi 0, %s90
      %s112 = sphi 0, %s114
      %s115 = sphi 0, %s112
      %s116 = sphi 0, %s115
      %s132 = sphi 0, %s116
      %s140 = sphi 0, %s142
      %s143 = sphi 0, %s140
      %s144 = sphi 0, %s143
      %s160 = sphi 0, %s144
      %s168 = sphi 0, %s170
      %s171 = sphi 0, %s168
      %s172 = sphi 0, %s171
      %s188 = sphi 0, %s172
    $region4: #{base_point_net.22} parent=1 // loop_header_branch
      %16 = sbr.rel (%p14) target = $region8
    $region5: #{base_point_net.22} parent=1 // loop_body
      %s18 = ssub.s32 %s13, 1
      %s19 = ssub.s32 %s13, 2
      %s26 = sadd.s32 1, %s21
      %p27 = scmp.ge.s32.totalorder %s26, 1
      %s28 = scalar_select %p27, 0, %s26
      %s29 = sadd.s32 1, %s20
      %s30 = scalar_select %p27, %s29, %s20
      %p31 = scmp.ge.s32.totalorder %s30, 2
      %s32 = scalar_select %p31, 0, %s30
      %s33 = ssub.s32 %s20, %s32
      %s34 = ssub.s32 %s21, %s28
      %s35 = sor.u32 %s33, %s34
      %p36 = scmp.eq.s32.totalorder %s35, 0
      %s38 = sadd.s32 %s37, 1
      %s39 = scalar_select %p36, %s37, %s38
      %p42 = pneg %p36
      %p43 = scmp.eq.s32.totalorder %s13, 1
      %p44 = por %p42, %p43
      %p45 = scmp.ne.s32.totalorder %s37, %s40
      %p46 = scmp.eq.s32.totalorder %s13, 0
      %p47 = por %p45, %p46
      %p48 = scmp.ne.s32.totalorder %s37, %s40
      %p49 = scmp.eq.s32.totalorder %s18, 1
      %p50 = por %p48, %p49
      %p51 = scmp.ne.s32.totalorder %s40, %s41
      %p52 = scmp.eq.s32.totalorder %s18, 0
      %p53 = por %p51, %p52
      %p54 = scmp.ne.s32.totalorder %s40, %s41
      %p55 = scmp.eq.s32.totalorder %s19, 1
      %p56 = por %p54, %p55
      %p58 = scmp.ne.s32.totalorder %s41, %s57
      %p59 = scmp.eq.s32.totalorder %s19, 0
      %p60 = por %p58, %p59
      %s61 = ssub.s32 %s20, %s32
      %p62 = scmp.eq.s32.totalorder %s61, 0
      %s64 = sadd.s32 %s63, 1
      %s65 = scalar_select %p62, %s63, %s64
      %p68 = pneg %p62
      %p69 = scmp.eq.s32.totalorder %s13, 1
      %p70 = por %p68, %p69
      %p71 = scmp.ne.s32.totalorder %s63, %s66
      %p72 = scmp.eq.s32.totalorder %s13, 0
      %p73 = por %p71, %p72
      %p74 = scmp.ne.s32.totalorder %s63, %s66
      %p75 = scmp.eq.s32.totalorder %s18, 1
      %p76 = por %p74, %p75
      %p77 = scmp.ne.s32.totalorder %s66, %s67
      %p78 = scmp.eq.s32.totalorder %s18, 0
      %p79 = por %p77, %p78
      %p80 = scmp.ne.s32.totalorder %s66, %s67
      %p81 = scmp.eq.s32.totalorder %s19, 1
      %p82 = por %p80, %p81
      %p84 = scmp.ne.s32.totalorder %s67, %s83
      %p85 = scmp.eq.s32.totalorder %s19, 0
      %p86 = por %p84, %p85
      %s88 = sadd.s32 %s87, 1
      %p91 = scmp.eq.s32.totalorder %s13, 1
      %p92 = scmp.ne.s32.totalorder %s87, %s89
      %p93 = scmp.eq.s32.totalorder %s13, 0
      %p94 = por %p92, %p93
      %p95 = scmp.ne.s32.totalorder %s87, %s89
      %p96 = scmp.eq.s32.totalorder %s18, 1
      %p97 = por %p95, %p96
      %p98 = scmp.ne.s32.totalorder %s89, %s90
      %p99 = scmp.eq.s32.totalorder %s18, 0
      %p100 = por %p98, %p99
      %p101 = scmp.ne.s32.totalorder %s89, %s90
      %p102 = scmp.eq.s32.totalorder %s19, 1
      %p103 = por %p101, %p102
      %p105 = scmp.ne.s32.totalorder %s90, %s104
      %p106 = scmp.eq.s32.totalorder %s19, 0
      %p107 = por %p105, %p106
      %s108 = ssub.s32 %s20, %s32
      %s109 = ssub.s32 %s21, %s28
      %s110 = sor.u32 %s108, %s109
      %p111 = scmp.eq.s32.totalorder %s110, 0
      %s113 = sadd.s32 %s112, 1
      %s114 = scalar_select %p111, %s112, %s113
      %p117 = pneg %p111
      %p118 = scmp.eq.s32.totalorder %s13, 1
      %p119 = por %p117, %p118
      %p120 = scmp.ne.s32.totalorder %s112, %s115
      %p121 = scmp.eq.s32.totalorder %s13, 0
      %p122 = por %p120, %p121
      %p123 = scmp.ne.s32.totalorder %s112, %s115
      %p124 = scmp.eq.s32.totalorder %s18, 1
      %p125 = por %p123, %p124
      %p126 = scmp.ne.s32.totalorder %s115, %s116
      %p127 = scmp.eq.s32.totalorder %s18, 0
      %p128 = por %p126, %p127
      %p129 = scmp.ne.s32.totalorder %s115, %s116
      %p130 = scmp.eq.s32.totalorder %s19, 1
      %p131 = por %p129, %p130
      %p133 = scmp.ne.s32.totalorder %s116, %s132
      %p134 = scmp.eq.s32.totalorder %s19, 0
      %p135 = por %p133, %p134
      %s136 = ssub.s32 %s20, %s32
      %s137 = ssub.s32 %s21, %s28
      %s138 = sor.u32 %s136, %s137
      %p139 = scmp.eq.s32.totalorder %s138, 0
      %s141 = sadd.s32 %s140, 1
      %s142 = scalar_select %p139, %s140, %s141
      %p145 = pneg %p139
      %p146 = scmp.eq.s32.totalorder %s13, 1
      %p147 = por %p145, %p146
      %p148 = scmp.ne.s32.totalorder %s140, %s143
      %p149 = scmp.eq.s32.totalorder %s13, 0
      %p150 = por %p148, %p149
      %p151 = scmp.ne.s32.totalorder %s140, %s143
      %p152 = scmp.eq.s32.totalorder %s18, 1
      %p153 = por %p151, %p152
      %p154 = scmp.ne.s32.totalorder %s143, %s144
      %p155 = scmp.eq.s32.totalorder %s18, 0
      %p156 = por %p154, %p155
      %p157 = scmp.ne.s32.totalorder %s143, %s144
      %p158 = scmp.eq.s32.totalorder %s19, 1
      %p159 = por %p157, %p158
      %p161 = scmp.ne.s32.totalorder %s144, %s160
      %p162 = scmp.eq.s32.totalorder %s19, 0
      %p163 = por %p161, %p162
      %s164 = sadd.s32 %s20, %s21
      %s165 = sadd.s32 %s32, %s28
      %s166 = ssub.s32 %s164, %s165
      %p167 = scmp.eq.s32.totalorder %s166, 0
      %s169 = sadd.s32 %s168, 1
      %s170 = scalar_select %p167, %s168, %s169
      %p173 = pneg %p167
      %p174 = scmp.eq.s32.totalorder %s13, 1
      %p175 = por %p173, %p174
      %p176 = scmp.ne.s32.totalorder %s168, %s171
      %p177 = scmp.eq.s32.totalorder %s13, 0
      %p178 = por %p176, %p177
      %p179 = scmp.ne.s32.totalorder %s168, %s171
      %p180 = scmp.eq.s32.totalorder %s18, 1
      %p181 = por %p179, %p180
      %p182 = scmp.ne.s32.totalorder %s171, %s172
      %p183 = scmp.eq.s32.totalorder %s18, 0
      %p184 = por %p182, %p183
      %p185 = scmp.ne.s32.totalorder %s171, %s172
      %p186 = scmp.eq.s32.totalorder %s19, 1
      %p187 = por %p185, %p186
      %p189 = scmp.ne.s32.totalorder %s172, %s188
      %p190 = scmp.eq.s32.totalorder %s19, 0
      %p191 = por %p189, %p190
      %p192 = scmp.le.s32.totalorder 1, %s13
      %p193 = scmp.lt.s32.totalorder %s13, 3
      %p194 = pnand %p192, %p193
      %p195 = pneg %p194
      // Predicated region
      $region9: #{base_point_net.22} parent=5 // pred_check
        _
      $region10: #{base_point_net.22} parent=5 // pred_check_branch
        %197 = sbr.rel (%p194) target = $region12
      $region11: #{base_point_net.22} parent=5 // pred_region
        %s198 = ssub.s32 %s13, 1
        // Predicated region
        $region13: #{base_point_net.22} parent=11 // pred_check
          %p199 = pneg %p100
        $region14: #{base_point_net.22} parent=11 // pred_check_branch
          %201 = sbr.rel (%p199) target = $region16
        $region15: #{base_point_net.22} parent=11 // pred_region
          %s203 = ssub.s32 32, 32
          %204 = vsyncadd [#allocation3], %s203
          %s206 = sshll.u32 [#allocation2], 4
          %s207 = int_to_ptr.vmem [resolvable:$true] %s206
          %209 = dma.hbm_to_vmem [thread:$0]  %s2, 32, %s207, [#allocation3]
        $region16: #{base_point_net.22} parent=11 // pred_fallthru
          _
      $region12: #{base_point_net.22} parent=5 // pred_fallthru
        _
      %p210 = scmp.lt.s32.totalorder %s13, 2
      // Predicated region
      $region17: #{base_point_net.22} parent=5 // pred_check
        %p211 = pneg %p210
      $region18: #{base_point_net.22} parent=5 // pred_check_branch
        %213 = sbr.rel (%p211) target = $region20
      $region19: #{base_point_net.22} parent=5 // pred_region
        // Predicated region
        $region21: #{base_point_net.22} parent=19 // pred_check
          %p214 = pneg %p47
        $region22: #{base_point_net.22} parent=19 // pred_check_branch
          %216 = sbr.rel (%p214) target = $region24
        $region23: #{base_point_net.22} parent=19 // pred_region
          %s217 = smul.u32 16, %s21
          %p218 = scmp.lt.s32.totalorder %s20, 1
          %s219 = scalar_select %p218, %s20, 1
          %p220 = scmp.lt.s32.totalorder %s217, 15
          %s221 = scalar_select %p220, %s217, 15
          %s222 = smul.addr %s219, 16
          %s223 = sadd.s32 %s221, %s222
          %s224 = smul.addr %s223, 8
          %s225 = scalar_lea.vmem %s0, %s224
          %s226 = smul.u32 16, %s21
        $region24: #{base_point_net.22} parent=19 // pred_fallthru
          _
        // Predicated region
        $region25: #{base_point_net.22} parent=19 // pred_check
          %p227 = pneg %p73
        $region26: #{base_point_net.22} parent=19 // pred_check_branch
          %229 = sbr.rel (%p227) target = $region28
        $region27: #{base_point_net.22} parent=19 // pred_region
          %p230 = scmp.lt.s32.totalorder %s20, 1
          %s231 = scalar_select %p230, %s20, 1
          %s232 = smul.addr %s231, 2
          %s233 = scalar_lea.vmem %s1, %s232
        $region28: #{base_point_net.22} parent=19 // pred_fallthru
          _
      $region20: #{base_point_net.22} parent=5 // pred_fallthru
        _
      %p234 = scmp.le.s32.totalorder 1, %s13
      %p235 = scmp.lt.s32.totalorder %s13, 3
      %p236 = pnand %p234, %p235
      %p237 = pneg %p236
      // Predicated region
      $region29: #{base_point_net.22} parent=5 // pred_check
        _
      $region30: #{base_point_net.22} parent=5 // pred_check_branch
        %239 = sbr.rel (%p236) target = $region32
      $region31: #{base_point_net.22} parent=5 // pred_region
        %s240 = ssub.s32 %s13, 1
        // Predicated region
        $region33: #{base_point_net.22} parent=31 // pred_check
          %p241 = pneg %p100
        $region34: #{base_point_net.22} parent=31 // pred_check_branch
          %243 = sbr.rel (%p241) target = $region36
        $region35: #{base_point_net.22} parent=31 // pred_region
          %244 = dma.done [#allocation3], 32
        $region36: #{base_point_net.22} parent=31 // pred_fallthru
          _
        %s245 = smul.u32 16, %s23
        %p246 = scmp.lt.s32.totalorder %s22, 1
        %s247 = scalar_select %p246, %s22, 1
        %p248 = scmp.lt.s32.totalorder %s245, 15
        %s249 = scalar_select %p248, %s245, 15
        %s250 = smul.addr %s247, 16
        %s251 = sadd.s32 %s249, %s250
        %s252 = smul.addr %s251, 8
        %s253 = scalar_lea.vmem %s0, %s252
        %p254 = pneg %p53
        %p255 = pneg %p50
        %p256 = scmp.lt.s32.totalorder %s22, 1
        %s257 = scalar_select %p256, %s22, 1
        %s258 = smul.addr %s257, 2
        %s259 = scalar_lea.vmem %s1, %s258
        %p260 = pneg %p79
        %p261 = pneg %p76
        %p262 = pneg %p100
        %p263 = pneg %p97
        %p264 = pneg %p128
        %p265 = pneg %p125
        %p266 = scmp.lt.s32.totalorder %s22, 1
        %s267 = scalar_select %p266, %s22, 1
        %p268 = scmp.lt.s32.totalorder %s23, 0
        %s269 = scalar_select %p268, %s23, 0
        %s270 = sadd.s32 %s269, %s267
        %s271 = smul.addr %s270, 4
        %s272 = scalar_lea.vmem %s3, %s271
        %p273 = pneg %p156
        %p274 = pneg %p153
        %s275 = smul.u32 16, %s23
        %p276 = scmp.lt.s32.totalorder %s22, 1
        %s277 = scalar_select %p276, %s22, 1
        %p278 = scmp.lt.s32.totalorder %s275, 15
        %s279 = scalar_select %p278, %s275, 15
        %s280 = smul.addr %s277, 16
        %s281 = sadd.s32 %s279, %s280
        %s282 = smul.addr %s281, 4
        %s283 = scalar_lea.vmem %s4, %s282
        %p284 = pneg %p184
        %p285 = pneg %p181
        %s286 = sadd.s32 %s22, %s23
        %p287 = scmp.lt.s32.totalorder %s286, 1
        %s288 = scalar_select %p287, %s286, 1
        %s289 = smul.addr %s288, 2
        %s290 = scalar_lea.vmem %s5, %s289
        %s291 = smul.u32 16, %s23
        %p292 = scmp.lt.s32.totalorder %s22, 1
        %s293 = scalar_select %p292, %s22, 1
        %p294 = scmp.lt.s32.totalorder %s291, 15
        %s295 = scalar_select %p294, %s291, 15
        %s296 = smul.addr %s293, 16
        %s297 = sadd.s32 %s295, %s296
        %s298 = smul.addr %s297, 8
        %s299 = scalar_lea.vmem %s0, %s298
        %s300 = smul.u32 16, %s23
        %p301 = scmp.lt.s32.totalorder %s22, 1
        %s302 = scalar_select %p301, %s22, 1
        %s303 = smul.addr %s302, 2
        %s304 = scalar_lea.vmem %s1, %s303
        %p305 = scmp.lt.s32.totalorder %s22, 1
        %s306 = scalar_select %p305, %s22, 1
        %p307 = scmp.lt.s32.totalorder %s23, 0
        %s308 = scalar_select %p307, %s23, 0
        %s309 = sadd.s32 %s308, %s306
        %s310 = smul.addr %s309, 4
        %s311 = scalar_lea.vmem %s3, %s310
        %s312 = smul.u32 16, %s23
        %p313 = scmp.lt.s32.totalorder %s22, 1
        %s314 = scalar_select %p313, %s22, 1
        %p315 = scmp.lt.s32.totalorder %s312, 15
        %s316 = scalar_select %p315, %s312, 15
        %s317 = smul.addr %s314, 16
        %s318 = sadd.s32 %s316, %s317
        %s319 = smul.addr %s318, 4
        %s320 = scalar_lea.vmem %s4, %s319
        %s321 = smul.u32 16, %s23
        %s322 = sadd.s32 %s22, %s23
        %p323 = scmp.lt.s32.totalorder %s322, 1
        %s324 = scalar_select %p323, %s322, 1
        %s325 = smul.addr %s324, 2
        %s326 = scalar_lea.vmem %s5, %s325
        %s327 = sadd.s32 %s22, %s23
        %v329 = vld [vmem:[%s299] sm:$0xff]
        %v330 = vld [vmem:[%s299 + $0x8] sm:$0xff]
        %v331 = vld [vmem:[%s299 + $0x10] sm:$0xff]
        %v332 = vld [vmem:[%s299 + $0x18] sm:$0xff]
        %v333 = vld [vmem:[%s299 + $0x20] sm:$0xff]
        %v334 = vld [vmem:[%s299 + $0x28] sm:$0xff]
        %v335 = vld [vmem:[%s299 + $0x30] sm:$0xff]
        %v336 = vld [vmem:[%s299 + $0x38] sm:$0xff]
        %v337 = vld [vmem:[%s299 + $0x40] sm:$0xff]
        %v338 = vld [vmem:[%s299 + $0x48] sm:$0xff]
        %v339 = vld [vmem:[%s299 + $0x50] sm:$0xff]
        %v340 = vld [vmem:[%s299 + $0x58] sm:$0xff]
        %v341 = vld [vmem:[%s299 + $0x60] sm:$0xff]
        %v342 = vld [vmem:[%s299 + $0x68] sm:$0xff]
        %v343 = vld [vmem:[%s299 + $0x70] sm:$0xff]
        %v344 = vld [vmem:[%s299 + $0x78] sm:$0xff]
        %v345 = vpack.c.bf16 %v330, %v329
        %v346 = vpack.c.bf16 %v332, %v331
        %v347 = vpack.c.bf16 %v334, %v333
        %v348 = vpack.c.bf16 %v336, %v335
        %v349 = vpack.c.bf16 %v338, %v337
        %v350 = vpack.c.bf16 %v340, %v339
        %v351 = vpack.c.bf16 %v342, %v341
        %v352 = vpack.c.bf16 %v344, %v343
        %v353 = vld [vmem:[%s304] sm:$0x3]
        %vm354 = vcmask 23552
        %v356 = vsel %vm354, %v345, 0
        %v359 = vsel %vm354, %v346, 0
        %v362 = vsel %vm354, %v347, 0
        %v365 = vsel %vm354, %v348, 0
        %v368 = vsel %vm354, %v349, 0
        %v371 = vsel %vm354, %v350, 0
        %v374 = vsel %vm354, %v351, 0
        %v377 = vsel %vm354, %v352, 0
        %vm379 = vcmask 1040384
        %vm380 = vcmask 1041408
        %v381 = vsel %vm379, 4294967295, 65535
        %v382 = vsel %vm380, %v381, 0
        %v384 = vand.u32 %v353, %v382
        %386 = vmatprep.subr.bf16.mxu0 0
        %387 = vmatpush1.bf16.msra.mxu0 %v384
        %388 = vmatprep.subr.bf16.mxu0 0
        %389 = vmatpush1.bf16.msra.mxu0 0
        %390 = vmatprep.subr.bf16.mxu0 0
        %391 = vmatpush1.bf16.msra.mxu0 0
        %392 = vmatprep.subr.bf16.mxu0 0
        %393 = vmatpush1.bf16.msra.mxu0 0
        %394 = vmatprep.subr.bf16.mxu0 0
        %395 = vmatpush1.bf16.msra.mxu0 0
        %396 = vmatprep.subr.bf16.mxu0 0
        %397 = vmatpush1.bf16.msra.mxu0 0
        %398 = vmatprep.subr.bf16.mxu0 0
        %399 = vmatpush1.bf16.msra.mxu0 0
        %400 = vmatprep.subr.bf16.mxu0 0
        %401 = vmatpush1.bf16.msra.mxu0 0
        %402 = vmatprep.subr.bf16.mxu0 0
        %403 = vmatpush1.bf16.msra.mxu0 0
        %404 = vmatprep.subr.bf16.mxu0 0
        %405 = vmatpush1.bf16.msra.mxu0 0
        %406 = vmatprep.subr.bf16.mxu0 0
        %407 = vmatpush1.bf16.msra.mxu0 0
        %408 = vmatprep.subr.bf16.mxu0 0
        %409 = vmatpush1.bf16.msra.mxu0 0
        %410 = vmatprep.subr.bf16.mxu0 0
        %411 = vmatpush1.bf16.msra.mxu0 0
        %412 = vmatprep.subr.bf16.mxu0 0
        %413 = vmatpush1.bf16.msra.mxu0 0
        %414 = vmatprep.subr.bf16.mxu0 0
        %415 = vmatpush1.bf16.msra.mxu0 0
        %416 = vmatprep.subr.bf16.mxu0 0
        %417 = vmatpush1.bf16.msra.mxu0 0
        %418 = vmatprep.mubr.bf16.mxu0 0
        %419 = vmatmul.mubr.bf16.gmra.mrb[0].mxu0 %v356
        %v420 = vpop.f32.mrb[0].mxu0
        %v421 = vadd.f32 0.0, %v420
        %v422 = vpop.f32.mrb[0].mxu0
        %v423 = vpop.f32.mrb[0].mxu0
        %v424 = vadd.f32 0.0, %v423
        %v425 = vpop.f32.mrb[0].mxu0
        %426 = vmatprep.mubr.bf16.mxu0 0
        %427 = vmatmul.mubr.bf16.gmra.mrb[0].mxu0 %v359
        %v428 = vpop.f32.mrb[0].mxu0
        %v429 = vadd.f32 0.0, %v428
        %v430 = vpop.f32.mrb[0].mxu0
        %v431 = vpop.f32.mrb[0].mxu0
        %v432 = vadd.f32 0.0, %v431
        %v433 = vpop.f32.mrb[0].mxu0
        %434 = vmatprep.mubr.bf16.mxu0 0
        %435 = vmatmul.mubr.bf16.gmra.mrb[0].mxu0 %v362
        %v436 = vpop.f32.mrb[0].mxu0
        %v437 = vadd.f32 0.0, %v436
        %v438 = vpop.f32.mrb[0].mxu0
        %v439 = vpop.f32.mrb[0].mxu0
        %v440 = vadd.f32 0.0, %v439
        %v441 = vpop.f32.mrb[0].mxu0
        %442 = vmatprep.mubr.bf16.mxu0 0
        %443 = vmatmul.mubr.bf16.gmra.mrb[0].mxu0 %v365
        %v444 = vpop.f32.mrb[0].mxu0
        %v445 = vadd.f32 0.0, %v444
        %v446 = vpop.f32.mrb[0].mxu0
        %v447 = vpop.f32.mrb[0].mxu0
        %v448 = vadd.f32 0.0, %v447
        %v449 = vpop.f32.mrb[0].mxu0
        %450 = vmatprep.mubr.bf16.mxu0 0
        %451 = vmatmul.mubr.bf16.gmra.mrb[0].mxu0 %v368
        %v452 = vpop.f32.mrb[0].mxu0
        %v453 = vadd.f32 0.0, %v452
        %v454 = vpop.f32.mrb[0].mxu0
        %v455 = vpop.f32.mrb[0].mxu0
        %v456 = vadd.f32 0.0, %v455
        %v457 = vpop.f32.mrb[0].mxu0
        %458 = vmatprep.mubr.bf16.mxu0 0
        %459 = vmatmul.mubr.bf16.gmra.mrb[0].mxu0 %v371
        %v460 = vpop.f32.mrb[0].mxu0
        %v461 = vadd.f32 0.0, %v460
        %v462 = vpop.f32.mrb[0].mxu0
        %v463 = vpop.f32.mrb[0].mxu0
        %v464 = vadd.f32 0.0, %v463
        %v465 = vpop.f32.mrb[0].mxu0
        %466 = vmatprep.mubr.bf16.mxu0 0
        %467 = vmatmul.mubr.bf16.gmra.mrb[0].mxu0 %v374
        %v468 = vpop.f32.mrb[0].mxu0
        %v469 = vadd.f32 0.0, %v468
        %v470 = vpop.f32.mrb[0].mxu0
        %v471 = vpop.f32.mrb[0].mxu0
        %v472 = vadd.f32 0.0, %v471
        %v473 = vpop.f32.mrb[0].mxu0
        %474 = vmatprep.mubr.bf16.mxu0 0
        %475 = vmatmul.mubr.bf16.gmra.mrb[0].mxu0 %v377
        %v476 = vpop.f32.mrb[0].mxu0
        %v477 = vadd.f32 0.0, %v476
        %v478 = vpop.f32.mrb[0].mxu0
        %v479 = vpop.f32.mrb[0].mxu0
        %v480 = vadd.f32 0.0, %v479
        %v481 = vpop.f32.mrb[0].mxu0
        %482 = vdwg.mxu0
        %483 = vxpose.xlu0.b32.start [1/16] %v421, 128
        %484 = vxpose.xlu0.b32.cont [2/16] %v424, 128
        %485 = vxpose.xlu0.b32.cont [3/16] %v429, 128
        %486 = vxpose.xlu0.b32.cont [4/16] %v432, 128
        %487 = vxpose.xlu0.b32.cont [5/16] %v437, 128
        %488 = vxpose.xlu0.b32.cont [6/16] %v440, 128
        %489 = vxpose.xlu0.b32.cont [7/16] %v445, 128
        %490 = vxpose.xlu0.b32.cont [8/16] %v448, 128
        %491 = vxpose.xlu0.b32.cont [9/16] %v453, 128
        %492 = vxpose.xlu0.b32.cont [10/16] %v456, 128
        %493 = vxpose.xlu0.b32.cont [11/16] %v461, 128
        %494 = vxpose.xlu0.b32.cont [12/16] %v464, 128
        %495 = vxpose.xlu0.b32.cont [13/16] %v469, 128
        %496 = vxpose.xlu0.b32.cont [14/16] %v472, 128
        %497 = vxpose.xlu0.b32.cont [15/16] %v477, 128
        %498 = vxpose.xlu0.b32.end [16/16] %v480, 128
        %v499 = vpop.trf.xlu0
        %v500 = vpop.trf.xlu0
        %v501 = vpop.trf.xlu0
        %v502 = vpop.trf.xlu0
        %v503 = vpop.trf.xlu0
        %v504 = vpop.trf.xlu0
        %v505 = vpop.trf.xlu0
        %v506 = vpop.trf.xlu0
        %v507 = vpop.trf.xlu0
        %v508 = vpop.trf.xlu0
        %v509 = vpop.trf.xlu0
        %v510 = vpop.trf.xlu0
        %v511 = vpop.trf.xlu0
        %v512 = vpop.trf.xlu0
        %v513 = vpop.trf.xlu0
        %v514 = vpop.trf.xlu0
        %515 = vst [vmem:[%s311] sm:$0x7] %v499
        %v516 = vpack.c.bf16 %v424, %v421
        %v517 = vpack.c.bf16 %v432, %v429
        %v518 = vpack.c.bf16 %v440, %v437
        %v519 = vpack.c.bf16 %v448, %v445
        %v520 = vpack.c.bf16 %v456, %v453
        %v521 = vpack.c.bf16 %v464, %v461
        %v522 = vpack.c.bf16 %v472, %v469
        %v523 = vpack.c.bf16 %v480, %v477
        %v524 = vld [vmem:[#allocation2] sm:$0x3]
        %v526 = vsel %vm354, %v516, 0
        %v529 = vsel %vm354, %v517, 0
        %v532 = vsel %vm354, %v518, 0
        %v535 = vsel %vm354, %v519, 0
        %v538 = vsel %vm354, %v520, 0
        %v541 = vsel %vm354, %v521, 0
        %v544 = vsel %vm354, %v522, 0
        %v547 = vsel %vm354, %v523, 0
        %v550 = vand.u32 %v524, %v382
        %552 = vmatprep.subr.bf16.mxu0 0
        %553 = vmatpush1.bf16.msra.mxu0 %v550
        %554 = vmatprep.subr.bf16.mxu0 0
        %555 = vmatpush1.bf16.msra.mxu0 0
        %556 = vmatprep.subr.bf16.mxu0 0
        %557 = vmatpush1.bf16.msra.mxu0 0
        %558 = vmatprep.subr.bf16.mxu0 0
        %559 = vmatpush1.bf16.msra.mxu0 0
        %560 = vmatprep.subr.bf16.mxu0 0
        %561 = vmatpush1.bf16.msra.mxu0 0
        %562 = vmatprep.subr.bf16.mxu0 0
        %563 = vmatpush1.bf16.msra.mxu0 0
        %564 = vmatprep.subr.bf16.mxu0 0
        %565 = vmatpush1.bf16.msra.mxu0 0
        %566 = vmatprep.subr.bf16.mxu0 0
        %567 = vmatpush1.bf16.msra.mxu0 0
        %568 = vmatprep.subr.bf16.mxu0 0
        %569 = vmatpush1.bf16.msra.mxu0 0
        %570 = vmatprep.subr.bf16.mxu0 0
        %571 = vmatpush1.bf16.msra.mxu0 0
        %572 = vmatprep.subr.bf16.mxu0 0
        %573 = vmatpush1.bf16.msra.mxu0 0
        %574 = vmatprep.subr.bf16.mxu0 0
        %575 = vmatpush1.bf16.msra.mxu0 0
        %576 = vmatprep.subr.bf16.mxu0 0
        %577 = vmatpush1.bf16.msra.mxu0 0
        %578 = vmatprep.subr.bf16.mxu0 0
        %579 = vmatpush1.bf16.msra.mxu0 0
        %580 = vmatprep.subr.bf16.mxu0 0
        %581 = vmatpush1.bf16.msra.mxu0 0
        %582 = vmatprep.subr.bf16.mxu0 0
        %583 = vmatpush1.bf16.msra.mxu0 0
        %584 = vmatprep.mubr.bf16.mxu0 0
        %585 = vmatmul.mubr.bf16.gmra.mrb[0].mxu0 %v526
        %v586 = vpop.f32.mrb[0].mxu0
        %v587 = vadd.f32 0.0, %v586
        %v588 = vpop.f32.mrb[0].mxu0
        %v589 = vpop.f32.mrb[0].mxu0
        %v590 = vadd.f32 0.0, %v589
        %v591 = vpop.f32.mrb[0].mxu0
        %592 = vmatprep.mubr.bf16.mxu0 0
        %593 = vmatmul.mubr.bf16.gmra.mrb[0].mxu0 %v529
        %v594 = vpop.f32.mrb[0].mxu0
        %v595 = vadd.f32 0.0, %v594
        %v596 = vpop.f32.mrb[0].mxu0
        %v597 = vpop.f32.mrb[0].mxu0
        %v598 = vadd.f32 0.0, %v597
        %v599 = vpop.f32.mrb[0].mxu0
        %600 = vmatprep.mubr.bf16.mxu0 0
        %601 = vmatmul.mubr.bf16.gmra.mrb[0].mxu0 %v532
        %v602 = vpop.f32.mrb[0].mxu0
        %v603 = vadd.f32 0.0, %v602
        %v604 = vpop.f32.mrb[0].mxu0
        %v605 = vpop.f32.mrb[0].mxu0
        %v606 = vadd.f32 0.0, %v605
        %v607 = vpop.f32.mrb[0].mxu0
        %608 = vmatprep.mubr.bf16.mxu0 0
        %609 = vmatmul.mubr.bf16.gmra.mrb[0].mxu0 %v535
        %v610 = vpop.f32.mrb[0].mxu0
        %v611 = vadd.f32 0.0, %v610
        %v612 = vpop.f32.mrb[0].mxu0
        %v613 = vpop.f32.mrb[0].mxu0
        %v614 = vadd.f32 0.0, %v613
        %v615 = vpop.f32.mrb[0].mxu0
        %616 = vmatprep.mubr.bf16.mxu0 0
        %617 = vmatmul.mubr.bf16.gmra.mrb[0].mxu0 %v538
        %v618 = vpop.f32.mrb[0].mxu0
        %v619 = vadd.f32 0.0, %v618
        %v620 = vpop.f32.mrb[0].mxu0
        %v621 = vpop.f32.mrb[0].mxu0
        %v622 = vadd.f32 0.0, %v621
        %v623 = vpop.f32.mrb[0].mxu0
        %624 = vmatprep.mubr.bf16.mxu0 0
        %625 = vmatmul.mubr.bf16.gmra.mrb[0].mxu0 %v541
        %v626 = vpop.f32.mrb[0].mxu0
        %v627 = vadd.f32 0.0, %v626
        %v628 = vpop.f32.mrb[0].mxu0
        %v629 = vpop.f32.mrb[0].mxu0
        %v630 = vadd.f32 0.0, %v629
        %v631 = vpop.f32.mrb[0].mxu0
        %632 = vmatprep.mubr.bf16.mxu0 0
        %633 = vmatmul.mubr.bf16.gmra.mrb[0].mxu0 %v544
        %v634 = vpop.f32.mrb[0].mxu0
        %v635 = vadd.f32 0.0, %v634
        %v636 = vpop.f32.mrb[0].mxu0
        %v637 = vpop.f32.mrb[0].mxu0
        %v638 = vadd.f32 0.0, %v637
        %v639 = vpop.f32.mrb[0].mxu0
        %640 = vmatprep.mubr.bf16.mxu0 0
        %641 = vmatmul.mubr.bf16.gmra.mrb[0].mxu0 %v547
        %v642 = vpop.f32.mrb[0].mxu0
        %v643 = vadd.f32 0.0, %v642
        %v644 = vpop.f32.mrb[0].mxu0
        %v645 = vpop.f32.mrb[0].mxu0
        %v646 = vadd.f32 0.0, %v645
        %v647 = vpop.f32.mrb[0].mxu0
        %648 = vdwg.mxu0
        %v649 = vpack.c.bf16 %v590, %v587
        %v650 = vpack.c.bf16 %v598, %v595
        %v651 = vpack.c.bf16 %v606, %v603
        %v652 = vpack.c.bf16 %v614, %v611
        %v653 = vpack.c.bf16 %v622, %v619
        %v654 = vpack.c.bf16 %v630, %v627
        %v655 = vpack.c.bf16 %v638, %v635
        %v656 = vpack.c.bf16 %v646, %v643
        %v665 = vunpack.c.l.b16 %v649
        %v666 = vunpack.c.h.b16 %v649
        %v667 = vunpack.c.l.b16 %v650
        %v668 = vunpack.c.h.b16 %v650
        %v669 = vunpack.c.l.b16 %v651
        %v670 = vunpack.c.h.b16 %v651
        %v671 = vunpack.c.l.b16 %v652
        %v672 = vunpack.c.h.b16 %v652
        %v673 = vunpack.c.l.b16 %v653
        %v674 = vunpack.c.h.b16 %v653
        %v675 = vunpack.c.l.b16 %v654
        %v676 = vunpack.c.h.b16 %v654
        %v677 = vunpack.c.l.b16 %v655
        %v678 = vunpack.c.h.b16 %v655
        %v679 = vunpack.c.l.b16 %v656
        %v680 = vunpack.c.h.b16 %v656
        %v681 = vpack.c.b16 %v665, %v665
        %v682 = vpack.c.b16 %v666, %v666
        %v683 = vpack.c.b16 %v667, %v667
        %v684 = vpack.c.b16 %v668, %v668
        %v685 = vpack.c.b16 %v669, %v669
        %v686 = vpack.c.b16 %v670, %v670
        %v687 = vpack.c.b16 %v671, %v671
        %v688 = vpack.c.b16 %v672, %v672
        %v689 = vpack.c.b16 %v673, %v673
        %v690 = vpack.c.b16 %v674, %v674
        %v691 = vpack.c.b16 %v675, %v675
        %v692 = vpack.c.b16 %v676, %v676
        %v693 = vpack.c.b16 %v677, %v677
        %v694 = vpack.c.b16 %v678, %v678
        %v695 = vpack.c.b16 %v679, %v679
        %v696 = vpack.c.b16 %v680, %v680
        %vm713 = vcmask 519168
        %714 = vst.msk [vmem:[%s320] sm:$0xf] %vm713, %v681
        %715 = vst.msk [vmem:[%s320 + $0x4] sm:$0xf] %vm713, %v682
        %716 = vst.msk [vmem:[%s320 + $0x8] sm:$0xf] %vm713, %v683
        %717 = vst.msk [vmem:[%s320 + $0xc] sm:$0xf] %vm713, %v684
        %718 = vst.msk [vmem:[%s320 + $0x10] sm:$0xf] %vm713, %v685
        %719 = vst.msk [vmem:[%s320 + $0x14] sm:$0xf] %vm713, %v686
        %720 = vst.msk [vmem:[%s320 + $0x18] sm:$0xf] %vm713, %v687
        %721 = vst.msk [vmem:[%s320 + $0x1c] sm:$0xf] %vm713, %v688
        %722 = vst.msk [vmem:[%s320 + $0x20] sm:$0xf] %vm713, %v689
        %723 = vst.msk [vmem:[%s320 + $0x24] sm:$0xf] %vm713, %v690
        %724 = vst.msk [vmem:[%s320 + $0x28] sm:$0xf] %vm713, %v691
        %725 = vst.msk [vmem:[%s320 + $0x2c] sm:$0xf] %vm713, %v692
        %726 = vst.msk [vmem:[%s320 + $0x30] sm:$0xf] %vm713, %v693
        %727 = vst.msk [vmem:[%s320 + $0x34] sm:$0xf] %vm713, %v694
        %728 = vst.msk [vmem:[%s320 + $0x38] sm:$0xf] %vm713, %v695
        %729 = vst.msk [vmem:[%s320 + $0x3c] sm:$0xf] %vm713, %v696
        %vm730 = vcmask 523264
        %v731 = vsel %vm730, %v587, 0.0
        %v732 = vsel %vm730, %v590, 0.0
        %v733 = vadd.f32 %v731, %v732
        %v734 = vsel %vm730, %v595, 0.0
        %v735 = vadd.f32 %v733, %v734
        %v736 = vsel %vm730, %v598, 0.0
        %v737 = vadd.f32 %v735, %v736
        %v738 = vsel %vm730, %v603, 0.0
        %v739 = vadd.f32 %v737, %v738
        %v740 = vsel %vm730, %v606, 0.0
        %v741 = vadd.f32 %v739, %v740
        %v742 = vsel %vm730, %v611, 0.0
        %v743 = vadd.f32 %v741, %v742
        %v744 = vsel %vm730, %v614, 0.0
        %v745 = vadd.f32 %v743, %v744
        %v746 = vsel %vm730, %v619, 0.0
        %v747 = vadd.f32 %v745, %v746
        %v748 = vsel %vm730, %v622, 0.0
        %v749 = vadd.f32 %v747, %v748
        %v750 = vsel %vm730, %v627, 0.0
        %v751 = vadd.f32 %v749, %v750
        %v752 = vsel %vm730, %v630, 0.0
        %v753 = vadd.f32 %v751, %v752
        %v754 = vsel %vm730, %v635, 0.0
        %v755 = vadd.f32 %v753, %v754
        %v756 = vsel %vm730, %v638, 0.0
        %v757 = vadd.f32 %v755, %v756
        %v758 = vsel %vm730, %v643, 0.0
        %v759 = vadd.f32 %v757, %v758
        %v760 = vsel %vm730, %v646, 0.0
        %v761 = vadd.f32 %v759, %v760
        %v762 = vrot.slane %v761, 4
        %v763 = vadd.f32 %v761, %v762
        %v764 = vrot.slane %v763, 2
        %v765 = vadd.f32 %v763, %v764
        %v766 = vrot.slane %v765, 1
        %v767 = vadd.f32 %v765, %v766
        %v768 = vmul.f32 %v587, %v587
        %v769 = vmul.f32 %v590, %v590
        %v770 = vmul.f32 %v595, %v595
        %v771 = vmul.f32 %v598, %v598
        %v772 = vmul.f32 %v603, %v603
        %v773 = vmul.f32 %v606, %v606
        %v774 = vmul.f32 %v611, %v611
        %v775 = vmul.f32 %v614, %v614
        %v776 = vmul.f32 %v619, %v619
        %v777 = vmul.f32 %v622, %v622
        %v778 = vmul.f32 %v627, %v627
        %v779 = vmul.f32 %v630, %v630
        %v780 = vmul.f32 %v635, %v635
        %v781 = vmul.f32 %v638, %v638
        %v782 = vmul.f32 %v643, %v643
        %v783 = vmul.f32 %v646, %v646
        %v784 = vsel %vm730, %v768, 0.0
        %v785 = vsel %vm730, %v769, 0.0
        %v786 = vadd.f32 %v784, %v785
        %v787 = vsel %vm730, %v770, 0.0
        %v788 = vadd.f32 %v786, %v787
        %v789 = vsel %vm730, %v771, 0.0
        %v790 = vadd.f32 %v788, %v789
        %v791 = vsel %vm730, %v772, 0.0
        %v792 = vadd.f32 %v790, %v791
        %v793 = vsel %vm730, %v773, 0.0
        %v794 = vadd.f32 %v792, %v793
        %v795 = vsel %vm730, %v774, 0.0
        %v796 = vadd.f32 %v794, %v795
        %v797 = vsel %vm730, %v775, 0.0
        %v798 = vadd.f32 %v796, %v797
        %v799 = vsel %vm730, %v776, 0.0
        %v800 = vadd.f32 %v798, %v799
        %v801 = vsel %vm730, %v777, 0.0
        %v802 = vadd.f32 %v800, %v801
        %v803 = vsel %vm730, %v778, 0.0
        %v804 = vadd.f32 %v802, %v803
        %v805 = vsel %vm730, %v779, 0.0
        %v806 = vadd.f32 %v804, %v805
        %v807 = vsel %vm730, %v780, 0.0
        %v808 = vadd.f32 %v806, %v807
        %v809 = vsel %vm730, %v781, 0.0
        %v810 = vadd.f32 %v808, %v809
        %v811 = vsel %vm730, %v782, 0.0
        %v812 = vadd.f32 %v810, %v811
        %v813 = vsel %vm730, %v783, 0.0
        %v814 = vadd.f32 %v812, %v813
        %v815 = vrot.slane %v814, 4
        %v816 = vadd.f32 %v814, %v815
        %v817 = vrot.slane %v816, 2
        %v818 = vadd.f32 %v816, %v817
        %v819 = vrot.slane %v818, 1
        %v820 = vadd.f32 %v818, %v819
        %v821 = vsel %vm379, %v767, %v820
        %vm822 = vcmask 517120
        %823 = vst.msk [vmem:[%s326] sm:$0x3] %vm822, %v821
        %p824 = scmp.lt.s32.totalorder %s22, 1
        %s825 = scalar_select %p824, %s22, 1
        %p826 = scmp.lt.s32.totalorder %s23, 0
        %s827 = scalar_select %p826, %s23, 0
        %s828 = sadd.s32 %s827, %s825
        %s829 = smul.addr %s828, 4
        %s830 = scalar_lea.vmem %s3, %s829
        %s831 = smul.u32 16, %s23
        %p832 = scmp.lt.s32.totalorder %s22, 1
        %s833 = scalar_select %p832, %s22, 1
        %p834 = scmp.lt.s32.totalorder %s831, 15
        %s835 = scalar_select %p834, %s831, 15
        %s836 = smul.addr %s833, 16
        %s837 = sadd.s32 %s835, %s836
        %s838 = smul.addr %s837, 4
        %s839 = scalar_lea.vmem %s4, %s838
        %s840 = sadd.s32 %s22, %s23
        %p841 = scmp.lt.s32.totalorder %s840, 1
        %s842 = scalar_select %p841, %s840, 1
        %s843 = smul.addr %s842, 2
        %s844 = scalar_lea.vmem %s5, %s843
        // Predicated region
        $region37: #{base_point_net.22} parent=31 // pred_check
          %p845 = pneg %p125
        $region38: #{base_point_net.22} parent=31 // pred_check_branch
          %847 = sbr.rel (%p845) target = $region40
        $region39: #{base_point_net.22} parent=31 // pred_region
          _
        $region40: #{base_point_net.22} parent=31 // pred_fallthru
          _
        // Predicated region
        $region41: #{base_point_net.22} parent=31 // pred_check
          %p848 = pneg %p153
        $region42: #{base_point_net.22} parent=31 // pred_check_branch
          %850 = sbr.rel (%p848) target = $region44
        $region43: #{base_point_net.22} parent=31 // pred_region
          %s851 = smul.u32 16, %s23
        $region44: #{base_point_net.22} parent=31 // pred_fallthru
          _
        // Predicated region
        $region45: #{base_point_net.22} parent=31 // pred_check
          %p852 = pneg %p181
        $region46: #{base_point_net.22} parent=31 // pred_check_branch
          %854 = sbr.rel (%p852) target = $region48
        $region47: #{base_point_net.22} parent=31 // pred_region
          %s855 = sadd.s32 %s22, %s23
        $region48: #{base_point_net.22} parent=31 // pred_fallthru
          _
      $region32: #{base_point_net.22} parent=5 // pred_fallthru
        _
      %p856 = scmp.le.s32.totalorder 2, %s13
      // Predicated region
      $region49: #{base_point_net.22} parent=5 // pred_check
        %p857 = pneg %p856
      $region50: #{base_point_net.22} parent=5 // pred_check_branch
        %859 = sbr.rel (%p857) target = $region52
      $region51: #{base_point_net.22} parent=5 // pred_region
        %s860 = ssub.s32 %s13, 2
        // Predicated region
        $region53: #{base_point_net.22} parent=51 // pred_check
          %p861 = pneg %p131
        $region54: #{base_point_net.22} parent=51 // pred_check_branch
          %863 = sbr.rel (%p861) target = $region56
        $region55: #{base_point_net.22} parent=51 // pred_region
          %p864 = scmp.lt.s32.totalorder %s24, 1
          %s865 = scalar_select %p864, %s24, 1
          %p866 = scmp.lt.s32.totalorder %s25, 0
          %s867 = scalar_select %p866, %s25, 0
          %s868 = sadd.s32 %s867, %s865
          %s869 = smul.addr %s868, 4
          %s870 = scalar_lea.vmem %s3, %s869
        $region56: #{base_point_net.22} parent=51 // pred_fallthru
          _
        // Predicated region
        $region57: #{base_point_net.22} parent=51 // pred_check
          %p871 = pneg %p159
        $region58: #{base_point_net.22} parent=51 // pred_check_branch
          %873 = sbr.rel (%p871) target = $region60
        $region59: #{base_point_net.22} parent=51 // pred_region
          %s874 = smul.u32 16, %s25
          %p875 = scmp.lt.s32.totalorder %s24, 1
          %s876 = scalar_select %p875, %s24, 1
          %p877 = scmp.lt.s32.totalorder %s874, 15
          %s878 = scalar_select %p877, %s874, 15
          %s879 = smul.addr %s876, 16
          %s880 = sadd.s32 %s878, %s879
          %s881 = smul.addr %s880, 4
          %s882 = scalar_lea.vmem %s4, %s881
        $region60: #{base_point_net.22} parent=51 // pred_fallthru
          _
        // Predicated region
        $region61: #{base_point_net.22} parent=51 // pred_check
          %p883 = pneg %p187
        $region62: #{base_point_net.22} parent=51 // pred_check_branch
          %885 = sbr.rel (%p883) target = $region64
        $region63: #{base_point_net.22} parent=51 // pred_region
          %s886 = sadd.s32 %s24, %s25
          %p887 = scmp.lt.s32.totalorder %s886, 1
          %s888 = scalar_select %p887, %s886, 1
          %s889 = smul.addr %s888, 2
          %s890 = scalar_lea.vmem %s5, %s889
        $region64: #{base_point_net.22} parent=51 // pred_fallthru
          _
      $region52: #{base_point_net.22} parent=5 // pred_fallthru
        _
    $region6: #{base_point_net.22} parent=1 // loop_footer
      %s17 = sadd.s32 1, %s13
    $region7: #{base_point_net.22} parent=1 // loop_footer_branch
      %12 = sbr.rel target = $region3
    $region8: #{base_point_net.22} parent=1 // loop_exit
      _
    %891 = vsyncpa [#allocation3], 1
    %s892 = scalar_lea.sflag [#allocation3], 1
    %893 = vsyncpa %s892, 1

// kernel: base_point_net.24
$region0: #{base_point_net.24}
  #allocation0 [shape = 'u32[]', space=smem, size = 0x4, offset = 0x4, fixed_abs, tag = 'smem constant byte address 0x4 - core index']
  #allocation1 [shape = 'u32[144,128]{1,0:T(1,128)}', space=vmem, size = 0x12000, scoped, tag = 'internal scratch']
  %s0 = inlined_call_operand.vmem [shape: bf16[256,64], index: 0, kind: input, shape index: {}]
  %s1 = inlined_call_operand.vmem [shape: bf16[1,64], index: 1, kind: input, shape index: {}]
  %s2 = inlined_call_operand.vmem [shape: bf16[1,64], index: 2, kind: input, shape index: {}]
  %s3 = inlined_call_operand.vmem [shape: bf16[256,64], index: 3, kind: output, shape index: {}]
  %s4 = sld [smem:[#allocation0]]
  $region22: #{base_point_net.24} parent=0
    _
  %s6 = ssub.s32 1, %s4
  %s7 = scalar_select 0, %s6, %s4
  // Predicated region
  $region2: #{base_point_net.24} parent=0 // pred_check
    _
  $region3: #{base_point_net.24} parent=0 // pred_check_branch
    %9 = sbr.rel (0) target = $region5
  $region4: #{base_point_net.24} parent=0 // pred_region
    _
  $region5: #{base_point_net.24} parent=0 // pred_fallthru
    _
  // Predicated region
  $region6: #{base_point_net.24} parent=0 // pred_check
    _
  $region7: #{base_point_net.24} parent=0 // pred_check_branch
    %11 = sbr.rel (0) target = $region9
  $region8: #{base_point_net.24} parent=0 // pred_region
    _
  $region9: #{base_point_net.24} parent=0 // pred_fallthru
    _
  // Predicated region
  $region10: #{base_point_net.24} parent=0 // pred_check
    _
  $region11: #{base_point_net.24} parent=0 // pred_check_branch
    %13 = sbr.rel (0) target = $region13
  $region12: #{base_point_net.24} parent=0 // pred_region
    _
  $region13: #{base_point_net.24} parent=0 // pred_fallthru
    _
  %v15 = vld [vmem:[%s0] sm:$0xf]
  %v16 = vld [vmem:[%s0 + $0x4] sm:$0xf]
  %v17 = vld [vmem:[%s0 + $0x8] sm:$0xf]
  %v18 = vld [vmem:[%s0 + $0xc] sm:$0xf]
  %v19 = vld [vmem:[%s0 + $0x10] sm:$0xf]
  %v20 = vld [vmem:[%s0 + $0x14] sm:$0xf]
  %v21 = vld [vmem:[%s0 + $0x18] sm:$0xf]
  %v22 = vld [vmem:[%s0 + $0x1c] sm:$0xf]
  %v23 = vld [vmem:[%s0 + $0x20] sm:$0xf]
  %v24 = vld [vmem:[%s0 + $0x24] sm:$0xf]
  %v25 = vld [vmem:[%s0 + $0x28] sm:$0xf]
  %v26 = vld [vmem:[%s0 + $0x2c] sm:$0xf]
  %v27 = vld [vmem:[%s0 + $0x30] sm:$0xf]
  %v28 = vld [vmem:[%s0 + $0x34] sm:$0xf]
  %v29 = vld [vmem:[%s0 + $0x38] sm:$0xf]
  %v30 = vld [vmem:[%s0 + $0x3c] sm:$0xf]
  %v31 = vld [vmem:[%s0 + $0x40] sm:$0xf]
  %v32 = vld [vmem:[%s0 + $0x44] sm:$0xf]
  %v33 = vld [vmem:[%s0 + $0x48] sm:$0xf]
  %v34 = vld [vmem:[%s0 + $0x4c] sm:$0xf]
  %v35 = vld [vmem:[%s0 + $0x50] sm:$0xf]
  %v36 = vld [vmem:[%s0 + $0x54] sm:$0xf]
  %v37 = vld [vmem:[%s0 + $0x58] sm:$0xf]
  %v38 = vld [vmem:[%s0 + $0x5c] sm:$0xf]
  %v39 = vld [vmem:[%s0 + $0x60] sm:$0xf]
  %v40 = vld [vmem:[%s0 + $0x64] sm:$0xf]
  %v41 = vld [vmem:[%s0 + $0x68] sm:$0xf]
  %v42 = vld [vmem:[%s0 + $0x6c] sm:$0xf]
  %v43 = vld [vmem:[%s0 + $0x70] sm:$0xf]
  %v44 = vld [vmem:[%s0 + $0x74] sm:$0xf]
  %v45 = vld [vmem:[%s0 + $0x78] sm:$0xf]
  %v46 = vld [vmem:[%s0 + $0x7c] sm:$0xf]
  %v47 = vld [vmem:[%s1] sm:$0x1]
  %v49 = vpack.i.b16 %v47, %v47
  %v51 = vlaneseq
  %v52 = vshrl.u32 %v51, 7
  %v53 = vsub.s32 0, %v52
  %v54 = vrot.slane %v49, %v53
  %v56 = vunpack.c.l.b16 %v54
  %v57 = vpack.c.b16 %v56, %v56
  %v59 = vmul.bf16 %v15, %v57
  %v60 = vmul.bf16 %v16, %v57
  %v61 = vmul.bf16 %v17, %v57
  %v62 = vmul.bf16 %v18, %v57
  %v63 = vmul.bf16 %v19, %v57
  %v64 = vmul.bf16 %v20, %v57
  %v65 = vmul.bf16 %v21, %v57
  %v66 = vmul.bf16 %v22, %v57
  %v67 = vmul.bf16 %v23, %v57
  %v68 = vmul.bf16 %v24, %v57
  %v69 = vmul.bf16 %v25, %v57
  %v70 = vmul.bf16 %v26, %v57
  %v71 = vmul.bf16 %v27, %v57
  %v72 = vmul.bf16 %v28, %v57
  %v73 = vmul.bf16 %v29, %v57
  %v74 = vmul.bf16 %v30, %v57
  %v75 = vmul.bf16 %v31, %v57
  %v76 = vmul.bf16 %v32, %v57
  %v77 = vmul.bf16 %v33, %v57
  %v78 = vmul.bf16 %v34, %v57
  %v79 = vmul.bf16 %v35, %v57
  %v80 = vmul.bf16 %v36, %v57
  %v81 = vmul.bf16 %v37, %v57
  %v82 = vmul.bf16 %v38, %v57
  %v83 = vmul.bf16 %v39, %v57
  %v84 = vmul.bf16 %v40, %v57
  %v85 = vmul.bf16 %v41, %v57
  %v86 = vmul.bf16 %v42, %v57
  %v87 = vmul.bf16 %v43, %v57
  %v88 = vmul.bf16 %v44, %v57
  %v89 = vmul.bf16 %v45, %v57
  %v90 = vmul.bf16 %v46, %v57
  %v91 = vld [vmem:[%s2] sm:$0x1]
  %v93 = vpack.i.b16 %v91, %v91
  %v95 = vlaneseq
  %v96 = vshrl.u32 %v95, 7
  %v97 = vsub.s32 0, %v96
  %v98 = vrot.slane %v93, %v97
  %v100 = vunpack.c.l.b16 %v98
  %v101 = vpack.c.b16 %v100, %v100
  %v103 = vadd.bf16 %v59, %v101
  %v104 = vadd.bf16 %v60, %v101
  %v105 = vadd.bf16 %v61, %v101
  %v106 = vadd.bf16 %v62, %v101
  %v107 = vadd.bf16 %v63, %v101
  %v108 = vadd.bf16 %v64, %v101
  %v109 = vadd.bf16 %v65, %v101
  %v110 = vadd.bf16 %v66, %v101
  %v111 = vadd.bf16 %v67, %v101
  %v112 = vadd.bf16 %v68, %v101
  %v113 = vadd.bf16 %v69, %v101
  %v114 = vadd.bf16 %v70, %v101
  %v115 = vadd.bf16 %v71, %v101
  %v116 = vadd.bf16 %v72, %v101
  %v117 = vadd.bf16 %v73, %v101
  %v118 = vadd.bf16 %v74, %v101
  %v119 = vadd.bf16 %v75, %v101
  %v120 = vadd.bf16 %v76, %v101
  %v121 = vadd.bf16 %v77, %v101
  %v122 = vadd.bf16 %v78, %v101
  %v123 = vadd.bf16 %v79, %v101
  %v124 = vadd.bf16 %v80, %v101
  %v125 = vadd.bf16 %v81, %v101
  %v126 = vadd.bf16 %v82, %v101
  %v127 = vadd.bf16 %v83, %v101
  %v128 = vadd.bf16 %v84, %v101
  %v129 = vadd.bf16 %v85, %v101
  %v130 = vadd.bf16 %v86, %v101
  %v131 = vadd.bf16 %v87, %v101
  %v132 = vadd.bf16 %v88, %v101
  %v133 = vadd.bf16 %v89, %v101
  %v134 = vadd.bf16 %v90, %v101
  %v135 = vmax.bf16 %v103, 0
  %v136 = vmax.bf16 %v104, 0
  %v137 = vmax.bf16 %v105, 0
  %v138 = vmax.bf16 %v106, 0
  %v139 = vmax.bf16 %v107, 0
  %v140 = vmax.bf16 %v108, 0
  %v141 = vmax.bf16 %v109, 0
  %v142 = vmax.bf16 %v110, 0
  %v143 = vmax.bf16 %v111, 0
  %v144 = vmax.bf16 %v112, 0
  %v145 = vmax.bf16 %v113, 0
  %v146 = vmax.bf16 %v114, 0
  %v147 = vmax.bf16 %v115, 0
  %v148 = vmax.bf16 %v116, 0
  %v149 = vmax.bf16 %v117, 0
  %v150 = vmax.bf16 %v118, 0
  %v151 = vmax.bf16 %v119, 0
  %v152 = vmax.bf16 %v120, 0
  %v153 = vmax.bf16 %v121, 0
  %v154 = vmax.bf16 %v122, 0
  %v155 = vmax.bf16 %v123, 0
  %v156 = vmax.bf16 %v124, 0
  %v157 = vmax.bf16 %v125, 0
  %v158 = vmax.bf16 %v126, 0
  %v159 = vmax.bf16 %v127, 0
  %v160 = vmax.bf16 %v128, 0
  %v161 = vmax.bf16 %v129, 0
  %v162 = vmax.bf16 %v130, 0
  %v163 = vmax.bf16 %v131, 0
  %v164 = vmax.bf16 %v132, 0
  %v165 = vmax.bf16 %v133, 0
  %v166 = vmax.bf16 %v134, 0
  %vm167 = vcmask 519168
  %168 = vst.msk [vmem:[%s3] sm:$0xf] %vm167, %v135
  %169 = vst.msk [vmem:[%s3 + $0x4] sm:$0xf] %vm167, %v136
  %170 = vst.msk [vmem:[%s3 + $0x8] sm:$0xf] %vm167, %v137
  %171 = vst.msk [vmem:[%s3 + $0xc] sm:$0xf] %vm167, %v138
  %172 = vst.msk [vmem:[%s3 + $0x10] sm:$0xf] %vm167, %v139
  %173 = vst.msk [vmem:[%s3 + $0x14] sm:$0xf] %vm167, %v140
  %174 = vst.msk [vmem:[%s3 + $0x18] sm:$0xf] %vm167, %v141
  %175 = vst.msk [vmem:[%s3 + $0x1c] sm:$0xf] %vm167, %v142
  %176 = vst.msk [vmem:[%s3 + $0x20] sm:$0xf] %vm167, %v143
  %177 = vst.msk [vmem:[%s3 + $0x24] sm:$0xf] %vm167, %v144
  %178 = vst.msk [vmem:[%s3 + $0x28] sm:$0xf] %vm167, %v145
  %179 = vst.msk [vmem:[%s3 + $0x2c] sm:$0xf] %vm167, %v146
  %180 = vst.msk [vmem:[%s3 + $0x30] sm:$0xf] %vm167, %v147
  %181 = vst.msk [vmem:[%s3 + $0x34] sm:$0xf] %vm167, %v148
  %182 = vst.msk [vmem:[%s3 + $0x38] sm:$0xf] %vm167, %v149
  %183 = vst.msk [vmem:[%s3 + $0x3c] sm:$0xf] %vm167, %v150
  %184 = vst.msk [vmem:[%s3 + $0x40] sm:$0xf] %vm167, %v151
  %185 = vst.msk [vmem:[%s3 + $0x44] sm:$0xf] %vm167, %v152
  %186 = vst.msk [vmem:[%s3 + $0x48] sm:$0xf] %vm167, %v153
  %187 = vst.msk [vmem:[%s3 + $0x4c] sm:$0xf] %vm167, %v154
  %188 = vst.msk [vmem:[%s3 + $0x50] sm:$0xf] %vm167, %v155
  %189 = vst.msk [vmem:[%s3 + $0x54] sm:$0xf] %vm167, %v156
  %190 = vst.msk [vmem:[%s3 + $0x58] sm:$0xf] %vm167, %v157
  %191 = vst.msk [vmem:[%s3 + $0x5c] sm:$0xf] %vm167, %v158
  %192 = vst.msk [vmem:[%s3 + $0x60] sm:$0xf] %vm167, %v159
  %193 = vst.msk [vmem:[%s3 + $0x64] sm:$0xf] %vm167, %v160
  %194 = vst.msk [vmem:[%s3 + $0x68] sm:$0xf] %vm167, %v161
  %195 = vst.msk [vmem:[%s3 + $0x6c] sm:$0xf] %vm167, %v162
  %196 = vst.msk [vmem:[%s3 + $0x70] sm:$0xf] %vm167, %v163
  %197 = vst.msk [vmem:[%s3 + $0x74] sm:$0xf] %vm167, %v164
  %198 = vst.msk [vmem:[%s3 + $0x78] sm:$0xf] %vm167, %v165
  %199 = vst.msk [vmem:[%s3 + $0x7c] sm:$0xf] %vm167, %v166
  // Predicated region
  $region14: #{base_point_net.24} parent=0 // pred_check
    _
  $region15: #{base_point_net.24} parent=0 // pred_check_branch
    %201 = sbr.rel (0) target = $region17
  $region16: #{base_point_net.24} parent=0 // pred_region
    _
  $region17: #{base_point_net.24} parent=0 // pred_fallthru
    _
  // Predicated region
  $region18: #{base_point_net.24} parent=0 // pred_check
    _
  $region19: #{base_point_net.24} parent=0 // pred_check_branch
    %203 = sbr.rel (0) target = $region21
  $region20: #{base_point_net.24} parent=0 // pred_region
    _
  $region21: #{base_point_net.24} parent=0 // pred_fallthru
    _

// kernel: base_point_net.23
$region0: #{base_point_net.23}
  #allocation0 [shape = 'u32[]', space=smem, size = 0x4, offset = 0x4, fixed_abs, tag = 'smem constant byte address 0x4 - core index']
  #allocation1 [shape = 'u32[144,128]{1,0:T(1,128)}', space=vmem, size = 0x12000, scoped, tag = 'internal scratch']
  %s0 = inlined_call_operand.vmem [shape: bf16[256,64], index: 0, kind: input, shape index: {}]
  %s1 = inlined_call_operand.vmem [shape: bf16[1,64], index: 1, kind: input, shape index: {}]
  %s2 = inlined_call_operand.vmem [shape: bf16[1,64], index: 2, kind: input, shape index: {}]
  %s3 = inlined_call_operand.hbm [shape: bf16[64,64], index: 3, kind: input, shape index: {}]
  %s4 = inlined_call_operand.vmem [shape: bf16[256,64], index: 4, kind: output, shape index: {0}]
  %s5 = inlined_call_operand.vmem [shape: f32[1,2,64], index: 5, kind: output, shape index: {1}]
  %6 = xla_tuple %s4, %s5
  %s7 = sld [smem:[#allocation0]]
  $region38: #{base_point_net.23} parent=0
    _
  %s9 = ssub.s32 1, %s7
  %s10 = scalar_select 0, %s9, %s7
  $region1: #{base_point_net.23} parent=0
    #allocation2 [shape = 'u8[16384]{0}', space=vmem, size = 0x4000, scoped, tag = 'input window, operand 3, single buffered']
    #allocation3 [shape = 's32[1]{0}', space=sflag, size = 0x4, scoped, tag = 'scoped memory for base_point_net.23']
    %11 = vsyncpa [#allocation3], 0
    // Predicated region
    $region2: #{base_point_net.23} parent=1 // pred_check
      _
    $region3: #{base_point_net.23} parent=1 // pred_check_branch
      %13 = sbr.rel (0) target = $region5
    $region4: #{base_point_net.23} parent=1 // pred_region
      _
    $region5: #{base_point_net.23} parent=1 // pred_fallthru
      _
    // Predicated region
    $region6: #{base_point_net.23} parent=1 // pred_check
      _
    $region7: #{base_point_net.23} parent=1 // pred_check_branch
      %15 = sbr.rel (0) target = $region9
    $region8: #{base_point_net.23} parent=1 // pred_region
      _
    $region9: #{base_point_net.23} parent=1 // pred_fallthru
      _
    // Predicated region
    $region10: #{base_point_net.23} parent=1 // pred_check
      _
    $region11: #{base_point_net.23} parent=1 // pred_check_branch
      %17 = sbr.rel (0) target = $region13
    $region12: #{base_point_net.23} parent=1 // pred_region
      _
    $region13: #{base_point_net.23} parent=1 // pred_fallthru
      _
    // Predicated region
    $region14: #{base_point_net.23} parent=1 // pred_check
      _
    $region15: #{base_point_net.23} parent=1 // pred_check_branch
      %19 = sbr.rel (0) target = $region17
    $region16: #{base_point_net.23} parent=1 // pred_region
      %s21 = ssub.s32 512, 512
      %22 = vsyncadd [#allocation3], %s21
      %s23 = sshll.u32 [#allocation2], 4
      %s24 = int_to_ptr.vmem [resolvable:$true] %s23
      %29 = dma.hbm_to_vmem [thread:$0]  %s3, 512, %s24, [#allocation3], 64, 64, 4
    $region17: #{base_point_net.23} parent=1 // pred_fallthru
      _
    // Predicated region
    $region18: #{base_point_net.23} parent=1 // pred_check
      _
    $region19: #{base_point_net.23} parent=1 // pred_check_branch
      %31 = sbr.rel (0) target = $region21
    $region20: #{base_point_net.23} parent=1 // pred_region
      %32 = dma.done [#allocation3], 512
    $region21: #{base_point_net.23} parent=1 // pred_fallthru
      _
    %v34 = vld [vmem:[%s0] sm:$0xf]
    %v35 = vld [vmem:[%s0 + $0x4] sm:$0xf]
    %v36 = vld [vmem:[%s0 + $0x8] sm:$0xf]
    %v37 = vld [vmem:[%s0 + $0xc] sm:$0xf]
    %v38 = vld [vmem:[%s0 + $0x10] sm:$0xf]
    %v39 = vld [vmem:[%s0 + $0x14] sm:$0xf]
    %v40 = vld [vmem:[%s0 + $0x18] sm:$0xf]
    %v41 = vld [vmem:[%s0 + $0x1c] sm:$0xf]
    %v42 = vld [vmem:[%s0 + $0x20] sm:$0xf]
    %v43 = vld [vmem:[%s0 + $0x24] sm:$0xf]
    %v44 = vld [vmem:[%s0 + $0x28] sm:$0xf]
    %v45 = vld [vmem:[%s0 + $0x2c] sm:$0xf]
    %v46 = vld [vmem:[%s0 + $0x30] sm:$0xf]
    %v47 = vld [vmem:[%s0 + $0x34] sm:$0xf]
    %v48 = vld [vmem:[%s0 + $0x38] sm:$0xf]
    %v49 = vld [vmem:[%s0 + $0x3c] sm:$0xf]
    %v50 = vld [vmem:[%s0 + $0x40] sm:$0xf]
    %v51 = vld [vmem:[%s0 + $0x44] sm:$0xf]
    %v52 = vld [vmem:[%s0 + $0x48] sm:$0xf]
    %v53 = vld [vmem:[%s0 + $0x4c] sm:$0xf]
    %v54 = vld [vmem:[%s0 + $0x50] sm:$0xf]
    %v55 = vld [vmem:[%s0 + $0x54] sm:$0xf]
    %v56 = vld [vmem:[%s0 + $0x58] sm:$0xf]
    %v57 = vld [vmem:[%s0 + $0x5c] sm:$0xf]
    %v58 = vld [vmem:[%s0 + $0x60] sm:$0xf]
    %v59 = vld [vmem:[%s0 + $0x64] sm:$0xf]
    %v60 = vld [vmem:[%s0 + $0x68] sm:$0xf]
    %v61 = vld [vmem:[%s0 + $0x6c] sm:$0xf]
    %v62 = vld [vmem:[%s0 + $0x70] sm:$0xf]
    %v63 = vld [vmem:[%s0 + $0x74] sm:$0xf]
    %v64 = vld [vmem:[%s0 + $0x78] sm:$0xf]
    %v65 = vld [vmem:[%s0 + $0x7c] sm:$0xf]
    %v66 = vld [vmem:[%s1] sm:$0x1]
    %v68 = vpack.i.b16 %v66, %v66
    %v70 = vlaneseq
    %v71 = vshrl.u32 %v70, 7
    %v72 = vsub.s32 0, %v71
    %v73 = vrot.slane %v68, %v72
    %v75 = vunpack.c.l.b16 %v73
    %v76 = vpack.c.b16 %v75, %v75
    %v78 = vmul.bf16 %v34, %v76
    %v79 = vmul.bf16 %v35, %v76
    %v80 = vmul.bf16 %v36, %v76
    %v81 = vmul.bf16 %v37, %v76
    %v82 = vmul.bf16 %v38, %v76
    %v83 = vmul.bf16 %v39, %v76
    %v84 = vmul.bf16 %v40, %v76
    %v85 = vmul.bf16 %v41, %v76
    %v86 = vmul.bf16 %v42, %v76
    %v87 = vmul.bf16 %v43, %v76
    %v88 = vmul.bf16 %v44, %v76
    %v89 = vmul.bf16 %v45, %v76
    %v90 = vmul.bf16 %v46, %v76
    %v91 = vmul.bf16 %v47, %v76
    %v92 = vmul.bf16 %v48, %v76
    %v93 = vmul.bf16 %v49, %v76
    %v94 = vmul.bf16 %v50, %v76
    %v95 = vmul.bf16 %v51, %v76
    %v96 = vmul.bf16 %v52, %v76
    %v97 = vmul.bf16 %v53, %v76
    %v98 = vmul.bf16 %v54, %v76
    %v99 = vmul.bf16 %v55, %v76
    %v100 = vmul.bf16 %v56, %v76
    %v101 = vmul.bf16 %v57, %v76
    %v102 = vmul.bf16 %v58, %v76
    %v103 = vmul.bf16 %v59, %v76
    %v104 = vmul.bf16 %v60, %v76
    %v105 = vmul.bf16 %v61, %v76
    %v106 = vmul.bf16 %v62, %v76
    %v107 = vmul.bf16 %v63, %v76
    %v108 = vmul.bf16 %v64, %v76
    %v109 = vmul.bf16 %v65, %v76
    %v110 = vld [vmem:[%s2] sm:$0x1]
    %v112 = vpack.i.b16 %v110, %v110
    %v114 = vlaneseq
    %v115 = vshrl.u32 %v114, 7
    %v116 = vsub.s32 0, %v115
    %v117 = vrot.slane %v112, %v116
    %v119 = vunpack.c.l.b16 %v117
    %v120 = vpack.c.b16 %v119, %v119
    %v122 = vadd.bf16 %v78, %v120
    %v123 = vadd.bf16 %v79, %v120
    %v124 = vadd.bf16 %v80, %v120
    %v125 = vadd.bf16 %v81, %v120
    %v126 = vadd.bf16 %v82, %v120
    %v127 = vadd.bf16 %v83, %v120
    %v128 = vadd.bf16 %v84, %v120
    %v129 = vadd.bf16 %v85, %v120
    %v130 = vadd.bf16 %v86, %v120
    %v131 = vadd.bf16 %v87, %v120
    %v132 = vadd.bf16 %v88, %v120
    %v133 = vadd.bf16 %v89, %v120
    %v134 = vadd.bf16 %v90, %v120
    %v135 = vadd.bf16 %v91, %v120
    %v136 = vadd.bf16 %v92, %v120
    %v137 = vadd.bf16 %v93, %v120
    %v138 = vadd.bf16 %v94, %v120
    %v139 = vadd.bf16 %v95, %v120
    %v140 = vadd.bf16 %v96, %v120
    %v141 = vadd.bf16 %v97, %v120
    %v142 = vadd.bf16 %v98, %v120
    %v143 = vadd.bf16 %v99, %v120
    %v144 = vadd.bf16 %v100, %v120
    %v145 = vadd.bf16 %v101, %v120
    %v146 = vadd.bf16 %v102, %v120
    %v147 = vadd.bf16 %v103, %v120
    %v148 = vadd.bf16 %v104, %v120
    %v149 = vadd.bf16 %v105, %v120
    %v150 = vadd.bf16 %v106, %v120
    %v151 = vadd.bf16 %v107, %v120
    %v152 = vadd.bf16 %v108, %v120
    %v153 = vadd.bf16 %v109, %v120
    %v154 = vmax.bf16 %v122, 0
    %v155 = vmax.bf16 %v123, 0
    %v156 = vmax.bf16 %v124, 0
    %v157 = vmax.bf16 %v125, 0
    %v158 = vmax.bf16 %v126, 0
    %v159 = vmax.bf16 %v127, 0
    %v160 = vmax.bf16 %v128, 0
    %v161 = vmax.bf16 %v129, 0
    %v162 = vmax.bf16 %v130, 0
    %v163 = vmax.bf16 %v131, 0
    %v164 = vmax.bf16 %v132, 0
    %v165 = vmax.bf16 %v133, 0
    %v166 = vmax.bf16 %v134, 0
    %v167 = vmax.bf16 %v135, 0
    %v168 = vmax.bf16 %v136, 0
    %v169 = vmax.bf16 %v137, 0
    %v170 = vmax.bf16 %v138, 0
    %v171 = vmax.bf16 %v139, 0
    %v172 = vmax.bf16 %v140, 0
    %v173 = vmax.bf16 %v141, 0
    %v174 = vmax.bf16 %v142, 0
    %v175 = vmax.bf16 %v143, 0
    %v176 = vmax.bf16 %v144, 0
    %v177 = vmax.bf16 %v145, 0
    %v178 = vmax.bf16 %v146, 0
    %v179 = vmax.bf16 %v147, 0
    %v180 = vmax.bf16 %v148, 0
    %v181 = vmax.bf16 %v149, 0
    %v182 = vmax.bf16 %v150, 0
    %v183 = vmax.bf16 %v151, 0
    %v184 = vmax.bf16 %v152, 0
    %v185 = vmax.bf16 %v153, 0
    %v186 = vld [vmem:[#allocation2] sm:$0xf]
    %v187 = vld [vmem:[#allocation2 + $0x4] sm:$0xf]
    %v188 = vld [vmem:[#allocation2 + $0x8] sm:$0xf]
    %v189 = vld [vmem:[#allocation2 + $0xc] sm:$0xf]
    %v190 = vld [vmem:[#allocation2 + $0x10] sm:$0xf]
    %v191 = vld [vmem:[#allocation2 + $0x14] sm:$0xf]
    %v192 = vld [vmem:[#allocation2 + $0x18] sm:$0xf]
    %v193 = vld [vmem:[#allocation2 + $0x1c] sm:$0xf]
    %v226 = vunpack.c.l.b16 %v154
    %v227 = vunpack.c.l.b16 %v155
    %v228 = vunpack.c.l.b16 %v156
    %v229 = vunpack.c.l.b16 %v157
    %v230 = vunpack.c.l.b16 %v158
    %v231 = vunpack.c.l.b16 %v159
    %v232 = vunpack.c.l.b16 %v160
    %v233 = vunpack.c.l.b16 %v161
    %v234 = vunpack.c.l.b16 %v162
    %v235 = vunpack.c.l.b16 %v163
    %v236 = vunpack.c.l.b16 %v164
    %v237 = vunpack.c.l.b16 %v165
    %v238 = vunpack.c.l.b16 %v166
    %v239 = vunpack.c.l.b16 %v167
    %v240 = vunpack.c.l.b16 %v168
    %v241 = vunpack.c.l.b16 %v169
    %v242 = vunpack.c.l.b16 %v170
    %v243 = vunpack.c.l.b16 %v171
    %v244 = vunpack.c.l.b16 %v172
    %v245 = vunpack.c.l.b16 %v173
    %v246 = vunpack.c.l.b16 %v174
    %v247 = vunpack.c.l.b16 %v175
    %v248 = vunpack.c.l.b16 %v176
    %v249 = vunpack.c.l.b16 %v177
    %v250 = vunpack.c.l.b16 %v178
    %v251 = vunpack.c.l.b16 %v179
    %v252 = vunpack.c.l.b16 %v180
    %v253 = vunpack.c.l.b16 %v181
    %v254 = vunpack.c.l.b16 %v182
    %v255 = vunpack.c.l.b16 %v183
    %v256 = vunpack.c.l.b16 %v184
    %v257 = vunpack.c.l.b16 %v185
    %v258 = vpack.c.b16 %v227, %v226
    %v259 = vpack.c.b16 %v229, %v228
    %v260 = vpack.c.b16 %v231, %v230
    %v261 = vpack.c.b16 %v233, %v232
    %v262 = vpack.c.b16 %v235, %v234
    %v263 = vpack.c.b16 %v237, %v236
    %v264 = vpack.c.b16 %v239, %v238
    %v265 = vpack.c.b16 %v241, %v240
    %v266 = vpack.c.b16 %v243, %v242
    %v267 = vpack.c.b16 %v245, %v244
    %v268 = vpack.c.b16 %v247, %v246
    %v269 = vpack.c.b16 %v249, %v248
    %v270 = vpack.c.b16 %v251, %v250
    %v271 = vpack.c.b16 %v253, %v252
    %v272 = vpack.c.b16 %v255, %v254
    %v273 = vpack.c.b16 %v257, %v256
    %v282 = vunpack.c.l.b16 %v186
    %v283 = vunpack.c.l.b16 %v187
    %v284 = vunpack.c.l.b16 %v188
    %v285 = vunpack.c.l.b16 %v189
    %v286 = vunpack.c.l.b16 %v190
    %v287 = vunpack.c.l.b16 %v191
    %v288 = vunpack.c.l.b16 %v192
    %v289 = vunpack.c.l.b16 %v193
    %v290 = vpack.c.b16 %v283, %v282
    %v291 = vpack.c.b16 %v285, %v284
    %v292 = vpack.c.b16 %v287, %v286
    %v293 = vpack.c.b16 %v289, %v288
    %vm298 = vcmask 523264
    %v300 = vsel %vm298, %v258, 0
    %v303 = vsel %vm298, %v259, 0
    %v306 = vsel %vm298, %v260, 0
    %v309 = vsel %vm298, %v261, 0
    %v312 = vsel %vm298, %v262, 0
    %v315 = vsel %vm298, %v263, 0
    %v318 = vsel %vm298, %v264, 0
    %v321 = vsel %vm298, %v265, 0
    %v324 = vsel %vm298, %v266, 0
    %v327 = vsel %vm298, %v267, 0
    %v330 = vsel %vm298, %v268, 0
    %v333 = vsel %vm298, %v269, 0
    %v336 = vsel %vm298, %v270, 0
    %v339 = vsel %vm298, %v271, 0
    %v342 = vsel %vm298, %v272, 0
    %v345 = vsel %vm298, %v273, 0
    %347 = vmatprep.subr.bf16.mxu0 0
    %348 = vmatpush1.bf16.msra.mxu0 %v290
    %349 = vmatprep.subr.bf16.mxu0 0
    %350 = vmatpush1.bf16.msra.mxu0 %v291
    %351 = vmatprep.subr.bf16.mxu0 0
    %352 = vmatpush1.bf16.msra.mxu0 %v292
    %353 = vmatprep.subr.bf16.mxu0 0
    %354 = vmatpush1.bf16.msra.mxu0 %v293
    %355 = vmatprep.subr.bf16.mxu0 0
    %356 = vmatpush1.bf16.msra.mxu0 0
    %357 = vmatprep.subr.bf16.mxu0 0
    %358 = vmatpush1.bf16.msra.mxu0 0
    %359 = vmatprep.subr.bf16.mxu0 0
    %360 = vmatpush1.bf16.msra.mxu0 0
    %361 = vmatprep.subr.bf16.mxu0 0
    %362 = vmatpush1.bf16.msra.mxu0 0
    %363 = vmatprep.subr.bf16.mxu0 0
    %364 = vmatpush1.bf16.msra.mxu0 0
    %365 = vmatprep.subr.bf16.mxu0 0
    %366 = vmatpush1.bf16.msra.mxu0 0
    %367 = vmatprep.subr.bf16.mxu0 0
    %368 = vmatpush1.bf16.msra.mxu0 0
    %369 = vmatprep.subr.bf16.mxu0 0
    %370 = vmatpush1.bf16.msra.mxu0 0
    %371 = vmatprep.subr.bf16.mxu0 0
    %372 = vmatpush1.bf16.msra.mxu0 0
    %373 = vmatprep.subr.bf16.mxu0 0
    %374 = vmatpush1.bf16.msra.mxu0 0
    %375 = vmatprep.subr.bf16.mxu0 0
    %376 = vmatpush1.bf16.msra.mxu0 0
    %377 = vmatprep.subr.bf16.mxu0 0
    %378 = vmatpush1.bf16.msra.mxu0 0
    %379 = vmatprep.mubr.bf16.mxu0 0
    %380 = vmatmul.mubr.bf16.gmra.mrb[0].mxu0 %v300
    %v381 = vpop.f32.mrb[0].mxu0
    %v382 = vadd.f32 0.0, %v381
    %v383 = vpop.f32.mrb[0].mxu0
    %v384 = vpop.f32.mrb[0].mxu0
    %v385 = vadd.f32 0.0, %v384
    %v386 = vpop.f32.mrb[0].mxu0
    %387 = vmatprep.mubr.bf16.mxu0 0
    %388 = vmatmul.mubr.bf16.gmra.mrb[0].mxu0 %v303
    %v389 = vpop.f32.mrb[0].mxu0
    %v390 = vadd.f32 0.0, %v389
    %v391 = vpop.f32.mrb[0].mxu0
    %v392 = vpop.f32.mrb[0].mxu0
    %v393 = vadd.f32 0.0, %v392
    %v394 = vpop.f32.mrb[0].mxu0
    %395 = vmatprep.mubr.bf16.mxu0 0
    %396 = vmatmul.mubr.bf16.gmra.mrb[0].mxu0 %v306
    %v397 = vpop.f32.mrb[0].mxu0
    %v398 = vadd.f32 0.0, %v397
    %v399 = vpop.f32.mrb[0].mxu0
    %v400 = vpop.f32.mrb[0].mxu0
    %v401 = vadd.f32 0.0, %v400
    %v402 = vpop.f32.mrb[0].mxu0
    %403 = vmatprep.mubr.bf16.mxu0 0
    %404 = vmatmul.mubr.bf16.gmra.mrb[0].mxu0 %v309
    %v405 = vpop.f32.mrb[0].mxu0
    %v406 = vadd.f32 0.0, %v405
    %v407 = vpop.f32.mrb[0].mxu0
    %v408 = vpop.f32.mrb[0].mxu0
    %v409 = vadd.f32 0.0, %v408
    %v410 = vpop.f32.mrb[0].mxu0
    %411 = vmatprep.mubr.bf16.mxu0 0
    %412 = vmatmul.mubr.bf16.gmra.mrb[0].mxu0 %v312
    %v413 = vpop.f32.mrb[0].mxu0
    %v414 = vadd.f32 0.0, %v413
    %v415 = vpop.f32.mrb[0].mxu0
    %v416 = vpop.f32.mrb[0].mxu0
    %v417 = vadd.f32 0.0, %v416
    %v418 = vpop.f32.mrb[0].mxu0
    %419 = vmatprep.mubr.bf16.mxu0 0
    %420 = vmatmul.mubr.bf16.gmra.mrb[0].mxu0 %v315
    %v421 = vpop.f32.mrb[0].mxu0
    %v422 = vadd.f32 0.0, %v421
    %v423 = vpop.f32.mrb[0].mxu0
    %v424 = vpop.f32.mrb[0].mxu0
    %v425 = vadd.f32 0.0, %v424
    %v426 = vpop.f32.mrb[0].mxu0
    %427 = vmatprep.mubr.bf16.mxu0 0
    %428 = vmatmul.mubr.bf16.gmra.mrb[0].mxu0 %v318
    %v429 = vpop.f32.mrb[0].mxu0
    %v430 = vadd.f32 0.0, %v429
    %v431 = vpop.f32.mrb[0].mxu0
    %v432 = vpop.f32.mrb[0].mxu0
    %v433 = vadd.f32 0.0, %v432
    %v434 = vpop.f32.mrb[0].mxu0
    %435 = vmatprep.mubr.bf16.mxu0 0
    %436 = vmatmul.mubr.bf16.gmra.mrb[0].mxu0 %v321
    %v437 = vpop.f32.mrb[0].mxu0
    %v438 = vadd.f32 0.0, %v437
    %v439 = vpop.f32.mrb[0].mxu0
    %v440 = vpop.f32.mrb[0].mxu0
    %v441 = vadd.f32 0.0, %v440
    %v442 = vpop.f32.mrb[0].mxu0
    %443 = vmatprep.mubr.bf16.mxu0 0
    %444 = vmatmul.mubr.bf16.gmra.mrb[0].mxu0 %v324
    %v445 = vpop.f32.mrb[0].mxu0
    %v446 = vadd.f32 0.0, %v445
    %v447 = vpop.f32.mrb[0].mxu0
    %v448 = vpop.f32.mrb[0].mxu0
    %v449 = vadd.f32 0.0, %v448
    %v450 = vpop.f32.mrb[0].mxu0
    %451 = vmatprep.mubr.bf16.mxu0 0
    %452 = vmatmul.mubr.bf16.gmra.mrb[0].mxu0 %v327
    %v453 = vpop.f32.mrb[0].mxu0
    %v454 = vadd.f32 0.0, %v453
    %v455 = vpop.f32.mrb[0].mxu0
    %v456 = vpop.f32.mrb[0].mxu0
    %v457 = vadd.f32 0.0, %v456
    %v458 = vpop.f32.mrb[0].mxu0
    %459 = vmatprep.mubr.bf16.mxu0 0
    %460 = vmatmul.mubr.bf16.gmra.mrb[0].mxu0 %v330
    %v461 = vpop.f32.mrb[0].mxu0
    %v462 = vadd.f32 0.0, %v461
    %v463 = vpop.f32.mrb[0].mxu0
    %v464 = vpop.f32.mrb[0].mxu0
    %v465 = vadd.f32 0.0, %v464
    %v466 = vpop.f32.mrb[0].mxu0
    %467 = vmatprep.mubr.bf16.mxu0 0
    %468 = vmatmul.mubr.bf16.gmra.mrb[0].mxu0 %v333
    %v469 = vpop.f32.mrb[0].mxu0
    %v470 = vadd.f32 0.0, %v469
    %v471 = vpop.f32.mrb[0].mxu0
    %v472 = vpop.f32.mrb[0].mxu0
    %v473 = vadd.f32 0.0, %v472
    %v474 = vpop.f32.mrb[0].mxu0
    %475 = vmatprep.mubr.bf16.mxu0 0
    %476 = vmatmul.mubr.bf16.gmra.mrb[0].mxu0 %v336
    %v477 = vpop.f32.mrb[0].mxu0
    %v478 = vadd.f32 0.0, %v477
    %v479 = vpop.f32.mrb[0].mxu0
    %v480 = vpop.f32.mrb[0].mxu0
    %v481 = vadd.f32 0.0, %v480
    %v482 = vpop.f32.mrb[0].mxu0
    %483 = vmatprep.mubr.bf16.mxu0 0
    %484 = vmatmul.mubr.bf16.gmra.mrb[0].mxu0 %v339
    %v485 = vpop.f32.mrb[0].mxu0
    %v486 = vadd.f32 0.0, %v485
    %v487 = vpop.f32.mrb[0].mxu0
    %v488 = vpop.f32.mrb[0].mxu0
    %v489 = vadd.f32 0.0, %v488
    %v490 = vpop.f32.mrb[0].mxu0
    %491 = vmatprep.mubr.bf16.mxu0 0
    %492 = vmatmul.mubr.bf16.gmra.mrb[0].mxu0 %v342
    %v493 = vpop.f32.mrb[0].mxu0
    %v494 = vadd.f32 0.0, %v493
    %v495 = vpop.f32.mrb[0].mxu0
    %v496 = vpop.f32.mrb[0].mxu0
    %v497 = vadd.f32 0.0, %v496
    %v498 = vpop.f32.mrb[0].mxu0
    %499 = vmatprep.mubr.bf16.mxu0 0
    %500 = vmatmul.mubr.bf16.gmra.mrb[0].mxu0 %v345
    %v501 = vpop.f32.mrb[0].mxu0
    %v502 = vadd.f32 0.0, %v501
    %v503 = vpop.f32.mrb[0].mxu0
    %v504 = vpop.f32.mrb[0].mxu0
    %v505 = vadd.f32 0.0, %v504
    %v506 = vpop.f32.mrb[0].mxu0
    %507 = vdwg.mxu0
    %v508 = vpack.c.bf16 %v385, %v382
    %v509 = vpack.c.bf16 %v393, %v390
    %v510 = vpack.c.bf16 %v401, %v398
    %v511 = vpack.c.bf16 %v409, %v406
    %v512 = vpack.c.bf16 %v417, %v414
    %v513 = vpack.c.bf16 %v425, %v422
    %v514 = vpack.c.bf16 %v433, %v430
    %v515 = vpack.c.bf16 %v441, %v438
    %v516 = vpack.c.bf16 %v449, %v446
    %v517 = vpack.c.bf16 %v457, %v454
    %v518 = vpack.c.bf16 %v465, %v462
    %v519 = vpack.c.bf16 %v473, %v470
    %v520 = vpack.c.bf16 %v481, %v478
    %v521 = vpack.c.bf16 %v489, %v486
    %v522 = vpack.c.bf16 %v497, %v494
    %v523 = vpack.c.bf16 %v505, %v502
    %v540 = vunpack.c.l.b16 %v508
    %v541 = vunpack.c.h.b16 %v508
    %v542 = vunpack.c.l.b16 %v509
    %v543 = vunpack.c.h.b16 %v509
    %v544 = vunpack.c.l.b16 %v510
    %v545 = vunpack.c.h.b16 %v510
    %v546 = vunpack.c.l.b16 %v511
    %v547 = vunpack.c.h.b16 %v511
    %v548 = vunpack.c.l.b16 %v512
    %v549 = vunpack.c.h.b16 %v512
    %v550 = vunpack.c.l.b16 %v513
    %v551 = vunpack.c.h.b16 %v513
    %v552 = vunpack.c.l.b16 %v514
    %v553 = vunpack.c.h.b16 %v514
    %v554 = vunpack.c.l.b16 %v515
    %v555 = vunpack.c.h.b16 %v515
    %v556 = vunpack.c.l.b16 %v516
    %v557 = vunpack.c.h.b16 %v516
    %v558 = vunpack.c.l.b16 %v517
    %v559 = vunpack.c.h.b16 %v517
    %v560 = vunpack.c.l.b16 %v518
    %v561 = vunpack.c.h.b16 %v518
    %v562 = vunpack.c.l.b16 %v519
    %v563 = vunpack.c.h.b16 %v519
    %v564 = vunpack.c.l.b16 %v520
    %v565 = vunpack.c.h.b16 %v520
    %v566 = vunpack.c.l.b16 %v521
    %v567 = vunpack.c.h.b16 %v521
    %v568 = vunpack.c.l.b16 %v522
    %v569 = vunpack.c.h.b16 %v522
    %v570 = vunpack.c.l.b16 %v523
    %v571 = vunpack.c.h.b16 %v523
    %v572 = vpack.c.b16 %v540, %v540
    %v573 = vpack.c.b16 %v541, %v541
    %v574 = vpack.c.b16 %v542, %v542
    %v575 = vpack.c.b16 %v543, %v543
    %v576 = vpack.c.b16 %v544, %v544
    %v577 = vpack.c.b16 %v545, %v545
    %v578 = vpack.c.b16 %v546, %v546
    %v579 = vpack.c.b16 %v547, %v547
    %v580 = vpack.c.b16 %v548, %v548
    %v581 = vpack.c.b16 %v549, %v549
    %v582 = vpack.c.b16 %v550, %v550
    %v583 = vpack.c.b16 %v551, %v551
    %v584 = vpack.c.b16 %v552, %v552
    %v585 = vpack.c.b16 %v553, %v553
    %v586 = vpack.c.b16 %v554, %v554
    %v587 = vpack.c.b16 %v555, %v555
    %v588 = vpack.c.b16 %v556, %v556
    %v589 = vpack.c.b16 %v557, %v557
    %v590 = vpack.c.b16 %v558, %v558
    %v591 = vpack.c.b16 %v559, %v559
    %v592 = vpack.c.b16 %v560, %v560
    %v593 = vpack.c.b16 %v561, %v561
    %v594 = vpack.c.b16 %v562, %v562
    %v595 = vpack.c.b16 %v563, %v563
    %v596 = vpack.c.b16 %v564, %v564
    %v597 = vpack.c.b16 %v565, %v565
    %v598 = vpack.c.b16 %v566, %v566
    %v599 = vpack.c.b16 %v567, %v567
    %v600 = vpack.c.b16 %v568, %v568
    %v601 = vpack.c.b16 %v569, %v569
    %v602 = vpack.c.b16 %v570, %v570
    %v603 = vpack.c.b16 %v571, %v571
    %vm636 = vcmask 519168
    %637 = vst.msk [vmem:[%s4] sm:$0xf] %vm636, %v572
    %638 = vst.msk [vmem:[%s4 + $0x4] sm:$0xf] %vm636, %v573
    %639 = vst.msk [vmem:[%s4 + $0x8] sm:$0xf] %vm636, %v574
    %640 = vst.msk [vmem:[%s4 + $0xc] sm:$0xf] %vm636, %v575
    %641 = vst.msk [vmem:[%s4 + $0x10] sm:$0xf] %vm636, %v576
    %642 = vst.msk [vmem:[%s4 + $0x14] sm:$0xf] %vm636, %v577
    %643 = vst.msk [vmem:[%s4 + $0x18] sm:$0xf] %vm636, %v578
    %644 = vst.msk [vmem:[%s4 + $0x1c] sm:$0xf] %vm636, %v579
    %645 = vst.msk [vmem:[%s4 + $0x20] sm:$0xf] %vm636, %v580
    %646 = vst.msk [vmem:[%s4 + $0x24] sm:$0xf] %vm636, %v581
    %647 = vst.msk [vmem:[%s4 + $0x28] sm:$0xf] %vm636, %v582
    %648 = vst.msk [vmem:[%s4 + $0x2c] sm:$0xf] %vm636, %v583
    %649 = vst.msk [vmem:[%s4 + $0x30] sm:$0xf] %vm636, %v584
    %650 = vst.msk [vmem:[%s4 + $0x34] sm:$0xf] %vm636, %v585
    %651 = vst.msk [vmem:[%s4 + $0x38] sm:$0xf] %vm636, %v586
    %652 = vst.msk [vmem:[%s4 + $0x3c] sm:$0xf] %vm636, %v587
    %653 = vst.msk [vmem:[%s4 + $0x40] sm:$0xf] %vm636, %v588
    %654 = vst.msk [vmem:[%s4 + $0x44] sm:$0xf] %vm636, %v589
    %655 = vst.msk [vmem:[%s4 + $0x48] sm:$0xf] %vm636, %v590
    %656 = vst.msk [vmem:[%s4 + $0x4c] sm:$0xf] %vm636, %v591
    %657 = vst.msk [vmem:[%s4 + $0x50] sm:$0xf] %vm636, %v592
    %658 = vst.msk [vmem:[%s4 + $0x54] sm:$0xf] %vm636, %v593
    %659 = vst.msk [vmem:[%s4 + $0x58] sm:$0xf] %vm636, %v594
    %660 = vst.msk [vmem:[%s4 + $0x5c] sm:$0xf] %vm636, %v595
    %661 = vst.msk [vmem:[%s4 + $0x60] sm:$0xf] %vm636, %v596
    %662 = vst.msk [vmem:[%s4 + $0x64] sm:$0xf] %vm636, %v597
    %663 = vst.msk [vmem:[%s4 + $0x68] sm:$0xf] %vm636, %v598
    %664 = vst.msk [vmem:[%s4 + $0x6c] sm:$0xf] %vm636, %v599
    %665 = vst.msk [vmem:[%s4 + $0x70] sm:$0xf] %vm636, %v600
    %666 = vst.msk [vmem:[%s4 + $0x74] sm:$0xf] %vm636, %v601
    %667 = vst.msk [vmem:[%s4 + $0x78] sm:$0xf] %vm636, %v602
    %668 = vst.msk [vmem:[%s4 + $0x7c] sm:$0xf] %vm636, %v603
    %v669 = vsel %vm298, %v382, 0.0
    %v670 = vsel %vm298, %v385, 0.0
    %v671 = vadd.f32 %v669, %v670
    %v672 = vsel %vm298, %v390, 0.0
    %v673 = vadd.f32 %v671, %v672
    %v674 = vsel %vm298, %v393, 0.0
    %v675 = vadd.f32 %v673, %v674
    %v676 = vsel %vm298, %v398, 0.0
    %v677 = vadd.f32 %v675, %v676
    %v678 = vsel %vm298, %v401, 0.0
    %v679 = vadd.f32 %v677, %v678
    %v680 = vsel %vm298, %v406, 0.0
    %v681 = vadd.f32 %v679, %v680
    %v682 = vsel %vm298, %v409, 0.0
    %v683 = vadd.f32 %v681, %v682
    %v684 = vsel %vm298, %v414, 0.0
    %v685 = vadd.f32 %v683, %v684
    %v686 = vsel %vm298, %v417, 0.0
    %v687 = vadd.f32 %v685, %v686
    %v688 = vsel %vm298, %v422, 0.0
    %v689 = vadd.f32 %v687, %v688
    %v690 = vsel %vm298, %v425, 0.0
    %v691 = vadd.f32 %v689, %v690
    %v692 = vsel %vm298, %v430, 0.0
    %v693 = vadd.f32 %v691, %v692
    %v694 = vsel %vm298, %v433, 0.0
    %v695 = vadd.f32 %v693, %v694
    %v696 = vsel %vm298, %v438, 0.0
    %v697 = vadd.f32 %v695, %v696
    %v698 = vsel %vm298, %v441, 0.0
    %v699 = vadd.f32 %v697, %v698
    %v700 = vsel %vm298, %v446, 0.0
    %v701 = vadd.f32 %v699, %v700
    %v702 = vsel %vm298, %v449, 0.0
    %v703 = vadd.f32 %v701, %v702
    %v704 = vsel %vm298, %v454, 0.0
    %v705 = vadd.f32 %v703, %v704
    %v706 = vsel %vm298, %v457, 0.0
    %v707 = vadd.f32 %v705, %v706
    %v708 = vsel %vm298, %v462, 0.0
    %v709 = vadd.f32 %v707, %v708
    %v710 = vsel %vm298, %v465, 0.0
    %v711 = vadd.f32 %v709, %v710
    %v712 = vsel %vm298, %v470, 0.0
    %v713 = vadd.f32 %v711, %v712
    %v714 = vsel %vm298, %v473, 0.0
    %v715 = vadd.f32 %v713, %v714
    %v716 = vsel %vm298, %v478, 0.0
    %v717 = vadd.f32 %v715, %v716
    %v718 = vsel %vm298, %v481, 0.0
    %v719 = vadd.f32 %v717, %v718
    %v720 = vsel %vm298, %v486, 0.0
    %v721 = vadd.f32 %v719, %v720
    %v722 = vsel %vm298, %v489, 0.0
    %v723 = vadd.f32 %v721, %v722
    %v724 = vsel %vm298, %v494, 0.0
    %v725 = vadd.f32 %v723, %v724
    %v726 = vsel %vm298, %v497, 0.0
    %v727 = vadd.f32 %v725, %v726
    %v728 = vsel %vm298, %v502, 0.0
    %v729 = vadd.f32 %v727, %v728
    %v730 = vsel %vm298, %v505, 0.0
    %v731 = vadd.f32 %v729, %v730
    %v732 = vrot.slane %v731, 4
    %v733 = vadd.f32 %v731, %v732
    %v734 = vrot.slane %v733, 2
    %v735 = vadd.f32 %v733, %v734
    %v736 = vrot.slane %v735, 1
    %v737 = vadd.f32 %v735, %v736
    %v738 = vmul.f32 %v382, %v382
    %v739 = vmul.f32 %v385, %v385
    %v740 = vmul.f32 %v390, %v390
    %v741 = vmul.f32 %v393, %v393
    %v742 = vmul.f32 %v398, %v398
    %v743 = vmul.f32 %v401, %v401
    %v744 = vmul.f32 %v406, %v406
    %v745 = vmul.f32 %v409, %v409
    %v746 = vmul.f32 %v414, %v414
    %v747 = vmul.f32 %v417, %v417
    %v748 = vmul.f32 %v422, %v422
    %v749 = vmul.f32 %v425, %v425
    %v750 = vmul.f32 %v430, %v430
    %v751 = vmul.f32 %v433, %v433
    %v752 = vmul.f32 %v438, %v438
    %v753 = vmul.f32 %v441, %v441
    %v754 = vmul.f32 %v446, %v446
    %v755 = vmul.f32 %v449, %v449
    %v756 = vmul.f32 %v454, %v454
    %v757 = vmul.f32 %v457, %v457
    %v758 = vmul.f32 %v462, %v462
    %v759 = vmul.f32 %v465, %v465
    %v760 = vmul.f32 %v470, %v470
    %v761 = vmul.f32 %v473, %v473
    %v762 = vmul.f32 %v478, %v478
    %v763 = vmul.f32 %v481, %v481
    %v764 = vmul.f32 %v486, %v486
    %v765 = vmul.f32 %v489, %v489
    %v766 = vmul.f32 %v494, %v494
    %v767 = vmul.f32 %v497, %v497
    %v768 = vmul.f32 %v502, %v502
    %v769 = vmul.f32 %v505, %v505
    %v770 = vsel %vm298, %v738, 0.0
    %v771 = vsel %vm298, %v739, 0.0
    %v772 = vadd.f32 %v770, %v771
    %v773 = vsel %vm298, %v740, 0.0
    %v774 = vadd.f32 %v772, %v773
    %v775 = vsel %vm298, %v741, 0.0
    %v776 = vadd.f32 %v774, %v775
    %v777 = vsel %vm298, %v742, 0.0
    %v778 = vadd.f32 %v776, %v777
    %v779 = vsel %vm298, %v743, 0.0
    %v780 = vadd.f32 %v778, %v779
    %v781 = vsel %vm298, %v744, 0.0
    %v782 = vadd.f32 %v780, %v781
    %v783 = vsel %vm298, %v745, 0.0
    %v784 = vadd.f32 %v782, %v783
    %v785 = vsel %vm298, %v746, 0.0
    %v786 = vadd.f32 %v784, %v785
    %v787 = vsel %vm298, %v747, 0.0
    %v788 = vadd.f32 %v786, %v787
    %v789 = vsel %vm298, %v748, 0.0
    %v790 = vadd.f32 %v788, %v789
    %v791 = vsel %vm298, %v749, 0.0
    %v792 = vadd.f32 %v790, %v791
    %v793 = vsel %vm298, %v750, 0.0
    %v794 = vadd.f32 %v792, %v793
    %v795 = vsel %vm298, %v751, 0.0
    %v796 = vadd.f32 %v794, %v795
    %v797 = vsel %vm298, %v752, 0.0
    %v798 = vadd.f32 %v796, %v797
    %v799 = vsel %vm298, %v753, 0.0
    %v800 = vadd.f32 %v798, %v799
    %v801 = vsel %vm298, %v754, 0.0
    %v802 = vadd.f32 %v800, %v801
    %v803 = vsel %vm298, %v755, 0.0
    %v804 = vadd.f32 %v802, %v803
    %v805 = vsel %vm298, %v756, 0.0
    %v806 = vadd.f32 %v804, %v805
    %v807 = vsel %vm298, %v757, 0.0
    %v808 = vadd.f32 %v806, %v807
    %v809 = vsel %vm298, %v758, 0.0
    %v810 = vadd.f32 %v808, %v809
    %v811 = vsel %vm298, %v759, 0.0
    %v812 = vadd.f32 %v810, %v811
    %v813 = vsel %vm298, %v760, 0.0
    %v814 = vadd.f32 %v812, %v813
    %v815 = vsel %vm298, %v761, 0.0
    %v816 = vadd.f32 %v814, %v815
    %v817 = vsel %vm298, %v762, 0.0
    %v818 = vadd.f32 %v816, %v817
    %v819 = vsel %vm298, %v763, 0.0
    %v820 = vadd.f32 %v818, %v819
    %v821 = vsel %vm298, %v764, 0.0
    %v822 = vadd.f32 %v820, %v821
    %v823 = vsel %vm298, %v765, 0.0
    %v824 = vadd.f32 %v822, %v823
    %v825 = vsel %vm298, %v766, 0.0
    %v826 = vadd.f32 %v824, %v825
    %v827 = vsel %vm298, %v767, 0.0
    %v828 = vadd.f32 %v826, %v827
    %v829 = vsel %vm298, %v768, 0.0
    %v830 = vadd.f32 %v828, %v829
    %v831 = vsel %vm298, %v769, 0.0
    %v832 = vadd.f32 %v830, %v831
    %v833 = vrot.slane %v832, 4
    %v834 = vadd.f32 %v832, %v833
    %v835 = vrot.slane %v834, 2
    %v836 = vadd.f32 %v834, %v835
    %v837 = vrot.slane %v836, 1
    %v838 = vadd.f32 %v836, %v837
    %vm839 = vcmask 1040384
    %v840 = vsel %vm839, %v737, %v838
    %vm841 = vcmask 517120
    %842 = vst.msk [vmem:[%s5] sm:$0x3] %vm841, %v840
    // Predicated region
    $region22: #{base_point_net.23} parent=1 // pred_check
      _
    $region23: #{base_point_net.23} parent=1 // pred_check_branch
      %844 = sbr.rel (0) target = $region25
    $region24: #{base_point_net.23} parent=1 // pred_region
      _
    $region25: #{base_point_net.23} parent=1 // pred_fallthru
      _
    // Predicated region
    $region26: #{base_point_net.23} parent=1 // pred_check
      _
    $region27: #{base_point_net.23} parent=1 // pred_check_branch
      %846 = sbr.rel (0) target = $region29
    $region28: #{base_point_net.23} parent=1 // pred_region
      _
    $region29: #{base_point_net.23} parent=1 // pred_fallthru
      _
    // Predicated region
    $region30: #{base_point_net.23} parent=1 // pred_check
      _
    $region31: #{base_point_net.23} parent=1 // pred_check_branch
      %848 = sbr.rel (0) target = $region33
    $region32: #{base_point_net.23} parent=1 // pred_region
      _
    $region33: #{base_point_net.23} parent=1 // pred_fallthru
      _
    // Predicated region
    $region34: #{base_point_net.23} parent=1 // pred_check
      _
    $region35: #{base_point_net.23} parent=1 // pred_check_branch
      %850 = sbr.rel (0) target = $region37
    $region36: #{base_point_net.23} parent=1 // pred_region
      _
    $region37: #{base_point_net.23} parent=1 // pred_fallthru
      _
    %851 = vsyncpa [#allocation3], 1

// kernel: base_point_net.25
$region0: #{base_point_net.25}
  #allocation0 [shape = 'u32[]', space=smem, size = 0x4, offset = 0x4, fixed_abs, tag = 'smem constant byte address 0x4 - core index']
  #allocation1 [shape = 'u32[144,128]{1,0:T(1,128)}', space=vmem, size = 0x12000, scoped, tag = 'internal scratch']
  %s0 = inlined_call_operand.vmem [shape: bf16[256,64], index: 0, kind: input, shape index: {}]
  %s1 = inlined_call_operand.vmem [shape: bf16[64,64], index: 1, kind: input, shape index: {}]
  %s2 = inlined_call_operand.vmem [shape: bf16[256,64], index: 2, kind: output, shape index: {0}]
  %s3 = inlined_call_operand.vmem [shape: f32[1,2,64], index: 3, kind: output, shape index: {1}]
  %4 = xla_tuple %s2, %s3
  %s5 = sld [smem:[#allocation0]]
  $region26: #{base_point_net.25} parent=0
    _
  %s7 = ssub.s32 1, %s5
  %s8 = scalar_select 0, %s7, %s5
  // Predicated region
  $region2: #{base_point_net.25} parent=0 // pred_check
    _
  $region3: #{base_point_net.25} parent=0 // pred_check_branch
    %10 = sbr.rel (0) target = $region5
  $region4: #{base_point_net.25} parent=0 // pred_region
    _
  $region5: #{base_point_net.25} parent=0 // pred_fallthru
    _
  // Predicated region
  $region6: #{base_point_net.25} parent=0 // pred_check
    _
  $region7: #{base_point_net.25} parent=0 // pred_check_branch
    %12 = sbr.rel (0) target = $region9
  $region8: #{base_point_net.25} parent=0 // pred_region
    _
  $region9: #{base_point_net.25} parent=0 // pred_fallthru
    _
  %v14 = vld [vmem:[%s0] sm:$0xf]
  %v15 = vld [vmem:[%s0 + $0x4] sm:$0xf]
  %v16 = vld [vmem:[%s0 + $0x8] sm:$0xf]
  %v17 = vld [vmem:[%s0 + $0xc] sm:$0xf]
  %v18 = vld [vmem:[%s0 + $0x10] sm:$0xf]
  %v19 = vld [vmem:[%s0 + $0x14] sm:$0xf]
  %v20 = vld [vmem:[%s0 + $0x18] sm:$0xf]
  %v21 = vld [vmem:[%s0 + $0x1c] sm:$0xf]
  %v22 = vld [vmem:[%s0 + $0x20] sm:$0xf]
  %v23 = vld [vmem:[%s0 + $0x24] sm:$0xf]
  %v24 = vld [vmem:[%s0 + $0x28] sm:$0xf]
  %v25 = vld [vmem:[%s0 + $0x2c] sm:$0xf]
  %v26 = vld [vmem:[%s0 + $0x30] sm:$0xf]
  %v27 = vld [vmem:[%s0 + $0x34] sm:$0xf]
  %v28 = vld [vmem:[%s0 + $0x38] sm:$0xf]
  %v29 = vld [vmem:[%s0 + $0x3c] sm:$0xf]
  %v30 = vld [vmem:[%s0 + $0x40] sm:$0xf]
  %v31 = vld [vmem:[%s0 + $0x44] sm:$0xf]
  %v32 = vld [vmem:[%s0 + $0x48] sm:$0xf]
  %v33 = vld [vmem:[%s0 + $0x4c] sm:$0xf]
  %v34 = vld [vmem:[%s0 + $0x50] sm:$0xf]
  %v35 = vld [vmem:[%s0 + $0x54] sm:$0xf]
  %v36 = vld [vmem:[%s0 + $0x58] sm:$0xf]
  %v37 = vld [vmem:[%s0 + $0x5c] sm:$0xf]
  %v38 = vld [vmem:[%s0 + $0x60] sm:$0xf]
  %v39 = vld [vmem:[%s0 + $0x64] sm:$0xf]
  %v40 = vld [vmem:[%s0 + $0x68] sm:$0xf]
  %v41 = vld [vmem:[%s0 + $0x6c] sm:$0xf]
  %v42 = vld [vmem:[%s0 + $0x70] sm:$0xf]
  %v43 = vld [vmem:[%s0 + $0x74] sm:$0xf]
  %v44 = vld [vmem:[%s0 + $0x78] sm:$0xf]
  %v45 = vld [vmem:[%s0 + $0x7c] sm:$0xf]
  %v46 = vld [vmem:[%s1] sm:$0xf]
  %v47 = vld [vmem:[%s1 + $0x4] sm:$0xf]
  %v48 = vld [vmem:[%s1 + $0x8] sm:$0xf]
  %v49 = vld [vmem:[%s1 + $0xc] sm:$0xf]
  %v50 = vld [vmem:[%s1 + $0x10] sm:$0xf]
  %v51 = vld [vmem:[%s1 + $0x14] sm:$0xf]
  %v52 = vld [vmem:[%s1 + $0x18] sm:$0xf]
  %v53 = vld [vmem:[%s1 + $0x1c] sm:$0xf]
  %v86 = vunpack.c.l.b16 %v14
  %v87 = vunpack.c.l.b16 %v15
  %v88 = vunpack.c.l.b16 %v16
  %v89 = vunpack.c.l.b16 %v17
  %v90 = vunpack.c.l.b16 %v18
  %v91 = vunpack.c.l.b16 %v19
  %v92 = vunpack.c.l.b16 %v20
  %v93 = vunpack.c.l.b16 %v21
  %v94 = vunpack.c.l.b16 %v22
  %v95 = vunpack.c.l.b16 %v23
  %v96 = vunpack.c.l.b16 %v24
  %v97 = vunpack.c.l.b16 %v25
  %v98 = vunpack.c.l.b16 %v26
  %v99 = vunpack.c.l.b16 %v27
  %v100 = vunpack.c.l.b16 %v28
  %v101 = vunpack.c.l.b16 %v29
  %v102 = vunpack.c.l.b16 %v30
  %v103 = vunpack.c.l.b16 %v31
  %v104 = vunpack.c.l.b16 %v32
  %v105 = vunpack.c.l.b16 %v33
  %v106 = vunpack.c.l.b16 %v34
  %v107 = vunpack.c.l.b16 %v35
  %v108 = vunpack.c.l.b16 %v36
  %v109 = vunpack.c.l.b16 %v37
  %v110 = vunpack.c.l.b16 %v38
  %v111 = vunpack.c.l.b16 %v39
  %v112 = vunpack.c.l.b16 %v40
  %v113 = vunpack.c.l.b16 %v41
  %v114 = vunpack.c.l.b16 %v42
  %v115 = vunpack.c.l.b16 %v43
  %v116 = vunpack.c.l.b16 %v44
  %v117 = vunpack.c.l.b16 %v45
  %v118 = vpack.c.b16 %v87, %v86
  %v119 = vpack.c.b16 %v89, %v88
  %v120 = vpack.c.b16 %v91, %v90
  %v121 = vpack.c.b16 %v93, %v92
  %v122 = vpack.c.b16 %v95, %v94
  %v123 = vpack.c.b16 %v97, %v96
  %v124 = vpack.c.b16 %v99, %v98
  %v125 = vpack.c.b16 %v101, %v100
  %v126 = vpack.c.b16 %v103, %v102
  %v127 = vpack.c.b16 %v105, %v104
  %v128 = vpack.c.b16 %v107, %v106
  %v129 = vpack.c.b16 %v109, %v108
  %v130 = vpack.c.b16 %v111, %v110
  %v131 = vpack.c.b16 %v113, %v112
  %v132 = vpack.c.b16 %v115, %v114
  %v133 = vpack.c.b16 %v117, %v116
  %v142 = vunpack.c.l.b16 %v46
  %v143 = vunpack.c.l.b16 %v47
  %v144 = vunpack.c.l.b16 %v48
  %v145 = vunpack.c.l.b16 %v49
  %v146 = vunpack.c.l.b16 %v50
  %v147 = vunpack.c.l.b16 %v51
  %v148 = vunpack.c.l.b16 %v52
  %v149 = vunpack.c.l.b16 %v53
  %v150 = vpack.c.b16 %v143, %v142
  %v151 = vpack.c.b16 %v145, %v144
  %v152 = vpack.c.b16 %v147, %v146
  %v153 = vpack.c.b16 %v149, %v148
  %vm158 = vcmask 523264
  %v160 = vsel %vm158, %v118, 0
  %v163 = vsel %vm158, %v119, 0
  %v166 = vsel %vm158, %v120, 0
  %v169 = vsel %vm158, %v121, 0
  %v172 = vsel %vm158, %v122, 0
  %v175 = vsel %vm158, %v123, 0
  %v178 = vsel %vm158, %v124, 0
  %v181 = vsel %vm158, %v125, 0
  %v184 = vsel %vm158, %v126, 0
  %v187 = vsel %vm158, %v127, 0
  %v190 = vsel %vm158, %v128, 0
  %v193 = vsel %vm158, %v129, 0
  %v196 = vsel %vm158, %v130, 0
  %v199 = vsel %vm158, %v131, 0
  %v202 = vsel %vm158, %v132, 0
  %v205 = vsel %vm158, %v133, 0
  %207 = vmatprep.subr.bf16.mxu0 0
  %208 = vmatpush1.bf16.msra.mxu0 %v150
  %209 = vmatprep.subr.bf16.mxu0 0
  %210 = vmatpush1.bf16.msra.mxu0 %v151
  %211 = vmatprep.subr.bf16.mxu0 0
  %212 = vmatpush1.bf16.msra.mxu0 %v152
  %213 = vmatprep.subr.bf16.mxu0 0
  %214 = vmatpush1.bf16.msra.mxu0 %v153
  %215 = vmatprep.subr.bf16.mxu0 0
  %216 = vmatpush1.bf16.msra.mxu0 0
  %217 = vmatprep.subr.bf16.mxu0 0
  %218 = vmatpush1.bf16.msra.mxu0 0
  %219 = vmatprep.subr.bf16.mxu0 0
  %220 = vmatpush1.bf16.msra.mxu0 0
  %221 = vmatprep.subr.bf16.mxu0 0
  %222 = vmatpush1.bf16.msra.mxu0 0
  %223 = vmatprep.subr.bf16.mxu0 0
  %224 = vmatpush1.bf16.msra.mxu0 0
  %225 = vmatprep.subr.bf16.mxu0 0
  %226 = vmatpush1.bf16.msra.mxu0 0
  %227 = vmatprep.subr.bf16.mxu0 0
  %228 = vmatpush1.bf16.msra.mxu0 0
  %229 = vmatprep.subr.bf16.mxu0 0
  %230 = vmatpush1.bf16.msra.mxu0 0
  %231 = vmatprep.subr.bf16.mxu0 0
  %232 = vmatpush1.bf16.msra.mxu0 0
  %233 = vmatprep.subr.bf16.mxu0 0
  %234 = vmatpush1.bf16.msra.mxu0 0
  %235 = vmatprep.subr.bf16.mxu0 0
  %236 = vmatpush1.bf16.msra.mxu0 0
  %237 = vmatprep.subr.bf16.mxu0 0
  %238 = vmatpush1.bf16.msra.mxu0 0
  %239 = vmatprep.mubr.bf16.mxu0 0
  %240 = vmatmul.mubr.bf16.gmra.mrb[0].mxu0 %v160
  %v241 = vpop.f32.mrb[0].mxu0
  %v242 = vadd.f32 0.0, %v241
  %v243 = vpop.f32.mrb[0].mxu0
  %v244 = vpop.f32.mrb[0].mxu0
  %v245 = vadd.f32 0.0, %v244
  %v246 = vpop.f32.mrb[0].mxu0
  %247 = vmatprep.mubr.bf16.mxu0 0
  %248 = vmatmul.mubr.bf16.gmra.mrb[0].mxu0 %v163
  %v249 = vpop.f32.mrb[0].mxu0
  %v250 = vadd.f32 0.0, %v249
  %v251 = vpop.f32.mrb[0].mxu0
  %v252 = vpop.f32.mrb[0].mxu0
  %v253 = vadd.f32 0.0, %v252
  %v254 = vpop.f32.mrb[0].mxu0
  %255 = vmatprep.mubr.bf16.mxu0 0
  %256 = vmatmul.mubr.bf16.gmra.mrb[0].mxu0 %v166
  %v257 = vpop.f32.mrb[0].mxu0
  %v258 = vadd.f32 0.0, %v257
  %v259 = vpop.f32.mrb[0].mxu0
  %v260 = vpop.f32.mrb[0].mxu0
  %v261 = vadd.f32 0.0, %v260
  %v262 = vpop.f32.mrb[0].mxu0
  %263 = vmatprep.mubr.bf16.mxu0 0
  %264 = vmatmul.mubr.bf16.gmra.mrb[0].mxu0 %v169
  %v265 = vpop.f32.mrb[0].mxu0
  %v266 = vadd.f32 0.0, %v265
  %v267 = vpop.f32.mrb[0].mxu0
  %v268 = vpop.f32.mrb[0].mxu0
  %v269 = vadd.f32 0.0, %v268
  %v270 = vpop.f32.mrb[0].mxu0
  %271 = vmatprep.mubr.bf16.mxu0 0
  %272 = vmatmul.mubr.bf16.gmra.mrb[0].mxu0 %v172
  %v273 = vpop.f32.mrb[0].mxu0
  %v274 = vadd.f32 0.0, %v273
  %v275 = vpop.f32.mrb[0].mxu0
  %v276 = vpop.f32.mrb[0].mxu0
  %v277 = vadd.f32 0.0, %v276
  %v278 = vpop.f32.mrb[0].mxu0
  %279 = vmatprep.mubr.bf16.mxu0 0
  %280 = vmatmul.mubr.bf16.gmra.mrb[0].mxu0 %v175
  %v281 = vpop.f32.mrb[0].mxu0
  %v282 = vadd.f32 0.0, %v281
  %v283 = vpop.f32.mrb[0].mxu0
  %v284 = vpop.f32.mrb[0].mxu0
  %v285 = vadd.f32 0.0, %v284
  %v286 = vpop.f32.mrb[0].mxu0
  %287 = vmatprep.mubr.bf16.mxu0 0
  %288 = vmatmul.mubr.bf16.gmra.mrb[0].mxu0 %v178
  %v289 = vpop.f32.mrb[0].mxu0
  %v290 = vadd.f32 0.0, %v289
  %v291 = vpop.f32.mrb[0].mxu0
  %v292 = vpop.f32.mrb[0].mxu0
  %v293 = vadd.f32 0.0, %v292
  %v294 = vpop.f32.mrb[0].mxu0
  %295 = vmatprep.mubr.bf16.mxu0 0
  %296 = vmatmul.mubr.bf16.gmra.mrb[0].mxu0 %v181
  %v297 = vpop.f32.mrb[0].mxu0
  %v298 = vadd.f32 0.0, %v297
  %v299 = vpop.f32.mrb[0].mxu0
  %v300 = vpop.f32.mrb[0].mxu0
  %v301 = vadd.f32 0.0, %v300
  %v302 = vpop.f32.mrb[0].mxu0
  %303 = vmatprep.mubr.bf16.mxu0 0
  %304 = vmatmul.mubr.bf16.gmra.mrb[0].mxu0 %v184
  %v305 = vpop.f32.mrb[0].mxu0
  %v306 = vadd.f32 0.0, %v305
  %v307 = vpop.f32.mrb[0].mxu0
  %v308 = vpop.f32.mrb[0].mxu0
  %v309 = vadd.f32 0.0, %v308
  %v310 = vpop.f32.mrb[0].mxu0
  %311 = vmatprep.mubr.bf16.mxu0 0
  %312 = vmatmul.mubr.bf16.gmra.mrb[0].mxu0 %v187
  %v313 = vpop.f32.mrb[0].mxu0
  %v314 = vadd.f32 0.0, %v313
  %v315 = vpop.f32.mrb[0].mxu0
  %v316 = vpop.f32.mrb[0].mxu0
  %v317 = vadd.f32 0.0, %v316
  %v318 = vpop.f32.mrb[0].mxu0
  %319 = vmatprep.mubr.bf16.mxu0 0
  %320 = vmatmul.mubr.bf16.gmra.mrb[0].mxu0 %v190
  %v321 = vpop.f32.mrb[0].mxu0
  %v322 = vadd.f32 0.0, %v321
  %v323 = vpop.f32.mrb[0].mxu0
  %v324 = vpop.f32.mrb[0].mxu0
  %v325 = vadd.f32 0.0, %v324
  %v326 = vpop.f32.mrb[0].mxu0
  %327 = vmatprep.mubr.bf16.mxu0 0
  %328 = vmatmul.mubr.bf16.gmra.mrb[0].mxu0 %v193
  %v329 = vpop.f32.mrb[0].mxu0
  %v330 = vadd.f32 0.0, %v329
  %v331 = vpop.f32.mrb[0].mxu0
  %v332 = vpop.f32.mrb[0].mxu0
  %v333 = vadd.f32 0.0, %v332
  %v334 = vpop.f32.mrb[0].mxu0
  %335 = vmatprep.mubr.bf16.mxu0 0
  %336 = vmatmul.mubr.bf16.gmra.mrb[0].mxu0 %v196
  %v337 = vpop.f32.mrb[0].mxu0
  %v338 = vadd.f32 0.0, %v337
  %v339 = vpop.f32.mrb[0].mxu0
  %v340 = vpop.f32.mrb[0].mxu0
  %v341 = vadd.f32 0.0, %v340
  %v342 = vpop.f32.mrb[0].mxu0
  %343 = vmatprep.mubr.bf16.mxu0 0
  %344 = vmatmul.mubr.bf16.gmra.mrb[0].mxu0 %v199
  %v345 = vpop.f32.mrb[0].mxu0
  %v346 = vadd.f32 0.0, %v345
  %v347 = vpop.f32.mrb[0].mxu0
  %v348 = vpop.f32.mrb[0].mxu0
  %v349 = vadd.f32 0.0, %v348
  %v350 = vpop.f32.mrb[0].mxu0
  %351 = vmatprep.mubr.bf16.mxu0 0
  %352 = vmatmul.mubr.bf16.gmra.mrb[0].mxu0 %v202
  %v353 = vpop.f32.mrb[0].mxu0
  %v354 = vadd.f32 0.0, %v353
  %v355 = vpop.f32.mrb[0].mxu0
  %v356 = vpop.f32.mrb[0].mxu0
  %v357 = vadd.f32 0.0, %v356
  %v358 = vpop.f32.mrb[0].mxu0
  %359 = vmatprep.mubr.bf16.mxu0 0
  %360 = vmatmul.mubr.bf16.gmra.mrb[0].mxu0 %v205
  %v361 = vpop.f32.mrb[0].mxu0
  %v362 = vadd.f32 0.0, %v361
  %v363 = vpop.f32.mrb[0].mxu0
  %v364 = vpop.f32.mrb[0].mxu0
  %v365 = vadd.f32 0.0, %v364
  %v366 = vpop.f32.mrb[0].mxu0
  %367 = vdwg.mxu0
  %v368 = vpack.c.bf16 %v245, %v242
  %v369 = vpack.c.bf16 %v253, %v250
  %v370 = vpack.c.bf16 %v261, %v258
  %v371 = vpack.c.bf16 %v269, %v266
  %v372 = vpack.c.bf16 %v277, %v274
  %v373 = vpack.c.bf16 %v285, %v282
  %v374 = vpack.c.bf16 %v293, %v290
  %v375 = vpack.c.bf16 %v301, %v298
  %v376 = vpack.c.bf16 %v309, %v306
  %v377 = vpack.c.bf16 %v317, %v314
  %v378 = vpack.c.bf16 %v325, %v322
  %v379 = vpack.c.bf16 %v333, %v330
  %v380 = vpack.c.bf16 %v341, %v338
  %v381 = vpack.c.bf16 %v349, %v346
  %v382 = vpack.c.bf16 %v357, %v354
  %v383 = vpack.c.bf16 %v365, %v362
  %v400 = vunpack.c.l.b16 %v368
  %v401 = vunpack.c.h.b16 %v368
  %v402 = vunpack.c.l.b16 %v369
  %v403 = vunpack.c.h.b16 %v369
  %v404 = vunpack.c.l.b16 %v370
  %v405 = vunpack.c.h.b16 %v370
  %v406 = vunpack.c.l.b16 %v371
  %v407 = vunpack.c.h.b16 %v371
  %v408 = vunpack.c.l.b16 %v372
  %v409 = vunpack.c.h.b16 %v372
  %v410 = vunpack.c.l.b16 %v373
  %v411 = vunpack.c.h.b16 %v373
  %v412 = vunpack.c.l.b16 %v374
  %v413 = vunpack.c.h.b16 %v374
  %v414 = vunpack.c.l.b16 %v375
  %v415 = vunpack.c.h.b16 %v375
  %v416 = vunpack.c.l.b16 %v376
  %v417 = vunpack.c.h.b16 %v376
  %v418 = vunpack.c.l.b16 %v377
  %v419 = vunpack.c.h.b16 %v377
  %v420 = vunpack.c.l.b16 %v378
  %v421 = vunpack.c.h.b16 %v378
  %v422 = vunpack.c.l.b16 %v379
  %v423 = vunpack.c.h.b16 %v379
  %v424 = vunpack.c.l.b16 %v380
  %v425 = vunpack.c.h.b16 %v380
  %v426 = vunpack.c.l.b16 %v381
  %v427 = vunpack.c.h.b16 %v381
  %v428 = vunpack.c.l.b16 %v382
  %v429 = vunpack.c.h.b16 %v382
  %v430 = vunpack.c.l.b16 %v383
  %v431 = vunpack.c.h.b16 %v383
  %v432 = vpack.c.b16 %v400, %v400
  %v433 = vpack.c.b16 %v401, %v401
  %v434 = vpack.c.b16 %v402, %v402
  %v435 = vpack.c.b16 %v403, %v403
  %v436 = vpack.c.b16 %v404, %v404
  %v437 = vpack.c.b16 %v405, %v405
  %v438 = vpack.c.b16 %v406, %v406
  %v439 = vpack.c.b16 %v407, %v407
  %v440 = vpack.c.b16 %v408, %v408
  %v441 = vpack.c.b16 %v409, %v409
  %v442 = vpack.c.b16 %v410, %v410
  %v443 = vpack.c.b16 %v411, %v411
  %v444 = vpack.c.b16 %v412, %v412
  %v445 = vpack.c.b16 %v413, %v413
  %v446 = vpack.c.b16 %v414, %v414
  %v447 = vpack.c.b16 %v415, %v415
  %v448 = vpack.c.b16 %v416, %v416
  %v449 = vpack.c.b16 %v417, %v417
  %v450 = vpack.c.b16 %v418, %v418
  %v451 = vpack.c.b16 %v419, %v419
  %v452 = vpack.c.b16 %v420, %v420
  %v453 = vpack.c.b16 %v421, %v421
  %v454 = vpack.c.b16 %v422, %v422
  %v455 = vpack.c.b16 %v423, %v423
  %v456 = vpack.c.b16 %v424, %v424
  %v457 = vpack.c.b16 %v425, %v425
  %v458 = vpack.c.b16 %v426, %v426
  %v459 = vpack.c.b16 %v427, %v427
  %v460 = vpack.c.b16 %v428, %v428
  %v461 = vpack.c.b16 %v429, %v429
  %v462 = vpack.c.b16 %v430, %v430
  %v463 = vpack.c.b16 %v431, %v431
  %vm496 = vcmask 519168
  %497 = vst.msk [vmem:[%s2] sm:$0xf] %vm496, %v432
  %498 = vst.msk [vmem:[%s2 + $0x4] sm:$0xf] %vm496, %v433
  %499 = vst.msk [vmem:[%s2 + $0x8] sm:$0xf] %vm496, %v434
  %500 = vst.msk [vmem:[%s2 + $0xc] sm:$0xf] %vm496, %v435
  %501 = vst.msk [vmem:[%s2 + $0x10] sm:$0xf] %vm496, %v436
  %502 = vst.msk [vmem:[%s2 + $0x14] sm:$0xf] %vm496, %v437
  %503 = vst.msk [vmem:[%s2 + $0x18] sm:$0xf] %vm496, %v438
  %504 = vst.msk [vmem:[%s2 + $0x1c] sm:$0xf] %vm496, %v439
  %505 = vst.msk [vmem:[%s2 + $0x20] sm:$0xf] %vm496, %v440
  %506 = vst.msk [vmem:[%s2 + $0x24] sm:$0xf] %vm496, %v441
  %507 = vst.msk [vmem:[%s2 + $0x28] sm:$0xf] %vm496, %v442
  %508 = vst.msk [vmem:[%s2 + $0x2c] sm:$0xf] %vm496, %v443
  %509 = vst.msk [vmem:[%s2 + $0x30] sm:$0xf] %vm496, %v444
  %510 = vst.msk [vmem:[%s2 + $0x34] sm:$0xf] %vm496, %v445
  %511 = vst.msk [vmem:[%s2 + $0x38] sm:$0xf] %vm496, %v446
  %512 = vst.msk [vmem:[%s2 + $0x3c] sm:$0xf] %vm496, %v447
  %513 = vst.msk [vmem:[%s2 + $0x40] sm:$0xf] %vm496, %v448
  %514 = vst.msk [vmem:[%s2 + $0x44] sm:$0xf] %vm496, %v449
  %515 = vst.msk [vmem:[%s2 + $0x48] sm:$0xf] %vm496, %v450
  %516 = vst.msk [vmem:[%s2 + $0x4c] sm:$0xf] %vm496, %v451
  %517 = vst.msk [vmem:[%s2 + $0x50] sm:$0xf] %vm496, %v452
  %518 = vst.msk [vmem:[%s2 + $0x54] sm:$0xf] %vm496, %v453
  %519 = vst.msk [vmem:[%s2 + $0x58] sm:$0xf] %vm496, %v454
  %520 = vst.msk [vmem:[%s2 + $0x5c] sm:$0xf] %vm496, %v455
  %521 = vst.msk [vmem:[%s2 + $0x60] sm:$0xf] %vm496, %v456
  %522 = vst.msk [vmem:[%s2 + $0x64] sm:$0xf] %vm496, %v457
  %523 = vst.msk [vmem:[%s2 + $0x68] sm:$0xf] %vm496, %v458
  %524 = vst.msk [vmem:[%s2 + $0x6c] sm:$0xf] %vm496, %v459
  %525 = vst.msk [vmem:[%s2 + $0x70] sm:$0xf] %vm496, %v460
  %526 = vst.msk [vmem:[%s2 + $0x74] sm:$0xf] %vm496, %v461
  %527 = vst.msk [vmem:[%s2 + $0x78] sm:$0xf] %vm496, %v462
  %528 = vst.msk [vmem:[%s2 + $0x7c] sm:$0xf] %vm496, %v463
  %v529 = vsel %vm158, %v242, 0.0
  %v530 = vsel %vm158, %v245, 0.0
  %v531 = vadd.f32 %v529, %v530
  %v532 = vsel %vm158, %v250, 0.0
  %v533 = vadd.f32 %v531, %v532
  %v534 = vsel %vm158, %v253, 0.0
  %v535 = vadd.f32 %v533, %v534
  %v536 = vsel %vm158, %v258, 0.0
  %v537 = vadd.f32 %v535, %v536
  %v538 = vsel %vm158, %v261, 0.0
  %v539 = vadd.f32 %v537, %v538
  %v540 = vsel %vm158, %v266, 0.0
  %v541 = vadd.f32 %v539, %v540
  %v542 = vsel %vm158, %v269, 0.0
  %v543 = vadd.f32 %v541, %v542
  %v544 = vsel %vm158, %v274, 0.0
  %v545 = vadd.f32 %v543, %v544
  %v546 = vsel %vm158, %v277, 0.0
  %v547 = vadd.f32 %v545, %v546
  %v548 = vsel %vm158, %v282, 0.0
  %v549 = vadd.f32 %v547, %v548
  %v550 = vsel %vm158, %v285, 0.0
  %v551 = vadd.f32 %v549, %v550
  %v552 = vsel %vm158, %v290, 0.0
  %v553 = vadd.f32 %v551, %v552
  %v554 = vsel %vm158, %v293, 0.0
  %v555 = vadd.f32 %v553, %v554
  %v556 = vsel %vm158, %v298, 0.0
  %v557 = vadd.f32 %v555, %v556
  %v558 = vsel %vm158, %v301, 0.0
  %v559 = vadd.f32 %v557, %v558
  %v560 = vsel %vm158, %v306, 0.0
  %v561 = vadd.f32 %v559, %v560
  %v562 = vsel %vm158, %v309, 0.0
  %v563 = vadd.f32 %v561, %v562
  %v564 = vsel %vm158, %v314, 0.0
  %v565 = vadd.f32 %v563, %v564
  %v566 = vsel %vm158, %v317, 0.0
  %v567 = vadd.f32 %v565, %v566
  %v568 = vsel %vm158, %v322, 0.0
  %v569 = vadd.f32 %v567, %v568
  %v570 = vsel %vm158, %v325, 0.0
  %v571 = vadd.f32 %v569, %v570
  %v572 = vsel %vm158, %v330, 0.0
  %v573 = vadd.f32 %v571, %v572
  %v574 = vsel %vm158, %v333, 0.0
  %v575 = vadd.f32 %v573, %v574
  %v576 = vsel %vm158, %v338, 0.0
  %v577 = vadd.f32 %v575, %v576
  %v578 = vsel %vm158, %v341, 0.0
  %v579 = vadd.f32 %v577, %v578
  %v580 = vsel %vm158, %v346, 0.0
  %v581 = vadd.f32 %v579, %v580
  %v582 = vsel %vm158, %v349, 0.0
  %v583 = vadd.f32 %v581, %v582
  %v584 = vsel %vm158, %v354, 0.0
  %v585 = vadd.f32 %v583, %v584
  %v586 = vsel %vm158, %v357, 0.0
  %v587 = vadd.f32 %v585, %v586
  %v588 = vsel %vm158, %v362, 0.0
  %v589 = vadd.f32 %v587, %v588
  %v590 = vsel %vm158, %v365, 0.0
  %v591 = vadd.f32 %v589, %v590
  %v592 = vrot.slane %v591, 4
  %v593 = vadd.f32 %v591, %v592
  %v594 = vrot.slane %v593, 2
  %v595 = vadd.f32 %v593, %v594
  %v596 = vrot.slane %v595, 1
  %v597 = vadd.f32 %v595, %v596
  %v598 = vmul.f32 %v242, %v242
  %v599 = vmul.f32 %v245, %v245
  %v600 = vmul.f32 %v250, %v250
  %v601 = vmul.f32 %v253, %v253
  %v602 = vmul.f32 %v258, %v258
  %v603 = vmul.f32 %v261, %v261
  %v604 = vmul.f32 %v266, %v266
  %v605 = vmul.f32 %v269, %v269
  %v606 = vmul.f32 %v274, %v274
  %v607 = vmul.f32 %v277, %v277
  %v608 = vmul.f32 %v282, %v282
  %v609 = vmul.f32 %v285, %v285
  %v610 = vmul.f32 %v290, %v290
  %v611 = vmul.f32 %v293, %v293
  %v612 = vmul.f32 %v298, %v298
  %v613 = vmul.f32 %v301, %v301
  %v614 = vmul.f32 %v306, %v306
  %v615 = vmul.f32 %v309, %v309
  %v616 = vmul.f32 %v314, %v314
  %v617 = vmul.f32 %v317, %v317
  %v618 = vmul.f32 %v322, %v322
  %v619 = vmul.f32 %v325, %v325
  %v620 = vmul.f32 %v330, %v330
  %v621 = vmul.f32 %v333, %v333
  %v622 = vmul.f32 %v338, %v338
  %v623 = vmul.f32 %v341, %v341
  %v624 = vmul.f32 %v346, %v346
  %v625 = vmul.f32 %v349, %v349
  %v626 = vmul.f32 %v354, %v354
  %v627 = vmul.f32 %v357, %v357
  %v628 = vmul.f32 %v362, %v362
  %v629 = vmul.f32 %v365, %v365
  %v630 = vsel %vm158, %v598, 0.0
  %v631 = vsel %vm158, %v599, 0.0
  %v632 = vadd.f32 %v630, %v631
  %v633 = vsel %vm158, %v600, 0.0
  %v634 = vadd.f32 %v632, %v633
  %v635 = vsel %vm158, %v601, 0.0
  %v636 = vadd.f32 %v634, %v635
  %v637 = vsel %vm158, %v602, 0.0
  %v638 = vadd.f32 %v636, %v637
  %v639 = vsel %vm158, %v603, 0.0
  %v640 = vadd.f32 %v638, %v639
  %v641 = vsel %vm158, %v604, 0.0
  %v642 = vadd.f32 %v640, %v641
  %v643 = vsel %vm158, %v605, 0.0
  %v644 = vadd.f32 %v642, %v643
  %v645 = vsel %vm158, %v606, 0.0
  %v646 = vadd.f32 %v644, %v645
  %v647 = vsel %vm158, %v607, 0.0
  %v648 = vadd.f32 %v646, %v647
  %v649 = vsel %vm158, %v608, 0.0
  %v650 = vadd.f32 %v648, %v649
  %v651 = vsel %vm158, %v609, 0.0
  %v652 = vadd.f32 %v650, %v651
  %v653 = vsel %vm158, %v610, 0.0
  %v654 = vadd.f32 %v652, %v653
  %v655 = vsel %vm158, %v611, 0.0
  %v656 = vadd.f32 %v654, %v655
  %v657 = vsel %vm158, %v612, 0.0
  %v658 = vadd.f32 %v656, %v657
  %v659 = vsel %vm158, %v613, 0.0
  %v660 = vadd.f32 %v658, %v659
  %v661 = vsel %vm158, %v614, 0.0
  %v662 = vadd.f32 %v660, %v661
  %v663 = vsel %vm158, %v615, 0.0
  %v664 = vadd.f32 %v662, %v663
  %v665 = vsel %vm158, %v616, 0.0
  %v666 = vadd.f32 %v664, %v665
  %v667 = vsel %vm158, %v617, 0.0
  %v668 = vadd.f32 %v666, %v667
  %v669 = vsel %vm158, %v618, 0.0
  %v670 = vadd.f32 %v668, %v669
  %v671 = vsel %vm158, %v619, 0.0
  %v672 = vadd.f32 %v670, %v671
  %v673 = vsel %vm158, %v620, 0.0
  %v674 = vadd.f32 %v672, %v673
  %v675 = vsel %vm158, %v621, 0.0
  %v676 = vadd.f32 %v674, %v675
  %v677 = vsel %vm158, %v622, 0.0
  %v678 = vadd.f32 %v676, %v677
  %v679 = vsel %vm158, %v623, 0.0
  %v680 = vadd.f32 %v678, %v679
  %v681 = vsel %vm158, %v624, 0.0
  %v682 = vadd.f32 %v680, %v681
  %v683 = vsel %vm158, %v625, 0.0
  %v684 = vadd.f32 %v682, %v683
  %v685 = vsel %vm158, %v626, 0.0
  %v686 = vadd.f32 %v684, %v685
  %v687 = vsel %vm158, %v627, 0.0
  %v688 = vadd.f32 %v686, %v687
  %v689 = vsel %vm158, %v628, 0.0
  %v690 = vadd.f32 %v688, %v689
  %v691 = vsel %vm158, %v629, 0.0
  %v692 = vadd.f32 %v690, %v691
  %v693 = vrot.slane %v692, 4
  %v694 = vadd.f32 %v692, %v693
  %v695 = vrot.slane %v694, 2
  %v696 = vadd.f32 %v694, %v695
  %v697 = vrot.slane %v696, 1
  %v698 = vadd.f32 %v696, %v697
  %vm699 = vcmask 1040384
  %v700 = vsel %vm699, %v597, %v698
  %vm701 = vcmask 517120
  %702 = vst.msk [vmem:[%s3] sm:$0x3] %vm701, %v700
  // Predicated region
  $region10: #{base_point_net.25} parent=0 // pred_check
    _
  $region11: #{base_point_net.25} parent=0 // pred_check_branch
    %704 = sbr.rel (0) target = $region13
  $region12: #{base_point_net.25} parent=0 // pred_region
    _
  $region13: #{base_point_net.25} parent=0 // pred_fallthru
    _
  // Predicated region
  $region14: #{base_point_net.25} parent=0 // pred_check
    _
  $region15: #{base_point_net.25} parent=0 // pred_check_branch
    %706 = sbr.rel (0) target = $region17
  $region16: #{base_point_net.25} parent=0 // pred_region
    _
  $region17: #{base_point_net.25} parent=0 // pred_fallthru
    _
  // Predicated region
  $region18: #{base_point_net.25} parent=0 // pred_check
    _
  $region19: #{base_point_net.25} parent=0 // pred_check_branch
    %708 = sbr.rel (0) target = $region21
  $region20: #{base_point_net.25} parent=0 // pred_region
    _
  $region21: #{base_point_net.25} parent=0 // pred_fallthru
    _
  // Predicated region
  $region22: #{base_point_net.25} parent=0 // pred_check
    _
  $region23: #{base_point_net.25} parent=0 // pred_check_branch
    %710 = sbr.rel (0) target = $region25
  $region24: #{base_point_net.25} parent=0 // pred_region
    _
  $region25: #{base_point_net.25} parent=0 // pred_fallthru
    _

// kernel: base_point_net.33
$region0: #{base_point_net.33}
  #allocation0 [shape = 'u32[]', space=smem, size = 0x4, offset = 0x4, fixed_abs, tag = 'smem constant byte address 0x4 - core index']
  #allocation1 [shape = 'u32[144,128]{1,0:T(1,128)}', space=vmem, size = 0x12000, scoped, tag = 'internal scratch']
  %s0 = inlined_call_operand.vmem [shape: bf16[2,128,256], index: 0, kind: input, shape index: {}]
  %s1 = inlined_call_operand.vmem [shape: f32[1,256], index: 1, kind: input, shape index: {}]
  %s2 = inlined_call_operand.vmem [shape: f32[1,256], index: 2, kind: input, shape index: {}]
  %s3 = inlined_call_operand.hbm [shape: f32[2,256,128], index: 3, kind: output, shape index: {}]
  %s4 = sld [smem:[#allocation0]]
  $region45: #{base_point_net.33} parent=0
    _
  %s6 = ssub.s32 1, %s4
  %s7 = scalar_select 0, %s6, %s4
  $region1: #{base_point_net.33} parent=0
    #allocation2 [shape = 'u8[262144]{0}', space=vmem, size = 0x40000, scoped, tag = 'output window, operand 0']
    #allocation3 [shape = 's32[2]{0}', space=sflag, size = 0x8, scoped, tag = 'scoped memory for base_point_net.33']
    %8 = vsyncpa [#allocation3], 0
    %s9 = scalar_lea.sflag [#allocation3], 1
    %10 = vsyncpa %s9, 0
    loop: start=0, step=1, limit=4
    $region2: #{base_point_net.33} parent=1 // loop_pre_header
      _
    $region3: #{base_point_net.33} parent=1 // loop_header
      %s12 = sphi 0, %s16
      %p13 = scmp.ge.s32.totalorder %s12, 4
      %s19 = sphi 0, %s31
      %s20 = sphi 0, %s27
      %s21 = sphi 0, %s19
      %s22 = sphi 0, %s20
      %s23 = sphi 0, %s21
      %s24 = sphi 0, %s22
      %s36 = sphi 0, %s38
      %s39 = sphi 0, %s36
      %s40 = sphi 0, %s39
      %s56 = sphi 0, %s40
      %s60 = sphi 0, %s60
      %s62 = sphi 0, %s60
      %s63 = sphi 0, %s62
      %s77 = sphi 0, %s63
      %s81 = sphi 0, %s81
      %s83 = sphi 0, %s81
      %s84 = sphi 0, %s83
      %s98 = sphi 0, %s84
      %s106 = sphi 0, %s108
      %s109 = sphi 0, %s106
      %s110 = sphi 0, %s109
      %s126 = sphi 0, %s110
    $region4: #{base_point_net.33} parent=1 // loop_header_branch
      %15 = sbr.rel (%p13) target = $region8
    $region5: #{base_point_net.33} parent=1 // loop_body
      %s17 = ssub.s32 %s12, 1
      %s18 = ssub.s32 %s12, 2
      %s25 = sadd.s32 1, %s20
      %p26 = scmp.ge.s32.totalorder %s25, 1
      %s27 = scalar_select %p26, 0, %s25
      %s28 = sadd.s32 1, %s19
      %s29 = scalar_select %p26, %s28, %s19
      %p30 = scmp.ge.s32.totalorder %s29, 2
      %s31 = scalar_select %p30, 0, %s29
      %s32 = ssub.s32 %s19, %s31
      %s33 = ssub.s32 %s20, %s27
      %s34 = sor.u32 %s32, %s33
      %p35 = scmp.eq.s32.totalorder %s34, 0
      %s37 = sadd.s32 %s36, 1
      %s38 = scalar_select %p35, %s36, %s37
      %p41 = pneg %p35
      %p42 = scmp.eq.s32.totalorder %s12, 1
      %p43 = por %p41, %p42
      %p44 = scmp.ne.s32.totalorder %s36, %s39
      %p45 = scmp.eq.s32.totalorder %s12, 0
      %p46 = por %p44, %p45
      %p47 = scmp.ne.s32.totalorder %s36, %s39
      %p48 = scmp.eq.s32.totalorder %s17, 1
      %p49 = por %p47, %p48
      %p50 = scmp.ne.s32.totalorder %s39, %s40
      %p51 = scmp.eq.s32.totalorder %s17, 0
      %p52 = por %p50, %p51
      %p53 = scmp.ne.s32.totalorder %s39, %s40
      %p54 = scmp.eq.s32.totalorder %s18, 1
      %p55 = por %p53, %p54
      %p57 = scmp.ne.s32.totalorder %s40, %s56
      %p58 = scmp.eq.s32.totalorder %s18, 0
      %p59 = por %p57, %p58
      %s61 = sadd.s32 %s60, 1
      %p64 = scmp.eq.s32.totalorder %s12, 1
      %p65 = scmp.ne.s32.totalorder %s60, %s62
      %p66 = scmp.eq.s32.totalorder %s12, 0
      %p67 = por %p65, %p66
      %p68 = scmp.ne.s32.totalorder %s60, %s62
      %p69 = scmp.eq.s32.totalorder %s17, 1
      %p70 = por %p68, %p69
      %p71 = scmp.ne.s32.totalorder %s62, %s63
      %p72 = scmp.eq.s32.totalorder %s17, 0
      %p73 = por %p71, %p72
      %p74 = scmp.ne.s32.totalorder %s62, %s63
      %p75 = scmp.eq.s32.totalorder %s18, 1
      %p76 = por %p74, %p75
      %p78 = scmp.ne.s32.totalorder %s63, %s77
      %p79 = scmp.eq.s32.totalorder %s18, 0
      %p80 = por %p78, %p79
      %s82 = sadd.s32 %s81, 1
      %p85 = scmp.eq.s32.totalorder %s12, 1
      %p86 = scmp.ne.s32.totalorder %s81, %s83
      %p87 = scmp.eq.s32.totalorder %s12, 0
      %p88 = por %p86, %p87
      %p89 = scmp.ne.s32.totalorder %s81, %s83
      %p90 = scmp.eq.s32.totalorder %s17, 1
      %p91 = por %p89, %p90
      %p92 = scmp.ne.s32.totalorder %s83, %s84
      %p93 = scmp.eq.s32.totalorder %s17, 0
      %p94 = por %p92, %p93
      %p95 = scmp.ne.s32.totalorder %s83, %s84
      %p96 = scmp.eq.s32.totalorder %s18, 1
      %p97 = por %p95, %p96
      %p99 = scmp.ne.s32.totalorder %s84, %s98
      %p100 = scmp.eq.s32.totalorder %s18, 0
      %p101 = por %p99, %p100
      %s102 = ssub.s32 %s19, %s31
      %s103 = ssub.s32 %s20, %s27
      %s104 = sor.u32 %s102, %s103
      %p105 = scmp.eq.s32.totalorder %s104, 0
      %s107 = sadd.s32 %s106, 1
      %s108 = scalar_select %p105, %s106, %s107
      %p111 = pneg %p105
      %p112 = scmp.eq.s32.totalorder %s12, 1
      %p113 = por %p111, %p112
      %p114 = scmp.ne.s32.totalorder %s106, %s109
      %p115 = scmp.eq.s32.totalorder %s12, 0
      %p116 = por %p114, %p115
      %p117 = scmp.ne.s32.totalorder %s106, %s109
      %p118 = scmp.eq.s32.totalorder %s17, 1
      %p119 = por %p117, %p118
      %p120 = scmp.ne.s32.totalorder %s109, %s110
      %p121 = scmp.eq.s32.totalorder %s17, 0
      %p122 = por %p120, %p121
      %p123 = scmp.ne.s32.totalorder %s109, %s110
      %p124 = scmp.eq.s32.totalorder %s18, 1
      %p125 = por %p123, %p124
      %p127 = scmp.ne.s32.totalorder %s110, %s126
      %p128 = scmp.eq.s32.totalorder %s18, 0
      %p129 = por %p127, %p128
      %p130 = scmp.le.s32.totalorder 1, %s12
      %p131 = scmp.lt.s32.totalorder %s12, 3
      %p132 = pnand %p130, %p131
      %p133 = pneg %p132
      // Predicated region
      $region9: #{base_point_net.33} parent=5 // pred_check
        _
      $region10: #{base_point_net.33} parent=5 // pred_check_branch
        %135 = sbr.rel (%p132) target = $region12
      $region11: #{base_point_net.33} parent=5 // pred_region
        %s136 = ssub.s32 %s12, 1
        // Predicated region
        $region13: #{base_point_net.33} parent=11 // pred_check
          %p137 = pneg %p73
        $region14: #{base_point_net.33} parent=11 // pred_check_branch
          %139 = sbr.rel (%p137) target = $region16
        $region15: #{base_point_net.33} parent=11 // pred_region
          _
        $region16: #{base_point_net.33} parent=11 // pred_fallthru
          _
        // Predicated region
        $region17: #{base_point_net.33} parent=11 // pred_check
          %p140 = pneg %p94
        $region18: #{base_point_net.33} parent=11 // pred_check_branch
          %142 = sbr.rel (%p140) target = $region20
        $region19: #{base_point_net.33} parent=11 // pred_region
          _
        $region20: #{base_point_net.33} parent=11 // pred_fallthru
          _
      $region12: #{base_point_net.33} parent=5 // pred_fallthru
        _
      %p143 = scmp.lt.s32.totalorder %s12, 2
      // Predicated region
      $region21: #{base_point_net.33} parent=5 // pred_check
        %p144 = pneg %p143
      $region22: #{base_point_net.33} parent=5 // pred_check_branch
        %146 = sbr.rel (%p144) target = $region24
      $region23: #{base_point_net.33} parent=5 // pred_region
        // Predicated region
        $region25: #{base_point_net.33} parent=23 // pred_check
          %p147 = pneg %p46
        $region26: #{base_point_net.33} parent=23 // pred_check_branch
          %149 = sbr.rel (%p147) target = $region28
        $region27: #{base_point_net.33} parent=23 // pred_region
          %s150 = smul.u32 16, %s20
          %p151 = scmp.lt.s32.totalorder %s19, 1
          %s152 = scalar_select %p151, %s19, 1
          %p153 = scmp.lt.s32.totalorder %s150, 15
          %s154 = scalar_select %p153, %s150, 15
          %s155 = smul.addr %s154, 2
          %s156 = smul.addr %s152, 32
          %s157 = sadd.s32 %s155, %s156
          %s158 = smul.addr %s157, 4
          %s159 = scalar_lea.vmem %s0, %s158
          %s160 = smul.u32 16, %s20
        $region28: #{base_point_net.33} parent=23 // pred_fallthru
          _
      $region24: #{base_point_net.33} parent=5 // pred_fallthru
        _
      %p161 = scmp.le.s32.totalorder 1, %s12
      %p162 = scmp.lt.s32.totalorder %s12, 3
      %p163 = pnand %p161, %p162
      %p164 = pneg %p163
      // Predicated region
      $region29: #{base_point_net.33} parent=5 // pred_check
        _
      $region30: #{base_point_net.33} parent=5 // pred_check_branch
        %166 = sbr.rel (%p163) target = $region32
      $region31: #{base_point_net.33} parent=5 // pred_region
        %s167 = ssub.s32 %s12, 1
        %s168 = smul.u32 16, %s22
        %p169 = scmp.lt.s32.totalorder %s21, 1
        %s170 = scalar_select %p169, %s21, 1
        %p171 = scmp.lt.s32.totalorder %s168, 15
        %s172 = scalar_select %p171, %s168, 15
        %s173 = smul.addr %s172, 2
        %s174 = smul.addr %s170, 32
        %s175 = sadd.s32 %s173, %s174
        %s176 = smul.addr %s175, 4
        %s177 = scalar_lea.vmem %s0, %s176
        %p178 = pneg %p52
        %p179 = pneg %p49
        %p180 = pneg %p73
        %p181 = pneg %p70
        %p182 = pneg %p94
        %p183 = pneg %p91
        %p184 = pneg %p122
        %p185 = pneg %p119
        %s186 = sand.u32 %s109, 1
        %s187 = scalar_lea.sflag [#allocation3], %s186
        %s188 = sand.u32 %s109, 1
        %s189 = smul.addr %s188, 256
        %s190 = scalar_lea.vmem [#allocation2], %s189
        %s191 = smul.u32 16, %s22
        %p192 = scmp.lt.s32.totalorder %s21, 1
        %s193 = scalar_select %p192, %s21, 1
        %p194 = scmp.lt.s32.totalorder %s191, 15
        %s195 = scalar_select %p194, %s191, 15
        %s196 = smul.addr %s195, 2
        %s197 = smul.addr %s193, 32
        %s198 = sadd.s32 %s196, %s197
        %s199 = smul.addr %s198, 4
        %s200 = scalar_lea.vmem %s0, %s199
        %s201 = smul.u32 16, %s22
        %v202 = vld [vmem:[%s200] sm:$0xff]
        %v203 = vld [vmem:[%s200 + $0x8] sm:$0xff]
        %v204 = vld [vmem:[%s200 + $0x10] sm:$0xff]
        %v205 = vld [vmem:[%s200 + $0x18] sm:$0xff]
        %v206 = vld [vmem:[%s200 + $0x20] sm:$0xff]
        %v207 = vld [vmem:[%s200 + $0x28] sm:$0xff]
        %v208 = vld [vmem:[%s200 + $0x30] sm:$0xff]
        %v209 = vld [vmem:[%s200 + $0x38] sm:$0xff]
        %v210 = vld [vmem:[%s200 + $0x40] sm:$0xff]
        %v211 = vld [vmem:[%s200 + $0x48] sm:$0xff]
        %v212 = vld [vmem:[%s200 + $0x50] sm:$0xff]
        %v213 = vld [vmem:[%s200 + $0x58] sm:$0xff]
        %v214 = vld [vmem:[%s200 + $0x60] sm:$0xff]
        %v215 = vld [vmem:[%s200 + $0x68] sm:$0xff]
        %v216 = vld [vmem:[%s200 + $0x70] sm:$0xff]
        %v217 = vld [vmem:[%s200 + $0x78] sm:$0xff]
        %v218 = vunpack.c.l.bf16 %v202
        %v219 = vunpack.c.h.bf16 %v202
        %v220 = vunpack.c.l.bf16 %v203
        %v221 = vunpack.c.h.bf16 %v203
        %v222 = vunpack.c.l.bf16 %v204
        %v223 = vunpack.c.h.bf16 %v204
        %v224 = vunpack.c.l.bf16 %v205
        %v225 = vunpack.c.h.bf16 %v205
        %v226 = vunpack.c.l.bf16 %v206
        %v227 = vunpack.c.h.bf16 %v206
        %v228 = vunpack.c.l.bf16 %v207
        %v229 = vunpack.c.h.bf16 %v207
        %v230 = vunpack.c.l.bf16 %v208
        %v231 = vunpack.c.h.bf16 %v208
        %v232 = vunpack.c.l.bf16 %v209
        %v233 = vunpack.c.h.bf16 %v209
        %v234 = vunpack.c.l.bf16 %v210
        %v235 = vunpack.c.h.bf16 %v210
        %v236 = vunpack.c.l.bf16 %v211
        %v237 = vunpack.c.h.bf16 %v211
        %v238 = vunpack.c.l.bf16 %v212
        %v239 = vunpack.c.h.bf16 %v212
        %v240 = vunpack.c.l.bf16 %v213
        %v241 = vunpack.c.h.bf16 %v213
        %v242 = vunpack.c.l.bf16 %v214
        %v243 = vunpack.c.h.bf16 %v214
        %v244 = vunpack.c.l.bf16 %v215
        %v245 = vunpack.c.h.bf16 %v215
        %v246 = vunpack.c.l.bf16 %v216
        %v247 = vunpack.c.h.bf16 %v216
        %v248 = vunpack.c.l.bf16 %v217
        %v249 = vunpack.c.h.bf16 %v217
        %v250 = vld [vmem:[%s1] sm:$0x3]
        %v252 = vlaneseq
        %v253 = vshrl.u32 %v252, 7
        %v254 = vsub.s32 0, %v253
        %v255 = vrot.slane %v250, %v254
        %v256 = vlaneseq
        %v257 = vshrl.u32 %v256, 7
        %v258 = vsub.s32 1, %v257
        %v259 = vrot.slane %v250, %v258
        %v262 = vmul.f32 %v218, %v255
        %v263 = vmul.f32 %v219, %v259
        %v264 = vmul.f32 %v220, %v255
        %v265 = vmul.f32 %v221, %v259
        %v266 = vmul.f32 %v222, %v255
        %v267 = vmul.f32 %v223, %v259
        %v268 = vmul.f32 %v224, %v255
        %v269 = vmul.f32 %v225, %v259
        %v270 = vmul.f32 %v226, %v255
        %v271 = vmul.f32 %v227, %v259
        %v272 = vmul.f32 %v228, %v255
        %v273 = vmul.f32 %v229, %v259
        %v274 = vmul.f32 %v230, %v255
        %v275 = vmul.f32 %v231, %v259
        %v276 = vmul.f32 %v232, %v255
        %v277 = vmul.f32 %v233, %v259
        %v278 = vmul.f32 %v234, %v255
        %v279 = vmul.f32 %v235, %v259
        %v280 = vmul.f32 %v236, %v255
        %v281 = vmul.f32 %v237, %v259
        %v282 = vmul.f32 %v238, %v255
        %v283 = vmul.f32 %v239, %v259
        %v284 = vmul.f32 %v240, %v255
        %v285 = vmul.f32 %v241, %v259
        %v286 = vmul.f32 %v242, %v255
        %v287 = vmul.f32 %v243, %v259
        %v288 = vmul.f32 %v244, %v255
        %v289 = vmul.f32 %v245, %v259
        %v290 = vmul.f32 %v246, %v255
        %v291 = vmul.f32 %v247, %v259
        %v292 = vmul.f32 %v248, %v255
        %v293 = vmul.f32 %v249, %v259
        %v294 = vld [vmem:[%s2] sm:$0x3]
        %v296 = vlaneseq
        %v297 = vshrl.u32 %v296, 7
        %v298 = vsub.s32 0, %v297
        %v299 = vrot.slane %v294, %v298
        %v300 = vlaneseq
        %v301 = vshrl.u32 %v300, 7
        %v302 = vsub.s32 1, %v301
        %v303 = vrot.slane %v294, %v302
        %v306 = vadd.f32 %v262, %v299
        %v307 = vadd.f32 %v263, %v303
        %v308 = vadd.f32 %v264, %v299
        %v309 = vadd.f32 %v265, %v303
        %v310 = vadd.f32 %v266, %v299
        %v311 = vadd.f32 %v267, %v303
        %v312 = vadd.f32 %v268, %v299
        %v313 = vadd.f32 %v269, %v303
        %v314 = vadd.f32 %v270, %v299
        %v315 = vadd.f32 %v271, %v303
        %v316 = vadd.f32 %v272, %v299
        %v317 = vadd.f32 %v273, %v303
        %v318 = vadd.f32 %v274, %v299
        %v319 = vadd.f32 %v275, %v303
        %v320 = vadd.f32 %v276, %v299
        %v321 = vadd.f32 %v277, %v303
        %v322 = vadd.f32 %v278, %v299
        %v323 = vadd.f32 %v279, %v303
        %v324 = vadd.f32 %v280, %v299
        %v325 = vadd.f32 %v281, %v303
        %v326 = vadd.f32 %v282, %v299
        %v327 = vadd.f32 %v283, %v303
        %v328 = vadd.f32 %v284, %v299
        %v329 = vadd.f32 %v285, %v303
        %v330 = vadd.f32 %v286, %v299
        %v331 = vadd.f32 %v287, %v303
        %v332 = vadd.f32 %v288, %v299
        %v333 = vadd.f32 %v289, %v303
        %v334 = vadd.f32 %v290, %v299
        %v335 = vadd.f32 %v291, %v303
        %v336 = vadd.f32 %v292, %v299
        %v337 = vadd.f32 %v293, %v303
        %v338 = vmax.f32 %v306, 0.0
        %v339 = vmax.f32 %v307, 0.0
        %v340 = vmax.f32 %v308, 0.0
        %v341 = vmax.f32 %v309, 0.0
        %v342 = vmax.f32 %v310, 0.0
        %v343 = vmax.f32 %v311, 0.0
        %v344 = vmax.f32 %v312, 0.0
        %v345 = vmax.f32 %v313, 0.0
        %v346 = vmax.f32 %v314, 0.0
        %v347 = vmax.f32 %v315, 0.0
        %v348 = vmax.f32 %v316, 0.0
        %v349 = vmax.f32 %v317, 0.0
        %v350 = vmax.f32 %v318, 0.0
        %v351 = vmax.f32 %v319, 0.0
        %v352 = vmax.f32 %v320, 0.0
        %v353 = vmax.f32 %v321, 0.0
        %v354 = vmax.f32 %v322, 0.0
        %v355 = vmax.f32 %v323, 0.0
        %v356 = vmax.f32 %v324, 0.0
        %v357 = vmax.f32 %v325, 0.0
        %v358 = vmax.f32 %v326, 0.0
        %v359 = vmax.f32 %v327, 0.0
        %v360 = vmax.f32 %v328, 0.0
        %v361 = vmax.f32 %v329, 0.0
        %v362 = vmax.f32 %v330, 0.0
        %v363 = vmax.f32 %v331, 0.0
        %v364 = vmax.f32 %v332, 0.0
        %v365 = vmax.f32 %v333, 0.0
        %v366 = vmax.f32 %v334, 0.0
        %v367 = vmax.f32 %v335, 0.0
        %v368 = vmax.f32 %v336, 0.0
        %v369 = vmax.f32 %v337, 0.0
        %370 = vxpose.xlu0.b32.start [1/16] %v338, 128
        %371 = vxpose.xlu0.b32.cont [2/16] %v340, 128
        %372 = vxpose.xlu0.b32.cont [3/16] %v342, 128
        %373 = vxpose.xlu0.b32.cont [4/16] %v344, 128
        %374 = vxpose.xlu0.b32.cont [5/16] %v346, 128
        %375 = vxpose.xlu0.b32.cont [6/16] %v348, 128
        %376 = vxpose.xlu0.b32.cont [7/16] %v350, 128
        %377 = vxpose.xlu0.b32.cont [8/16] %v352, 128
        %378 = vxpose.xlu0.b32.cont [9/16] %v354, 128
        %379 = vxpose.xlu0.b32.cont [10/16] %v356, 128
        %380 = vxpose.xlu0.b32.cont [11/16] %v358, 128
        %381 = vxpose.xlu0.b32.cont [12/16] %v360, 128
        %382 = vxpose.xlu0.b32.cont [13/16] %v362, 128
        %383 = vxpose.xlu0.b32.cont [14/16] %v364, 128
        %384 = vxpose.xlu0.b32.cont [15/16] %v366, 128
        %385 = vxpose.xlu0.b32.end [16/16] %v368, 128
        %v386 = vpop.trf.xlu0
        %v387 = vpop.trf.xlu0
        %v388 = vpop.trf.xlu0
        %v389 = vpop.trf.xlu0
        %v390 = vpop.trf.xlu0
        %v391 = vpop.trf.xlu0
        %v392 = vpop.trf.xlu0
        %v393 = vpop.trf.xlu0
        %v394 = vpop.trf.xlu0
        %v395 = vpop.trf.xlu0
        %v396 = vpop.trf.xlu0
        %v397 = vpop.trf.xlu0
        %v398 = vpop.trf.xlu0
        %v399 = vpop.trf.xlu0
        %v400 = vpop.trf.xlu0
        %v401 = vpop.trf.xlu0
        %402 = vxpose.xlu0.b32.start [1/16] %v339, 128
        %403 = vxpose.xlu0.b32.cont [2/16] %v341, 128
        %404 = vxpose.xlu0.b32.cont [3/16] %v343, 128
        %405 = vxpose.xlu0.b32.cont [4/16] %v345, 128
        %406 = vxpose.xlu0.b32.cont [5/16] %v347, 128
        %407 = vxpose.xlu0.b32.cont [6/16] %v349, 128
        %408 = vxpose.xlu0.b32.cont [7/16] %v351, 128
        %409 = vxpose.xlu0.b32.cont [8/16] %v353, 128
        %410 = vxpose.xlu0.b32.cont [9/16] %v355, 128
        %411 = vxpose.xlu0.b32.cont [10/16] %v357, 128
        %412 = vxpose.xlu0.b32.cont [11/16] %v359, 128
        %413 = vxpose.xlu0.b32.cont [12/16] %v361, 128
        %414 = vxpose.xlu0.b32.cont [13/16] %v363, 128
        %415 = vxpose.xlu0.b32.cont [14/16] %v365, 128
        %416 = vxpose.xlu0.b32.cont [15/16] %v367, 128
        %417 = vxpose.xlu0.b32.end [16/16] %v369, 128
        %v418 = vpop.trf.xlu0
        %v419 = vpop.trf.xlu0
        %v420 = vpop.trf.xlu0
        %v421 = vpop.trf.xlu0
        %v422 = vpop.trf.xlu0
        %v423 = vpop.trf.xlu0
        %v424 = vpop.trf.xlu0
        %v425 = vpop.trf.xlu0
        %v426 = vpop.trf.xlu0
        %v427 = vpop.trf.xlu0
        %v428 = vpop.trf.xlu0
        %v429 = vpop.trf.xlu0
        %v430 = vpop.trf.xlu0
        %v431 = vpop.trf.xlu0
        %v432 = vpop.trf.xlu0
        %v433 = vpop.trf.xlu0
        %434 = vst [vmem:[%s190] sm:$0xff] %v386
        %435 = vst [vmem:[%s190 + $0x8] sm:$0xff] %v387
        %436 = vst [vmem:[%s190 + $0x10] sm:$0xff] %v388
        %437 = vst [vmem:[%s190 + $0x18] sm:$0xff] %v389
        %438 = vst [vmem:[%s190 + $0x20] sm:$0xff] %v390
        %439 = vst [vmem:[%s190 + $0x28] sm:$0xff] %v391
        %440 = vst [vmem:[%s190 + $0x30] sm:$0xff] %v392
        %441 = vst [vmem:[%s190 + $0x38] sm:$0xff] %v393
        %442 = vst [vmem:[%s190 + $0x40] sm:$0xff] %v394
        %443 = vst [vmem:[%s190 + $0x48] sm:$0xff] %v395
        %444 = vst [vmem:[%s190 + $0x50] sm:$0xff] %v396
        %445 = vst [vmem:[%s190 + $0x58] sm:$0xff] %v397
        %446 = vst [vmem:[%s190 + $0x60] sm:$0xff] %v398
        %447 = vst [vmem:[%s190 + $0x68] sm:$0xff] %v399
        %448 = vst [vmem:[%s190 + $0x70] sm:$0xff] %v400
        %449 = vst [vmem:[%s190 + $0x78] sm:$0xff] %v401
        %450 = vst [vmem:[%s190 + $0x80] sm:$0xff] %v418
        %451 = vst [vmem:[%s190 + $0x88] sm:$0xff] %v419
        %452 = vst [vmem:[%s190 + $0x90] sm:$0xff] %v420
        %453 = vst [vmem:[%s190 + $0x98] sm:$0xff] %v421
        %454 = vst [vmem:[%s190 + $0xa0] sm:$0xff] %v422
        %455 = vst [vmem:[%s190 + $0xa8] sm:$0xff] %v423
        %456 = vst [vmem:[%s190 + $0xb0] sm:$0xff] %v424
        %457 = vst [vmem:[%s190 + $0xb8] sm:$0xff] %v425
        %458 = vst [vmem:[%s190 + $0xc0] sm:$0xff] %v426
        %459 = vst [vmem:[%s190 + $0xc8] sm:$0xff] %v427
        %460 = vst [vmem:[%s190 + $0xd0] sm:$0xff] %v428
        %461 = vst [vmem:[%s190 + $0xd8] sm:$0xff] %v429
        %462 = vst [vmem:[%s190 + $0xe0] sm:$0xff] %v430
        %463 = vst [vmem:[%s190 + $0xe8] sm:$0xff] %v431
        %464 = vst [vmem:[%s190 + $0xf0] sm:$0xff] %v432
        %465 = vst [vmem:[%s190 + $0xf8] sm:$0xff] %v433
        %s466 = sand.u32 %s109, 1
        %s467 = scalar_lea.sflag [#allocation3], %s466
        %s468 = sand.u32 %s109, 1
        %s469 = smul.addr %s468, 256
        %s470 = scalar_lea.vmem [#allocation2], %s469
        // Predicated region
        $region33: #{base_point_net.33} parent=31 // pred_check
          %p471 = pneg %p119
        $region34: #{base_point_net.33} parent=31 // pred_check_branch
          %473 = sbr.rel (%p471) target = $region36
        $region35: #{base_point_net.33} parent=31 // pred_region
          %s475 = ssub.s32 4096, 4096
          %476 = vsyncadd %s467, %s475
          %s477 = smul.addr %s21, 32
          %s478 = sadd.s32 %s22, %s477
          %s479 = smul.addr %s478, 128
          %s480 = scalar_lea.hbm %s3, %s479
          %s481 = sshll.u32 %s470, 4
          %s482 = int_to_ptr.vmem [resolvable:$true] %s481
          %487 = dma.vmem_to_hbm [thread:$0]  %s482, 4096, %s480, %s467, 128, 128, 8
        $region36: #{base_point_net.33} parent=31 // pred_fallthru
          _
      $region32: #{base_point_net.33} parent=5 // pred_fallthru
        _
      %p488 = scmp.le.s32.totalorder 2, %s12
      // Predicated region
      $region37: #{base_point_net.33} parent=5 // pred_check
        %p489 = pneg %p488
      $region38: #{base_point_net.33} parent=5 // pred_check_branch
        %491 = sbr.rel (%p489) target = $region40
      $region39: #{base_point_net.33} parent=5 // pred_region
        %s492 = ssub.s32 %s12, 2
        // Predicated region
        $region41: #{base_point_net.33} parent=39 // pred_check
          %p493 = pneg %p125
        $region42: #{base_point_net.33} parent=39 // pred_check_branch
          %495 = sbr.rel (%p493) target = $region44
        $region43: #{base_point_net.33} parent=39 // pred_region
          %s496 = sand.u32 %s110, 1
          %s497 = scalar_lea.sflag [#allocation3], %s496
          %s498 = sand.u32 %s110, 1
          %s499 = smul.addr %s498, 256
          %s500 = scalar_lea.vmem [#allocation2], %s499
          %501 = dma.done %s497, 4096
        $region44: #{base_point_net.33} parent=39 // pred_fallthru
          _
      $region40: #{base_point_net.33} parent=5 // pred_fallthru
        _
    $region6: #{base_point_net.33} parent=1 // loop_footer
      %s16 = sadd.s32 1, %s12
    $region7: #{base_point_net.33} parent=1 // loop_footer_branch
      %11 = sbr.rel target = $region3
    $region8: #{base_point_net.33} parent=1 // loop_exit
      _
    %502 = vsyncpa [#allocation3], 1
    %s503 = scalar_lea.sflag [#allocation3], 1
    %504 = vsyncpa %s503, 1

// kernel: base_point_net.30
$region0: #{base_point_net.30}
  #allocation0 [shape = 'u32[]', space=smem, size = 0x4, offset = 0x4, fixed_abs, tag = 'smem constant byte address 0x4 - core index']
  #allocation1 [shape = 'u32[144,128]{1,0:T(1,128)}', space=vmem, size = 0x12000, scoped, tag = 'internal scratch']
  %s0 = inlined_call_operand.vmem [shape: bf16[2,128,64], index: 0, kind: input, shape index: {}]
  %s1 = inlined_call_operand.vmem [shape: bf16[2,64,64], index: 1, kind: input, shape index: {}]
  %s2 = inlined_call_operand.vmem [shape: bf16[2,128,64], index: 2, kind: output, shape index: {0}]
  %s3 = inlined_call_operand.vmem [shape: f32[2,2,64], index: 3, kind: output, shape index: {1}]
  %4 = xla_tuple %s2, %s3
  %s5 = sld [smem:[#allocation0]]
  $region49: #{base_point_net.30} parent=0
    _
  %s7 = ssub.s32 1, %s5
  %s8 = scalar_select 0, %s7, %s5
  loop: start=0, step=1, limit=4
  $region2: #{base_point_net.30} parent=0 // loop_pre_header
    _
  $region3: #{base_point_net.30} parent=0 // loop_header
    %s10 = sphi 0, %s14
    %p11 = scmp.ge.s32.totalorder %s10, 4
    %s17 = sphi 0, %s29
    %s18 = sphi 0, %s25
    %s19 = sphi 0, %s17
    %s20 = sphi 0, %s18
    %s21 = sphi 0, %s19
    %s22 = sphi 0, %s20
    %s34 = sphi 0, %s36
    %s37 = sphi 0, %s34
    %s38 = sphi 0, %s37
    %s54 = sphi 0, %s38
    %s60 = sphi 0, %s62
    %s63 = sphi 0, %s60
    %s64 = sphi 0, %s63
    %s80 = sphi 0, %s64
    %s88 = sphi 0, %s90
    %s91 = sphi 0, %s88
    %s92 = sphi 0, %s91
    %s108 = sphi 0, %s92
    %s116 = sphi 0, %s118
    %s119 = sphi 0, %s116
    %s120 = sphi 0, %s119
    %s136 = sphi 0, %s120
  $region4: #{base_point_net.30} parent=0 // loop_header_branch
    %13 = sbr.rel (%p11) target = $region8
  $region5: #{base_point_net.30} parent=0 // loop_body
    %s15 = ssub.s32 %s10, 1
    %s16 = ssub.s32 %s10, 2
    %s23 = sadd.s32 1, %s18
    %p24 = scmp.ge.s32.totalorder %s23, 1
    %s25 = scalar_select %p24, 0, %s23
    %s26 = sadd.s32 1, %s17
    %s27 = scalar_select %p24, %s26, %s17
    %p28 = scmp.ge.s32.totalorder %s27, 2
    %s29 = scalar_select %p28, 0, %s27
    %s30 = ssub.s32 %s17, %s29
    %s31 = ssub.s32 %s18, %s25
    %s32 = sor.u32 %s30, %s31
    %p33 = scmp.eq.s32.totalorder %s32, 0
    %s35 = sadd.s32 %s34, 1
    %s36 = scalar_select %p33, %s34, %s35
    %p39 = pneg %p33
    %p40 = scmp.eq.s32.totalorder %s10, 1
    %p41 = por %p39, %p40
    %p42 = scmp.ne.s32.totalorder %s34, %s37
    %p43 = scmp.eq.s32.totalorder %s10, 0
    %p44 = por %p42, %p43
    %p45 = scmp.ne.s32.totalorder %s34, %s37
    %p46 = scmp.eq.s32.totalorder %s15, 1
    %p47 = por %p45, %p46
    %p48 = scmp.ne.s32.totalorder %s37, %s38
    %p49 = scmp.eq.s32.totalorder %s15, 0
    %p50 = por %p48, %p49
    %p51 = scmp.ne.s32.totalorder %s37, %s38
    %p52 = scmp.eq.s32.totalorder %s16, 1
    %p53 = por %p51, %p52
    %p55 = scmp.ne.s32.totalorder %s38, %s54
    %p56 = scmp.eq.s32.totalorder %s16, 0
    %p57 = por %p55, %p56
    %s58 = ssub.s32 %s17, %s29
    %p59 = scmp.eq.s32.totalorder %s58, 0
    %s61 = sadd.s32 %s60, 1
    %s62 = scalar_select %p59, %s60, %s61
    %p65 = pneg %p59
    %p66 = scmp.eq.s32.totalorder %s10, 1
    %p67 = por %p65, %p66
    %p68 = scmp.ne.s32.totalorder %s60, %s63
    %p69 = scmp.eq.s32.totalorder %s10, 0
    %p70 = por %p68, %p69
    %p71 = scmp.ne.s32.totalorder %s60, %s63
    %p72 = scmp.eq.s32.totalorder %s15, 1
    %p73 = por %p71, %p72
    %p74 = scmp.ne.s32.totalorder %s63, %s64
    %p75 = scmp.eq.s32.totalorder %s15, 0
    %p76 = por %p74, %p75
    %p77 = scmp.ne.s32.totalorder %s63, %s64
    %p78 = scmp.eq.s32.totalorder %s16, 1
    %p79 = por %p77, %p78
    %p81 = scmp.ne.s32.totalorder %s64, %s80
    %p82 = scmp.eq.s32.totalorder %s16, 0
    %p83 = por %p81, %p82
    %s84 = ssub.s32 %s17, %s29
    %s85 = ssub.s32 %s18, %s25
    %s86 = sor.u32 %s84, %s85
    %p87 = scmp.eq.s32.totalorder %s86, 0
    %s89 = sadd.s32 %s88, 1
    %s90 = scalar_select %p87, %s88, %s89
    %p93 = pneg %p87
    %p94 = scmp.eq.s32.totalorder %s10, 1
    %p95 = por %p93, %p94
    %p96 = scmp.ne.s32.totalorder %s88, %s91
    %p97 = scmp.eq.s32.totalorder %s10, 0
    %p98 = por %p96, %p97
    %p99 = scmp.ne.s32.totalorder %s88, %s91
    %p100 = scmp.eq.s32.totalorder %s15, 1
    %p101 = por %p99, %p100
    %p102 = scmp.ne.s32.totalorder %s91, %s92
    %p103 = scmp.eq.s32.totalorder %s15, 0
    %p104 = por %p102, %p103
    %p105 = scmp.ne.s32.totalorder %s91, %s92
    %p106 = scmp.eq.s32.totalorder %s16, 1
    %p107 = por %p105, %p106
    %p109 = scmp.ne.s32.totalorder %s92, %s108
    %p110 = scmp.eq.s32.totalorder %s16, 0
    %p111 = por %p109, %p110
    %s112 = sadd.s32 %s17, %s18
    %s113 = sadd.s32 %s29, %s25
    %s114 = ssub.s32 %s112, %s113
    %p115 = scmp.eq.s32.totalorder %s114, 0
    %s117 = sadd.s32 %s116, 1
    %s118 = scalar_select %p115, %s116, %s117
    %p121 = pneg %p115
    %p122 = scmp.eq.s32.totalorder %s10, 1
    %p123 = por %p121, %p122
    %p124 = scmp.ne.s32.totalorder %s116, %s119
    %p125 = scmp.eq.s32.totalorder %s10, 0
    %p126 = por %p124, %p125
    %p127 = scmp.ne.s32.totalorder %s116, %s119
    %p128 = scmp.eq.s32.totalorder %s15, 1
    %p129 = por %p127, %p128
    %p130 = scmp.ne.s32.totalorder %s119, %s120
    %p131 = scmp.eq.s32.totalorder %s15, 0
    %p132 = por %p130, %p131
    %p133 = scmp.ne.s32.totalorder %s119, %s120
    %p134 = scmp.eq.s32.totalorder %s16, 1
    %p135 = por %p133, %p134
    %p137 = scmp.ne.s32.totalorder %s120, %s136
    %p138 = scmp.eq.s32.totalorder %s16, 0
    %p139 = por %p137, %p138
    %p140 = scmp.le.s32.totalorder 1, %s10
    %p141 = scmp.lt.s32.totalorder %s10, 3
    %p142 = pnand %p140, %p141
    %p143 = pneg %p142
    // Predicated region
    $region9: #{base_point_net.30} parent=5 // pred_check
      _
    $region10: #{base_point_net.30} parent=5 // pred_check_branch
      %145 = sbr.rel (%p142) target = $region12
    $region11: #{base_point_net.30} parent=5 // pred_region
      %s146 = ssub.s32 %s10, 1
    $region12: #{base_point_net.30} parent=5 // pred_fallthru
      _
    %p147 = scmp.lt.s32.totalorder %s10, 2
    // Predicated region
    $region13: #{base_point_net.30} parent=5 // pred_check
      %p148 = pneg %p147
    $region14: #{base_point_net.30} parent=5 // pred_check_branch
      %150 = sbr.rel (%p148) target = $region16
    $region15: #{base_point_net.30} parent=5 // pred_region
      // Predicated region
      $region17: #{base_point_net.30} parent=15 // pred_check
        %p151 = pneg %p44
      $region18: #{base_point_net.30} parent=15 // pred_check_branch
        %153 = sbr.rel (%p151) target = $region20
      $region19: #{base_point_net.30} parent=15 // pred_region
        %s154 = smul.u32 16, %s18
        %p155 = scmp.lt.s32.totalorder %s17, 1
        %s156 = scalar_select %p155, %s17, 1
        %p157 = scmp.lt.s32.totalorder %s154, 15
        %s158 = scalar_select %p157, %s154, 15
        %s159 = smul.addr %s156, 16
        %s160 = sadd.s32 %s158, %s159
        %s161 = smul.addr %s160, 4
        %s162 = scalar_lea.vmem %s0, %s161
        %s163 = smul.u32 16, %s18
      $region20: #{base_point_net.30} parent=15 // pred_fallthru
        _
      // Predicated region
      $region21: #{base_point_net.30} parent=15 // pred_check
        %p164 = pneg %p70
      $region22: #{base_point_net.30} parent=15 // pred_check_branch
        %166 = sbr.rel (%p164) target = $region24
      $region23: #{base_point_net.30} parent=15 // pred_region
        %p167 = scmp.lt.s32.totalorder %s17, 1
        %s168 = scalar_select %p167, %s17, 1
        %s169 = smul.addr %s168, 8
        %s170 = smul.addr %s169, 4
        %s171 = scalar_lea.vmem %s1, %s170
      $region24: #{base_point_net.30} parent=15 // pred_fallthru
        _
    $region16: #{base_point_net.30} parent=5 // pred_fallthru
      _
    %p172 = scmp.le.s32.totalorder 1, %s10
    %p173 = scmp.lt.s32.totalorder %s10, 3
    %p174 = pnand %p172, %p173
    %p175 = pneg %p174
    // Predicated region
    $region25: #{base_point_net.30} parent=5 // pred_check
      _
    $region26: #{base_point_net.30} parent=5 // pred_check_branch
      %177 = sbr.rel (%p174) target = $region28
    $region27: #{base_point_net.30} parent=5 // pred_region
      %s178 = ssub.s32 %s10, 1
      %s179 = smul.u32 16, %s20
      %p180 = scmp.lt.s32.totalorder %s19, 1
      %s181 = scalar_select %p180, %s19, 1
      %p182 = scmp.lt.s32.totalorder %s179, 15
      %s183 = scalar_select %p182, %s179, 15
      %s184 = smul.addr %s181, 16
      %s185 = sadd.s32 %s183, %s184
      %s186 = smul.addr %s185, 4
      %s187 = scalar_lea.vmem %s0, %s186
      %p188 = pneg %p50
      %p189 = pneg %p47
      %p190 = scmp.lt.s32.totalorder %s19, 1
      %s191 = scalar_select %p190, %s19, 1
      %s192 = smul.addr %s191, 8
      %s193 = smul.addr %s192, 4
      %s194 = scalar_lea.vmem %s1, %s193
      %p195 = pneg %p76
      %p196 = pneg %p73
      %p197 = pneg %p104
      %p198 = pneg %p101
      %s199 = smul.u32 16, %s20
      %p200 = scmp.lt.s32.totalorder %s19, 1
      %s201 = scalar_select %p200, %s19, 1
      %p202 = scmp.lt.s32.totalorder %s199, 15
      %s203 = scalar_select %p202, %s199, 15
      %s204 = smul.addr %s201, 16
      %s205 = sadd.s32 %s203, %s204
      %s206 = smul.addr %s205, 4
      %s207 = scalar_lea.vmem %s2, %s206
      %p208 = pneg %p132
      %p209 = pneg %p129
      %s210 = sadd.s32 %s19, %s20
      %p211 = scmp.lt.s32.totalorder %s210, 1
      %s212 = scalar_select %p211, %s210, 1
      %s213 = smul.addr %s212, 2
      %s214 = scalar_lea.vmem %s3, %s213
      %s215 = smul.u32 16, %s20
      %p216 = scmp.lt.s32.totalorder %s19, 1
      %s217 = scalar_select %p216, %s19, 1
      %p218 = scmp.lt.s32.totalorder %s215, 15
      %s219 = scalar_select %p218, %s215, 15
      %s220 = smul.addr %s217, 16
      %s221 = sadd.s32 %s219, %s220
      %s222 = smul.addr %s221, 4
      %s223 = scalar_lea.vmem %s0, %s222
      %s224 = smul.u32 16, %s20
      %p225 = scmp.lt.s32.totalorder %s19, 1
      %s226 = scalar_select %p225, %s19, 1
      %s227 = smul.addr %s226, 8
      %s228 = smul.addr %s227, 4
      %s229 = scalar_lea.vmem %s1, %s228
      %s230 = smul.u32 16, %s20
      %p231 = scmp.lt.s32.totalorder %s19, 1
      %s232 = scalar_select %p231, %s19, 1
      %p233 = scmp.lt.s32.totalorder %s230, 15
      %s234 = scalar_select %p233, %s230, 15
      %s235 = smul.addr %s232, 16
      %s236 = sadd.s32 %s234, %s235
      %s237 = smul.addr %s236, 4
      %s238 = scalar_lea.vmem %s2, %s237
      %s239 = smul.u32 16, %s20
      %s240 = sadd.s32 %s19, %s20
      %p241 = scmp.lt.s32.totalorder %s240, 1
      %s242 = scalar_select %p241, %s240, 1
      %s243 = smul.addr %s242, 2
      %s244 = scalar_lea.vmem %s3, %s243
      %s245 = sadd.s32 %s19, %s20
      %v247 = vld [vmem:[%s223] sm:$0xf]
      %v248 = vld [vmem:[%s223 + $0x4] sm:$0xf]
      %v249 = vld [vmem:[%s223 + $0x8] sm:$0xf]
      %v250 = vld [vmem:[%s223 + $0xc] sm:$0xf]
      %v251 = vld [vmem:[%s223 + $0x10] sm:$0xf]
      %v252 = vld [vmem:[%s223 + $0x14] sm:$0xf]
      %v253 = vld [vmem:[%s223 + $0x18] sm:$0xf]
      %v254 = vld [vmem:[%s223 + $0x1c] sm:$0xf]
      %v255 = vld [vmem:[%s223 + $0x20] sm:$0xf]
      %v256 = vld [vmem:[%s223 + $0x24] sm:$0xf]
      %v257 = vld [vmem:[%s223 + $0x28] sm:$0xf]
      %v258 = vld [vmem:[%s223 + $0x2c] sm:$0xf]
      %v259 = vld [vmem:[%s223 + $0x30] sm:$0xf]
      %v260 = vld [vmem:[%s223 + $0x34] sm:$0xf]
      %v261 = vld [vmem:[%s223 + $0x38] sm:$0xf]
      %v262 = vld [vmem:[%s223 + $0x3c] sm:$0xf]
      %v263 = vld [vmem:[%s229] sm:$0xf]
      %v264 = vld [vmem:[%s229 + $0x4] sm:$0xf]
      %v265 = vld [vmem:[%s229 + $0x8] sm:$0xf]
      %v266 = vld [vmem:[%s229 + $0xc] sm:$0xf]
      %v267 = vld [vmem:[%s229 + $0x10] sm:$0xf]
      %v268 = vld [vmem:[%s229 + $0x14] sm:$0xf]
      %v269 = vld [vmem:[%s229 + $0x18] sm:$0xf]
      %v270 = vld [vmem:[%s229 + $0x1c] sm:$0xf]
      %v287 = vunpack.c.l.b16 %v247
      %v288 = vunpack.c.l.b16 %v248
      %v289 = vunpack.c.l.b16 %v249
      %v290 = vunpack.c.l.b16 %v250
      %v291 = vunpack.c.l.b16 %v251
      %v292 = vunpack.c.l.b16 %v252
      %v293 = vunpack.c.l.b16 %v253
      %v294 = vunpack.c.l.b16 %v254
      %v295 = vunpack.c.l.b16 %v255
      %v296 = vunpack.c.l.b16 %v256
      %v297 = vunpack.c.l.b16 %v257
      %v298 = vunpack.c.l.b16 %v258
      %v299 = vunpack.c.l.b16 %v259
      %v300 = vunpack.c.l.b16 %v260
      %v301 = vunpack.c.l.b16 %v261
      %v302 = vunpack.c.l.b16 %v262
      %v303 = vpack.c.b16 %v288, %v287
      %v304 = vpack.c.b16 %v290, %v289
      %v305 = vpack.c.b16 %v292, %v291
      %v306 = vpack.c.b16 %v294, %v293
      %v307 = vpack.c.b16 %v296, %v295
      %v308 = vpack.c.b16 %v298, %v297
      %v309 = vpack.c.b16 %v300, %v299
      %v310 = vpack.c.b16 %v302, %v301
      %v319 = vunpack.c.l.b16 %v263
      %v320 = vunpack.c.l.b16 %v264
      %v321 = vunpack.c.l.b16 %v265
      %v322 = vunpack.c.l.b16 %v266
      %v323 = vunpack.c.l.b16 %v267
      %v324 = vunpack.c.l.b16 %v268
      %v325 = vunpack.c.l.b16 %v269
      %v326 = vunpack.c.l.b16 %v270
      %v327 = vpack.c.b16 %v320, %v319
      %v328 = vpack.c.b16 %v322, %v321
      %v329 = vpack.c.b16 %v324, %v323
      %v330 = vpack.c.b16 %v326, %v325
      %vm335 = vcmask 523264
      %v337 = vsel %vm335, %v303, 0
      %v340 = vsel %vm335, %v304, 0
      %v343 = vsel %vm335, %v305, 0
      %v346 = vsel %vm335, %v306, 0
      %v349 = vsel %vm335, %v307, 0
      %v352 = vsel %vm335, %v308, 0
      %v355 = vsel %vm335, %v309, 0
      %v358 = vsel %vm335, %v310, 0
      %360 = vmatprep.subr.bf16.mxu0 0
      %361 = vmatpush1.bf16.msra.mxu0 %v327
      %362 = vmatprep.subr.bf16.mxu0 0
      %363 = vmatpush1.bf16.msra.mxu0 %v328
      %364 = vmatprep.subr.bf16.mxu0 0
      %365 = vmatpush1.bf16.msra.mxu0 %v329
      %366 = vmatprep.subr.bf16.mxu0 0
      %367 = vmatpush1.bf16.msra.mxu0 %v330
      %368 = vmatprep.subr.bf16.mxu0 0
      %369 = vmatpush1.bf16.msra.mxu0 0
      %370 = vmatprep.subr.bf16.mxu0 0
      %371 = vmatpush1.bf16.msra.mxu0 0
      %372 = vmatprep.subr.bf16.mxu0 0
      %373 = vmatpush1.bf16.msra.mxu0 0
      %374 = vmatprep.subr.bf16.mxu0 0
      %375 = vmatpush1.bf16.msra.mxu0 0
      %376 = vmatprep.subr.bf16.mxu0 0
      %377 = vmatpush1.bf16.msra.mxu0 0
      %378 = vmatprep.subr.bf16.mxu0 0
      %379 = vmatpush1.bf16.msra.mxu0 0
      %380 = vmatprep.subr.bf16.mxu0 0
      %381 = vmatpush1.bf16.msra.mxu0 0
      %382 = vmatprep.subr.bf16.mxu0 0
      %383 = vmatpush1.bf16.msra.mxu0 0
      %384 = vmatprep.subr.bf16.mxu0 0
      %385 = vmatpush1.bf16.msra.mxu0 0
      %386 = vmatprep.subr.bf16.mxu0 0
      %387 = vmatpush1.bf16.msra.mxu0 0
      %388 = vmatprep.subr.bf16.mxu0 0
      %389 = vmatpush1.bf16.msra.mxu0 0
      %390 = vmatprep.subr.bf16.mxu0 0
      %391 = vmatpush1.bf16.msra.mxu0 0
      %392 = vmatprep.mubr.bf16.mxu0 0
      %393 = vmatmul.mubr.bf16.gmra.mrb[0].mxu0 %v337
      %v394 = vpop.f32.mrb[0].mxu0
      %v395 = vadd.f32 0.0, %v394
      %v396 = vpop.f32.mrb[0].mxu0
      %v397 = vpop.f32.mrb[0].mxu0
      %v398 = vadd.f32 0.0, %v397
      %v399 = vpop.f32.mrb[0].mxu0
      %400 = vmatprep.mubr.bf16.mxu0 0
      %401 = vmatmul.mubr.bf16.gmra.mrb[0].mxu0 %v340
      %v402 = vpop.f32.mrb[0].mxu0
      %v403 = vadd.f32 0.0, %v402
      %v404 = vpop.f32.mrb[0].mxu0
      %v405 = vpop.f32.mrb[0].mxu0
      %v406 = vadd.f32 0.0, %v405
      %v407 = vpop.f32.mrb[0].mxu0
      %408 = vmatprep.mubr.bf16.mxu0 0
      %409 = vmatmul.mubr.bf16.gmra.mrb[0].mxu0 %v343
      %v410 = vpop.f32.mrb[0].mxu0
      %v411 = vadd.f32 0.0, %v410
      %v412 = vpop.f32.mrb[0].mxu0
      %v413 = vpop.f32.mrb[0].mxu0
      %v414 = vadd.f32 0.0, %v413
      %v415 = vpop.f32.mrb[0].mxu0
      %416 = vmatprep.mubr.bf16.mxu0 0
      %417 = vmatmul.mubr.bf16.gmra.mrb[0].mxu0 %v346
      %v418 = vpop.f32.mrb[0].mxu0
      %v419 = vadd.f32 0.0, %v418
      %v420 = vpop.f32.mrb[0].mxu0
      %v421 = vpop.f32.mrb[0].mxu0
      %v422 = vadd.f32 0.0, %v421
      %v423 = vpop.f32.mrb[0].mxu0
      %424 = vmatprep.mubr.bf16.mxu0 0
      %425 = vmatmul.mubr.bf16.gmra.mrb[0].mxu0 %v349
      %v426 = vpop.f32.mrb[0].mxu0
      %v427 = vadd.f32 0.0, %v426
      %v428 = vpop.f32.mrb[0].mxu0
      %v429 = vpop.f32.mrb[0].mxu0
      %v430 = vadd.f32 0.0, %v429
      %v431 = vpop.f32.mrb[0].mxu0
      %432 = vmatprep.mubr.bf16.mxu0 0
      %433 = vmatmul.mubr.bf16.gmra.mrb[0].mxu0 %v352
      %v434 = vpop.f32.mrb[0].mxu0
      %v435 = vadd.f32 0.0, %v434
      %v436 = vpop.f32.mrb[0].mxu0
      %v437 = vpop.f32.mrb[0].mxu0
      %v438 = vadd.f32 0.0, %v437
      %v439 = vpop.f32.mrb[0].mxu0
      %440 = vmatprep.mubr.bf16.mxu0 0
      %441 = vmatmul.mubr.bf16.gmra.mrb[0].mxu0 %v355
      %v442 = vpop.f32.mrb[0].mxu0
      %v443 = vadd.f32 0.0, %v442
      %v444 = vpop.f32.mrb[0].mxu0
      %v445 = vpop.f32.mrb[0].mxu0
      %v446 = vadd.f32 0.0, %v445
      %v447 = vpop.f32.mrb[0].mxu0
      %448 = vmatprep.mubr.bf16.mxu0 0
      %449 = vmatmul.mubr.bf16.gmra.mrb[0].mxu0 %v358
      %v450 = vpop.f32.mrb[0].mxu0
      %v451 = vadd.f32 0.0, %v450
      %v452 = vpop.f32.mrb[0].mxu0
      %v453 = vpop.f32.mrb[0].mxu0
      %v454 = vadd.f32 0.0, %v453
      %v455 = vpop.f32.mrb[0].mxu0
      %456 = vdwg.mxu0
      %v457 = vpack.c.bf16 %v398, %v395
      %v458 = vpack.c.bf16 %v406, %v403
      %v459 = vpack.c.bf16 %v414, %v411
      %v460 = vpack.c.bf16 %v422, %v419
      %v461 = vpack.c.bf16 %v430, %v427
      %v462 = vpack.c.bf16 %v438, %v435
      %v463 = vpack.c.bf16 %v446, %v443
      %v464 = vpack.c.bf16 %v454, %v451
      %v473 = vunpack.c.l.b16 %v457
      %v474 = vunpack.c.h.b16 %v457
      %v475 = vunpack.c.l.b16 %v458
      %v476 = vunpack.c.h.b16 %v458
      %v477 = vunpack.c.l.b16 %v459
      %v478 = vunpack.c.h.b16 %v459
      %v479 = vunpack.c.l.b16 %v460
      %v480 = vunpack.c.h.b16 %v460
      %v481 = vunpack.c.l.b16 %v461
      %v482 = vunpack.c.h.b16 %v461
      %v483 = vunpack.c.l.b16 %v462
      %v484 = vunpack.c.h.b16 %v462
      %v485 = vunpack.c.l.b16 %v463
      %v486 = vunpack.c.h.b16 %v463
      %v487 = vunpack.c.l.b16 %v464
      %v488 = vunpack.c.h.b16 %v464
      %v489 = vpack.c.b16 %v473, %v473
      %v490 = vpack.c.b16 %v474, %v474
      %v491 = vpack.c.b16 %v475, %v475
      %v492 = vpack.c.b16 %v476, %v476
      %v493 = vpack.c.b16 %v477, %v477
      %v494 = vpack.c.b16 %v478, %v478
      %v495 = vpack.c.b16 %v479, %v479
      %v496 = vpack.c.b16 %v480, %v480
      %v497 = vpack.c.b16 %v481, %v481
      %v498 = vpack.c.b16 %v482, %v482
      %v499 = vpack.c.b16 %v483, %v483
      %v500 = vpack.c.b16 %v484, %v484
      %v501 = vpack.c.b16 %v485, %v485
      %v502 = vpack.c.b16 %v486, %v486
      %v503 = vpack.c.b16 %v487, %v487
      %v504 = vpack.c.b16 %v488, %v488
      %vm521 = vcmask 519168
      %522 = vst.msk [vmem:[%s238] sm:$0xf] %vm521, %v489
      %523 = vst.msk [vmem:[%s238 + $0x4] sm:$0xf] %vm521, %v490
      %524 = vst.msk [vmem:[%s238 + $0x8] sm:$0xf] %vm521, %v491
      %525 = vst.msk [vmem:[%s238 + $0xc] sm:$0xf] %vm521, %v492
      %526 = vst.msk [vmem:[%s238 + $0x10] sm:$0xf] %vm521, %v493
      %527 = vst.msk [vmem:[%s238 + $0x14] sm:$0xf] %vm521, %v494
      %528 = vst.msk [vmem:[%s238 + $0x18] sm:$0xf] %vm521, %v495
      %529 = vst.msk [vmem:[%s238 + $0x1c] sm:$0xf] %vm521, %v496
      %530 = vst.msk [vmem:[%s238 + $0x20] sm:$0xf] %vm521, %v497
      %531 = vst.msk [vmem:[%s238 + $0x24] sm:$0xf] %vm521, %v498
      %532 = vst.msk [vmem:[%s238 + $0x28] sm:$0xf] %vm521, %v499
      %533 = vst.msk [vmem:[%s238 + $0x2c] sm:$0xf] %vm521, %v500
      %534 = vst.msk [vmem:[%s238 + $0x30] sm:$0xf] %vm521, %v501
      %535 = vst.msk [vmem:[%s238 + $0x34] sm:$0xf] %vm521, %v502
      %536 = vst.msk [vmem:[%s238 + $0x38] sm:$0xf] %vm521, %v503
      %537 = vst.msk [vmem:[%s238 + $0x3c] sm:$0xf] %vm521, %v504
      %v538 = vsel %vm335, %v395, 0.0
      %v539 = vsel %vm335, %v398, 0.0
      %v540 = vadd.f32 %v538, %v539
      %v541 = vsel %vm335, %v403, 0.0
      %v542 = vadd.f32 %v540, %v541
      %v543 = vsel %vm335, %v406, 0.0
      %v544 = vadd.f32 %v542, %v543
      %v545 = vsel %vm335, %v411, 0.0
      %v546 = vadd.f32 %v544, %v545
      %v547 = vsel %vm335, %v414, 0.0
      %v548 = vadd.f32 %v546, %v547
      %v549 = vsel %vm335, %v419, 0.0
      %v550 = vadd.f32 %v548, %v549
      %v551 = vsel %vm335, %v422, 0.0
      %v552 = vadd.f32 %v550, %v551
      %v553 = vsel %vm335, %v427, 0.0
      %v554 = vadd.f32 %v552, %v553
      %v555 = vsel %vm335, %v430, 0.0
      %v556 = vadd.f32 %v554, %v555
      %v557 = vsel %vm335, %v435, 0.0
      %v558 = vadd.f32 %v556, %v557
      %v559 = vsel %vm335, %v438, 0.0
      %v560 = vadd.f32 %v558, %v559
      %v561 = vsel %vm335, %v443, 0.0
      %v562 = vadd.f32 %v560, %v561
      %v563 = vsel %vm335, %v446, 0.0
      %v564 = vadd.f32 %v562, %v563
      %v565 = vsel %vm335, %v451, 0.0
      %v566 = vadd.f32 %v564, %v565
      %v567 = vsel %vm335, %v454, 0.0
      %v568 = vadd.f32 %v566, %v567
      %v569 = vrot.slane %v568, 4
      %v570 = vadd.f32 %v568, %v569
      %v571 = vrot.slane %v570, 2
      %v572 = vadd.f32 %v570, %v571
      %v573 = vrot.slane %v572, 1
      %v574 = vadd.f32 %v572, %v573
      %v575 = vmul.f32 %v395, %v395
      %v576 = vmul.f32 %v398, %v398
      %v577 = vmul.f32 %v403, %v403
      %v578 = vmul.f32 %v406, %v406
      %v579 = vmul.f32 %v411, %v411
      %v580 = vmul.f32 %v414, %v414
      %v581 = vmul.f32 %v419, %v419
      %v582 = vmul.f32 %v422, %v422
      %v583 = vmul.f32 %v427, %v427
      %v584 = vmul.f32 %v430, %v430
      %v585 = vmul.f32 %v435, %v435
      %v586 = vmul.f32 %v438, %v438
      %v587 = vmul.f32 %v443, %v443
      %v588 = vmul.f32 %v446, %v446
      %v589 = vmul.f32 %v451, %v451
      %v590 = vmul.f32 %v454, %v454
      %v591 = vsel %vm335, %v575, 0.0
      %v592 = vsel %vm335, %v576, 0.0
      %v593 = vadd.f32 %v591, %v592
      %v594 = vsel %vm335, %v577, 0.0
      %v595 = vadd.f32 %v593, %v594
      %v596 = vsel %vm335, %v578, 0.0
      %v597 = vadd.f32 %v595, %v596
      %v598 = vsel %vm335, %v579, 0.0
      %v599 = vadd.f32 %v597, %v598
      %v600 = vsel %vm335, %v580, 0.0
      %v601 = vadd.f32 %v599, %v600
      %v602 = vsel %vm335, %v581, 0.0
      %v603 = vadd.f32 %v601, %v602
      %v604 = vsel %vm335, %v582, 0.0
      %v605 = vadd.f32 %v603, %v604
      %v606 = vsel %vm335, %v583, 0.0
      %v607 = vadd.f32 %v605, %v606
      %v608 = vsel %vm335, %v584, 0.0
      %v609 = vadd.f32 %v607, %v608
      %v610 = vsel %vm335, %v585, 0.0
      %v611 = vadd.f32 %v609, %v610
      %v612 = vsel %vm335, %v586, 0.0
      %v613 = vadd.f32 %v611, %v612
      %v614 = vsel %vm335, %v587, 0.0
      %v615 = vadd.f32 %v613, %v614
      %v616 = vsel %vm335, %v588, 0.0
      %v617 = vadd.f32 %v615, %v616
      %v618 = vsel %vm335, %v589, 0.0
      %v619 = vadd.f32 %v617, %v618
      %v620 = vsel %vm335, %v590, 0.0
      %v621 = vadd.f32 %v619, %v620
      %v622 = vrot.slane %v621, 4
      %v623 = vadd.f32 %v621, %v622
      %v624 = vrot.slane %v623, 2
      %v625 = vadd.f32 %v623, %v624
      %v626 = vrot.slane %v625, 1
      %v627 = vadd.f32 %v625, %v626
      %vm628 = vcmask 1040384
      %v629 = vsel %vm628, %v574, %v627
      %vm630 = vcmask 517120
      %631 = vst.msk [vmem:[%s244] sm:$0x3] %vm630, %v629
      %s632 = smul.u32 16, %s20
      %p633 = scmp.lt.s32.totalorder %s19, 1
      %s634 = scalar_select %p633, %s19, 1
      %p635 = scmp.lt.s32.totalorder %s632, 15
      %s636 = scalar_select %p635, %s632, 15
      %s637 = smul.addr %s634, 16
      %s638 = sadd.s32 %s636, %s637
      %s639 = smul.addr %s638, 4
      %s640 = scalar_lea.vmem %s2, %s639
      %s641 = sadd.s32 %s19, %s20
      %p642 = scmp.lt.s32.totalorder %s641, 1
      %s643 = scalar_select %p642, %s641, 1
      %s644 = smul.addr %s643, 2
      %s645 = scalar_lea.vmem %s3, %s644
      // Predicated region
      $region29: #{base_point_net.30} parent=27 // pred_check
        %p646 = pneg %p101
      $region30: #{base_point_net.30} parent=27 // pred_check_branch
        %648 = sbr.rel (%p646) target = $region32
      $region31: #{base_point_net.30} parent=27 // pred_region
        %s649 = smul.u32 16, %s20
      $region32: #{base_point_net.30} parent=27 // pred_fallthru
        _
      // Predicated region
      $region33: #{base_point_net.30} parent=27 // pred_check
        %p650 = pneg %p129
      $region34: #{base_point_net.30} parent=27 // pred_check_branch
        %652 = sbr.rel (%p650) target = $region36
      $region35: #{base_point_net.30} parent=27 // pred_region
        %s653 = sadd.s32 %s19, %s20
      $region36: #{base_point_net.30} parent=27 // pred_fallthru
        _
    $region28: #{base_point_net.30} parent=5 // pred_fallthru
      _
    %p654 = scmp.le.s32.totalorder 2, %s10
    // Predicated region
    $region37: #{base_point_net.30} parent=5 // pred_check
      %p655 = pneg %p654
    $region38: #{base_point_net.30} parent=5 // pred_check_branch
      %657 = sbr.rel (%p655) target = $region40
    $region39: #{base_point_net.30} parent=5 // pred_region
      %s658 = ssub.s32 %s10, 2
      // Predicated region
      $region41: #{base_point_net.30} parent=39 // pred_check
        %p659 = pneg %p107
      $region42: #{base_point_net.30} parent=39 // pred_check_branch
        %661 = sbr.rel (%p659) target = $region44
      $region43: #{base_point_net.30} parent=39 // pred_region
        %s662 = smul.u32 16, %s22
        %p663 = scmp.lt.s32.totalorder %s21, 1
        %s664 = scalar_select %p663, %s21, 1
        %p665 = scmp.lt.s32.totalorder %s662, 15
        %s666 = scalar_select %p665, %s662, 15
        %s667 = smul.addr %s664, 16
        %s668 = sadd.s32 %s666, %s667
        %s669 = smul.addr %s668, 4
        %s670 = scalar_lea.vmem %s2, %s669
      $region44: #{base_point_net.30} parent=39 // pred_fallthru
        _
      // Predicated region
      $region45: #{base_point_net.30} parent=39 // pred_check
        %p671 = pneg %p135
      $region46: #{base_point_net.30} parent=39 // pred_check_branch
        %673 = sbr.rel (%p671) target = $region48
      $region47: #{base_point_net.30} parent=39 // pred_region
        %s674 = sadd.s32 %s21, %s22
        %p675 = scmp.lt.s32.totalorder %s674, 1
        %s676 = scalar_select %p675, %s674, 1
        %s677 = smul.addr %s676, 2
        %s678 = scalar_lea.vmem %s3, %s677
      $region48: #{base_point_net.30} parent=39 // pred_fallthru
        _
    $region40: #{base_point_net.30} parent=5 // pred_fallthru
      _
  $region6: #{base_point_net.30} parent=0 // loop_footer
    %s14 = sadd.s32 1, %s10
  $region7: #{base_point_net.30} parent=0 // loop_footer_branch
    %9 = sbr.rel target = $region3
  $region8: #{base_point_net.30} parent=0 // loop_exit
    _

// kernel: base_point_net.29
$region0: #{base_point_net.29}
  #allocation0 [shape = 'u32[]', space=smem, size = 0x4, offset = 0x4, fixed_abs, tag = 'smem constant byte address 0x4 - core index']
  #allocation1 [shape = 'u32[144,128]{1,0:T(1,128)}', space=vmem, size = 0x12000, scoped, tag = 'internal scratch']
  %s0 = inlined_call_operand.vmem [shape: f32[2,256], index: 0, kind: input, shape index: {}]
  %s1 = inlined_call_operand.vmem [shape: bf16[256,256], index: 1, kind: input, shape index: {}]
  %s2 = inlined_call_operand.vmem [shape: f32[1,256], index: 2, kind: input, shape index: {}]
  %s3 = inlined_call_operand.vmem [shape: f32[1,256], index: 3, kind: input, shape index: {}]
  %s4 = inlined_call_operand.vmem [shape: bf16[256,128], index: 4, kind: input, shape index: {}]
  %s5 = inlined_call_operand.vmem [shape: f32[1,128], index: 5, kind: input, shape index: {}]
  %s6 = inlined_call_operand.vmem [shape: f32[1,128], index: 6, kind: input, shape index: {}]
  %s7 = inlined_call_operand.vmem [shape: bf16[128,4096], index: 7, kind: input, shape index: {}]
  %s8 = inlined_call_operand.vmem [shape: f32[1,4096], index: 8, kind: input, shape index: {}]
  %s9 = inlined_call_operand.vmem [shape: f32[2,4096], index: 9, kind: output, shape index: {}]
  %s10 = sld [smem:[#allocation0]]
  $region46: #{base_point_net.29} parent=0
    _
  %s12 = ssub.s32 1, %s10
  %s13 = scalar_select 0, %s12, %s10
  // Predicated region
  $region2: #{base_point_net.29} parent=0 // pred_check
    _
  $region3: #{base_point_net.29} parent=0 // pred_check_branch
    %15 = sbr.rel (0) target = $region5
  $region4: #{base_point_net.29} parent=0 // pred_region
    _
  $region5: #{base_point_net.29} parent=0 // pred_fallthru
    _
  // Predicated region
  $region6: #{base_point_net.29} parent=0 // pred_check
    _
  $region7: #{base_point_net.29} parent=0 // pred_check_branch
    %17 = sbr.rel (0) target = $region9
  $region8: #{base_point_net.29} parent=0 // pred_region
    _
  $region9: #{base_point_net.29} parent=0 // pred_fallthru
    _
  // Predicated region
  $region10: #{base_point_net.29} parent=0 // pred_check
    _
  $region11: #{base_point_net.29} parent=0 // pred_check_branch
    %19 = sbr.rel (0) target = $region13
  $region12: #{base_point_net.29} parent=0 // pred_region
    _
  $region13: #{base_point_net.29} parent=0 // pred_fallthru
    _
  // Predicated region
  $region14: #{base_point_net.29} parent=0 // pred_check
    _
  $region15: #{base_point_net.29} parent=0 // pred_check_branch
    %21 = sbr.rel (0) target = $region17
  $region16: #{base_point_net.29} parent=0 // pred_region
    _
  $region17: #{base_point_net.29} parent=0 // pred_fallthru
    _
  // Predicated region
  $region18: #{base_point_net.29} parent=0 // pred_check
    _
  $region19: #{base_point_net.29} parent=0 // pred_check_branch
    %23 = sbr.rel (0) target = $region21
  $region20: #{base_point_net.29} parent=0 // pred_region
    _
  $region21: #{base_point_net.29} parent=0 // pred_fallthru
    _
  // Predicated region
  $region22: #{base_point_net.29} parent=0 // pred_check
    _
  $region23: #{base_point_net.29} parent=0 // pred_check_branch
    %25 = sbr.rel (0) target = $region25
  $region24: #{base_point_net.29} parent=0 // pred_region
    _
  $region25: #{base_point_net.29} parent=0 // pred_fallthru
    _
  // Predicated region
  $region26: #{base_point_net.29} parent=0 // pred_check
    _
  $region27: #{base_point_net.29} parent=0 // pred_check_branch
    %27 = sbr.rel (0) target = $region29
  $region28: #{base_point_net.29} parent=0 // pred_region
    _
  $region29: #{base_point_net.29} parent=0 // pred_fallthru
    _
  // Predicated region
  $region30: #{base_point_net.29} parent=0 // pred_check
    _
  $region31: #{base_point_net.29} parent=0 // pred_check_branch
    %29 = sbr.rel (0) target = $region33
  $region32: #{base_point_net.29} parent=0 // pred_region
    _
  $region33: #{base_point_net.29} parent=0 // pred_fallthru
    _
  // Predicated region
  $region34: #{base_point_net.29} parent=0 // pred_check
    _
  $region35: #{base_point_net.29} parent=0 // pred_check_branch
    %31 = sbr.rel (0) target = $region37
  $region36: #{base_point_net.29} parent=0 // pred_region
    _
  $region37: #{base_point_net.29} parent=0 // pred_fallthru
    _
  %v33 = vld [vmem:[%s0] sm:$0xf]
  %v36 = vunpack.c.l.s4 1983009808
  %v37 = vunpack.c.0.s8 %v36
  %v38 = vlaneseq
  %v39 = vshrl.u32 %v38, 7
  %v40 = vsub.s32 %v37, %v39
  %v41 = vrot.slane %v33, %v40
  %v42 = vcombine.high %v41, %v41
  %v45 = vpack.c.bf16 %v41, %v41
  %v46 = vpack.c.bf16 %v42, %v42
  %v47 = vld [vmem:[%s1] sm:$0xff]
  %v48 = vld [vmem:[%s1 + $0x8] sm:$0xff]
  %v49 = vld [vmem:[%s1 + $0x10] sm:$0xff]
  %v50 = vld [vmem:[%s1 + $0x18] sm:$0xff]
  %v51 = vld [vmem:[%s1 + $0x20] sm:$0xff]
  %v52 = vld [vmem:[%s1 + $0x28] sm:$0xff]
  %v53 = vld [vmem:[%s1 + $0x30] sm:$0xff]
  %v54 = vld [vmem:[%s1 + $0x38] sm:$0xff]
  %v55 = vld [vmem:[%s1 + $0x40] sm:$0xff]
  %v56 = vld [vmem:[%s1 + $0x48] sm:$0xff]
  %v57 = vld [vmem:[%s1 + $0x50] sm:$0xff]
  %v58 = vld [vmem:[%s1 + $0x58] sm:$0xff]
  %v59 = vld [vmem:[%s1 + $0x60] sm:$0xff]
  %v60 = vld [vmem:[%s1 + $0x68] sm:$0xff]
  %v61 = vld [vmem:[%s1 + $0x70] sm:$0xff]
  %v62 = vld [vmem:[%s1 + $0x78] sm:$0xff]
  %v63 = vld [vmem:[%s1 + $0x80] sm:$0xff]
  %v64 = vld [vmem:[%s1 + $0x88] sm:$0xff]
  %v65 = vld [vmem:[%s1 + $0x90] sm:$0xff]
  %v66 = vld [vmem:[%s1 + $0x98] sm:$0xff]
  %v67 = vld [vmem:[%s1 + $0xa0] sm:$0xff]
  %v68 = vld [vmem:[%s1 + $0xa8] sm:$0xff]
  %v69 = vld [vmem:[%s1 + $0xb0] sm:$0xff]
  %v70 = vld [vmem:[%s1 + $0xb8] sm:$0xff]
  %v71 = vld [vmem:[%s1 + $0xc0] sm:$0xff]
  %v72 = vld [vmem:[%s1 + $0xc8] sm:$0xff]
  %v73 = vld [vmem:[%s1 + $0xd0] sm:$0xff]
  %v74 = vld [vmem:[%s1 + $0xd8] sm:$0xff]
  %v75 = vld [vmem:[%s1 + $0xe0] sm:$0xff]
  %v76 = vld [vmem:[%s1 + $0xe8] sm:$0xff]
  %v77 = vld [vmem:[%s1 + $0xf0] sm:$0xff]
  %v78 = vld [vmem:[%s1 + $0xf8] sm:$0xff]
  %v111 = vunpack.c.l.b16 %v47
  %v112 = vunpack.c.h.b16 %v47
  %v113 = vunpack.c.l.b16 %v48
  %v114 = vunpack.c.h.b16 %v48
  %v115 = vunpack.c.l.b16 %v49
  %v116 = vunpack.c.h.b16 %v49
  %v117 = vunpack.c.l.b16 %v50
  %v118 = vunpack.c.h.b16 %v50
  %v119 = vunpack.c.l.b16 %v51
  %v120 = vunpack.c.h.b16 %v51
  %v121 = vunpack.c.l.b16 %v52
  %v122 = vunpack.c.h.b16 %v52
  %v123 = vunpack.c.l.b16 %v53
  %v124 = vunpack.c.h.b16 %v53
  %v125 = vunpack.c.l.b16 %v54
  %v126 = vunpack.c.h.b16 %v54
  %v127 = vunpack.c.l.b16 %v55
  %v128 = vunpack.c.h.b16 %v55
  %v129 = vunpack.c.l.b16 %v56
  %v130 = vunpack.c.h.b16 %v56
  %v131 = vunpack.c.l.b16 %v57
  %v132 = vunpack.c.h.b16 %v57
  %v133 = vunpack.c.l.b16 %v58
  %v134 = vunpack.c.h.b16 %v58
  %v135 = vunpack.c.l.b16 %v59
  %v136 = vunpack.c.h.b16 %v59
  %v137 = vunpack.c.l.b16 %v60
  %v138 = vunpack.c.h.b16 %v60
  %v139 = vunpack.c.l.b16 %v61
  %v140 = vunpack.c.h.b16 %v61
  %v141 = vunpack.c.l.b16 %v62
  %v142 = vunpack.c.h.b16 %v62
  %v143 = vunpack.c.l.b16 %v63
  %v144 = vunpack.c.h.b16 %v63
  %v145 = vunpack.c.l.b16 %v64
  %v146 = vunpack.c.h.b16 %v64
  %v147 = vunpack.c.l.b16 %v65
  %v148 = vunpack.c.h.b16 %v65
  %v149 = vunpack.c.l.b16 %v66
  %v150 = vunpack.c.h.b16 %v66
  %v151 = vunpack.c.l.b16 %v67
  %v152 = vunpack.c.h.b16 %v67
  %v153 = vunpack.c.l.b16 %v68
  %v154 = vunpack.c.h.b16 %v68
  %v155 = vunpack.c.l.b16 %v69
  %v156 = vunpack.c.h.b16 %v69
  %v157 = vunpack.c.l.b16 %v70
  %v158 = vunpack.c.h.b16 %v70
  %v159 = vunpack.c.l.b16 %v71
  %v160 = vunpack.c.h.b16 %v71
  %v161 = vunpack.c.l.b16 %v72
  %v162 = vunpack.c.h.b16 %v72
  %v163 = vunpack.c.l.b16 %v73
  %v164 = vunpack.c.h.b16 %v73
  %v165 = vunpack.c.l.b16 %v74
  %v166 = vunpack.c.h.b16 %v74
  %v167 = vunpack.c.l.b16 %v75
  %v168 = vunpack.c.h.b16 %v75
  %v169 = vunpack.c.l.b16 %v76
  %v170 = vunpack.c.h.b16 %v76
  %v171 = vunpack.c.l.b16 %v77
  %v172 = vunpack.c.h.b16 %v77
  %v173 = vunpack.c.l.b16 %v78
  %v174 = vunpack.c.h.b16 %v78
  %v175 = vpack.c.b16 %v113, %v111
  %v176 = vpack.c.b16 %v114, %v112
  %v177 = vpack.c.b16 %v117, %v115
  %v178 = vpack.c.b16 %v118, %v116
  %v179 = vpack.c.b16 %v121, %v119
  %v180 = vpack.c.b16 %v122, %v120
  %v181 = vpack.c.b16 %v125, %v123
  %v182 = vpack.c.b16 %v126, %v124
  %v183 = vpack.c.b16 %v129, %v127
  %v184 = vpack.c.b16 %v130, %v128
  %v185 = vpack.c.b16 %v133, %v131
  %v186 = vpack.c.b16 %v134, %v132
  %v187 = vpack.c.b16 %v137, %v135
  %v188 = vpack.c.b16 %v138, %v136
  %v189 = vpack.c.b16 %v141, %v139
  %v190 = vpack.c.b16 %v142, %v140
  %v191 = vpack.c.b16 %v145, %v143
  %v192 = vpack.c.b16 %v146, %v144
  %v193 = vpack.c.b16 %v149, %v147
  %v194 = vpack.c.b16 %v150, %v148
  %v195 = vpack.c.b16 %v153, %v151
  %v196 = vpack.c.b16 %v154, %v152
  %v197 = vpack.c.b16 %v157, %v155
  %v198 = vpack.c.b16 %v158, %v156
  %v199 = vpack.c.b16 %v161, %v159
  %v200 = vpack.c.b16 %v162, %v160
  %v201 = vpack.c.b16 %v165, %v163
  %v202 = vpack.c.b16 %v166, %v164
  %v203 = vpack.c.b16 %v169, %v167
  %v204 = vpack.c.b16 %v170, %v168
  %v205 = vpack.c.b16 %v173, %v171
  %v206 = vpack.c.b16 %v174, %v172
  %239 = vmatprep.subr.bf16.mxu0 %v176
  %240 = vmatpush1.bf16.msra.mxu0 %v175
  %241 = vmatprep.subr.bf16.mxu0 %v178
  %242 = vmatpush1.bf16.msra.mxu0 %v177
  %243 = vmatprep.subr.bf16.mxu0 %v180
  %244 = vmatpush1.bf16.msra.mxu0 %v179
  %245 = vmatprep.subr.bf16.mxu0 %v182
  %246 = vmatpush1.bf16.msra.mxu0 %v181
  %247 = vmatprep.subr.bf16.mxu0 %v184
  %248 = vmatpush1.bf16.msra.mxu0 %v183
  %249 = vmatprep.subr.bf16.mxu0 %v186
  %250 = vmatpush1.bf16.msra.mxu0 %v185
  %251 = vmatprep.subr.bf16.mxu0 %v188
  %252 = vmatpush1.bf16.msra.mxu0 %v187
  %253 = vmatprep.subr.bf16.mxu0 %v190
  %254 = vmatpush1.bf16.msra.mxu0 %v189
  %255 = vmatprep.subr.bf16.mxu0 %v192
  %256 = vmatpush1.bf16.msra.mxu0 %v191
  %257 = vmatprep.subr.bf16.mxu0 %v194
  %258 = vmatpush1.bf16.msra.mxu0 %v193
  %259 = vmatprep.subr.bf16.mxu0 %v196
  %260 = vmatpush1.bf16.msra.mxu0 %v195
  %261 = vmatprep.subr.bf16.mxu0 %v198
  %262 = vmatpush1.bf16.msra.mxu0 %v197
  %263 = vmatprep.subr.bf16.mxu0 %v200
  %264 = vmatpush1.bf16.msra.mxu0 %v199
  %265 = vmatprep.subr.bf16.mxu0 %v202
  %266 = vmatpush1.bf16.msra.mxu0 %v201
  %267 = vmatprep.subr.bf16.mxu0 %v204
  %268 = vmatpush1.bf16.msra.mxu0 %v203
  %269 = vmatprep.subr.bf16.mxu0 %v206
  %270 = vmatpush1.bf16.msra.mxu0 %v205
  %271 = vmatprep.mubr.bf16.mxu0 %v46
  %272 = vmatmul.mubr.bf16.gmra.mrb[0].mxu0 %v45
  %v273 = vpop.f32.mrb[0].mxu0
  %v274 = vadd.f32 0.0, %v273
  %v275 = vpop.f32.mrb[0].mxu0
  %v276 = vadd.f32 0.0, %v275
  %v277 = vpop.f32.mrb[0].mxu0
  %v278 = vpop.f32.mrb[0].mxu0
  %279 = vdwg.mxu0
  %v280 = vld [vmem:[%s2] sm:$0x3]
  %v281 = vld [vmem:[%s3] sm:$0x3]
  %vm282 = vcmask 1041408
  %v283 = vsel %vm282, %v274, 0.0
  %v284 = vrot.slane %v283, 4
  %v285 = vadd.f32 %v283, %v284
  %v286 = vrot.slane %v285, 2
  %v287 = vadd.f32 %v285, %v286
  %v288 = vrot.slane %v287, 1
  %v289 = vadd.f32 %v287, %v288
  %v290 = vsel %vm282, %v276, 0.0
  %v291 = vrot.slane %v290, 4
  %v292 = vadd.f32 %v290, %v291
  %v293 = vrot.slane %v292, 2
  %v294 = vadd.f32 %v292, %v293
  %v295 = vrot.slane %v294, 1
  %v296 = vadd.f32 %v294, %v295
  %v297 = vrcp.pop 2.0
  %v298 = vmul.f32 %v289, %v297
  %v299 = vmul.f32 %v296, %v297
  %v300 = vsub.f32 %v274, %v298
  %v301 = vsub.f32 %v276, %v299
  %v302 = vmul.f32 %v300, %v300
  %v303 = vmul.f32 %v301, %v301
  %v304 = vsel %vm282, %v302, 0.0
  %v305 = vrot.slane %v304, 4
  %v306 = vadd.f32 %v304, %v305
  %v307 = vrot.slane %v306, 2
  %v308 = vadd.f32 %v306, %v307
  %v309 = vrot.slane %v308, 1
  %v310 = vadd.f32 %v308, %v309
  %v311 = vsel %vm282, %v303, 0.0
  %v312 = vrot.slane %v311, 4
  %v313 = vadd.f32 %v311, %v312
  %v314 = vrot.slane %v313, 2
  %v315 = vadd.f32 %v313, %v314
  %v316 = vrot.slane %v315, 1
  %v317 = vadd.f32 %v315, %v316
  %v318 = vmul.f32 %v310, %v297
  %v319 = vmul.f32 %v317, %v297
  %v320 = vadd.f32 %v318, 1e-05
  %v321 = vadd.f32 %v319, 1e-05
  %v322 = vrsqrt.pop %v320
  %v323 = vrsqrt.pop %v321
  %v326 = vcombine.low %v322, %v323
  %v328 = vunpack.c.l.s4 1966171168
  %v329 = vunpack.c.0.s8 %v328
  %v330 = vlaneseq
  %v331 = vshrl.u32 %v330, 7
  %v332 = vsub.s32 %v329, %v331
  %v333 = vrot.slane %v326, %v332
  %v335 = vunpack.c.l.s4 1966171168
  %v336 = vunpack.c.0.s8 %v335
  %v337 = vlaneseq
  %v338 = vshrl.u32 %v337, 7
  %v339 = vsub.s32 %v336, %v338
  %v340 = vrot.slane %v333, %v339
  %v342 = vmul.f32 %v280, %v340
  %v344 = vlaneseq
  %v345 = vshrl.u32 %v344, 7
  %v346 = vsub.s32 0, %v345
  %v347 = vrot.slane %v342, %v346
  %v348 = vlaneseq
  %v349 = vshrl.u32 %v348, 7
  %v350 = vsub.s32 1, %v349
  %v351 = vrot.slane %v342, %v350
  %v354 = vmul.f32 %v274, %v347
  %v355 = vmul.f32 %v276, %v351
  %v356 = vmul.f32 %v298, %v347
  %v357 = vmul.f32 %v299, %v351
  %v360 = vcombine.low %v356, %v357
  %v362 = vunpack.c.l.s4 1966171168
  %v363 = vunpack.c.0.s8 %v362
  %v364 = vlaneseq
  %v365 = vshrl.u32 %v364, 7
  %v366 = vsub.s32 %v363, %v365
  %v367 = vrot.slane %v360, %v366
  %v369 = vunpack.c.l.s4 1966171168
  %v370 = vunpack.c.0.s8 %v369
  %v371 = vlaneseq
  %v372 = vshrl.u32 %v371, 7
  %v373 = vsub.s32 %v370, %v372
  %v374 = vrot.slane %v367, %v373
  %v376 = vsub.f32 %v281, %v374
  %v378 = vlaneseq
  %v379 = vshrl.u32 %v378, 7
  %v380 = vsub.s32 0, %v379
  %v381 = vrot.slane %v376, %v380
  %v382 = vlaneseq
  %v383 = vshrl.u32 %v382, 7
  %v384 = vsub.s32 1, %v383
  %v385 = vrot.slane %v376, %v384
  %v388 = vadd.f32 %v354, %v381
  %v389 = vadd.f32 %v355, %v385
  %v390 = vmax.f32 %v388, 0.0
  %v391 = vmax.f32 %v389, 0.0
  %v392 = vpack.c.bf16 %v390, %v390
  %v393 = vpack.c.bf16 %v391, %v391
  %v394 = vld [vmem:[%s4] sm:$0xf]
  %v395 = vld [vmem:[%s4 + $0x4] sm:$0xf]
  %v396 = vld [vmem:[%s4 + $0x8] sm:$0xf]
  %v397 = vld [vmem:[%s4 + $0xc] sm:$0xf]
  %v398 = vld [vmem:[%s4 + $0x10] sm:$0xf]
  %v399 = vld [vmem:[%s4 + $0x14] sm:$0xf]
  %v400 = vld [vmem:[%s4 + $0x18] sm:$0xf]
  %v401 = vld [vmem:[%s4 + $0x1c] sm:$0xf]
  %v402 = vld [vmem:[%s4 + $0x20] sm:$0xf]
  %v403 = vld [vmem:[%s4 + $0x24] sm:$0xf]
  %v404 = vld [vmem:[%s4 + $0x28] sm:$0xf]
  %v405 = vld [vmem:[%s4 + $0x2c] sm:$0xf]
  %v406 = vld [vmem:[%s4 + $0x30] sm:$0xf]
  %v407 = vld [vmem:[%s4 + $0x34] sm:$0xf]
  %v408 = vld [vmem:[%s4 + $0x38] sm:$0xf]
  %v409 = vld [vmem:[%s4 + $0x3c] sm:$0xf]
  %v410 = vld [vmem:[%s4 + $0x40] sm:$0xf]
  %v411 = vld [vmem:[%s4 + $0x44] sm:$0xf]
  %v412 = vld [vmem:[%s4 + $0x48] sm:$0xf]
  %v413 = vld [vmem:[%s4 + $0x4c] sm:$0xf]
  %v414 = vld [vmem:[%s4 + $0x50] sm:$0xf]
  %v415 = vld [vmem:[%s4 + $0x54] sm:$0xf]
  %v416 = vld [vmem:[%s4 + $0x58] sm:$0xf]
  %v417 = vld [vmem:[%s4 + $0x5c] sm:$0xf]
  %v418 = vld [vmem:[%s4 + $0x60] sm:$0xf]
  %v419 = vld [vmem:[%s4 + $0x64] sm:$0xf]
  %v420 = vld [vmem:[%s4 + $0x68] sm:$0xf]
  %v421 = vld [vmem:[%s4 + $0x6c] sm:$0xf]
  %v422 = vld [vmem:[%s4 + $0x70] sm:$0xf]
  %v423 = vld [vmem:[%s4 + $0x74] sm:$0xf]
  %v424 = vld [vmem:[%s4 + $0x78] sm:$0xf]
  %v425 = vld [vmem:[%s4 + $0x7c] sm:$0xf]
  %v458 = vunpack.c.l.b16 %v394
  %v459 = vunpack.c.l.b16 %v395
  %v460 = vunpack.c.l.b16 %v396
  %v461 = vunpack.c.l.b16 %v397
  %v462 = vunpack.c.l.b16 %v398
  %v463 = vunpack.c.l.b16 %v399
  %v464 = vunpack.c.l.b16 %v400
  %v465 = vunpack.c.l.b16 %v401
  %v466 = vunpack.c.l.b16 %v402
  %v467 = vunpack.c.l.b16 %v403
  %v468 = vunpack.c.l.b16 %v404
  %v469 = vunpack.c.l.b16 %v405
  %v470 = vunpack.c.l.b16 %v406
  %v471 = vunpack.c.l.b16 %v407
  %v472 = vunpack.c.l.b16 %v408
  %v473 = vunpack.c.l.b16 %v409
  %v474 = vunpack.c.l.b16 %v410
  %v475 = vunpack.c.l.b16 %v411
  %v476 = vunpack.c.l.b16 %v412
  %v477 = vunpack.c.l.b16 %v413
  %v478 = vunpack.c.l.b16 %v414
  %v479 = vunpack.c.l.b16 %v415
  %v480 = vunpack.c.l.b16 %v416
  %v481 = vunpack.c.l.b16 %v417
  %v482 = vunpack.c.l.b16 %v418
  %v483 = vunpack.c.l.b16 %v419
  %v484 = vunpack.c.l.b16 %v420
  %v485 = vunpack.c.l.b16 %v421
  %v486 = vunpack.c.l.b16 %v422
  %v487 = vunpack.c.l.b16 %v423
  %v488 = vunpack.c.l.b16 %v424
  %v489 = vunpack.c.l.b16 %v425
  %v490 = vpack.c.b16 %v459, %v458
  %v491 = vpack.c.b16 %v461, %v460
  %v492 = vpack.c.b16 %v463, %v462
  %v493 = vpack.c.b16 %v465, %v464
  %v494 = vpack.c.b16 %v467, %v466
  %v495 = vpack.c.b16 %v469, %v468
  %v496 = vpack.c.b16 %v471, %v470
  %v497 = vpack.c.b16 %v473, %v472
  %v498 = vpack.c.b16 %v475, %v474
  %v499 = vpack.c.b16 %v477, %v476
  %v500 = vpack.c.b16 %v479, %v478
  %v501 = vpack.c.b16 %v481, %v480
  %v502 = vpack.c.b16 %v483, %v482
  %v503 = vpack.c.b16 %v485, %v484
  %v504 = vpack.c.b16 %v487, %v486
  %v505 = vpack.c.b16 %v489, %v488
  %522 = vmatprep.subr.bf16.mxu0 0
  %523 = vmatpush1.bf16.msra.mxu0 %v490
  %524 = vmatprep.subr.bf16.mxu0 0
  %525 = vmatpush1.bf16.msra.mxu0 %v491
  %526 = vmatprep.subr.bf16.mxu0 0
  %527 = vmatpush1.bf16.msra.mxu0 %v492
  %528 = vmatprep.subr.bf16.mxu0 0
  %529 = vmatpush1.bf16.msra.mxu0 %v493
  %530 = vmatprep.subr.bf16.mxu0 0
  %531 = vmatpush1.bf16.msra.mxu0 %v494
  %532 = vmatprep.subr.bf16.mxu0 0
  %533 = vmatpush1.bf16.msra.mxu0 %v495
  %534 = vmatprep.subr.bf16.mxu0 0
  %535 = vmatpush1.bf16.msra.mxu0 %v496
  %536 = vmatprep.subr.bf16.mxu0 0
  %537 = vmatpush1.bf16.msra.mxu0 %v497
  %538 = vmatprep.subr.bf16.mxu0 0
  %539 = vmatpush1.bf16.msra.mxu0 %v498
  %540 = vmatprep.subr.bf16.mxu0 0
  %541 = vmatpush1.bf16.msra.mxu0 %v499
  %542 = vmatprep.subr.bf16.mxu0 0
  %543 = vmatpush1.bf16.msra.mxu0 %v500
  %544 = vmatprep.subr.bf16.mxu0 0
  %545 = vmatpush1.bf16.msra.mxu0 %v501
  %546 = vmatprep.subr.bf16.mxu0 0
  %547 = vmatpush1.bf16.msra.mxu0 %v502
  %548 = vmatprep.subr.bf16.mxu0 0
  %549 = vmatpush1.bf16.msra.mxu0 %v503
  %550 = vmatprep.subr.bf16.mxu0 0
  %551 = vmatpush1.bf16.msra.mxu0 %v504
  %552 = vmatprep.subr.bf16.mxu0 0
  %553 = vmatpush1.bf16.msra.mxu0 %v505
  %554 = vmatprep.mubr.bf16.mxu0 %v393
  %555 = vmatmul.mubr.bf16.gmra.mrb[0].mxu0 %v392
  %v556 = vpop.f32.mrb[0].mxu0
  %v557 = vadd.f32 0.0, %v556
  %v558 = vpop.f32.mrb[0].mxu0
  %v559 = vpop.f32.mrb[0].mxu0
  %v560 = vpop.f32.mrb[0].mxu0
  %561 = vdwg.mxu0
  %v562 = vld [vmem:[%s5] sm:$0x1]
  %v563 = vld [vmem:[%s6] sm:$0x1]
  %v564 = vsel %vm282, %v557, 0.0
  %v565 = vrot.slane %v564, 4
  %v566 = vadd.f32 %v564, %v565
  %v567 = vrot.slane %v566, 2
  %v568 = vadd.f32 %v566, %v567
  %v569 = vrot.slane %v568, 1
  %v570 = vadd.f32 %v568, %v569
  %v571 = vmul.f32 %v570, %v297
  %v572 = vsub.f32 %v557, %v571
  %v573 = vmul.f32 %v572, %v572
  %v574 = vsel %vm282, %v573, 0.0
  %v575 = vrot.slane %v574, 4
  %v576 = vadd.f32 %v574, %v575
  %v577 = vrot.slane %v576, 2
  %v578 = vadd.f32 %v576, %v577
  %v579 = vrot.slane %v578, 1
  %v580 = vadd.f32 %v578, %v579
  %v581 = vmul.f32 %v580, %v297
  %v582 = vadd.f32 %v581, 1e-05
  %v583 = vrsqrt.pop %v582
  %v584 = vmul.f32 %v562, %v583
  %v586 = vlaneseq
  %v587 = vshrl.u32 %v586, 7
  %v588 = vsub.s32 0, %v587
  %v589 = vrot.slane %v584, %v588
  %v591 = vmul.f32 %v557, %v589
  %v592 = vmul.f32 %v571, %v584
  %v593 = vsub.f32 %v563, %v592
  %v595 = vlaneseq
  %v596 = vshrl.u32 %v595, 7
  %v597 = vsub.s32 0, %v596
  %v598 = vrot.slane %v593, %v597
  %v600 = vadd.f32 %v591, %v598
  %v601 = vmax.f32 %v600, 0.0
  %v602 = vpack.c.bf16 %v601, %v601
  %v603 = vld [vmem:[%s7] sm:$0xff]
  %v604 = vld [vmem:[%s7 + $0x8] sm:$0xff]
  %v605 = vld [vmem:[%s7 + $0x10] sm:$0xff]
  %v606 = vld [vmem:[%s7 + $0x18] sm:$0xff]
  %v607 = vld [vmem:[%s7 + $0x20] sm:$0xff]
  %v608 = vld [vmem:[%s7 + $0x28] sm:$0xff]
  %v609 = vld [vmem:[%s7 + $0x30] sm:$0xff]
  %v610 = vld [vmem:[%s7 + $0x38] sm:$0xff]
  %v611 = vld [vmem:[%s7 + $0x40] sm:$0xff]
  %v612 = vld [vmem:[%s7 + $0x48] sm:$0xff]
  %v613 = vld [vmem:[%s7 + $0x50] sm:$0xff]
  %v614 = vld [vmem:[%s7 + $0x58] sm:$0xff]
  %v615 = vld [vmem:[%s7 + $0x60] sm:$0xff]
  %v616 = vld [vmem:[%s7 + $0x68] sm:$0xff]
  %v617 = vld [vmem:[%s7 + $0x70] sm:$0xff]
  %v618 = vld [vmem:[%s7 + $0x78] sm:$0xff]
  %v619 = vld [vmem:[%s7 + $0x80] sm:$0xff]
  %v620 = vld [vmem:[%s7 + $0x88] sm:$0xff]
  %v621 = vld [vmem:[%s7 + $0x90] sm:$0xff]
  %v622 = vld [vmem:[%s7 + $0x98] sm:$0xff]
  %v623 = vld [vmem:[%s7 + $0xa0] sm:$0xff]
  %v624 = vld [vmem:[%s7 + $0xa8] sm:$0xff]
  %v625 = vld [vmem:[%s7 + $0xb0] sm:$0xff]
  %v626 = vld [vmem:[%s7 + $0xb8] sm:$0xff]
  %v627 = vld [vmem:[%s7 + $0xc0] sm:$0xff]
  %v628 = vld [vmem:[%s7 + $0xc8] sm:$0xff]
  %v629 = vld [vmem:[%s7 + $0xd0] sm:$0xff]
  %v630 = vld [vmem:[%s7 + $0xd8] sm:$0xff]
  %v631 = vld [vmem:[%s7 + $0xe0] sm:$0xff]
  %v632 = vld [vmem:[%s7 + $0xe8] sm:$0xff]
  %v633 = vld [vmem:[%s7 + $0xf0] sm:$0xff]
  %v634 = vld [vmem:[%s7 + $0xf8] sm:$0xff]
  %v635 = vld [vmem:[%s7 + $0x100] sm:$0xff]
  %v636 = vld [vmem:[%s7 + $0x108] sm:$0xff]
  %v637 = vld [vmem:[%s7 + $0x110] sm:$0xff]
  %v638 = vld [vmem:[%s7 + $0x118] sm:$0xff]
  %v639 = vld [vmem:[%s7 + $0x120] sm:$0xff]
  %v640 = vld [vmem:[%s7 + $0x128] sm:$0xff]
  %v641 = vld [vmem:[%s7 + $0x130] sm:$0xff]
  %v642 = vld [vmem:[%s7 + $0x138] sm:$0xff]
  %v643 = vld [vmem:[%s7 + $0x140] sm:$0xff]
  %v644 = vld [vmem:[%s7 + $0x148] sm:$0xff]
  %v645 = vld [vmem:[%s7 + $0x150] sm:$0xff]
  %v646 = vld [vmem:[%s7 + $0x158] sm:$0xff]
  %v647 = vld [vmem:[%s7 + $0x160] sm:$0xff]
  %v648 = vld [vmem:[%s7 + $0x168] sm:$0xff]
  %v649 = vld [vmem:[%s7 + $0x170] sm:$0xff]
  %v650 = vld [vmem:[%s7 + $0x178] sm:$0xff]
  %v651 = vld [vmem:[%s7 + $0x180] sm:$0xff]
  %v652 = vld [vmem:[%s7 + $0x188] sm:$0xff]
  %v653 = vld [vmem:[%s7 + $0x190] sm:$0xff]
  %v654 = vld [vmem:[%s7 + $0x198] sm:$0xff]
  %v655 = vld [vmem:[%s7 + $0x1a0] sm:$0xff]
  %v656 = vld [vmem:[%s7 + $0x1a8] sm:$0xff]
  %v657 = vld [vmem:[%s7 + $0x1b0] sm:$0xff]
  %v658 = vld [vmem:[%s7 + $0x1b8] sm:$0xff]
  %v659 = vld [vmem:[%s7 + $0x1c0] sm:$0xff]
  %v660 = vld [vmem:[%s7 + $0x1c8] sm:$0xff]
  %v661 = vld [vmem:[%s7 + $0x1d0] sm:$0xff]
  %v662 = vld [vmem:[%s7 + $0x1d8] sm:$0xff]
  %v663 = vld [vmem:[%s7 + $0x1e0] sm:$0xff]
  %v664 = vld [vmem:[%s7 + $0x1e8] sm:$0xff]
  %v665 = vld [vmem:[%s7 + $0x1f0] sm:$0xff]
  %v666 = vld [vmem:[%s7 + $0x1f8] sm:$0xff]
  %v667 = vld [vmem:[%s7 + $0x200] sm:$0xff]
  %v668 = vld [vmem:[%s7 + $0x208] sm:$0xff]
  %v669 = vld [vmem:[%s7 + $0x210] sm:$0xff]
  %v670 = vld [vmem:[%s7 + $0x218] sm:$0xff]
  %v671 = vld [vmem:[%s7 + $0x220] sm:$0xff]
  %v672 = vld [vmem:[%s7 + $0x228] sm:$0xff]
  %v673 = vld [vmem:[%s7 + $0x230] sm:$0xff]
  %v674 = vld [vmem:[%s7 + $0x238] sm:$0xff]
  %v675 = vld [vmem:[%s7 + $0x240] sm:$0xff]
  %v676 = vld [vmem:[%s7 + $0x248] sm:$0xff]
  %v677 = vld [vmem:[%s7 + $0x250] sm:$0xff]
  %v678 = vld [vmem:[%s7 + $0x258] sm:$0xff]
  %v679 = vld [vmem:[%s7 + $0x260] sm:$0xff]
  %v680 = vld [vmem:[%s7 + $0x268] sm:$0xff]
  %v681 = vld [vmem:[%s7 + $0x270] sm:$0xff]
  %v682 = vld [vmem:[%s7 + $0x278] sm:$0xff]
  %v683 = vld [vmem:[%s7 + $0x280] sm:$0xff]
  %v684 = vld [vmem:[%s7 + $0x288] sm:$0xff]
  %v685 = vld [vmem:[%s7 + $0x290] sm:$0xff]
  %v686 = vld [vmem:[%s7 + $0x298] sm:$0xff]
  %v687 = vld [vmem:[%s7 + $0x2a0] sm:$0xff]
  %v688 = vld [vmem:[%s7 + $0x2a8] sm:$0xff]
  %v689 = vld [vmem:[%s7 + $0x2b0] sm:$0xff]
  %v690 = vld [vmem:[%s7 + $0x2b8] sm:$0xff]
  %v691 = vld [vmem:[%s7 + $0x2c0] sm:$0xff]
  %v692 = vld [vmem:[%s7 + $0x2c8] sm:$0xff]
  %v693 = vld [vmem:[%s7 + $0x2d0] sm:$0xff]
  %v694 = vld [vmem:[%s7 + $0x2d8] sm:$0xff]
  %v695 = vld [vmem:[%s7 + $0x2e0] sm:$0xff]
  %v696 = vld [vmem:[%s7 + $0x2e8] sm:$0xff]
  %v697 = vld [vmem:[%s7 + $0x2f0] sm:$0xff]
  %v698 = vld [vmem:[%s7 + $0x2f8] sm:$0xff]
  %v699 = vld [vmem:[%s7 + $0x300] sm:$0xff]
  %v700 = vld [vmem:[%s7 + $0x308] sm:$0xff]
  %v701 = vld [vmem:[%s7 + $0x310] sm:$0xff]
  %v702 = vld [vmem:[%s7 + $0x318] sm:$0xff]
  %v703 = vld [vmem:[%s7 + $0x320] sm:$0xff]
  %v704 = vld [vmem:[%s7 + $0x328] sm:$0xff]
  %v705 = vld [vmem:[%s7 + $0x330] sm:$0xff]
  %v706 = vld [vmem:[%s7 + $0x338] sm:$0xff]
  %v707 = vld [vmem:[%s7 + $0x340] sm:$0xff]
  %v708 = vld [vmem:[%s7 + $0x348] sm:$0xff]
  %v709 = vld [vmem:[%s7 + $0x350] sm:$0xff]
  %v710 = vld [vmem:[%s7 + $0x358] sm:$0xff]
  %v711 = vld [vmem:[%s7 + $0x360] sm:$0xff]
  %v712 = vld [vmem:[%s7 + $0x368] sm:$0xff]
  %v713 = vld [vmem:[%s7 + $0x370] sm:$0xff]
  %v714 = vld [vmem:[%s7 + $0x378] sm:$0xff]
  %v715 = vld [vmem:[%s7 + $0x380] sm:$0xff]
  %v716 = vld [vmem:[%s7 + $0x388] sm:$0xff]
  %v717 = vld [vmem:[%s7 + $0x390] sm:$0xff]
  %v718 = vld [vmem:[%s7 + $0x398] sm:$0xff]
  %v719 = vld [vmem:[%s7 + $0x3a0] sm:$0xff]
  %v720 = vld [vmem:[%s7 + $0x3a8] sm:$0xff]
  %v721 = vld [vmem:[%s7 + $0x3b0] sm:$0xff]
  %v722 = vld [vmem:[%s7 + $0x3b8] sm:$0xff]
  %v723 = vld [vmem:[%s7 + $0x3c0] sm:$0xff]
  %v724 = vld [vmem:[%s7 + $0x3c8] sm:$0xff]
  %v725 = vld [vmem:[%s7 + $0x3d0] sm:$0xff]
  %v726 = vld [vmem:[%s7 + $0x3d8] sm:$0xff]
  %v727 = vld [vmem:[%s7 + $0x3e0] sm:$0xff]
  %v728 = vld [vmem:[%s7 + $0x3e8] sm:$0xff]
  %v729 = vld [vmem:[%s7 + $0x3f0] sm:$0xff]
  %v730 = vld [vmem:[%s7 + $0x3f8] sm:$0xff]
  %v731 = vld [vmem:[%s7 + $0x400] sm:$0xff]
  %v732 = vld [vmem:[%s7 + $0x408] sm:$0xff]
  %v733 = vld [vmem:[%s7 + $0x410] sm:$0xff]
  %v734 = vld [vmem:[%s7 + $0x418] sm:$0xff]
  %v735 = vld [vmem:[%s7 + $0x420] sm:$0xff]
  %v736 = vld [vmem:[%s7 + $0x428] sm:$0xff]
  %v737 = vld [vmem:[%s7 + $0x430] sm:$0xff]
  %v738 = vld [vmem:[%s7 + $0x438] sm:$0xff]
  %v739 = vld [vmem:[%s7 + $0x440] sm:$0xff]
  %v740 = vld [vmem:[%s7 + $0x448] sm:$0xff]
  %v741 = vld [vmem:[%s7 + $0x450] sm:$0xff]
  %v742 = vld [vmem:[%s7 + $0x458] sm:$0xff]
  %v743 = vld [vmem:[%s7 + $0x460] sm:$0xff]
  %v744 = vld [vmem:[%s7 + $0x468] sm:$0xff]
  %v745 = vld [vmem:[%s7 + $0x470] sm:$0xff]
  %v746 = vld [vmem:[%s7 + $0x478] sm:$0xff]
  %v747 = vld [vmem:[%s7 + $0x480] sm:$0xff]
  %v748 = vld [vmem:[%s7 + $0x488] sm:$0xff]
  %v749 = vld [vmem:[%s7 + $0x490] sm:$0xff]
  %v750 = vld [vmem:[%s7 + $0x498] sm:$0xff]
  %v751 = vld [vmem:[%s7 + $0x4a0] sm:$0xff]
  %v752 = vld [vmem:[%s7 + $0x4a8] sm:$0xff]
  %v753 = vld [vmem:[%s7 + $0x4b0] sm:$0xff]
  %v754 = vld [vmem:[%s7 + $0x4b8] sm:$0xff]
  %v755 = vld [vmem:[%s7 + $0x4c0] sm:$0xff]
  %v756 = vld [vmem:[%s7 + $0x4c8] sm:$0xff]
  %v757 = vld [vmem:[%s7 + $0x4d0] sm:$0xff]
  %v758 = vld [vmem:[%s7 + $0x4d8] sm:$0xff]
  %v759 = vld [vmem:[%s7 + $0x4e0] sm:$0xff]
  %v760 = vld [vmem:[%s7 + $0x4e8] sm:$0xff]
  %v761 = vld [vmem:[%s7 + $0x4f0] sm:$0xff]
  %v762 = vld [vmem:[%s7 + $0x4f8] sm:$0xff]
  %v763 = vld [vmem:[%s7 + $0x500] sm:$0xff]
  %v764 = vld [vmem:[%s7 + $0x508] sm:$0xff]
  %v765 = vld [vmem:[%s7 + $0x510] sm:$0xff]
  %v766 = vld [vmem:[%s7 + $0x518] sm:$0xff]
  %v767 = vld [vmem:[%s7 + $0x520] sm:$0xff]
  %v768 = vld [vmem:[%s7 + $0x528] sm:$0xff]
  %v769 = vld [vmem:[%s7 + $0x530] sm:$0xff]
  %v770 = vld [vmem:[%s7 + $0x538] sm:$0xff]
  %v771 = vld [vmem:[%s7 + $0x540] sm:$0xff]
  %v772 = vld [vmem:[%s7 + $0x548] sm:$0xff]
  %v773 = vld [vmem:[%s7 + $0x550] sm:$0xff]
  %v774 = vld [vmem:[%s7 + $0x558] sm:$0xff]
  %v775 = vld [vmem:[%s7 + $0x560] sm:$0xff]
  %v776 = vld [vmem:[%s7 + $0x568] sm:$0xff]
  %v777 = vld [vmem:[%s7 + $0x570] sm:$0xff]
  %v778 = vld [vmem:[%s7 + $0x578] sm:$0xff]
  %v779 = vld [vmem:[%s7 + $0x580] sm:$0xff]
  %v780 = vld [vmem:[%s7 + $0x588] sm:$0xff]
  %v781 = vld [vmem:[%s7 + $0x590] sm:$0xff]
  %v782 = vld [vmem:[%s7 + $0x598] sm:$0xff]
  %v783 = vld [vmem:[%s7 + $0x5a0] sm:$0xff]
  %v784 = vld [vmem:[%s7 + $0x5a8] sm:$0xff]
  %v785 = vld [vmem:[%s7 + $0x5b0] sm:$0xff]
  %v786 = vld [vmem:[%s7 + $0x5b8] sm:$0xff]
  %v787 = vld [vmem:[%s7 + $0x5c0] sm:$0xff]
  %v788 = vld [vmem:[%s7 + $0x5c8] sm:$0xff]
  %v789 = vld [vmem:[%s7 + $0x5d0] sm:$0xff]
  %v790 = vld [vmem:[%s7 + $0x5d8] sm:$0xff]
  %v791 = vld [vmem:[%s7 + $0x5e0] sm:$0xff]
  %v792 = vld [vmem:[%s7 + $0x5e8] sm:$0xff]
  %v793 = vld [vmem:[%s7 + $0x5f0] sm:$0xff]
  %v794 = vld [vmem:[%s7 + $0x5f8] sm:$0xff]
  %v795 = vld [vmem:[%s7 + $0x600] sm:$0xff]
  %v796 = vld [vmem:[%s7 + $0x608] sm:$0xff]
  %v797 = vld [vmem:[%s7 + $0x610] sm:$0xff]
  %v798 = vld [vmem:[%s7 + $0x618] sm:$0xff]
  %v799 = vld [vmem:[%s7 + $0x620] sm:$0xff]
  %v800 = vld [vmem:[%s7 + $0x628] sm:$0xff]
  %v801 = vld [vmem:[%s7 + $0x630] sm:$0xff]
  %v802 = vld [vmem:[%s7 + $0x638] sm:$0xff]
  %v803 = vld [vmem:[%s7 + $0x640] sm:$0xff]
  %v804 = vld [vmem:[%s7 + $0x648] sm:$0xff]
  %v805 = vld [vmem:[%s7 + $0x650] sm:$0xff]
  %v806 = vld [vmem:[%s7 + $0x658] sm:$0xff]
  %v807 = vld [vmem:[%s7 + $0x660] sm:$0xff]
  %v808 = vld [vmem:[%s7 + $0x668] sm:$0xff]
  %v809 = vld [vmem:[%s7 + $0x670] sm:$0xff]
  %v810 = vld [vmem:[%s7 + $0x678] sm:$0xff]
  %v811 = vld [vmem:[%s7 + $0x680] sm:$0xff]
  %v812 = vld [vmem:[%s7 + $0x688] sm:$0xff]
  %v813 = vld [vmem:[%s7 + $0x690] sm:$0xff]
  %v814 = vld [vmem:[%s7 + $0x698] sm:$0xff]
  %v815 = vld [vmem:[%s7 + $0x6a0] sm:$0xff]
  %v816 = vld [vmem:[%s7 + $0x6a8] sm:$0xff]
  %v817 = vld [vmem:[%s7 + $0x6b0] sm:$0xff]
  %v818 = vld [vmem:[%s7 + $0x6b8] sm:$0xff]
  %v819 = vld [vmem:[%s7 + $0x6c0] sm:$0xff]
  %v820 = vld [vmem:[%s7 + $0x6c8] sm:$0xff]
  %v821 = vld [vmem:[%s7 + $0x6d0] sm:$0xff]
  %v822 = vld [vmem:[%s7 + $0x6d8] sm:$0xff]
  %v823 = vld [vmem:[%s7 + $0x6e0] sm:$0xff]
  %v824 = vld [vmem:[%s7 + $0x6e8] sm:$0xff]
  %v825 = vld [vmem:[%s7 + $0x6f0] sm:$0xff]
  %v826 = vld [vmem:[%s7 + $0x6f8] sm:$0xff]
  %v827 = vld [vmem:[%s7 + $0x700] sm:$0xff]
  %v828 = vld [vmem:[%s7 + $0x708] sm:$0xff]
  %v829 = vld [vmem:[%s7 + $0x710] sm:$0xff]
  %v830 = vld [vmem:[%s7 + $0x718] sm:$0xff]
  %v831 = vld [vmem:[%s7 + $0x720] sm:$0xff]
  %v832 = vld [vmem:[%s7 + $0x728] sm:$0xff]
  %v833 = vld [vmem:[%s7 + $0x730] sm:$0xff]
  %v834 = vld [vmem:[%s7 + $0x738] sm:$0xff]
  %v835 = vld [vmem:[%s7 + $0x740] sm:$0xff]
  %v836 = vld [vmem:[%s7 + $0x748] sm:$0xff]
  %v837 = vld [vmem:[%s7 + $0x750] sm:$0xff]
  %v838 = vld [vmem:[%s7 + $0x758] sm:$0xff]
  %v839 = vld [vmem:[%s7 + $0x760] sm:$0xff]
  %v840 = vld [vmem:[%s7 + $0x768] sm:$0xff]
  %v841 = vld [vmem:[%s7 + $0x770] sm:$0xff]
  %v842 = vld [vmem:[%s7 + $0x778] sm:$0xff]
  %v843 = vld [vmem:[%s7 + $0x780] sm:$0xff]
  %v844 = vld [vmem:[%s7 + $0x788] sm:$0xff]
  %v845 = vld [vmem:[%s7 + $0x790] sm:$0xff]
  %v846 = vld [vmem:[%s7 + $0x798] sm:$0xff]
  %v847 = vld [vmem:[%s7 + $0x7a0] sm:$0xff]
  %v848 = vld [vmem:[%s7 + $0x7a8] sm:$0xff]
  %v849 = vld [vmem:[%s7 + $0x7b0] sm:$0xff]
  %v850 = vld [vmem:[%s7 + $0x7b8] sm:$0xff]
  %v851 = vld [vmem:[%s7 + $0x7c0] sm:$0xff]
  %v852 = vld [vmem:[%s7 + $0x7c8] sm:$0xff]
  %v853 = vld [vmem:[%s7 + $0x7d0] sm:$0xff]
  %v854 = vld [vmem:[%s7 + $0x7d8] sm:$0xff]
  %v855 = vld [vmem:[%s7 + $0x7e0] sm:$0xff]
  %v856 = vld [vmem:[%s7 + $0x7e8] sm:$0xff]
  %v857 = vld [vmem:[%s7 + $0x7f0] sm:$0xff]
  %v858 = vld [vmem:[%s7 + $0x7f8] sm:$0xff]
  %v859 = vld [vmem:[%s8] sm:$0xff]
  %v860 = vld [vmem:[%s8 + $0x8] sm:$0xff]
  %v861 = vld [vmem:[%s8 + $0x10] sm:$0xff]
  %v862 = vld [vmem:[%s8 + $0x18] sm:$0xff]
  %v867 = vlaneseq
  %v868 = vshrl.u32 %v867, 7
  %v869 = vsub.s32 0, %v868
  %v870 = vrot.slane %v859, %v869
  %v871 = vlaneseq
  %v872 = vshrl.u32 %v871, 7
  %v873 = vsub.s32 1, %v872
  %v874 = vrot.slane %v859, %v873
  %v875 = vlaneseq
  %v876 = vshrl.u32 %v875, 7
  %v877 = vsub.s32 2, %v876
  %v878 = vrot.slane %v859, %v877
  %v879 = vlaneseq
  %v880 = vshrl.u32 %v879, 7
  %v881 = vsub.s32 3, %v880
  %v882 = vrot.slane %v859, %v881
  %v883 = vlaneseq
  %v884 = vshrl.u32 %v883, 7
  %v885 = vsub.s32 4, %v884
  %v886 = vrot.slane %v859, %v885
  %v887 = vlaneseq
  %v888 = vshrl.u32 %v887, 7
  %v889 = vsub.s32 5, %v888
  %v890 = vrot.slane %v859, %v889
  %v891 = vlaneseq
  %v892 = vshrl.u32 %v891, 7
  %v893 = vsub.s32 6, %v892
  %v894 = vrot.slane %v859, %v893
  %v895 = vlaneseq
  %v896 = vshrl.u32 %v895, 7
  %v897 = vsub.s32 7, %v896
  %v898 = vrot.slane %v859, %v897
  %v899 = vlaneseq
  %v900 = vshrl.u32 %v899, 7
  %v901 = vsub.s32 0, %v900
  %v902 = vrot.slane %v860, %v901
  %v903 = vlaneseq
  %v904 = vshrl.u32 %v903, 7
  %v905 = vsub.s32 1, %v904
  %v906 = vrot.slane %v860, %v905
  %v907 = vlaneseq
  %v908 = vshrl.u32 %v907, 7
  %v909 = vsub.s32 2, %v908
  %v910 = vrot.slane %v860, %v909
  %v911 = vlaneseq
  %v912 = vshrl.u32 %v911, 7
  %v913 = vsub.s32 3, %v912
  %v914 = vrot.slane %v860, %v913
  %v915 = vlaneseq
  %v916 = vshrl.u32 %v915, 7
  %v917 = vsub.s32 4, %v916
  %v918 = vrot.slane %v860, %v917
  %v919 = vlaneseq
  %v920 = vshrl.u32 %v919, 7
  %v921 = vsub.s32 5, %v920
  %v922 = vrot.slane %v860, %v921
  %v923 = vlaneseq
  %v924 = vshrl.u32 %v923, 7
  %v925 = vsub.s32 6, %v924
  %v926 = vrot.slane %v860, %v925
  %v927 = vlaneseq
  %v928 = vshrl.u32 %v927, 7
  %v929 = vsub.s32 7, %v928
  %v930 = vrot.slane %v860, %v929
  %v931 = vlaneseq
  %v932 = vshrl.u32 %v931, 7
  %v933 = vsub.s32 0, %v932
  %v934 = vrot.slane %v861, %v933
  %v935 = vlaneseq
  %v936 = vshrl.u32 %v935, 7
  %v937 = vsub.s32 1, %v936
  %v938 = vrot.slane %v861, %v937
  %v939 = vlaneseq
  %v940 = vshrl.u32 %v939, 7
  %v941 = vsub.s32 2, %v940
  %v942 = vrot.slane %v861, %v941
  %v943 = vlaneseq
  %v944 = vshrl.u32 %v943, 7
  %v945 = vsub.s32 3, %v944
  %v946 = vrot.slane %v861, %v945
  %v947 = vlaneseq
  %v948 = vshrl.u32 %v947, 7
  %v949 = vsub.s32 4, %v948
  %v950 = vrot.slane %v861, %v949
  %v951 = vlaneseq
  %v952 = vshrl.u32 %v951, 7
  %v953 = vsub.s32 5, %v952
  %v954 = vrot.slane %v861, %v953
  %v955 = vlaneseq
  %v956 = vshrl.u32 %v955, 7
  %v957 = vsub.s32 6, %v956
  %v958 = vrot.slane %v861, %v957
  %v959 = vlaneseq
  %v960 = vshrl.u32 %v959, 7
  %v961 = vsub.s32 7, %v960
  %v962 = vrot.slane %v861, %v961
  %v963 = vlaneseq
  %v964 = vshrl.u32 %v963, 7
  %v965 = vsub.s32 0, %v964
  %v966 = vrot.slane %v862, %v965
  %v967 = vlaneseq
  %v968 = vshrl.u32 %v967, 7
  %v969 = vsub.s32 1, %v968
  %v970 = vrot.slane %v862, %v969
  %v971 = vlaneseq
  %v972 = vshrl.u32 %v971, 7
  %v973 = vsub.s32 2, %v972
  %v974 = vrot.slane %v862, %v973
  %v975 = vlaneseq
  %v976 = vshrl.u32 %v975, 7
  %v977 = vsub.s32 3, %v976
  %v978 = vrot.slane %v862, %v977
  %v979 = vlaneseq
  %v980 = vshrl.u32 %v979, 7
  %v981 = vsub.s32 4, %v980
  %v982 = vrot.slane %v862, %v981
  %v983 = vlaneseq
  %v984 = vshrl.u32 %v983, 7
  %v985 = vsub.s32 5, %v984
  %v986 = vrot.slane %v862, %v985
  %v987 = vlaneseq
  %v988 = vshrl.u32 %v987, 7
  %v989 = vsub.s32 6, %v988
  %v990 = vrot.slane %v862, %v989
  %v991 = vlaneseq
  %v992 = vshrl.u32 %v991, 7
  %v993 = vsub.s32 7, %v992
  %v994 = vrot.slane %v862, %v993
  %v1283 = vunpack.c.l.b16 %v603
  %v1284 = vunpack.c.h.b16 %v603
  %v1285 = vunpack.c.l.b16 %v604
  %v1286 = vunpack.c.h.b16 %v604
  %v1287 = vunpack.c.l.b16 %v605
  %v1288 = vunpack.c.h.b16 %v605
  %v1289 = vunpack.c.l.b16 %v606
  %v1290 = vunpack.c.h.b16 %v606
  %v1291 = vunpack.c.l.b16 %v607
  %v1292 = vunpack.c.h.b16 %v607
  %v1293 = vunpack.c.l.b16 %v608
  %v1294 = vunpack.c.h.b16 %v608
  %v1295 = vunpack.c.l.b16 %v609
  %v1296 = vunpack.c.h.b16 %v609
  %v1297 = vunpack.c.l.b16 %v610
  %v1298 = vunpack.c.h.b16 %v610
  %v1299 = vunpack.c.l.b16 %v611
  %v1300 = vunpack.c.h.b16 %v611
  %v1301 = vunpack.c.l.b16 %v612
  %v1302 = vunpack.c.h.b16 %v612
  %v1303 = vunpack.c.l.b16 %v613
  %v1304 = vunpack.c.h.b16 %v613
  %v1305 = vunpack.c.l.b16 %v614
  %v1306 = vunpack.c.h.b16 %v614
  %v1307 = vunpack.c.l.b16 %v615
  %v1308 = vunpack.c.h.b16 %v615
  %v1309 = vunpack.c.l.b16 %v616
  %v1310 = vunpack.c.h.b16 %v616
  %v1311 = vunpack.c.l.b16 %v617
  %v1312 = vunpack.c.h.b16 %v617
  %v1313 = vunpack.c.l.b16 %v618
  %v1314 = vunpack.c.h.b16 %v618
  %v1315 = vunpack.c.l.b16 %v619
  %v1316 = vunpack.c.h.b16 %v619
  %v1317 = vunpack.c.l.b16 %v620
  %v1318 = vunpack.c.h.b16 %v620
  %v1319 = vunpack.c.l.b16 %v621
  %v1320 = vunpack.c.h.b16 %v621
  %v1321 = vunpack.c.l.b16 %v622
  %v1322 = vunpack.c.h.b16 %v622
  %v1323 = vunpack.c.l.b16 %v623
  %v1324 = vunpack.c.h.b16 %v623
  %v1325 = vunpack.c.l.b16 %v624
  %v1326 = vunpack.c.h.b16 %v624
  %v1327 = vunpack.c.l.b16 %v625
  %v1328 = vunpack.c.h.b16 %v625
  %v1329 = vunpack.c.l.b16 %v626
  %v1330 = vunpack.c.h.b16 %v626
  %v1331 = vunpack.c.l.b16 %v627
  %v1332 = vunpack.c.h.b16 %v627
  %v1333 = vunpack.c.l.b16 %v628
  %v1334 = vunpack.c.h.b16 %v628
  %v1335 = vunpack.c.l.b16 %v629
  %v1336 = vunpack.c.h.b16 %v629
  %v1337 = vunpack.c.l.b16 %v630
  %v1338 = vunpack.c.h.b16 %v630
  %v1339 = vunpack.c.l.b16 %v631
  %v1340 = vunpack.c.h.b16 %v631
  %v1341 = vunpack.c.l.b16 %v632
  %v1342 = vunpack.c.h.b16 %v632
  %v1343 = vunpack.c.l.b16 %v633
  %v1344 = vunpack.c.h.b16 %v633
  %v1345 = vunpack.c.l.b16 %v634
  %v1346 = vunpack.c.h.b16 %v634
  %v1347 = vunpack.c.l.b16 %v635
  %v1348 = vunpack.c.h.b16 %v635
  %v1349 = vunpack.c.l.b16 %v636
  %v1350 = vunpack.c.h.b16 %v636
  %v1351 = vunpack.c.l.b16 %v637
  %v1352 = vunpack.c.h.b16 %v637
  %v1353 = vunpack.c.l.b16 %v638
  %v1354 = vunpack.c.h.b16 %v638
  %v1355 = vunpack.c.l.b16 %v639
  %v1356 = vunpack.c.h.b16 %v639
  %v1357 = vunpack.c.l.b16 %v640
  %v1358 = vunpack.c.h.b16 %v640
  %v1359 = vunpack.c.l.b16 %v641
  %v1360 = vunpack.c.h.b16 %v641
  %v1361 = vunpack.c.l.b16 %v642
  %v1362 = vunpack.c.h.b16 %v642
  %v1363 = vunpack.c.l.b16 %v643
  %v1364 = vunpack.c.h.b16 %v643
  %v1365 = vunpack.c.l.b16 %v644
  %v1366 = vunpack.c.h.b16 %v644
  %v1367 = vunpack.c.l.b16 %v645
  %v1368 = vunpack.c.h.b16 %v645
  %v1369 = vunpack.c.l.b16 %v646
  %v1370 = vunpack.c.h.b16 %v646
  %v1371 = vunpack.c.l.b16 %v647
  %v1372 = vunpack.c.h.b16 %v647
  %v1373 = vunpack.c.l.b16 %v648
  %v1374 = vunpack.c.h.b16 %v648
  %v1375 = vunpack.c.l.b16 %v649
  %v1376 = vunpack.c.h.b16 %v649
  %v1377 = vunpack.c.l.b16 %v650
  %v1378 = vunpack.c.h.b16 %v650
  %v1379 = vunpack.c.l.b16 %v651
  %v1380 = vunpack.c.h.b16 %v651
  %v1381 = vunpack.c.l.b16 %v652
  %v1382 = vunpack.c.h.b16 %v652
  %v1383 = vunpack.c.l.b16 %v653
  %v1384 = vunpack.c.h.b16 %v653
  %v1385 = vunpack.c.l.b16 %v654
  %v1386 = vunpack.c.h.b16 %v654
  %v1387 = vunpack.c.l.b16 %v655
  %v1388 = vunpack.c.h.b16 %v655
  %v1389 = vunpack.c.l.b16 %v656
  %v1390 = vunpack.c.h.b16 %v656
  %v1391 = vunpack.c.l.b16 %v657
  %v1392 = vunpack.c.h.b16 %v657
  %v1393 = vunpack.c.l.b16 %v658
  %v1394 = vunpack.c.h.b16 %v658
  %v1395 = vunpack.c.l.b16 %v659
  %v1396 = vunpack.c.h.b16 %v659
  %v1397 = vunpack.c.l.b16 %v660
  %v1398 = vunpack.c.h.b16 %v660
  %v1399 = vunpack.c.l.b16 %v661
  %v1400 = vunpack.c.h.b16 %v661
  %v1401 = vunpack.c.l.b16 %v662
  %v1402 = vunpack.c.h.b16 %v662
  %v1403 = vunpack.c.l.b16 %v663
  %v1404 = vunpack.c.h.b16 %v663
  %v1405 = vunpack.c.l.b16 %v664
  %v1406 = vunpack.c.h.b16 %v664
  %v1407 = vunpack.c.l.b16 %v665
  %v1408 = vunpack.c.h.b16 %v665
  %v1409 = vunpack.c.l.b16 %v666
  %v1410 = vunpack.c.h.b16 %v666
  %v1411 = vunpack.c.l.b16 %v667
  %v1412 = vunpack.c.h.b16 %v667
  %v1413 = vunpack.c.l.b16 %v668
  %v1414 = vunpack.c.h.b16 %v668
  %v1415 = vunpack.c.l.b16 %v669
  %v1416 = vunpack.c.h.b16 %v669
  %v1417 = vunpack.c.l.b16 %v670
  %v1418 = vunpack.c.h.b16 %v670
  %v1419 = vunpack.c.l.b16 %v671
  %v1420 = vunpack.c.h.b16 %v671
  %v1421 = vunpack.c.l.b16 %v672
  %v1422 = vunpack.c.h.b16 %v672
  %v1423 = vunpack.c.l.b16 %v673
  %v1424 = vunpack.c.h.b16 %v673
  %v1425 = vunpack.c.l.b16 %v674
  %v1426 = vunpack.c.h.b16 %v674
  %v1427 = vunpack.c.l.b16 %v675
  %v1428 = vunpack.c.h.b16 %v675
  %v1429 = vunpack.c.l.b16 %v676
  %v1430 = vunpack.c.h.b16 %v676
  %v1431 = vunpack.c.l.b16 %v677
  %v1432 = vunpack.c.h.b16 %v677
  %v1433 = vunpack.c.l.b16 %v678
  %v1434 = vunpack.c.h.b16 %v678
  %v1435 = vunpack.c.l.b16 %v679
  %v1436 = vunpack.c.h.b16 %v679
  %v1437 = vunpack.c.l.b16 %v680
  %v1438 = vunpack.c.h.b16 %v680
  %v1439 = vunpack.c.l.b16 %v681
  %v1440 = vunpack.c.h.b16 %v681
  %v1441 = vunpack.c.l.b16 %v682
  %v1442 = vunpack.c.h.b16 %v682
  %v1443 = vunpack.c.l.b16 %v683
  %v1444 = vunpack.c.h.b16 %v683
  %v1445 = vunpack.c.l.b16 %v684
  %v1446 = vunpack.c.h.b16 %v684
  %v1447 = vunpack.c.l.b16 %v685
  %v1448 = vunpack.c.h.b16 %v685
  %v1449 = vunpack.c.l.b16 %v686
  %v1450 = vunpack.c.h.b16 %v686
  %v1451 = vunpack.c.l.b16 %v687
  %v1452 = vunpack.c.h.b16 %v687
  %v1453 = vunpack.c.l.b16 %v688
  %v1454 = vunpack.c.h.b16 %v688
  %v1455 = vunpack.c.l.b16 %v689
  %v1456 = vunpack.c.h.b16 %v689
  %v1457 = vunpack.c.l.b16 %v690
  %v1458 = vunpack.c.h.b16 %v690
  %v1459 = vunpack.c.l.b16 %v691
  %v1460 = vunpack.c.h.b16 %v691
  %v1461 = vunpack.c.l.b16 %v692
  %v1462 = vunpack.c.h.b16 %v692
  %v1463 = vunpack.c.l.b16 %v693
  %v1464 = vunpack.c.h.b16 %v693
  %v1465 = vunpack.c.l.b16 %v694
  %v1466 = vunpack.c.h.b16 %v694
  %v1467 = vunpack.c.l.b16 %v695
  %v1468 = vunpack.c.h.b16 %v695
  %v1469 = vunpack.c.l.b16 %v696
  %v1470 = vunpack.c.h.b16 %v696
  %v1471 = vunpack.c.l.b16 %v697
  %v1472 = vunpack.c.h.b16 %v697
  %v1473 = vunpack.c.l.b16 %v698
  %v1474 = vunpack.c.h.b16 %v698
  %v1475 = vunpack.c.l.b16 %v699
  %v1476 = vunpack.c.h.b16 %v699
  %v1477 = vunpack.c.l.b16 %v700
  %v1478 = vunpack.c.h.b16 %v700
  %v1479 = vunpack.c.l.b16 %v701
  %v1480 = vunpack.c.h.b16 %v701
  %v1481 = vunpack.c.l.b16 %v702
  %v1482 = vunpack.c.h.b16 %v702
  %v1483 = vunpack.c.l.b16 %v703
  %v1484 = vunpack.c.h.b16 %v703
  %v1485 = vunpack.c.l.b16 %v704
  %v1486 = vunpack.c.h.b16 %v704
  %v1487 = vunpack.c.l.b16 %v705
  %v1488 = vunpack.c.h.b16 %v705
  %v1489 = vunpack.c.l.b16 %v706
  %v1490 = vunpack.c.h.b16 %v706
  %v1491 = vunpack.c.l.b16 %v707
  %v1492 = vunpack.c.h.b16 %v707
  %v1493 = vunpack.c.l.b16 %v708
  %v1494 = vunpack.c.h.b16 %v708
  %v1495 = vunpack.c.l.b16 %v709
  %v1496 = vunpack.c.h.b16 %v709
  %v1497 = vunpack.c.l.b16 %v710
  %v1498 = vunpack.c.h.b16 %v710
  %v1499 = vunpack.c.l.b16 %v711
  %v1500 = vunpack.c.h.b16 %v711
  %v1501 = vunpack.c.l.b16 %v712
  %v1502 = vunpack.c.h.b16 %v712
  %v1503 = vunpack.c.l.b16 %v713
  %v1504 = vunpack.c.h.b16 %v713
  %v1505 = vunpack.c.l.b16 %v714
  %v1506 = vunpack.c.h.b16 %v714
  %v1507 = vunpack.c.l.b16 %v715
  %v1508 = vunpack.c.h.b16 %v715
  %v1509 = vunpack.c.l.b16 %v716
  %v1510 = vunpack.c.h.b16 %v716
  %v1511 = vunpack.c.l.b16 %v717
  %v1512 = vunpack.c.h.b16 %v717
  %v1513 = vunpack.c.l.b16 %v718
  %v1514 = vunpack.c.h.b16 %v718
  %v1515 = vunpack.c.l.b16 %v719
  %v1516 = vunpack.c.h.b16 %v719
  %v1517 = vunpack.c.l.b16 %v720
  %v1518 = vunpack.c.h.b16 %v720
  %v1519 = vunpack.c.l.b16 %v721
  %v1520 = vunpack.c.h.b16 %v721
  %v1521 = vunpack.c.l.b16 %v722
  %v1522 = vunpack.c.h.b16 %v722
  %v1523 = vunpack.c.l.b16 %v723
  %v1524 = vunpack.c.h.b16 %v723
  %v1525 = vunpack.c.l.b16 %v724
  %v1526 = vunpack.c.h.b16 %v724
  %v1527 = vunpack.c.l.b16 %v725
  %v1528 = vunpack.c.h.b16 %v725
  %v1529 = vunpack.c.l.b16 %v726
  %v1530 = vunpack.c.h.b16 %v726
  %v1531 = vunpack.c.l.b16 %v727
  %v1532 = vunpack.c.h.b16 %v727
  %v1533 = vunpack.c.l.b16 %v728
  %v1534 = vunpack.c.h.b16 %v728
  %v1535 = vunpack.c.l.b16 %v729
  %v1536 = vunpack.c.h.b16 %v729
  %v1537 = vunpack.c.l.b16 %v730
  %v1538 = vunpack.c.h.b16 %v730
  %v1539 = vunpack.c.l.b16 %v731
  %v1540 = vunpack.c.h.b16 %v731
  %v1541 = vunpack.c.l.b16 %v732
  %v1542 = vunpack.c.h.b16 %v732
  %v1543 = vunpack.c.l.b16 %v733
  %v1544 = vunpack.c.h.b16 %v733
  %v1545 = vunpack.c.l.b16 %v734
  %v1546 = vunpack.c.h.b16 %v734
  %v1547 = vunpack.c.l.b16 %v735
  %v1548 = vunpack.c.h.b16 %v735
  %v1549 = vunpack.c.l.b16 %v736
  %v1550 = vunpack.c.h.b16 %v736
  %v1551 = vunpack.c.l.b16 %v737
  %v1552 = vunpack.c.h.b16 %v737
  %v1553 = vunpack.c.l.b16 %v738
  %v1554 = vunpack.c.h.b16 %v738
  %v1555 = vunpack.c.l.b16 %v739
  %v1556 = vunpack.c.h.b16 %v739
  %v1557 = vunpack.c.l.b16 %v740
  %v1558 = vunpack.c.h.b16 %v740
  %v1559 = vunpack.c.l.b16 %v741
  %v1560 = vunpack.c.h.b16 %v741
  %v1561 = vunpack.c.l.b16 %v742
  %v1562 = vunpack.c.h.b16 %v742
  %v1563 = vunpack.c.l.b16 %v743
  %v1564 = vunpack.c.h.b16 %v743
  %v1565 = vunpack.c.l.b16 %v744
  %v1566 = vunpack.c.h.b16 %v744
  %v1567 = vunpack.c.l.b16 %v745
  %v1568 = vunpack.c.h.b16 %v745
  %v1569 = vunpack.c.l.b16 %v746
  %v1570 = vunpack.c.h.b16 %v746
  %v1571 = vunpack.c.l.b16 %v747
  %v1572 = vunpack.c.h.b16 %v747
  %v1573 = vunpack.c.l.b16 %v748
  %v1574 = vunpack.c.h.b16 %v748
  %v1575 = vunpack.c.l.b16 %v749
  %v1576 = vunpack.c.h.b16 %v749
  %v1577 = vunpack.c.l.b16 %v750
  %v1578 = vunpack.c.h.b16 %v750
  %v1579 = vunpack.c.l.b16 %v751
  %v1580 = vunpack.c.h.b16 %v751
  %v1581 = vunpack.c.l.b16 %v752
  %v1582 = vunpack.c.h.b16 %v752
  %v1583 = vunpack.c.l.b16 %v753
  %v1584 = vunpack.c.h.b16 %v753
  %v1585 = vunpack.c.l.b16 %v754
  %v1586 = vunpack.c.h.b16 %v754
  %v1587 = vunpack.c.l.b16 %v755
  %v1588 = vunpack.c.h.b16 %v755
  %v1589 = vunpack.c.l.b16 %v756
  %v1590 = vunpack.c.h.b16 %v756
  %v1591 = vunpack.c.l.b16 %v757
  %v1592 = vunpack.c.h.b16 %v757
  %v1593 = vunpack.c.l.b16 %v758
  %v1594 = vunpack.c.h.b16 %v758
  %v1595 = vunpack.c.l.b16 %v759
  %v1596 = vunpack.c.h.b16 %v759
  %v1597 = vunpack.c.l.b16 %v760
  %v1598 = vunpack.c.h.b16 %v760
  %v1599 = vunpack.c.l.b16 %v761
  %v1600 = vunpack.c.h.b16 %v761
  %v1601 = vunpack.c.l.b16 %v762
  %v1602 = vunpack.c.h.b16 %v762
  %v1603 = vunpack.c.l.b16 %v763
  %v1604 = vunpack.c.h.b16 %v763
  %v1605 = vunpack.c.l.b16 %v764
  %v1606 = vunpack.c.h.b16 %v764
  %v1607 = vunpack.c.l.b16 %v765
  %v1608 = vunpack.c.h.b16 %v765
  %v1609 = vunpack.c.l.b16 %v766
  %v1610 = vunpack.c.h.b16 %v766
  %v1611 = vunpack.c.l.b16 %v767
  %v1612 = vunpack.c.h.b16 %v767
  %v1613 = vunpack.c.l.b16 %v768
  %v1614 = vunpack.c.h.b16 %v768
  %v1615 = vunpack.c.l.b16 %v769
  %v1616 = vunpack.c.h.b16 %v769
  %v1617 = vunpack.c.l.b16 %v770
  %v1618 = vunpack.c.h.b16 %v770
  %v1619 = vunpack.c.l.b16 %v771
  %v1620 = vunpack.c.h.b16 %v771
  %v1621 = vunpack.c.l.b16 %v772
  %v1622 = vunpack.c.h.b16 %v772
  %v1623 = vunpack.c.l.b16 %v773
  %v1624 = vunpack.c.h.b16 %v773
  %v1625 = vunpack.c.l.b16 %v774
  %v1626 = vunpack.c.h.b16 %v774
  %v1627 = vunpack.c.l.b16 %v775
  %v1628 = vunpack.c.h.b16 %v775
  %v1629 = vunpack.c.l.b16 %v776
  %v1630 = vunpack.c.h.b16 %v776
  %v1631 = vunpack.c.l.b16 %v777
  %v1632 = vunpack.c.h.b16 %v777
  %v1633 = vunpack.c.l.b16 %v778
  %v1634 = vunpack.c.h.b16 %v778
  %v1635 = vunpack.c.l.b16 %v779
  %v1636 = vunpack.c.h.b16 %v779
  %v1637 = vunpack.c.l.b16 %v780
  %v1638 = vunpack.c.h.b16 %v780
  %v1639 = vunpack.c.l.b16 %v781
  %v1640 = vunpack.c.h.b16 %v781
  %v1641 = vunpack.c.l.b16 %v782
  %v1642 = vunpack.c.h.b16 %v782
  %v1643 = vunpack.c.l.b16 %v783
  %v1644 = vunpack.c.h.b16 %v783
  %v1645 = vunpack.c.l.b16 %v784
  %v1646 = vunpack.c.h.b16 %v784
  %v1647 = vunpack.c.l.b16 %v785
  %v1648 = vunpack.c.h.b16 %v785
  %v1649 = vunpack.c.l.b16 %v786
  %v1650 = vunpack.c.h.b16 %v786
  %v1651 = vunpack.c.l.b16 %v787
  %v1652 = vunpack.c.h.b16 %v787
  %v1653 = vunpack.c.l.b16 %v788
  %v1654 = vunpack.c.h.b16 %v788
  %v1655 = vunpack.c.l.b16 %v789
  %v1656 = vunpack.c.h.b16 %v789
  %v1657 = vunpack.c.l.b16 %v790
  %v1658 = vunpack.c.h.b16 %v790
  %v1659 = vunpack.c.l.b16 %v791
  %v1660 = vunpack.c.h.b16 %v791
  %v1661 = vunpack.c.l.b16 %v792
  %v1662 = vunpack.c.h.b16 %v792
  %v1663 = vunpack.c.l.b16 %v793
  %v1664 = vunpack.c.h.b16 %v793
  %v1665 = vunpack.c.l.b16 %v794
  %v1666 = vunpack.c.h.b16 %v794
  %v1667 = vunpack.c.l.b16 %v795
  %v1668 = vunpack.c.h.b16 %v795
  %v1669 = vunpack.c.l.b16 %v796
  %v1670 = vunpack.c.h.b16 %v796
  %v1671 = vunpack.c.l.b16 %v797
  %v1672 = vunpack.c.h.b16 %v797
  %v1673 = vunpack.c.l.b16 %v798
  %v1674 = vunpack.c.h.b16 %v798
  %v1675 = vunpack.c.l.b16 %v799
  %v1676 = vunpack.c.h.b16 %v799
  %v1677 = vunpack.c.l.b16 %v800
  %v1678 = vunpack.c.h.b16 %v800
  %v1679 = vunpack.c.l.b16 %v801
  %v1680 = vunpack.c.h.b16 %v801
  %v1681 = vunpack.c.l.b16 %v802
  %v1682 = vunpack.c.h.b16 %v802
  %v1683 = vunpack.c.l.b16 %v803
  %v1684 = vunpack.c.h.b16 %v803
  %v1685 = vunpack.c.l.b16 %v804
  %v1686 = vunpack.c.h.b16 %v804
  %v1687 = vunpack.c.l.b16 %v805
  %v1688 = vunpack.c.h.b16 %v805
  %v1689 = vunpack.c.l.b16 %v806
  %v1690 = vunpack.c.h.b16 %v806
  %v1691 = vunpack.c.l.b16 %v807
  %v1692 = vunpack.c.h.b16 %v807
  %v1693 = vunpack.c.l.b16 %v808
  %v1694 = vunpack.c.h.b16 %v808
  %v1695 = vunpack.c.l.b16 %v809
  %v1696 = vunpack.c.h.b16 %v809
  %v1697 = vunpack.c.l.b16 %v810
  %v1698 = vunpack.c.h.b16 %v810
  %v1699 = vunpack.c.l.b16 %v811
  %v1700 = vunpack.c.h.b16 %v811
  %v1701 = vunpack.c.l.b16 %v812
  %v1702 = vunpack.c.h.b16 %v812
  %v1703 = vunpack.c.l.b16 %v813
  %v1704 = vunpack.c.h.b16 %v813
  %v1705 = vunpack.c.l.b16 %v814
  %v1706 = vunpack.c.h.b16 %v814
  %v1707 = vunpack.c.l.b16 %v815
  %v1708 = vunpack.c.h.b16 %v815
  %v1709 = vunpack.c.l.b16 %v816
  %v1710 = vunpack.c.h.b16 %v816
  %v1711 = vunpack.c.l.b16 %v817
  %v1712 = vunpack.c.h.b16 %v817
  %v1713 = vunpack.c.l.b16 %v818
  %v1714 = vunpack.c.h.b16 %v818
  %v1715 = vunpack.c.l.b16 %v819
  %v1716 = vunpack.c.h.b16 %v819
  %v1717 = vunpack.c.l.b16 %v820
  %v1718 = vunpack.c.h.b16 %v820
  %v1719 = vunpack.c.l.b16 %v821
  %v1720 = vunpack.c.h.b16 %v821
  %v1721 = vunpack.c.l.b16 %v822
  %v1722 = vunpack.c.h.b16 %v822
  %v1723 = vunpack.c.l.b16 %v823
  %v1724 = vunpack.c.h.b16 %v823
  %v1725 = vunpack.c.l.b16 %v824
  %v1726 = vunpack.c.h.b16 %v824
  %v1727 = vunpack.c.l.b16 %v825
  %v1728 = vunpack.c.h.b16 %v825
  %v1729 = vunpack.c.l.b16 %v826
  %v1730 = vunpack.c.h.b16 %v826
  %v1731 = vunpack.c.l.b16 %v827
  %v1732 = vunpack.c.h.b16 %v827
  %v1733 = vunpack.c.l.b16 %v828
  %v1734 = vunpack.c.h.b16 %v828
  %v1735 = vunpack.c.l.b16 %v829
  %v1736 = vunpack.c.h.b16 %v829
  %v1737 = vunpack.c.l.b16 %v830
  %v1738 = vunpack.c.h.b16 %v830
  %v1739 = vunpack.c.l.b16 %v831
  %v1740 = vunpack.c.h.b16 %v831
  %v1741 = vunpack.c.l.b16 %v832
  %v1742 = vunpack.c.h.b16 %v832
  %v1743 = vunpack.c.l.b16 %v833
  %v1744 = vunpack.c.h.b16 %v833
  %v1745 = vunpack.c.l.b16 %v834
  %v1746 = vunpack.c.h.b16 %v834
  %v1747 = vunpack.c.l.b16 %v835
  %v1748 = vunpack.c.h.b16 %v835
  %v1749 = vunpack.c.l.b16 %v836
  %v1750 = vunpack.c.h.b16 %v836
  %v1751 = vunpack.c.l.b16 %v837
  %v1752 = vunpack.c.h.b16 %v837
  %v1753 = vunpack.c.l.b16 %v838
  %v1754 = vunpack.c.h.b16 %v838
  %v1755 = vunpack.c.l.b16 %v839
  %v1756 = vunpack.c.h.b16 %v839
  %v1757 = vunpack.c.l.b16 %v840
  %v1758 = vunpack.c.h.b16 %v840
  %v1759 = vunpack.c.l.b16 %v841
  %v1760 = vunpack.c.h.b16 %v841
  %v1761 = vunpack.c.l.b16 %v842
  %v1762 = vunpack.c.h.b16 %v842
  %v1763 = vunpack.c.l.b16 %v843
  %v1764 = vunpack.c.h.b16 %v843
  %v1765 = vunpack.c.l.b16 %v844
  %v1766 = vunpack.c.h.b16 %v844
  %v1767 = vunpack.c.l.b16 %v845
  %v1768 = vunpack.c.h.b16 %v845
  %v1769 = vunpack.c.l.b16 %v846
  %v1770 = vunpack.c.h.b16 %v846
  %v1771 = vunpack.c.l.b16 %v847
  %v1772 = vunpack.c.h.b16 %v847
  %v1773 = vunpack.c.l.b16 %v848
  %v1774 = vunpack.c.h.b16 %v848
  %v1775 = vunpack.c.l.b16 %v849
  %v1776 = vunpack.c.h.b16 %v849
  %v1777 = vunpack.c.l.b16 %v850
  %v1778 = vunpack.c.h.b16 %v850
  %v1779 = vunpack.c.l.b16 %v851
  %v1780 = vunpack.c.h.b16 %v851
  %v1781 = vunpack.c.l.b16 %v852
  %v1782 = vunpack.c.h.b16 %v852
  %v1783 = vunpack.c.l.b16 %v853
  %v1784 = vunpack.c.h.b16 %v853
  %v1785 = vunpack.c.l.b16 %v854
  %v1786 = vunpack.c.h.b16 %v854
  %v1787 = vunpack.c.l.b16 %v855
  %v1788 = vunpack.c.h.b16 %v855
  %v1789 = vunpack.c.l.b16 %v856
  %v1790 = vunpack.c.h.b16 %v856
  %v1791 = vunpack.c.l.b16 %v857
  %v1792 = vunpack.c.h.b16 %v857
  %v1793 = vunpack.c.l.b16 %v858
  %v1794 = vunpack.c.h.b16 %v858
  %v1795 = vpack.c.b16 %v1315, %v1283
  %v1796 = vpack.c.b16 %v1316, %v1284
  %v1797 = vpack.c.b16 %v1317, %v1285
  %v1798 = vpack.c.b16 %v1318, %v1286
  %v1799 = vpack.c.b16 %v1319, %v1287
  %v1800 = vpack.c.b16 %v1320, %v1288
  %v1801 = vpack.c.b16 %v1321, %v1289
  %v1802 = vpack.c.b16 %v1322, %v1290
  %v1803 = vpack.c.b16 %v1323, %v1291
  %v1804 = vpack.c.b16 %v1324, %v1292
  %v1805 = vpack.c.b16 %v1325, %v1293
  %v1806 = vpack.c.b16 %v1326, %v1294
  %v1807 = vpack.c.b16 %v1327, %v1295
  %v1808 = vpack.c.b16 %v1328, %v1296
  %v1809 = vpack.c.b16 %v1329, %v1297
  %v1810 = vpack.c.b16 %v1330, %v1298
  %v1811 = vpack.c.b16 %v1331, %v1299
  %v1812 = vpack.c.b16 %v1332, %v1300
  %v1813 = vpack.c.b16 %v1333, %v1301
  %v1814 = vpack.c.b16 %v1334, %v1302
  %v1815 = vpack.c.b16 %v1335, %v1303
  %v1816 = vpack.c.b16 %v1336, %v1304
  %v1817 = vpack.c.b16 %v1337, %v1305
  %v1818 = vpack.c.b16 %v1338, %v1306
  %v1819 = vpack.c.b16 %v1339, %v1307
  %v1820 = vpack.c.b16 %v1340, %v1308
  %v1821 = vpack.c.b16 %v1341, %v1309
  %v1822 = vpack.c.b16 %v1342, %v1310
  %v1823 = vpack.c.b16 %v1343, %v1311
  %v1824 = vpack.c.b16 %v1344, %v1312
  %v1825 = vpack.c.b16 %v1345, %v1313
  %v1826 = vpack.c.b16 %v1346, %v1314
  %v1827 = vpack.c.b16 %v1379, %v1347
  %v1828 = vpack.c.b16 %v1380, %v1348
  %v1829 = vpack.c.b16 %v1381, %v1349
  %v1830 = vpack.c.b16 %v1382, %v1350
  %v1831 = vpack.c.b16 %v1383, %v1351
  %v1832 = vpack.c.b16 %v1384, %v1352
  %v1833 = vpack.c.b16 %v1385, %v1353
  %v1834 = vpack.c.b16 %v1386, %v1354
  %v1835 = vpack.c.b16 %v1387, %v1355
  %v1836 = vpack.c.b16 %v1388, %v1356
  %v1837 = vpack.c.b16 %v1389, %v1357
  %v1838 = vpack.c.b16 %v1390, %v1358
  %v1839 = vpack.c.b16 %v1391, %v1359
  %v1840 = vpack.c.b16 %v1392, %v1360
  %v1841 = vpack.c.b16 %v1393, %v1361
  %v1842 = vpack.c.b16 %v1394, %v1362
  %v1843 = vpack.c.b16 %v1395, %v1363
  %v1844 = vpack.c.b16 %v1396, %v1364
  %v1845 = vpack.c.b16 %v1397, %v1365
  %v1846 = vpack.c.b16 %v1398, %v1366
  %v1847 = vpack.c.b16 %v1399, %v1367
  %v1848 = vpack.c.b16 %v1400, %v1368
  %v1849 = vpack.c.b16 %v1401, %v1369
  %v1850 = vpack.c.b16 %v1402, %v1370
  %v1851 = vpack.c.b16 %v1403, %v1371
  %v1852 = vpack.c.b16 %v1404, %v1372
  %v1853 = vpack.c.b16 %v1405, %v1373
  %v1854 = vpack.c.b16 %v1406, %v1374
  %v1855 = vpack.c.b16 %v1407, %v1375
  %v1856 = vpack.c.b16 %v1408, %v1376
  %v1857 = vpack.c.b16 %v1409, %v1377
  %v1858 = vpack.c.b16 %v1410, %v1378
  %v1859 = vpack.c.b16 %v1443, %v1411
  %v1860 = vpack.c.b16 %v1444, %v1412
  %v1861 = vpack.c.b16 %v1445, %v1413
  %v1862 = vpack.c.b16 %v1446, %v1414
  %v1863 = vpack.c.b16 %v1447, %v1415
  %v1864 = vpack.c.b16 %v1448, %v1416
  %v1865 = vpack.c.b16 %v1449, %v1417
  %v1866 = vpack.c.b16 %v1450, %v1418
  %v1867 = vpack.c.b16 %v1451, %v1419
  %v1868 = vpack.c.b16 %v1452, %v1420
  %v1869 = vpack.c.b16 %v1453, %v1421
  %v1870 = vpack.c.b16 %v1454, %v1422
  %v1871 = vpack.c.b16 %v1455, %v1423
  %v1872 = vpack.c.b16 %v1456, %v1424
  %v1873 = vpack.c.b16 %v1457, %v1425
  %v1874 = vpack.c.b16 %v1458, %v1426
  %v1875 = vpack.c.b16 %v1459, %v1427
  %v1876 = vpack.c.b16 %v1460, %v1428
  %v1877 = vpack.c.b16 %v1461, %v1429
  %v1878 = vpack.c.b16 %v1462, %v1430
  %v1879 = vpack.c.b16 %v1463, %v1431
  %v1880 = vpack.c.b16 %v1464, %v1432
  %v1881 = vpack.c.b16 %v1465, %v1433
  %v1882 = vpack.c.b16 %v1466, %v1434
  %v1883 = vpack.c.b16 %v1467, %v1435
  %v1884 = vpack.c.b16 %v1468, %v1436
  %v1885 = vpack.c.b16 %v1469, %v1437
  %v1886 = vpack.c.b16 %v1470, %v1438
  %v1887 = vpack.c.b16 %v1471, %v1439
  %v1888 = vpack.c.b16 %v1472, %v1440
  %v1889 = vpack.c.b16 %v1473, %v1441
  %v1890 = vpack.c.b16 %v1474, %v1442
  %v1891 = vpack.c.b16 %v1507, %v1475
  %v1892 = vpack.c.b16 %v1508, %v1476
  %v1893 = vpack.c.b16 %v1509, %v1477
  %v1894 = vpack.c.b16 %v1510, %v1478
  %v1895 = vpack.c.b16 %v1511, %v1479
  %v1896 = vpack.c.b16 %v1512, %v1480
  %v1897 = vpack.c.b16 %v1513, %v1481
  %v1898 = vpack.c.b16 %v1514, %v1482
  %v1899 = vpack.c.b16 %v1515, %v1483
  %v1900 = vpack.c.b16 %v1516, %v1484
  %v1901 = vpack.c.b16 %v1517, %v1485
  %v1902 = vpack.c.b16 %v1518, %v1486
  %v1903 = vpack.c.b16 %v1519, %v1487
  %v1904 = vpack.c.b16 %v1520, %v1488
  %v1905 = vpack.c.b16 %v1521, %v1489
  %v1906 = vpack.c.b16 %v1522, %v1490
  %v1907 = vpack.c.b16 %v1523, %v1491
  %v1908 = vpack.c.b16 %v1524, %v1492
  %v1909 = vpack.c.b16 %v1525, %v1493
  %v1910 = vpack.c.b16 %v1526, %v1494
  %v1911 = vpack.c.b16 %v1527, %v1495
  %v1912 = vpack.c.b16 %v1528, %v1496
  %v1913 = vpack.c.b16 %v1529, %v1497
  %v1914 = vpack.c.b16 %v1530, %v1498
  %v1915 = vpack.c.b16 %v1531, %v1499
  %v1916 = vpack.c.b16 %v1532, %v1500
  %v1917 = vpack.c.b16 %v1533, %v1501
  %v1918 = vpack.c.b16 %v1534, %v1502
  %v1919 = vpack.c.b16 %v1535, %v1503
  %v1920 = vpack.c.b16 %v1536, %v1504
  %v1921 = vpack.c.b16 %v1537, %v1505
  %v1922 = vpack.c.b16 %v1538, %v1506
  %v1923 = vpack.c.b16 %v1571, %v1539
  %v1924 = vpack.c.b16 %v1572, %v1540
  %v1925 = vpack.c.b16 %v1573, %v1541
  %v1926 = vpack.c.b16 %v1574, %v1542
  %v1927 = vpack.c.b16 %v1575, %v1543
  %v1928 = vpack.c.b16 %v1576, %v1544
  %v1929 = vpack.c.b16 %v1577, %v1545
  %v1930 = vpack.c.b16 %v1578, %v1546
  %v1931 = vpack.c.b16 %v1579, %v1547
  %v1932 = vpack.c.b16 %v1580, %v1548
  %v1933 = vpack.c.b16 %v1581, %v1549
  %v1934 = vpack.c.b16 %v1582, %v1550
  %v1935 = vpack.c.b16 %v1583, %v1551
  %v1936 = vpack.c.b16 %v1584, %v1552
  %v1937 = vpack.c.b16 %v1585, %v1553
  %v1938 = vpack.c.b16 %v1586, %v1554
  %v1939 = vpack.c.b16 %v1587, %v1555
  %v1940 = vpack.c.b16 %v1588, %v1556
  %v1941 = vpack.c.b16 %v1589, %v1557
  %v1942 = vpack.c.b16 %v1590, %v1558
  %v1943 = vpack.c.b16 %v1591, %v1559
  %v1944 = vpack.c.b16 %v1592, %v1560
  %v1945 = vpack.c.b16 %v1593, %v1561
  %v1946 = vpack.c.b16 %v1594, %v1562
  %v1947 = vpack.c.b16 %v1595, %v1563
  %v1948 = vpack.c.b16 %v1596, %v1564
  %v1949 = vpack.c.b16 %v1597, %v1565
  %v1950 = vpack.c.b16 %v1598, %v1566
  %v1951 = vpack.c.b16 %v1599, %v1567
  %v1952 = vpack.c.b16 %v1600, %v1568
  %v1953 = vpack.c.b16 %v1601, %v1569
  %v1954 = vpack.c.b16 %v1602, %v1570
  %v1955 = vpack.c.b16 %v1635, %v1603
  %v1956 = vpack.c.b16 %v1636, %v1604
  %v1957 = vpack.c.b16 %v1637, %v1605
  %v1958 = vpack.c.b16 %v1638, %v1606
  %v1959 = vpack.c.b16 %v1639, %v1607
  %v1960 = vpack.c.b16 %v1640, %v1608
  %v1961 = vpack.c.b16 %v1641, %v1609
  %v1962 = vpack.c.b16 %v1642, %v1610
  %v1963 = vpack.c.b16 %v1643, %v1611
  %v1964 = vpack.c.b16 %v1644, %v1612
  %v1965 = vpack.c.b16 %v1645, %v1613
  %v1966 = vpack.c.b16 %v1646, %v1614
  %v1967 = vpack.c.b16 %v1647, %v1615
  %v1968 = vpack.c.b16 %v1648, %v1616
  %v1969 = vpack.c.b16 %v1649, %v1617
  %v1970 = vpack.c.b16 %v1650, %v1618
  %v1971 = vpack.c.b16 %v1651, %v1619
  %v1972 = vpack.c.b16 %v1652, %v1620
  %v1973 = vpack.c.b16 %v1653, %v1621
  %v1974 = vpack.c.b16 %v1654, %v1622
  %v1975 = vpack.c.b16 %v1655, %v1623
  %v1976 = vpack.c.b16 %v1656, %v1624
  %v1977 = vpack.c.b16 %v1657, %v1625
  %v1978 = vpack.c.b16 %v1658, %v1626
  %v1979 = vpack.c.b16 %v1659, %v1627
  %v1980 = vpack.c.b16 %v1660, %v1628
  %v1981 = vpack.c.b16 %v1661, %v1629
  %v1982 = vpack.c.b16 %v1662, %v1630
  %v1983 = vpack.c.b16 %v1663, %v1631
  %v1984 = vpack.c.b16 %v1664, %v1632
  %v1985 = vpack.c.b16 %v1665, %v1633
  %v1986 = vpack.c.b16 %v1666, %v1634
  %v1987 = vpack.c.b16 %v1699, %v1667
  %v1988 = vpack.c.b16 %v1700, %v1668
  %v1989 = vpack.c.b16 %v1701, %v1669
  %v1990 = vpack.c.b16 %v1702, %v1670
  %v1991 = vpack.c.b16 %v1703, %v1671
  %v1992 = vpack.c.b16 %v1704, %v1672
  %v1993 = vpack.c.b16 %v1705, %v1673
  %v1994 = vpack.c.b16 %v1706, %v1674
  %v1995 = vpack.c.b16 %v1707, %v1675
  %v1996 = vpack.c.b16 %v1708, %v1676
  %v1997 = vpack.c.b16 %v1709, %v1677
  %v1998 = vpack.c.b16 %v1710, %v1678
  %v1999 = vpack.c.b16 %v1711, %v1679
  %v2000 = vpack.c.b16 %v1712, %v1680
  %v2001 = vpack.c.b16 %v1713, %v1681
  %v2002 = vpack.c.b16 %v1714, %v1682
  %v2003 = vpack.c.b16 %v1715, %v1683
  %v2004 = vpack.c.b16 %v1716, %v1684
  %v2005 = vpack.c.b16 %v1717, %v1685
  %v2006 = vpack.c.b16 %v1718, %v1686
  %v2007 = vpack.c.b16 %v1719, %v1687
  %v2008 = vpack.c.b16 %v1720, %v1688
  %v2009 = vpack.c.b16 %v1721, %v1689
  %v2010 = vpack.c.b16 %v1722, %v1690
  %v2011 = vpack.c.b16 %v1723, %v1691
  %v2012 = vpack.c.b16 %v1724, %v1692
  %v2013 = vpack.c.b16 %v1725, %v1693
  %v2014 = vpack.c.b16 %v1726, %v1694
  %v2015 = vpack.c.b16 %v1727, %v1695
  %v2016 = vpack.c.b16 %v1728, %v1696
  %v2017 = vpack.c.b16 %v1729, %v1697
  %v2018 = vpack.c.b16 %v1730, %v1698
  %v2019 = vpack.c.b16 %v1763, %v1731
  %v2020 = vpack.c.b16 %v1764, %v1732
  %v2021 = vpack.c.b16 %v1765, %v1733
  %v2022 = vpack.c.b16 %v1766, %v1734
  %v2023 = vpack.c.b16 %v1767, %v1735
  %v2024 = vpack.c.b16 %v1768, %v1736
  %v2025 = vpack.c.b16 %v1769, %v1737
  %v2026 = vpack.c.b16 %v1770, %v1738
  %v2027 = vpack.c.b16 %v1771, %v1739
  %v2028 = vpack.c.b16 %v1772, %v1740
  %v2029 = vpack.c.b16 %v1773, %v1741
  %v2030 = vpack.c.b16 %v1774, %v1742
  %v2031 = vpack.c.b16 %v1775, %v1743
  %v2032 = vpack.c.b16 %v1776, %v1744
  %v2033 = vpack.c.b16 %v1777, %v1745
  %v2034 = vpack.c.b16 %v1778, %v1746
  %v2035 = vpack.c.b16 %v1779, %v1747
  %v2036 = vpack.c.b16 %v1780, %v1748
  %v2037 = vpack.c.b16 %v1781, %v1749
  %v2038 = vpack.c.b16 %v1782, %v1750
  %v2039 = vpack.c.b16 %v1783, %v1751
  %v2040 = vpack.c.b16 %v1784, %v1752
  %v2041 = vpack.c.b16 %v1785, %v1753
  %v2042 = vpack.c.b16 %v1786, %v1754
  %v2043 = vpack.c.b16 %v1787, %v1755
  %v2044 = vpack.c.b16 %v1788, %v1756
  %v2045 = vpack.c.b16 %v1789, %v1757
  %v2046 = vpack.c.b16 %v1790, %v1758
  %v2047 = vpack.c.b16 %v1791, %v1759
  %v2048 = vpack.c.b16 %v1792, %v1760
  %v2049 = vpack.c.b16 %v1793, %v1761
  %v2050 = vpack.c.b16 %v1794, %v1762
  %2307 = vmatprep.subr.bf16.mxu0 %v1796
  %2308 = vmatpush1.bf16.msra.mxu0 %v1795
  %2309 = vmatprep.subr.bf16.mxu0 %v1828
  %2310 = vmatpush1.bf16.msra.mxu0 %v1827
  %2311 = vmatprep.subr.bf16.mxu0 %v1860
  %2312 = vmatpush1.bf16.msra.mxu0 %v1859
  %2313 = vmatprep.subr.bf16.mxu0 %v1892
  %2314 = vmatpush1.bf16.msra.mxu0 %v1891
  %2315 = vmatprep.subr.bf16.mxu0 %v1924
  %2316 = vmatpush1.bf16.msra.mxu0 %v1923
  %2317 = vmatprep.subr.bf16.mxu0 %v1956
  %2318 = vmatpush1.bf16.msra.mxu0 %v1955
  %2319 = vmatprep.subr.bf16.mxu0 %v1988
  %2320 = vmatpush1.bf16.msra.mxu0 %v1987
  %2321 = vmatprep.subr.bf16.mxu0 %v2020
  %2322 = vmatpush1.bf16.msra.mxu0 %v2019
  %2323 = vmatprep.subr.bf16.mxu0 0
  %2324 = vmatpush1.bf16.msra.mxu0 0
  %2325 = vmatprep.subr.bf16.mxu0 0
  %2326 = vmatpush1.bf16.msra.mxu0 0
  %2327 = vmatprep.subr.bf16.mxu0 0
  %2328 = vmatpush1.bf16.msra.mxu0 0
  %2329 = vmatprep.subr.bf16.mxu0 0
  %2330 = vmatpush1.bf16.msra.mxu0 0
  %2331 = vmatprep.subr.bf16.mxu0 0
  %2332 = vmatpush1.bf16.msra.mxu0 0
  %2333 = vmatprep.subr.bf16.mxu0 0
  %2334 = vmatpush1.bf16.msra.mxu0 0
  %2335 = vmatprep.subr.bf16.mxu0 0
  %2336 = vmatpush1.bf16.msra.mxu0 0
  %2337 = vmatprep.subr.bf16.mxu0 0
  %2338 = vmatpush1.bf16.msra.mxu0 0
  %2339 = vmatprep.mubr.bf16.mxu0 0
  %2340 = vmatmul.mubr.bf16.gmra.mrb[0].mxu0 %v602
  %v2341 = vpop.f32.mrb[0].mxu0
  %v2342 = vadd.f32 %v870, %v2341
  %v2343 = vpop.f32.mrb[0].mxu0
  %v2344 = vadd.f32 %v874, %v2343
  %v2345 = vpop.f32.mrb[0].mxu0
  %v2346 = vpop.f32.mrb[0].mxu0
  %2347 = vdwg.mxu0
  %2348 = vmatprep.subr.bf16.mxu0 %v1798
  %2349 = vmatpush1.bf16.msra.mxu0 %v1797
  %2350 = vmatprep.subr.bf16.mxu0 %v1830
  %2351 = vmatpush1.bf16.msra.mxu0 %v1829
  %2352 = vmatprep.subr.bf16.mxu0 %v1862
  %2353 = vmatpush1.bf16.msra.mxu0 %v1861
  %2354 = vmatprep.subr.bf16.mxu0 %v1894
  %2355 = vmatpush1.bf16.msra.mxu0 %v1893
  %2356 = vmatprep.subr.bf16.mxu0 %v1926
  %2357 = vmatpush1.bf16.msra.mxu0 %v1925
  %2358 = vmatprep.subr.bf16.mxu0 %v1958
  %2359 = vmatpush1.bf16.msra.mxu0 %v1957
  %2360 = vmatprep.subr.bf16.mxu0 %v1990
  %2361 = vmatpush1.bf16.msra.mxu0 %v1989
  %2362 = vmatprep.subr.bf16.mxu0 %v2022
  %2363 = vmatpush1.bf16.msra.mxu0 %v2021
  %2364 = vmatprep.subr.bf16.mxu0 0
  %2365 = vmatpush1.bf16.msra.mxu0 0
  %2366 = vmatprep.subr.bf16.mxu0 0
  %2367 = vmatpush1.bf16.msra.mxu0 0
  %2368 = vmatprep.subr.bf16.mxu0 0
  %2369 = vmatpush1.bf16.msra.mxu0 0
  %2370 = vmatprep.subr.bf16.mxu0 0
  %2371 = vmatpush1.bf16.msra.mxu0 0
  %2372 = vmatprep.subr.bf16.mxu0 0
  %2373 = vmatpush1.bf16.msra.mxu0 0
  %2374 = vmatprep.subr.bf16.mxu0 0
  %2375 = vmatpush1.bf16.msra.mxu0 0
  %2376 = vmatprep.subr.bf16.mxu0 0
  %2377 = vmatpush1.bf16.msra.mxu0 0
  %2378 = vmatprep.subr.bf16.mxu0 0
  %2379 = vmatpush1.bf16.msra.mxu0 0
  %2380 = vmatprep.mubr.bf16.mxu0 0
  %2381 = vmatmul.mubr.bf16.gmra.mrb[0].mxu0 %v602
  %v2382 = vpop.f32.mrb[0].mxu0
  %v2383 = vadd.f32 %v878, %v2382
  %v2384 = vpop.f32.mrb[0].mxu0
  %v2385 = vadd.f32 %v882, %v2384
  %v2386 = vpop.f32.mrb[0].mxu0
  %v2387 = vpop.f32.mrb[0].mxu0
  %2388 = vdwg.mxu0
  %2389 = vmatprep.subr.bf16.mxu0 %v1800
  %2390 = vmatpush1.bf16.msra.mxu0 %v1799
  %2391 = vmatprep.subr.bf16.mxu0 %v1832
  %2392 = vmatpush1.bf16.msra.mxu0 %v1831
  %2393 = vmatprep.subr.bf16.mxu0 %v1864
  %2394 = vmatpush1.bf16.msra.mxu0 %v1863
  %2395 = vmatprep.subr.bf16.mxu0 %v1896
  %2396 = vmatpush1.bf16.msra.mxu0 %v1895
  %2397 = vmatprep.subr.bf16.mxu0 %v1928
  %2398 = vmatpush1.bf16.msra.mxu0 %v1927
  %2399 = vmatprep.subr.bf16.mxu0 %v1960
  %2400 = vmatpush1.bf16.msra.mxu0 %v1959
  %2401 = vmatprep.subr.bf16.mxu0 %v1992
  %2402 = vmatpush1.bf16.msra.mxu0 %v1991
  %2403 = vmatprep.subr.bf16.mxu0 %v2024
  %2404 = vmatpush1.bf16.msra.mxu0 %v2023
  %2405 = vmatprep.subr.bf16.mxu0 0
  %2406 = vmatpush1.bf16.msra.mxu0 0
  %2407 = vmatprep.subr.bf16.mxu0 0
  %2408 = vmatpush1.bf16.msra.mxu0 0
  %2409 = vmatprep.subr.bf16.mxu0 0
  %2410 = vmatpush1.bf16.msra.mxu0 0
  %2411 = vmatprep.subr.bf16.mxu0 0
  %2412 = vmatpush1.bf16.msra.mxu0 0
  %2413 = vmatprep.subr.bf16.mxu0 0
  %2414 = vmatpush1.bf16.msra.mxu0 0
  %2415 = vmatprep.subr.bf16.mxu0 0
  %2416 = vmatpush1.bf16.msra.mxu0 0
  %2417 = vmatprep.subr.bf16.mxu0 0
  %2418 = vmatpush1.bf16.msra.mxu0 0
  %2419 = vmatprep.subr.bf16.mxu0 0
  %2420 = vmatpush1.bf16.msra.mxu0 0
  %2421 = vmatprep.mubr.bf16.mxu0 0
  %2422 = vmatmul.mubr.bf16.gmra.mrb[0].mxu0 %v602
  %v2423 = vpop.f32.mrb[0].mxu0
  %v2424 = vadd.f32 %v886, %v2423
  %v2425 = vpop.f32.mrb[0].mxu0
  %v2426 = vadd.f32 %v890, %v2425
  %v2427 = vpop.f32.mrb[0].mxu0
  %v2428 = vpop.f32.mrb[0].mxu0
  %2429 = vdwg.mxu0
  %2430 = vmatprep.subr.bf16.mxu0 %v1802
  %2431 = vmatpush1.bf16.msra.mxu0 %v1801
  %2432 = vmatprep.subr.bf16.mxu0 %v1834
  %2433 = vmatpush1.bf16.msra.mxu0 %v1833
  %2434 = vmatprep.subr.bf16.mxu0 %v1866
  %2435 = vmatpush1.bf16.msra.mxu0 %v1865
  %2436 = vmatprep.subr.bf16.mxu0 %v1898
  %2437 = vmatpush1.bf16.msra.mxu0 %v1897
  %2438 = vmatprep.subr.bf16.mxu0 %v1930
  %2439 = vmatpush1.bf16.msra.mxu0 %v1929
  %2440 = vmatprep.subr.bf16.mxu0 %v1962
  %2441 = vmatpush1.bf16.msra.mxu0 %v1961
  %2442 = vmatprep.subr.bf16.mxu0 %v1994
  %2443 = vmatpush1.bf16.msra.mxu0 %v1993
  %2444 = vmatprep.subr.bf16.mxu0 %v2026
  %2445 = vmatpush1.bf16.msra.mxu0 %v2025
  %2446 = vmatprep.subr.bf16.mxu0 0
  %2447 = vmatpush1.bf16.msra.mxu0 0
  %2448 = vmatprep.subr.bf16.mxu0 0
  %2449 = vmatpush1.bf16.msra.mxu0 0
  %2450 = vmatprep.subr.bf16.mxu0 0
  %2451 = vmatpush1.bf16.msra.mxu0 0
  %2452 = vmatprep.subr.bf16.mxu0 0
  %2453 = vmatpush1.bf16.msra.mxu0 0
  %2454 = vmatprep.subr.bf16.mxu0 0
  %2455 = vmatpush1.bf16.msra.mxu0 0
  %2456 = vmatprep.subr.bf16.mxu0 0
  %2457 = vmatpush1.bf16.msra.mxu0 0
  %2458 = vmatprep.subr.bf16.mxu0 0
  %2459 = vmatpush1.bf16.msra.mxu0 0
  %2460 = vmatprep.subr.bf16.mxu0 0
  %2461 = vmatpush1.bf16.msra.mxu0 0
  %2462 = vmatprep.mubr.bf16.mxu0 0
  %2463 = vmatmul.mubr.bf16.gmra.mrb[0].mxu0 %v602
  %v2464 = vpop.f32.mrb[0].mxu0
  %v2465 = vadd.f32 %v894, %v2464
  %v2466 = vpop.f32.mrb[0].mxu0
  %v2467 = vadd.f32 %v898, %v2466
  %v2468 = vpop.f32.mrb[0].mxu0
  %v2469 = vpop.f32.mrb[0].mxu0
  %2470 = vdwg.mxu0
  %2471 = vmatprep.subr.bf16.mxu0 %v1804
  %2472 = vmatpush1.bf16.msra.mxu0 %v1803
  %2473 = vmatprep.subr.bf16.mxu0 %v1836
  %2474 = vmatpush1.bf16.msra.mxu0 %v1835
  %2475 = vmatprep.subr.bf16.mxu0 %v1868
  %2476 = vmatpush1.bf16.msra.mxu0 %v1867
  %2477 = vmatprep.subr.bf16.mxu0 %v1900
  %2478 = vmatpush1.bf16.msra.mxu0 %v1899
  %2479 = vmatprep.subr.bf16.mxu0 %v1932
  %2480 = vmatpush1.bf16.msra.mxu0 %v1931
  %2481 = vmatprep.subr.bf16.mxu0 %v1964
  %2482 = vmatpush1.bf16.msra.mxu0 %v1963
  %2483 = vmatprep.subr.bf16.mxu0 %v1996
  %2484 = vmatpush1.bf16.msra.mxu0 %v1995
  %2485 = vmatprep.subr.bf16.mxu0 %v2028
  %2486 = vmatpush1.bf16.msra.mxu0 %v2027
  %2487 = vmatprep.subr.bf16.mxu0 0
  %2488 = vmatpush1.bf16.msra.mxu0 0
  %2489 = vmatprep.subr.bf16.mxu0 0
  %2490 = vmatpush1.bf16.msra.mxu0 0
  %2491 = vmatprep.subr.bf16.mxu0 0
  %2492 = vmatpush1.bf16.msra.mxu0 0
  %2493 = vmatprep.subr.bf16.mxu0 0
  %2494 = vmatpush1.bf16.msra.mxu0 0
  %2495 = vmatprep.subr.bf16.mxu0 0
  %2496 = vmatpush1.bf16.msra.mxu0 0
  %2497 = vmatprep.subr.bf16.mxu0 0
  %2498 = vmatpush1.bf16.msra.mxu0 0
  %2499 = vmatprep.subr.bf16.mxu0 0
  %2500 = vmatpush1.bf16.msra.mxu0 0
  %2501 = vmatprep.subr.bf16.mxu0 0
  %2502 = vmatpush1.bf16.msra.mxu0 0
  %2503 = vmatprep.mubr.bf16.mxu0 0
  %2504 = vmatmul.mubr.bf16.gmra.mrb[0].mxu0 %v602
  %v2505 = vpop.f32.mrb[0].mxu0
  %v2506 = vadd.f32 %v902, %v2505
  %v2507 = vpop.f32.mrb[0].mxu0
  %v2508 = vadd.f32 %v906, %v2507
  %v2509 = vpop.f32.mrb[0].mxu0
  %v2510 = vpop.f32.mrb[0].mxu0
  %2511 = vdwg.mxu0
  %2512 = vmatprep.subr.bf16.mxu0 %v1806
  %2513 = vmatpush1.bf16.msra.mxu0 %v1805
  %2514 = vmatprep.subr.bf16.mxu0 %v1838
  %2515 = vmatpush1.bf16.msra.mxu0 %v1837
  %2516 = vmatprep.subr.bf16.mxu0 %v1870
  %2517 = vmatpush1.bf16.msra.mxu0 %v1869
  %2518 = vmatprep.subr.bf16.mxu0 %v1902
  %2519 = vmatpush1.bf16.msra.mxu0 %v1901
  %2520 = vmatprep.subr.bf16.mxu0 %v1934
  %2521 = vmatpush1.bf16.msra.mxu0 %v1933
  %2522 = vmatprep.subr.bf16.mxu0 %v1966
  %2523 = vmatpush1.bf16.msra.mxu0 %v1965
  %2524 = vmatprep.subr.bf16.mxu0 %v1998
  %2525 = vmatpush1.bf16.msra.mxu0 %v1997
  %2526 = vmatprep.subr.bf16.mxu0 %v2030
  %2527 = vmatpush1.bf16.msra.mxu0 %v2029
  %2528 = vmatprep.subr.bf16.mxu0 0
  %2529 = vmatpush1.bf16.msra.mxu0 0
  %2530 = vmatprep.subr.bf16.mxu0 0
  %2531 = vmatpush1.bf16.msra.mxu0 0
  %2532 = vmatprep.subr.bf16.mxu0 0
  %2533 = vmatpush1.bf16.msra.mxu0 0
  %2534 = vmatprep.subr.bf16.mxu0 0
  %2535 = vmatpush1.bf16.msra.mxu0 0
  %2536 = vmatprep.subr.bf16.mxu0 0
  %2537 = vmatpush1.bf16.msra.mxu0 0
  %2538 = vmatprep.subr.bf16.mxu0 0
  %2539 = vmatpush1.bf16.msra.mxu0 0
  %2540 = vmatprep.subr.bf16.mxu0 0
  %2541 = vmatpush1.bf16.msra.mxu0 0
  %2542 = vmatprep.subr.bf16.mxu0 0
  %2543 = vmatpush1.bf16.msra.mxu0 0
  %2544 = vmatprep.mubr.bf16.mxu0 0
  %2545 = vmatmul.mubr.bf16.gmra.mrb[0].mxu0 %v602
  %v2546 = vpop.f32.mrb[0].mxu0
  %v2547 = vadd.f32 %v910, %v2546
  %v2548 = vpop.f32.mrb[0].mxu0
  %v2549 = vadd.f32 %v914, %v2548
  %v2550 = vpop.f32.mrb[0].mxu0
  %v2551 = vpop.f32.mrb[0].mxu0
  %2552 = vdwg.mxu0
  %2553 = vmatprep.subr.bf16.mxu0 %v1808
  %2554 = vmatpush1.bf16.msra.mxu0 %v1807
  %2555 = vmatprep.subr.bf16.mxu0 %v1840
  %2556 = vmatpush1.bf16.msra.mxu0 %v1839
  %2557 = vmatprep.subr.bf16.mxu0 %v1872
  %2558 = vmatpush1.bf16.msra.mxu0 %v1871
  %2559 = vmatprep.subr.bf16.mxu0 %v1904
  %2560 = vmatpush1.bf16.msra.mxu0 %v1903
  %2561 = vmatprep.subr.bf16.mxu0 %v1936
  %2562 = vmatpush1.bf16.msra.mxu0 %v1935
  %2563 = vmatprep.subr.bf16.mxu0 %v1968
  %2564 = vmatpush1.bf16.msra.mxu0 %v1967
  %2565 = vmatprep.subr.bf16.mxu0 %v2000
  %2566 = vmatpush1.bf16.msra.mxu0 %v1999
  %2567 = vmatprep.subr.bf16.mxu0 %v2032
  %2568 = vmatpush1.bf16.msra.mxu0 %v2031
  %2569 = vmatprep.subr.bf16.mxu0 0
  %2570 = vmatpush1.bf16.msra.mxu0 0
  %2571 = vmatprep.subr.bf16.mxu0 0
  %2572 = vmatpush1.bf16.msra.mxu0 0
  %2573 = vmatprep.subr.bf16.mxu0 0
  %2574 = vmatpush1.bf16.msra.mxu0 0
  %2575 = vmatprep.subr.bf16.mxu0 0
  %2576 = vmatpush1.bf16.msra.mxu0 0
  %2577 = vmatprep.subr.bf16.mxu0 0
  %2578 = vmatpush1.bf16.msra.mxu0 0
  %2579 = vmatprep.subr.bf16.mxu0 0
  %2580 = vmatpush1.bf16.msra.mxu0 0
  %2581 = vmatprep.subr.bf16.mxu0 0
  %2582 = vmatpush1.bf16.msra.mxu0 0
  %2583 = vmatprep.subr.bf16.mxu0 0
  %2584 = vmatpush1.bf16.msra.mxu0 0
  %2585 = vmatprep.mubr.bf16.mxu0 0
  %2586 = vmatmul.mubr.bf16.gmra.mrb[0].mxu0 %v602
  %v2587 = vpop.f32.mrb[0].mxu0
  %v2588 = vadd.f32 %v918, %v2587
  %v2589 = vpop.f32.mrb[0].mxu0
  %v2590 = vadd.f32 %v922, %v2589
  %v2591 = vpop.f32.mrb[0].mxu0
  %v2592 = vpop.f32.mrb[0].mxu0
  %2593 = vdwg.mxu0
  %2594 = vmatprep.subr.bf16.mxu0 %v1810
  %2595 = vmatpush1.bf16.msra.mxu0 %v1809
  %2596 = vmatprep.subr.bf16.mxu0 %v1842
  %2597 = vmatpush1.bf16.msra.mxu0 %v1841
  %2598 = vmatprep.subr.bf16.mxu0 %v1874
  %2599 = vmatpush1.bf16.msra.mxu0 %v1873
  %2600 = vmatprep.subr.bf16.mxu0 %v1906
  %2601 = vmatpush1.bf16.msra.mxu0 %v1905
  %2602 = vmatprep.subr.bf16.mxu0 %v1938
  %2603 = vmatpush1.bf16.msra.mxu0 %v1937
  %2604 = vmatprep.subr.bf16.mxu0 %v1970
  %2605 = vmatpush1.bf16.msra.mxu0 %v1969
  %2606 = vmatprep.subr.bf16.mxu0 %v2002
  %2607 = vmatpush1.bf16.msra.mxu0 %v2001
  %2608 = vmatprep.subr.bf16.mxu0 %v2034
  %2609 = vmatpush1.bf16.msra.mxu0 %v2033
  %2610 = vmatprep.subr.bf16.mxu0 0
  %2611 = vmatpush1.bf16.msra.mxu0 0
  %2612 = vmatprep.subr.bf16.mxu0 0
  %2613 = vmatpush1.bf16.msra.mxu0 0
  %2614 = vmatprep.subr.bf16.mxu0 0
  %2615 = vmatpush1.bf16.msra.mxu0 0
  %2616 = vmatprep.subr.bf16.mxu0 0
  %2617 = vmatpush1.bf16.msra.mxu0 0
  %2618 = vmatprep.subr.bf16.mxu0 0
  %2619 = vmatpush1.bf16.msra.mxu0 0
  %2620 = vmatprep.subr.bf16.mxu0 0
  %2621 = vmatpush1.bf16.msra.mxu0 0
  %2622 = vmatprep.subr.bf16.mxu0 0
  %2623 = vmatpush1.bf16.msra.mxu0 0
  %2624 = vmatprep.subr.bf16.mxu0 0
  %2625 = vmatpush1.bf16.msra.mxu0 0
  %2626 = vmatprep.mubr.bf16.mxu0 0
  %2627 = vmatmul.mubr.bf16.gmra.mrb[0].mxu0 %v602
  %v2628 = vpop.f32.mrb[0].mxu0
  %v2629 = vadd.f32 %v926, %v2628
  %v2630 = vpop.f32.mrb[0].mxu0
  %v2631 = vadd.f32 %v930, %v2630
  %v2632 = vpop.f32.mrb[0].mxu0
  %v2633 = vpop.f32.mrb[0].mxu0
  %2634 = vdwg.mxu0
  %2635 = vmatprep.subr.bf16.mxu0 %v1812
  %2636 = vmatpush1.bf16.msra.mxu0 %v1811
  %2637 = vmatprep.subr.bf16.mxu0 %v1844
  %2638 = vmatpush1.bf16.msra.mxu0 %v1843
  %2639 = vmatprep.subr.bf16.mxu0 %v1876
  %2640 = vmatpush1.bf16.msra.mxu0 %v1875
  %2641 = vmatprep.subr.bf16.mxu0 %v1908
  %2642 = vmatpush1.bf16.msra.mxu0 %v1907
  %2643 = vmatprep.subr.bf16.mxu0 %v1940
  %2644 = vmatpush1.bf16.msra.mxu0 %v1939
  %2645 = vmatprep.subr.bf16.mxu0 %v1972
  %2646 = vmatpush1.bf16.msra.mxu0 %v1971
  %2647 = vmatprep.subr.bf16.mxu0 %v2004
  %2648 = vmatpush1.bf16.msra.mxu0 %v2003
  %2649 = vmatprep.subr.bf16.mxu0 %v2036
  %2650 = vmatpush1.bf16.msra.mxu0 %v2035
  %2651 = vmatprep.subr.bf16.mxu0 0
  %2652 = vmatpush1.bf16.msra.mxu0 0
  %2653 = vmatprep.subr.bf16.mxu0 0
  %2654 = vmatpush1.bf16.msra.mxu0 0
  %2655 = vmatprep.subr.bf16.mxu0 0
  %2656 = vmatpush1.bf16.msra.mxu0 0
  %2657 = vmatprep.subr.bf16.mxu0 0
  %2658 = vmatpush1.bf16.msra.mxu0 0
  %2659 = vmatprep.subr.bf16.mxu0 0
  %2660 = vmatpush1.bf16.msra.mxu0 0
  %2661 = vmatprep.subr.bf16.mxu0 0
  %2662 = vmatpush1.bf16.msra.mxu0 0
  %2663 = vmatprep.subr.bf16.mxu0 0
  %2664 = vmatpush1.bf16.msra.mxu0 0
  %2665 = vmatprep.subr.bf16.mxu0 0
  %2666 = vmatpush1.bf16.msra.mxu0 0
  %2667 = vmatprep.mubr.bf16.mxu0 0
  %2668 = vmatmul.mubr.bf16.gmra.mrb[0].mxu0 %v602
  %v2669 = vpop.f32.mrb[0].mxu0
  %v2670 = vadd.f32 %v934, %v2669
  %v2671 = vpop.f32.mrb[0].mxu0
  %v2672 = vadd.f32 %v938, %v2671
  %v2673 = vpop.f32.mrb[0].mxu0
  %v2674 = vpop.f32.mrb[0].mxu0
  %2675 = vdwg.mxu0
  %2676 = vmatprep.subr.bf16.mxu0 %v1814
  %2677 = vmatpush1.bf16.msra.mxu0 %v1813
  %2678 = vmatprep.subr.bf16.mxu0 %v1846
  %2679 = vmatpush1.bf16.msra.mxu0 %v1845
  %2680 = vmatprep.subr.bf16.mxu0 %v1878
  %2681 = vmatpush1.bf16.msra.mxu0 %v1877
  %2682 = vmatprep.subr.bf16.mxu0 %v1910
  %2683 = vmatpush1.bf16.msra.mxu0 %v1909
  %2684 = vmatprep.subr.bf16.mxu0 %v1942
  %2685 = vmatpush1.bf16.msra.mxu0 %v1941
  %2686 = vmatprep.subr.bf16.mxu0 %v1974
  %2687 = vmatpush1.bf16.msra.mxu0 %v1973
  %2688 = vmatprep.subr.bf16.mxu0 %v2006
  %2689 = vmatpush1.bf16.msra.mxu0 %v2005
  %2690 = vmatprep.subr.bf16.mxu0 %v2038
  %2691 = vmatpush1.bf16.msra.mxu0 %v2037
  %2692 = vmatprep.subr.bf16.mxu0 0
  %2693 = vmatpush1.bf16.msra.mxu0 0
  %2694 = vmatprep.subr.bf16.mxu0 0
  %2695 = vmatpush1.bf16.msra.mxu0 0
  %2696 = vmatprep.subr.bf16.mxu0 0
  %2697 = vmatpush1.bf16.msra.mxu0 0
  %2698 = vmatprep.subr.bf16.mxu0 0
  %2699 = vmatpush1.bf16.msra.mxu0 0
  %2700 = vmatprep.subr.bf16.mxu0 0
  %2701 = vmatpush1.bf16.msra.mxu0 0
  %2702 = vmatprep.subr.bf16.mxu0 0
  %2703 = vmatpush1.bf16.msra.mxu0 0
  %2704 = vmatprep.subr.bf16.mxu0 0
  %2705 = vmatpush1.bf16.msra.mxu0 0
  %2706 = vmatprep.subr.bf16.mxu0 0
  %2707 = vmatpush1.bf16.msra.mxu0 0
  %2708 = vmatprep.mubr.bf16.mxu0 0
  %2709 = vmatmul.mubr.bf16.gmra.mrb[0].mxu0 %v602
  %v2710 = vpop.f32.mrb[0].mxu0
  %v2711 = vadd.f32 %v942, %v2710
  %v2712 = vpop.f32.mrb[0].mxu0
  %v2713 = vadd.f32 %v946, %v2712
  %v2714 = vpop.f32.mrb[0].mxu0
  %v2715 = vpop.f32.mrb[0].mxu0
  %2716 = vdwg.mxu0
  %2717 = vmatprep.subr.bf16.mxu0 %v1816
  %2718 = vmatpush1.bf16.msra.mxu0 %v1815
  %2719 = vmatprep.subr.bf16.mxu0 %v1848
  %2720 = vmatpush1.bf16.msra.mxu0 %v1847
  %2721 = vmatprep.subr.bf16.mxu0 %v1880
  %2722 = vmatpush1.bf16.msra.mxu0 %v1879
  %2723 = vmatprep.subr.bf16.mxu0 %v1912
  %2724 = vmatpush1.bf16.msra.mxu0 %v1911
  %2725 = vmatprep.subr.bf16.mxu0 %v1944
  %2726 = vmatpush1.bf16.msra.mxu0 %v1943
  %2727 = vmatprep.subr.bf16.mxu0 %v1976
  %2728 = vmatpush1.bf16.msra.mxu0 %v1975
  %2729 = vmatprep.subr.bf16.mxu0 %v2008
  %2730 = vmatpush1.bf16.msra.mxu0 %v2007
  %2731 = vmatprep.subr.bf16.mxu0 %v2040
  %2732 = vmatpush1.bf16.msra.mxu0 %v2039
  %2733 = vmatprep.subr.bf16.mxu0 0
  %2734 = vmatpush1.bf16.msra.mxu0 0
  %2735 = vmatprep.subr.bf16.mxu0 0
  %2736 = vmatpush1.bf16.msra.mxu0 0
  %2737 = vmatprep.subr.bf16.mxu0 0
  %2738 = vmatpush1.bf16.msra.mxu0 0
  %2739 = vmatprep.subr.bf16.mxu0 0
  %2740 = vmatpush1.bf16.msra.mxu0 0
  %2741 = vmatprep.subr.bf16.mxu0 0
  %2742 = vmatpush1.bf16.msra.mxu0 0
  %2743 = vmatprep.subr.bf16.mxu0 0
  %2744 = vmatpush1.bf16.msra.mxu0 0
  %2745 = vmatprep.subr.bf16.mxu0 0
  %2746 = vmatpush1.bf16.msra.mxu0 0
  %2747 = vmatprep.subr.bf16.mxu0 0
  %2748 = vmatpush1.bf16.msra.mxu0 0
  %2749 = vmatprep.mubr.bf16.mxu0 0
  %2750 = vmatmul.mubr.bf16.gmra.mrb[0].mxu0 %v602
  %v2751 = vpop.f32.mrb[0].mxu0
  %v2752 = vadd.f32 %v950, %v2751
  %v2753 = vpop.f32.mrb[0].mxu0
  %v2754 = vadd.f32 %v954, %v2753
  %v2755 = vpop.f32.mrb[0].mxu0
  %v2756 = vpop.f32.mrb[0].mxu0
  %2757 = vdwg.mxu0
  %2758 = vmatprep.subr.bf16.mxu0 %v1818
  %2759 = vmatpush1.bf16.msra.mxu0 %v1817
  %2760 = vmatprep.subr.bf16.mxu0 %v1850
  %2761 = vmatpush1.bf16.msra.mxu0 %v1849
  %2762 = vmatprep.subr.bf16.mxu0 %v1882
  %2763 = vmatpush1.bf16.msra.mxu0 %v1881
  %2764 = vmatprep.subr.bf16.mxu0 %v1914
  %2765 = vmatpush1.bf16.msra.mxu0 %v1913
  %2766 = vmatprep.subr.bf16.mxu0 %v1946
  %2767 = vmatpush1.bf16.msra.mxu0 %v1945
  %2768 = vmatprep.subr.bf16.mxu0 %v1978
  %2769 = vmatpush1.bf16.msra.mxu0 %v1977
  %2770 = vmatprep.subr.bf16.mxu0 %v2010
  %2771 = vmatpush1.bf16.msra.mxu0 %v2009
  %2772 = vmatprep.subr.bf16.mxu0 %v2042
  %2773 = vmatpush1.bf16.msra.mxu0 %v2041
  %2774 = vmatprep.subr.bf16.mxu0 0
  %2775 = vmatpush1.bf16.msra.mxu0 0
  %2776 = vmatprep.subr.bf16.mxu0 0
  %2777 = vmatpush1.bf16.msra.mxu0 0
  %2778 = vmatprep.subr.bf16.mxu0 0
  %2779 = vmatpush1.bf16.msra.mxu0 0
  %2780 = vmatprep.subr.bf16.mxu0 0
  %2781 = vmatpush1.bf16.msra.mxu0 0
  %2782 = vmatprep.subr.bf16.mxu0 0
  %2783 = vmatpush1.bf16.msra.mxu0 0
  %2784 = vmatprep.subr.bf16.mxu0 0
  %2785 = vmatpush1.bf16.msra.mxu0 0
  %2786 = vmatprep.subr.bf16.mxu0 0
  %2787 = vmatpush1.bf16.msra.mxu0 0
  %2788 = vmatprep.subr.bf16.mxu0 0
  %2789 = vmatpush1.bf16.msra.mxu0 0
  %2790 = vmatprep.mubr.bf16.mxu0 0
  %2791 = vmatmul.mubr.bf16.gmra.mrb[0].mxu0 %v602
  %v2792 = vpop.f32.mrb[0].mxu0
  %v2793 = vadd.f32 %v958, %v2792
  %v2794 = vpop.f32.mrb[0].mxu0
  %v2795 = vadd.f32 %v962, %v2794
  %v2796 = vpop.f32.mrb[0].mxu0
  %v2797 = vpop.f32.mrb[0].mxu0
  %2798 = vdwg.mxu0
  %2799 = vmatprep.subr.bf16.mxu0 %v1820
  %2800 = vmatpush1.bf16.msra.mxu0 %v1819
  %2801 = vmatprep.subr.bf16.mxu0 %v1852
  %2802 = vmatpush1.bf16.msra.mxu0 %v1851
  %2803 = vmatprep.subr.bf16.mxu0 %v1884
  %2804 = vmatpush1.bf16.msra.mxu0 %v1883
  %2805 = vmatprep.subr.bf16.mxu0 %v1916
  %2806 = vmatpush1.bf16.msra.mxu0 %v1915
  %2807 = vmatprep.subr.bf16.mxu0 %v1948
  %2808 = vmatpush1.bf16.msra.mxu0 %v1947
  %2809 = vmatprep.subr.bf16.mxu0 %v1980
  %2810 = vmatpush1.bf16.msra.mxu0 %v1979
  %2811 = vmatprep.subr.bf16.mxu0 %v2012
  %2812 = vmatpush1.bf16.msra.mxu0 %v2011
  %2813 = vmatprep.subr.bf16.mxu0 %v2044
  %2814 = vmatpush1.bf16.msra.mxu0 %v2043
  %2815 = vmatprep.subr.bf16.mxu0 0
  %2816 = vmatpush1.bf16.msra.mxu0 0
  %2817 = vmatprep.subr.bf16.mxu0 0
  %2818 = vmatpush1.bf16.msra.mxu0 0
  %2819 = vmatprep.subr.bf16.mxu0 0
  %2820 = vmatpush1.bf16.msra.mxu0 0
  %2821 = vmatprep.subr.bf16.mxu0 0
  %2822 = vmatpush1.bf16.msra.mxu0 0
  %2823 = vmatprep.subr.bf16.mxu0 0
  %2824 = vmatpush1.bf16.msra.mxu0 0
  %2825 = vmatprep.subr.bf16.mxu0 0
  %2826 = vmatpush1.bf16.msra.mxu0 0
  %2827 = vmatprep.subr.bf16.mxu0 0
  %2828 = vmatpush1.bf16.msra.mxu0 0
  %2829 = vmatprep.subr.bf16.mxu0 0
  %2830 = vmatpush1.bf16.msra.mxu0 0
  %2831 = vmatprep.mubr.bf16.mxu0 0
  %2832 = vmatmul.mubr.bf16.gmra.mrb[0].mxu0 %v602
  %v2833 = vpop.f32.mrb[0].mxu0
  %v2834 = vadd.f32 %v966, %v2833
  %v2835 = vpop.f32.mrb[0].mxu0
  %v2836 = vadd.f32 %v970, %v2835
  %v2837 = vpop.f32.mrb[0].mxu0
  %v2838 = vpop.f32.mrb[0].mxu0
  %2839 = vdwg.mxu0
  %2840 = vmatprep.subr.bf16.mxu0 %v1822
  %2841 = vmatpush1.bf16.msra.mxu0 %v1821
  %2842 = vmatprep.subr.bf16.mxu0 %v1854
  %2843 = vmatpush1.bf16.msra.mxu0 %v1853
  %2844 = vmatprep.subr.bf16.mxu0 %v1886
  %2845 = vmatpush1.bf16.msra.mxu0 %v1885
  %2846 = vmatprep.subr.bf16.mxu0 %v1918
  %2847 = vmatpush1.bf16.msra.mxu0 %v1917
  %2848 = vmatprep.subr.bf16.mxu0 %v1950
  %2849 = vmatpush1.bf16.msra.mxu0 %v1949
  %2850 = vmatprep.subr.bf16.mxu0 %v1982
  %2851 = vmatpush1.bf16.msra.mxu0 %v1981
  %2852 = vmatprep.subr.bf16.mxu0 %v2014
  %2853 = vmatpush1.bf16.msra.mxu0 %v2013
  %2854 = vmatprep.subr.bf16.mxu0 %v2046
  %2855 = vmatpush1.bf16.msra.mxu0 %v2045
  %2856 = vmatprep.subr.bf16.mxu0 0
  %2857 = vmatpush1.bf16.msra.mxu0 0
  %2858 = vmatprep.subr.bf16.mxu0 0
  %2859 = vmatpush1.bf16.msra.mxu0 0
  %2860 = vmatprep.subr.bf16.mxu0 0
  %2861 = vmatpush1.bf16.msra.mxu0 0
  %2862 = vmatprep.subr.bf16.mxu0 0
  %2863 = vmatpush1.bf16.msra.mxu0 0
  %2864 = vmatprep.subr.bf16.mxu0 0
  %2865 = vmatpush1.bf16.msra.mxu0 0
  %2866 = vmatprep.subr.bf16.mxu0 0
  %2867 = vmatpush1.bf16.msra.mxu0 0
  %2868 = vmatprep.subr.bf16.mxu0 0
  %2869 = vmatpush1.bf16.msra.mxu0 0
  %2870 = vmatprep.subr.bf16.mxu0 0
  %2871 = vmatpush1.bf16.msra.mxu0 0
  %2872 = vmatprep.mubr.bf16.mxu0 0
  %2873 = vmatmul.mubr.bf16.gmra.mrb[0].mxu0 %v602
  %v2874 = vpop.f32.mrb[0].mxu0
  %v2875 = vadd.f32 %v974, %v2874
  %v2876 = vpop.f32.mrb[0].mxu0
  %v2877 = vadd.f32 %v978, %v2876
  %v2878 = vpop.f32.mrb[0].mxu0
  %v2879 = vpop.f32.mrb[0].mxu0
  %2880 = vdwg.mxu0
  %2881 = vmatprep.subr.bf16.mxu0 %v1824
  %2882 = vmatpush1.bf16.msra.mxu0 %v1823
  %2883 = vmatprep.subr.bf16.mxu0 %v1856
  %2884 = vmatpush1.bf16.msra.mxu0 %v1855
  %2885 = vmatprep.subr.bf16.mxu0 %v1888
  %2886 = vmatpush1.bf16.msra.mxu0 %v1887
  %2887 = vmatprep.subr.bf16.mxu0 %v1920
  %2888 = vmatpush1.bf16.msra.mxu0 %v1919
  %2889 = vmatprep.subr.bf16.mxu0 %v1952
  %2890 = vmatpush1.bf16.msra.mxu0 %v1951
  %2891 = vmatprep.subr.bf16.mxu0 %v1984
  %2892 = vmatpush1.bf16.msra.mxu0 %v1983
  %2893 = vmatprep.subr.bf16.mxu0 %v2016
  %2894 = vmatpush1.bf16.msra.mxu0 %v2015
  %2895 = vmatprep.subr.bf16.mxu0 %v2048
  %2896 = vmatpush1.bf16.msra.mxu0 %v2047
  %2897 = vmatprep.subr.bf16.mxu0 0
  %2898 = vmatpush1.bf16.msra.mxu0 0
  %2899 = vmatprep.subr.bf16.mxu0 0
  %2900 = vmatpush1.bf16.msra.mxu0 0
  %2901 = vmatprep.subr.bf16.mxu0 0
  %2902 = vmatpush1.bf16.msra.mxu0 0
  %2903 = vmatprep.subr.bf16.mxu0 0
  %2904 = vmatpush1.bf16.msra.mxu0 0
  %2905 = vmatprep.subr.bf16.mxu0 0
  %2906 = vmatpush1.bf16.msra.mxu0 0
  %2907 = vmatprep.subr.bf16.mxu0 0
  %2908 = vmatpush1.bf16.msra.mxu0 0
  %2909 = vmatprep.subr.bf16.mxu0 0
  %2910 = vmatpush1.bf16.msra.mxu0 0
  %2911 = vmatprep.subr.bf16.mxu0 0
  %2912 = vmatpush1.bf16.msra.mxu0 0
  %2913 = vmatprep.mubr.bf16.mxu0 0
  %2914 = vmatmul.mubr.bf16.gmra.mrb[0].mxu0 %v602
  %v2915 = vpop.f32.mrb[0].mxu0
  %v2916 = vadd.f32 %v982, %v2915
  %v2917 = vpop.f32.mrb[0].mxu0
  %v2918 = vadd.f32 %v986, %v2917
  %v2919 = vpop.f32.mrb[0].mxu0
  %v2920 = vpop.f32.mrb[0].mxu0
  %2921 = vdwg.mxu0
  %2922 = vmatprep.subr.bf16.mxu0 %v1826
  %2923 = vmatpush1.bf16.msra.mxu0 %v1825
  %2924 = vmatprep.subr.bf16.mxu0 %v1858
  %2925 = vmatpush1.bf16.msra.mxu0 %v1857
  %2926 = vmatprep.subr.bf16.mxu0 %v1890
  %2927 = vmatpush1.bf16.msra.mxu0 %v1889
  %2928 = vmatprep.subr.bf16.mxu0 %v1922
  %2929 = vmatpush1.bf16.msra.mxu0 %v1921
  %2930 = vmatprep.subr.bf16.mxu0 %v1954
  %2931 = vmatpush1.bf16.msra.mxu0 %v1953
  %2932 = vmatprep.subr.bf16.mxu0 %v1986
  %2933 = vmatpush1.bf16.msra.mxu0 %v1985
  %2934 = vmatprep.subr.bf16.mxu0 %v2018
  %2935 = vmatpush1.bf16.msra.mxu0 %v2017
  %2936 = vmatprep.subr.bf16.mxu0 %v2050
  %2937 = vmatpush1.bf16.msra.mxu0 %v2049
  %2938 = vmatprep.subr.bf16.mxu0 0
  %2939 = vmatpush1.bf16.msra.mxu0 0
  %2940 = vmatprep.subr.bf16.mxu0 0
  %2941 = vmatpush1.bf16.msra.mxu0 0
  %2942 = vmatprep.subr.bf16.mxu0 0
  %2943 = vmatpush1.bf16.msra.mxu0 0
  %2944 = vmatprep.subr.bf16.mxu0 0
  %2945 = vmatpush1.bf16.msra.mxu0 0
  %2946 = vmatprep.subr.bf16.mxu0 0
  %2947 = vmatpush1.bf16.msra.mxu0 0
  %2948 = vmatprep.subr.bf16.mxu0 0
  %2949 = vmatpush1.bf16.msra.mxu0 0
  %2950 = vmatprep.subr.bf16.mxu0 0
  %2951 = vmatpush1.bf16.msra.mxu0 0
  %2952 = vmatprep.subr.bf16.mxu0 0
  %2953 = vmatpush1.bf16.msra.mxu0 0
  %2954 = vmatprep.mubr.bf16.mxu0 0
  %2955 = vmatmul.mubr.bf16.gmra.mrb[0].mxu0 %v602
  %v2956 = vpop.f32.mrb[0].mxu0
  %v2957 = vadd.f32 %v990, %v2956
  %v2958 = vpop.f32.mrb[0].mxu0
  %v2959 = vadd.f32 %v994, %v2958
  %v2960 = vpop.f32.mrb[0].mxu0
  %v2961 = vpop.f32.mrb[0].mxu0
  %2962 = vdwg.mxu0
  %v2995 = vcombine.low %v2342, %v2344
  %v2996 = vcombine.low %v2383, %v2385
  %v2998 = vunpack.c.l.s4 1983009808
  %v2999 = vunpack.c.0.s8 %v2998
  %v3000 = vlaneseq
  %v3001 = vshrl.u32 %v3000, 7
  %v3002 = vsub.s32 %v2999, %v3001
  %v3003 = vrot.slane %v2995, %v3002
  %v3005 = vunpack.c.l.s4 1983009808
  %v3006 = vunpack.c.0.s8 %v3005
  %v3007 = vlaneseq
  %v3008 = vshrl.u32 %v3007, 7
  %v3009 = vsub.s32 %v3006, %v3008
  %v3010 = vrot.slane %v2996, %v3009
  %v3011 = vcombine.low %v3003, %v3010
  %v3012 = vcombine.low %v2424, %v2426
  %v3013 = vcombine.low %v2465, %v2467
  %v3015 = vunpack.c.l.s4 1983009808
  %v3016 = vunpack.c.0.s8 %v3015
  %v3017 = vlaneseq
  %v3018 = vshrl.u32 %v3017, 7
  %v3019 = vsub.s32 %v3016, %v3018
  %v3020 = vrot.slane %v3012, %v3019
  %v3022 = vunpack.c.l.s4 1983009808
  %v3023 = vunpack.c.0.s8 %v3022
  %v3024 = vlaneseq
  %v3025 = vshrl.u32 %v3024, 7
  %v3026 = vsub.s32 %v3023, %v3025
  %v3027 = vrot.slane %v3013, %v3026
  %v3028 = vcombine.low %v3020, %v3027
  %v3029 = vcombine.low %v2506, %v2508
  %v3030 = vcombine.low %v2547, %v2549
  %v3032 = vunpack.c.l.s4 1983009808
  %v3033 = vunpack.c.0.s8 %v3032
  %v3034 = vlaneseq
  %v3035 = vshrl.u32 %v3034, 7
  %v3036 = vsub.s32 %v3033, %v3035
  %v3037 = vrot.slane %v3029, %v3036
  %v3039 = vunpack.c.l.s4 1983009808
  %v3040 = vunpack.c.0.s8 %v3039
  %v3041 = vlaneseq
  %v3042 = vshrl.u32 %v3041, 7
  %v3043 = vsub.s32 %v3040, %v3042
  %v3044 = vrot.slane %v3030, %v3043
  %v3045 = vcombine.low %v3037, %v3044
  %v3046 = vcombine.low %v2588, %v2590
  %v3047 = vcombine.low %v2629, %v2631
  %v3049 = vunpack.c.l.s4 1983009808
  %v3050 = vunpack.c.0.s8 %v3049
  %v3051 = vlaneseq
  %v3052 = vshrl.u32 %v3051, 7
  %v3053 = vsub.s32 %v3050, %v3052
  %v3054 = vrot.slane %v3046, %v3053
  %v3056 = vunpack.c.l.s4 1983009808
  %v3057 = vunpack.c.0.s8 %v3056
  %v3058 = vlaneseq
  %v3059 = vshrl.u32 %v3058, 7
  %v3060 = vsub.s32 %v3057, %v3059
  %v3061 = vrot.slane %v3047, %v3060
  %v3062 = vcombine.low %v3054, %v3061
  %v3063 = vcombine.low %v2670, %v2672
  %v3064 = vcombine.low %v2711, %v2713
  %v3066 = vunpack.c.l.s4 1983009808
  %v3067 = vunpack.c.0.s8 %v3066
  %v3068 = vlaneseq
  %v3069 = vshrl.u32 %v3068, 7
  %v3070 = vsub.s32 %v3067, %v3069
  %v3071 = vrot.slane %v3063, %v3070
  %v3073 = vunpack.c.l.s4 1983009808
  %v3074 = vunpack.c.0.s8 %v3073
  %v3075 = vlaneseq
  %v3076 = vshrl.u32 %v3075, 7
  %v3077 = vsub.s32 %v3074, %v3076
  %v3078 = vrot.slane %v3064, %v3077
  %v3079 = vcombine.low %v3071, %v3078
  %v3080 = vcombine.low %v2752, %v2754
  %v3081 = vcombine.low %v2793, %v2795
  %v3083 = vunpack.c.l.s4 1983009808
  %v3084 = vunpack.c.0.s8 %v3083
  %v3085 = vlaneseq
  %v3086 = vshrl.u32 %v3085, 7
  %v3087 = vsub.s32 %v3084, %v3086
  %v3088 = vrot.slane %v3080, %v3087
  %v3090 = vunpack.c.l.s4 1983009808
  %v3091 = vunpack.c.0.s8 %v3090
  %v3092 = vlaneseq
  %v3093 = vshrl.u32 %v3092, 7
  %v3094 = vsub.s32 %v3091, %v3093
  %v3095 = vrot.slane %v3081, %v3094
  %v3096 = vcombine.low %v3088, %v3095
  %v3097 = vcombine.low %v2834, %v2836
  %v3098 = vcombine.low %v2875, %v2877
  %v3100 = vunpack.c.l.s4 1983009808
  %v3101 = vunpack.c.0.s8 %v3100
  %v3102 = vlaneseq
  %v3103 = vshrl.u32 %v3102, 7
  %v3104 = vsub.s32 %v3101, %v3103
  %v3105 = vrot.slane %v3097, %v3104
  %v3107 = vunpack.c.l.s4 1983009808
  %v3108 = vunpack.c.0.s8 %v3107
  %v3109 = vlaneseq
  %v3110 = vshrl.u32 %v3109, 7
  %v3111 = vsub.s32 %v3108, %v3110
  %v3112 = vrot.slane %v3098, %v3111
  %v3113 = vcombine.low %v3105, %v3112
  %v3114 = vcombine.low %v2916, %v2918
  %v3115 = vcombine.low %v2957, %v2959
  %v3117 = vunpack.c.l.s4 1983009808
  %v3118 = vunpack.c.0.s8 %v3117
  %v3119 = vlaneseq
  %v3120 = vshrl.u32 %v3119, 7
  %v3121 = vsub.s32 %v3118, %v3120
  %v3122 = vrot.slane %v3114, %v3121
  %v3124 = vunpack.c.l.s4 1983009808
  %v3125 = vunpack.c.0.s8 %v3124
  %v3126 = vlaneseq
  %v3127 = vshrl.u32 %v3126, 7
  %v3128 = vsub.s32 %v3125, %v3127
  %v3129 = vrot.slane %v3115, %v3128
  %v3130 = vcombine.low %v3122, %v3129
  %3139 = vst [vmem:[%s9] sm:$0xff] %v3011
  %3140 = vst [vmem:[%s9 + $0x8] sm:$0xff] %v3028
  %3141 = vst [vmem:[%s9 + $0x10] sm:$0xff] %v3045
  %3142 = vst [vmem:[%s9 + $0x18] sm:$0xff] %v3062
  %3143 = vst [vmem:[%s9 + $0x20] sm:$0xff] %v3079
  %3144 = vst [vmem:[%s9 + $0x28] sm:$0xff] %v3096
  %3145 = vst [vmem:[%s9 + $0x30] sm:$0xff] %v3113
  %3146 = vst [vmem:[%s9 + $0x38] sm:$0xff] %v3130
  // Predicated region
  $region38: #{base_point_net.29} parent=0 // pred_check
    _
  $region39: #{base_point_net.29} parent=0 // pred_check_branch
    %3148 = sbr.rel (0) target = $region41
  $region40: #{base_point_net.29} parent=0 // pred_region
    _
  $region41: #{base_point_net.29} parent=0 // pred_fallthru
    _
  // Predicated region
  $region42: #{base_point_net.29} parent=0 // pred_check
    _
  $region43: #{base_point_net.29} parent=0 // pred_check_branch
    %3150 = sbr.rel (0) target = $region45
  $region44: #{base_point_net.29} parent=0 // pred_region
    _
  $region45: #{base_point_net.29} parent=0 // pred_fallthru
    _

</llo_original>
